<compile_context>
chip_gen: v5e
topology: v5e:2x2
jax: 0.10.0
libtpu: 0.0.40
codegen_flags: <defaults>
</compile_context>

<pallas_src>
import functools

import numpy as np
import jax
import jax.numpy as jnp
from jax.experimental import pallas as pl
from jax.experimental.pallas import tpu as pltpu


# ---------------------------------------------------------------------------
# Constants
# ---------------------------------------------------------------------------
GRID = 9                      # sudoku board is 9x9
PIX = GRID * GRID             # 81 pixels per board
C_PAD = 128                   # conv activations carried with 128 lane-dense channels
K_LIN = PIX * C_PAD           # 10368: Linear reduction dim, rows ordered (pixel, channel)
N_LIN = PIX * GRID            # 729:   true Linear output width
N_PAD = 768                   # 6*128: lane-dense padded Linear output width
TK = 9 * C_PAD                # 1152:  Linear K tile = 9 pixels worth of channels
P_PER_BLK = TK // C_PAD       # 9 board pixels covered per K block
M_OUT = 8                     # sublane-aligned padded batch for the Linear / output

# 3x3 taps in s = dy*3+dx order, expressed as pixel-index offsets.
_TAP_OFFSETS = tuple((dy - 1) * GRID + (dx - 1) for dy in range(3) for dx in range(3))


# ---------------------------------------------------------------------------
# Fused kernel: conv1 -> conv2 -> conv3 (once, VMEM resident) + K-tiled Linear
# ---------------------------------------------------------------------------
def _fused_kernel(x_ref, mask_ref, w1_ref, b1_ref, w2_ref, b2_ref,
                  w3_ref, b3_ref, w4_ref, b4_ref, o_ref,
                  act_ref, lin_ref, *, mp, batch):
    k = pl.program_id(0)          # Linear K block ("arbitrary", sequential)

    # -- Conv stack + activation repack: runs exactly once (k == 0) ----------
    @pl.when(k == 0)
    def _():
        # conv1: Cin == 1 -> rank-1 tap products on the VPU.
        x_col = x_ref[...]                                        # (mp, 1) f32
        acc = jnp.zeros((mp, C_PAD), jnp.float32)
        for s, off in enumerate(_TAP_OFFSETS):
            sh = (-off * batch) % mp
            t = x_col * w1_ref[:, s * C_PAD:(s + 1) * C_PAD]      # (mp, 128)
            if sh:
                t = pltpu.roll(t, shift=sh, axis=0)
            acc = acc + t * mask_ref[s]
        h = jnp.maximum(acc + b1_ref[...], 0.0)

        # conv2 / conv3: roll+mask im2col -> ONE bf16 GEMM per stage.
        def stage(act, w_ref, b_ref):
            taps = []
            for s, off in enumerate(_TAP_OFFSETS):
                sh = (-off * batch) % mp
                t = pltpu.roll(act, shift=sh, axis=0) if sh else act
                taps.append((t * mask_ref[s]).astype(jnp.bfloat16))
            patches = jnp.concatenate(taps, axis=1)               # (mp, 1152) bf16
            y = jnp.dot(patches, w_ref[...],
                        preferred_element_type=jnp.float32)
            return jnp.maximum(y + b_ref[...], 0.0)

        h = stage(h, w2_ref, b2_ref)
        h = stage(h, w3_ref, b3_ref)
        act_ref[...] = h

        # Repack (pixel, board)-major rows into an 8-row-aligned scratch so the
        # Linear hot loop only does aligned (8,128) loads / M=8 MXU pushes.
        # Padded rows (board >= batch) are zeroed; padded activation rows
        # (>= batch*81) are never read here (81*batch-1 is the max source row).
        lin_ref[...] = jnp.zeros(lin_ref.shape, lin_ref.dtype)
        for p in range(PIX):
            lin_ref[pl.ds(p * M_OUT, batch), :] = act_ref[pl.ds(p * batch, batch), :]

        # Initialise the VMEM-resident output block with the Linear bias.
        o_ref[...] = jnp.broadcast_to(b4_ref[...], o_ref.shape)

    # -- Linear: accumulate this K block (9 pixels x 128 ch) into the output --
    psum = jnp.zeros(o_ref.shape, jnp.float32)
    row0 = pl.multiple_of(k * (P_PER_BLK * M_OUT), M_OUT)
    for lp in range(P_PER_BLK):
        a = lin_ref[pl.ds(row0 + lp * M_OUT, M_OUT), :].astype(jnp.bfloat16)
        wblk = w4_ref[pl.ds(lp * C_PAD, C_PAD), :]                # (128, N_PAD) bf16
        psum = psum + jnp.dot(a, wblk, preferred_element_type=jnp.float32)
    o_ref[...] += psum


def _fused_forward(x_in, masks, w1c, b1p, w2c, b2p, w3c, b3p, w4p, b4p, *, batch):
    mp = x_in.shape[0]
    n_k = K_LIN // TK             # 9
    kernel = functools.partial(_fused_kernel, mp=mp, batch=batch)
    return pl.pallas_call(
        kernel,
        out_shape=jax.ShapeDtypeStruct((M_OUT, N_PAD), jnp.float32),
        grid_spec=pltpu.PrefetchScalarGridSpec(
            num_scalar_prefetch=0,
            grid=(n_k,),
            in_specs=[
                pl.BlockSpec((mp, 1), lambda k: (0, 0)),            # x rows (pixel, board)
                pl.BlockSpec((9, mp, 1), lambda k: (0, 0, 0)),      # per-tap border masks
                pl.BlockSpec((1, TK), lambda k: (0, 0)),            # w1 (tap, cout)
                pl.BlockSpec((1, C_PAD), lambda k: (0, 0)),         # b1
                pl.BlockSpec((TK, C_PAD), lambda k: (0, 0)),        # w2 (tap*cin, cout) bf16
                pl.BlockSpec((1, C_PAD), lambda k: (0, 0)),         # b2
                pl.BlockSpec((TK, C_PAD), lambda k: (0, 0)),        # w3 bf16
                pl.BlockSpec((1, C_PAD), lambda k: (0, 0)),         # b3
                pl.BlockSpec((TK, N_PAD), lambda k: (k, 0)),        # w4 stream (contiguous tiles)
                pl.BlockSpec((1, N_PAD), lambda k: (0, 0)),         # b4
            ],
            out_specs=pl.BlockSpec((M_OUT, N_PAD), lambda k: (0, 0)),
            scratch_shapes=[
                pltpu.VMEM((mp, C_PAD), jnp.float32),               # conv3 activation
                pltpu.VMEM((PIX * M_OUT, C_PAD), jnp.float32),      # 8-aligned Linear LHS
            ],
        ),
        compiler_params=pltpu.CompilerParams(
            dimension_semantics=("arbitrary",),
            vmem_limit_bytes=32 * 1024 * 1024,
        ),
    )(x_in, masks, w1c, b1p, w2c, b2p, w3c, b3p, w4p, b4p)


# ---------------------------------------------------------------------------
# Parameter init (PyTorch layouts / default uniform(+-1/sqrt(fan_in)))
# ---------------------------------------------------------------------------
def init_params(key):
    def u(k, shape, fan_in):
        bound = 1.0 / np.sqrt(fan_in)
        return jax.random.uniform(k, shape, jnp.float32, -bound, bound)

    ks = jax.random.split(key, 8)
    return {
        "w1": u(ks[0], (64, 1, 3, 3), 9),
        "b1": u(ks[1], (64,), 9),
        "w2": u(ks[2], (128, 64, 3, 3), 576),
        "b2": u(ks[3], (128,), 576),
        "w3": u(ks[4], (128, 128, 3, 3), 1152),
        "b3": u(ks[5], (128,), 1152),
        "w4": u(ks[6], (N_LIN, 128 * PIX), 128 * PIX),   # (out, in), in = NCHW flat
        "b4": u(ks[7], (N_LIN,), 128 * PIX),
    }


def _pack_conv(w, cin_pad, cout_pad, dtype):
    """(Cout,Cin,3,3) torch conv weight -> (9*cin_pad, cout_pad), rows = (tap s, ci)."""
    cout, cin = w.shape[0], w.shape[1]
    wt = jnp.transpose(w, (2, 3, 1, 0)).reshape(9, cin, cout)          # [s, ci, co]
    wt = jnp.pad(wt, ((0, 0), (0, cin_pad - cin), (0, cout_pad - cout)))
    return wt.reshape(9 * cin_pad, cout_pad).astype(dtype)


def _build_masks(batch, mp):
    """(9, mp, 1) 0/1 masks: mask[s, p*batch+b] = 1 iff tap s of pixel p is in
    bounds.  Padded rows (>= batch*81) stay 0, so rolled-in garbage never leaks."""
    msk = np.zeros((9, mp, 1), np.float32)
    for dy in range(3):
        for dx in range(3):
            s = dy * 3 + dx
            for h in range(GRID):
                for w in range(GRID):
                    if 0 <= h + dy - 1 < GRID and 0 <= w + dx - 1 < GRID:
                        p = h * GRID + w
                        msk[s, p * batch:(p + 1) * batch, 0] = 1.0
    return jnp.asarray(msk)


def pack_params(params, batch):
    """One-time repack (outside the jit hot path) into kernel-friendly layouts."""
    assert batch <= M_OUT, "kernel specialised for batch <= 8"
    mp = ((batch * PIX + 7) // 8) * 8
    # Linear: transpose to (in,out), permute rows NCHW-flat (c*81+p) -> (p*128+c),
    # pad N 729 -> 768, store bf16 (f32 accumulation happens in-kernel).  With the
    # K-only grid each streamed (1152, 768) tile is fully contiguous in HBM.
    w4 = jnp.transpose(params["w4"])                                   # (10368, 729)
    w4 = w4.reshape(C_PAD, PIX, N_LIN).transpose(1, 0, 2).reshape(K_LIN, N_LIN)
    w4 = jnp.pad(w4, ((0, 0), (0, N_PAD - N_LIN))).astype(jnp.bfloat16)
    return {
        "masks": _build_masks(batch, mp),
        "w1": _pack_conv(params["w1"], 1, C_PAD, jnp.float32).reshape(1, TK),
        "b1": jnp.pad(params["b1"], (0, C_PAD - 64)).reshape(1, C_PAD),
        "w2": _pack_conv(params["w2"], C_PAD, C_PAD, jnp.bfloat16),
        "b2": params["b2"].reshape(1, C_PAD),
        "w3": _pack_conv(params["w3"], C_PAD, C_PAD, jnp.bfloat16),
        "b3": params["b3"].reshape(1, C_PAD),
        "w4": w4,
        "b4": jnp.pad(params["b4"], (0, N_PAD - N_LIN)).reshape(1, N_PAD),
    }


# ---------------------------------------------------------------------------
# Forward pass
# ---------------------------------------------------------------------------
@jax.jit
def sudoku_forward(x_nchw, packed):
    b = x_nchw.shape[0]
    m = b * PIX
    mp = packed["masks"].shape[1]
    # Activation rows ordered (pixel p = h*9+w, board b); single channel in lane 0.
    x_rows = jnp.transpose(x_nchw.reshape(b, PIX)).reshape(m, 1)
    x_in = jnp.pad(x_rows, ((0, mp - m), (0, 0)))
    out = _fused_forward(
        x_in, packed["masks"],
        packed["w1"], packed["b1"], packed["w2"], packed["b2"],
        packed["w3"], packed["b3"], packed["w4"], packed["b4"],
        batch=b)
    return out[:b, :N_LIN].reshape(b, PIX, GRID)   # matches x.view(-1, 81, 9)


# ---------------------------------------------------------------------------
# Pure-JAX reference (f32) for a numerical sanity check
# ---------------------------------------------------------------------------
def _conv3x3_ref(h, w, b):
    hp = jnp.pad(h, ((0, 0), (0, 0), (1, 1), (1, 1)))
    out = jnp.zeros((h.shape[0], w.shape[0], GRID, GRID), jnp.float32)
    out = out + b[None, :, None, None]
    for dy in range(3):
        for dx in range(3):
            out = out + jnp.einsum(
                "bchw,oc->bohw",
                hp[:, :, dy:dy + GRID, dx:dx + GRID], w[:, :, dy, dx],
                precision=jax.lax.Precision.HIGHEST)
    return out


def reference_forward(x, p):
    h = jax.nn.relu(_conv3x3_ref(x, p["w1"], p["b1"]))
    h = jax.nn.relu(_conv3x3_ref(h, p["w2"], p["b2"]))
    h = jax.nn.relu(_conv3x3_ref(h, p["w3"], p["b3"]))
    flat = h.reshape(h.shape[0], -1)                        # NCHW flatten
    out = jnp.dot(flat, jnp.transpose(p["w4"]),
                  precision=jax.lax.Precision.HIGHEST) + p["b4"]
    return out.reshape(-1, PIX, GRID)


if __name__ == "__main__":
    key = jax.random.PRNGKey(0)
    k_param, k_x = jax.random.split(key)

    params = init_params(k_param)
    packed = pack_params(params, batch=2)   # one-time repack, outside the hot path

    # Sudoku-style input: batch of 2 boards, 1 channel, 9x9 grid.
    x = jax.random.uniform(k_x, (2, 1, 9, 9), jnp.float32)

    out = sudoku_forward(x, packed)
    out = jax.block_until_ready(out)

    assert out.shape == (2, 81, 9), out.shape
    assert out.dtype == jnp.float32
    assert bool(jnp.all(jnp.isfinite(out)))

    # Sanity check against the f32 reference (conv2/3 + Linear use bf16 operands
    # with f32 accumulation in-kernel).
    ref = reference_forward(x, params)
    scale = float(jnp.max(jnp.abs(ref)))
    err = float(jnp.max(jnp.abs(out - ref)))
    assert err <= 5e-2 * scale + 2e-3, f"max abs err {err} vs scale {scale}"

    print("KERNEL_OK")
</pallas_src>

<mosaic_0001>
module attributes {stable_mosaic.version = 11 : i64} {
  func.func @_fused_kernel(%arg0: i32, %arg1: memref<168x1xf32, #tpu.memory_space<vmem>>, %arg2: memref<9x168x1xf32, #tpu.memory_space<vmem>>, %arg3: memref<1x1152xf32, #tpu.memory_space<vmem>>, %arg4: memref<1x128xf32, #tpu.memory_space<vmem>>, %arg5: memref<1152x128xbf16, #tpu.memory_space<vmem>>, %arg6: memref<1x128xf32, #tpu.memory_space<vmem>>, %arg7: memref<1152x128xbf16, #tpu.memory_space<vmem>>, %arg8: memref<1x128xf32, #tpu.memory_space<vmem>>, %arg9: memref<1152x768xbf16, #tpu.memory_space<vmem>>, %arg10: memref<1x768xf32, #tpu.memory_space<vmem>>, %arg11: memref<8x768xf32, #tpu.memory_space<vmem>>, %arg12: memref<168x128xf32, #tpu.memory_space<vmem>>, %arg13: memref<648x128xf32, #tpu.memory_space<vmem>>) attributes {dimension_semantics = [#tpu.dimension_semantics<arbitrary>], iteration_bounds = array<i64: 9>, scalar_prefetch = 0 : i64, scratch_operands = 2 : i64, tpu.core_type = #tpu.core_type<tc>, window_params = [{pipeline_mode = #tpu.pipeline_mode<synchronous>, transform_indices = @transform_0, window_bounds = array<i64: 168, 1>}, {pipeline_mode = #tpu.pipeline_mode<synchronous>, transform_indices = @transform_1, window_bounds = array<i64: 9, 168, 1>}, {pipeline_mode = #tpu.pipeline_mode<synchronous>, transform_indices = @transform_2, window_bounds = array<i64: 1, 1152>}, {pipeline_mode = #tpu.pipeline_mode<synchronous>, transform_indices = @transform_3, window_bounds = array<i64: 1, 128>}, {pipeline_mode = #tpu.pipeline_mode<synchronous>, transform_indices = @transform_4, window_bounds = array<i64: 1152, 128>}, {pipeline_mode = #tpu.pipeline_mode<synchronous>, transform_indices = @transform_5, window_bounds = array<i64: 1, 128>}, {pipeline_mode = #tpu.pipeline_mode<synchronous>, transform_indices = @transform_6, window_bounds = array<i64: 1152, 128>}, {pipeline_mode = #tpu.pipeline_mode<synchronous>, transform_indices = @transform_7, window_bounds = array<i64: 1, 128>}, {transform_indices = @transform_8, window_bounds = array<i64: 1152, 768>}, {pipeline_mode = #tpu.pipeline_mode<synchronous>, transform_indices = @transform_9, window_bounds = array<i64: 1, 768>}, {pipeline_mode = #tpu.pipeline_mode<synchronous>, transform_indices = @transform_10, window_bounds = array<i64: 8, 768>}]} {
    %c0_i32 = arith.constant 0 : i32
    %0 = arith.cmpi eq, %arg0, %c0_i32 : i32
    %1 = arith.extui %0 : i1 to i32
    %c0_i32_0 = arith.constant 0 : i32
    %2 = arith.cmpi ne, %1, %c0_i32_0 : i32
    scf.if %2 {
      %c0_33 = arith.constant 0 : index
      %c0_34 = arith.constant 0 : index
      %72 = vector.load %arg1[%c0_33, %c0_34] : memref<168x1xf32, #tpu.memory_space<vmem>>, vector<168x1xf32>
      %cst_35 = arith.constant 0.000000e+00 : f32
      %73 = vector.broadcast %cst_35 : f32 to vector<168x128xf32>
      %c0_36 = arith.constant 0 : index
      %c0_37 = arith.constant 0 : index
      %74 = vector.load %arg3[%c0_36, %c0_37] : memref<1x1152xf32, #tpu.memory_space<vmem>>, vector<1x128xf32>
      %75 = vector.broadcast %72 : vector<168x1xf32> to vector<168x128xf32>
      %76 = vector.broadcast %74 : vector<1x128xf32> to vector<168x128xf32>
      %77 = arith.mulf %75, %76 : vector<168x128xf32>
      %c20_i32 = arith.constant 20 : i32
      %78 = tpu.dynamic_rotate %77 by %c20_i32 dim 0 : vector<168x128xf32>, i32 -> vector<168x128xf32>
      %c0_38 = arith.constant 0 : index
      %c0_39 = arith.constant 0 : index
      %c0_40 = arith.constant 0 : index
      %79 = vector.load %arg2[%c0_38, %c0_39, %c0_40] : memref<9x168x1xf32, #tpu.memory_space<vmem>>, vector<1x168x1xf32>
      %80 = vector.shape_cast %79 : vector<1x168x1xf32> to vector<168x1xf32>
      %81 = vector.broadcast %80 : vector<168x1xf32> to vector<168x128xf32>
      %82 = arith.mulf %78, %81 : vector<168x128xf32>
      %83 = arith.addf %73, %82 : vector<168x128xf32>
      %c0_41 = arith.constant 0 : index
      %c128_42 = arith.constant 128 : index
      %84 = vector.load %arg3[%c0_41, %c128_42] : memref<1x1152xf32, #tpu.memory_space<vmem>>, vector<1x128xf32>
      %85 = vector.broadcast %72 : vector<168x1xf32> to vector<168x128xf32>
      %86 = vector.broadcast %84 : vector<1x128xf32> to vector<168x128xf32>
      %87 = arith.mulf %85, %86 : vector<168x128xf32>
      %c18_i32 = arith.constant 18 : i32
      %88 = tpu.dynamic_rotate %87 by %c18_i32 dim 0 : vector<168x128xf32>, i32 -> vector<168x128xf32>
      %c1 = arith.constant 1 : index
      %c0_43 = arith.constant 0 : index
      %c0_44 = arith.constant 0 : index
      %89 = vector.load %arg2[%c1, %c0_43, %c0_44] : memref<9x168x1xf32, #tpu.memory_space<vmem>>, vector<1x168x1xf32>
      %90 = vector.shape_cast %89 : vector<1x168x1xf32> to vector<168x1xf32>
      %91 = vector.broadcast %90 : vector<168x1xf32> to vector<168x128xf32>
      %92 = arith.mulf %88, %91 : vector<168x128xf32>
      %93 = arith.addf %83, %92 : vector<168x128xf32>
      %c0_45 = arith.constant 0 : index
      %c256_46 = arith.constant 256 : index
      %94 = vector.load %arg3[%c0_45, %c256_46] : memref<1x1152xf32, #tpu.memory_space<vmem>>, vector<1x128xf32>
      %95 = vector.broadcast %72 : vector<168x1xf32> to vector<168x128xf32>
      %96 = vector.broadcast %94 : vector<1x128xf32> to vector<168x128xf32>
      %97 = arith.mulf %95, %96 : vector<168x128xf32>
      %c16_i32_47 = arith.constant 16 : i32
      %98 = tpu.dynamic_rotate %97 by %c16_i32_47 dim 0 : vector<168x128xf32>, i32 -> vector<168x128xf32>
      %c2 = arith.constant 2 : index
      %c0_48 = arith.constant 0 : index
      %c0_49 = arith.constant 0 : index
      %99 = vector.load %arg2[%c2, %c0_48, %c0_49] : memref<9x168x1xf32, #tpu.memory_space<vmem>>, vector<1x168x1xf32>
      %100 = vector.shape_cast %99 : vector<1x168x1xf32> to vector<168x1xf32>
      %101 = vector.broadcast %100 : vector<168x1xf32> to vector<168x128xf32>
      %102 = arith.mulf %98, %101 : vector<168x128xf32>
      %103 = arith.addf %93, %102 : vector<168x128xf32>
      %c0_50 = arith.constant 0 : index
      %c384_51 = arith.constant 384 : index
      %104 = vector.load %arg3[%c0_50, %c384_51] : memref<1x1152xf32, #tpu.memory_space<vmem>>, vector<1x128xf32>
      %105 = vector.broadcast %72 : vector<168x1xf32> to vector<168x128xf32>
      %106 = vector.broadcast %104 : vector<1x128xf32> to vector<168x128xf32>
      %107 = arith.mulf %105, %106 : vector<168x128xf32>
      %c2_i32 = arith.constant 2 : i32
      %108 = tpu.dynamic_rotate %107 by %c2_i32 dim 0 : vector<168x128xf32>, i32 -> vector<168x128xf32>
      %c3 = arith.constant 3 : index
      %c0_52 = arith.constant 0 : index
      %c0_53 = arith.constant 0 : index
      %109 = vector.load %arg2[%c3, %c0_52, %c0_53] : memref<9x168x1xf32, #tpu.memory_space<vmem>>, vector<1x168x1xf32>
      %110 = vector.shape_cast %109 : vector<1x168x1xf32> to vector<168x1xf32>
      %111 = vector.broadcast %110 : vector<168x1xf32> to vector<168x128xf32>
      %112 = arith.mulf %108, %111 : vector<168x128xf32>
      %113 = arith.addf %103, %112 : vector<168x128xf32>
      %c0_54 = arith.constant 0 : index
      %c512_55 = arith.constant 512 : index
      %114 = vector.load %arg3[%c0_54, %c512_55] : memref<1x1152xf32, #tpu.memory_space<vmem>>, vector<1x128xf32>
      %115 = vector.broadcast %72 : vector<168x1xf32> to vector<168x128xf32>
      %116 = vector.broadcast %114 : vector<1x128xf32> to vector<168x128xf32>
      %117 = arith.mulf %115, %116 : vector<168x128xf32>
      %c4 = arith.constant 4 : index
      %c0_56 = arith.constant 0 : index
      %c0_57 = arith.constant 0 : index
      %118 = vector.load %arg2[%c4, %c0_56, %c0_57] : memref<9x168x1xf32, #tpu.memory_space<vmem>>, vector<1x168x1xf32>
      %119 = vector.shape_cast %118 : vector<1x168x1xf32> to vector<168x1xf32>
      %120 = vector.broadcast %119 : vector<168x1xf32> to vector<168x128xf32>
      %121 = arith.mulf %117, %120 : vector<168x128xf32>
      %122 = arith.addf %113, %121 : vector<168x128xf32>
      %c0_58 = arith.constant 0 : index
      %c640_59 = arith.constant 640 : index
      %123 = vector.load %arg3[%c0_58, %c640_59] : memref<1x1152xf32, #tpu.memory_space<vmem>>, vector<1x128xf32>
      %124 = vector.broadcast %72 : vector<168x1xf32> to vector<168x128xf32>
      %125 = vector.broadcast %123 : vector<1x128xf32> to vector<168x128xf32>
      %126 = arith.mulf %124, %125 : vector<168x128xf32>
      %c166_i32 = arith.constant 166 : i32
      %127 = tpu.dynamic_rotate %126 by %c166_i32 dim 0 : vector<168x128xf32>, i32 -> vector<168x128xf32>
      %c5 = arith.constant 5 : index
      %c0_60 = arith.constant 0 : index
      %c0_61 = arith.constant 0 : index
      %128 = vector.load %arg2[%c5, %c0_60, %c0_61] : memref<9x168x1xf32, #tpu.memory_space<vmem>>, vector<1x168x1xf32>
      %129 = vector.shape_cast %128 : vector<1x168x1xf32> to vector<168x1xf32>
      %130 = vector.broadcast %129 : vector<168x1xf32> to vector<168x128xf32>
      %131 = arith.mulf %127, %130 : vector<168x128xf32>
      %132 = arith.addf %122, %131 : vector<168x128xf32>
      %c0_62 = arith.constant 0 : index
      %c768_63 = arith.constant 768 : index
      %133 = vector.load %arg3[%c0_62, %c768_63] : memref<1x1152xf32, #tpu.memory_space<vmem>>, vector<1x128xf32>
      %134 = vector.broadcast %72 : vector<168x1xf32> to vector<168x128xf32>
      %135 = vector.broadcast %133 : vector<1x128xf32> to vector<168x128xf32>
      %136 = arith.mulf %134, %135 : vector<168x128xf32>
      %c152_i32 = arith.constant 152 : i32
      %137 = tpu.dynamic_rotate %136 by %c152_i32 dim 0 : vector<168x128xf32>, i32 -> vector<168x128xf32>
      %c6 = arith.constant 6 : index
      %c0_64 = arith.constant 0 : index
      %c0_65 = arith.constant 0 : index
      %138 = vector.load %arg2[%c6, %c0_64, %c0_65] : memref<9x168x1xf32, #tpu.memory_space<vmem>>, vector<1x168x1xf32>
      %139 = vector.shape_cast %138 : vector<1x168x1xf32> to vector<168x1xf32>
      %140 = vector.broadcast %139 : vector<168x1xf32> to vector<168x128xf32>
      %141 = arith.mulf %137, %140 : vector<168x128xf32>
      %142 = arith.addf %132, %141 : vector<168x128xf32>
      %c0_66 = arith.constant 0 : index
      %c896_67 = arith.constant 896 : index
      %143 = vector.load %arg3[%c0_66, %c896_67] : memref<1x1152xf32, #tpu.memory_space<vmem>>, vector<1x128xf32>
      %144 = vector.broadcast %72 : vector<168x1xf32> to vector<168x128xf32>
      %145 = vector.broadcast %143 : vector<1x128xf32> to vector<168x128xf32>
      %146 = arith.mulf %144, %145 : vector<168x128xf32>
      %c150_i32 = arith.constant 150 : i32
      %147 = tpu.dynamic_rotate %146 by %c150_i32 dim 0 : vector<168x128xf32>, i32 -> vector<168x128xf32>
      %c7 = arith.constant 7 : index
      %c0_68 = arith.constant 0 : index
      %c0_69 = arith.constant 0 : index
      %148 = vector.load %arg2[%c7, %c0_68, %c0_69] : memref<9x168x1xf32, #tpu.memory_space<vmem>>, vector<1x168x1xf32>
      %149 = vector.shape_cast %148 : vector<1x168x1xf32> to vector<168x1xf32>
      %150 = vector.broadcast %149 : vector<168x1xf32> to vector<168x128xf32>
      %151 = arith.mulf %147, %150 : vector<168x128xf32>
      %152 = arith.addf %142, %151 : vector<168x128xf32>
      %c0_70 = arith.constant 0 : index
      %c1024_71 = arith.constant 1024 : index
      %153 = vector.load %arg3[%c0_70, %c1024_71] : memref<1x1152xf32, #tpu.memory_space<vmem>>, vector<1x128xf32>
      %154 = vector.broadcast %72 : vector<168x1xf32> to vector<168x128xf32>
      %155 = vector.broadcast %153 : vector<1x128xf32> to vector<168x128xf32>
      %156 = arith.mulf %154, %155 : vector<168x128xf32>
      %c148_i32 = arith.constant 148 : i32
      %157 = tpu.dynamic_rotate %156 by %c148_i32 dim 0 : vector<168x128xf32>, i32 -> vector<168x128xf32>
      %c8 = arith.constant 8 : index
      %c0_72 = arith.constant 0 : index
      %c0_73 = arith.constant 0 : index
      %158 = vector.load %arg2[%c8, %c0_72, %c0_73] : memref<9x168x1xf32, #tpu.memory_space<vmem>>, vector<1x168x1xf32>
      %159 = vector.shape_cast %158 : vector<1x168x1xf32> to vector<168x1xf32>
      %160 = vector.broadcast %159 : vector<168x1xf32> to vector<168x128xf32>
      %161 = arith.mulf %157, %160 : vector<168x128xf32>
      %162 = arith.addf %152, %161 : vector<168x128xf32>
      %c0_74 = arith.constant 0 : index
      %c0_75 = arith.constant 0 : index
      %163 = vector.load %arg4[%c0_74, %c0_75] : memref<1x128xf32, #tpu.memory_space<vmem>>, vector<1x128xf32>
      %164 = vector.broadcast %163 : vector<1x128xf32> to vector<168x128xf32>
      %165 = arith.addf %162, %164 : vector<168x128xf32>
      %cst_76 = arith.constant 0.000000e+00 : f32
      %166 = vector.broadcast %cst_76 : f32 to vector<168x128xf32>
      %167 = arith.maximumf %165, %166 : vector<168x128xf32>
      %c20_i32_77 = arith.constant 20 : i32
      %168 = tpu.dynamic_rotate %167 by %c20_i32_77 dim 0 : vector<168x128xf32>, i32 -> vector<168x128xf32>
      %c0_78 = arith.constant 0 : index
      %c0_79 = arith.constant 0 : index
      %c0_80 = arith.constant 0 : index
      %169 = vector.load %arg2[%c0_78, %c0_79, %c0_80] : memref<9x168x1xf32, #tpu.memory_space<vmem>>, vector<1x168x1xf32>
      %170 = vector.shape_cast %169 : vector<1x168x1xf32> to vector<168x1xf32>
      %171 = vector.broadcast %170 : vector<168x1xf32> to vector<168x128xf32>
      %172 = arith.mulf %168, %171 : vector<168x128xf32>
      %173 = arith.truncf %172 : vector<168x128xf32> to vector<168x128xbf16>
      %c18_i32_81 = arith.constant 18 : i32
      %174 = tpu.dynamic_rotate %167 by %c18_i32_81 dim 0 : vector<168x128xf32>, i32 -> vector<168x128xf32>
      %c1_82 = arith.constant 1 : index
      %c0_83 = arith.constant 0 : index
      %c0_84 = arith.constant 0 : index
      %175 = vector.load %arg2[%c1_82, %c0_83, %c0_84] : memref<9x168x1xf32, #tpu.memory_space<vmem>>, vector<1x168x1xf32>
      %176 = vector.shape_cast %175 : vector<1x168x1xf32> to vector<168x1xf32>
      %177 = vector.broadcast %176 : vector<168x1xf32> to vector<168x128xf32>
      %178 = arith.mulf %174, %177 : vector<168x128xf32>
      %179 = arith.truncf %178 : vector<168x128xf32> to vector<168x128xbf16>
      %c16_i32_85 = arith.constant 16 : i32
      %180 = tpu.dynamic_rotate %167 by %c16_i32_85 dim 0 : vector<168x128xf32>, i32 -> vector<168x128xf32>
      %c2_86 = arith.constant 2 : index
      %c0_87 = arith.constant 0 : index
      %c0_88 = arith.constant 0 : index
      %181 = vector.load %arg2[%c2_86, %c0_87, %c0_88] : memref<9x168x1xf32, #tpu.memory_space<vmem>>, vector<1x168x1xf32>
      %182 = vector.shape_cast %181 : vector<1x168x1xf32> to vector<168x1xf32>
      %183 = vector.broadcast %182 : vector<168x1xf32> to vector<168x128xf32>
      %184 = arith.mulf %180, %183 : vector<168x128xf32>
      %185 = arith.truncf %184 : vector<168x128xf32> to vector<168x128xbf16>
      %c2_i32_89 = arith.constant 2 : i32
      %186 = tpu.dynamic_rotate %167 by %c2_i32_89 dim 0 : vector<168x128xf32>, i32 -> vector<168x128xf32>
      %c3_90 = arith.constant 3 : index
      %c0_91 = arith.constant 0 : index
      %c0_92 = arith.constant 0 : index
      %187 = vector.load %arg2[%c3_90, %c0_91, %c0_92] : memref<9x168x1xf32, #tpu.memory_space<vmem>>, vector<1x168x1xf32>
      %188 = vector.shape_cast %187 : vector<1x168x1xf32> to vector<168x1xf32>
      %189 = vector.broadcast %188 : vector<168x1xf32> to vector<168x128xf32>
      %190 = arith.mulf %186, %189 : vector<168x128xf32>
      %191 = arith.truncf %190 : vector<168x128xf32> to vector<168x128xbf16>
      %c4_93 = arith.constant 4 : index
      %c0_94 = arith.constant 0 : index
      %c0_95 = arith.constant 0 : index
      %192 = vector.load %arg2[%c4_93, %c0_94, %c0_95] : memref<9x168x1xf32, #tpu.memory_space<vmem>>, vector<1x168x1xf32>
      %193 = vector.shape_cast %192 : vector<1x168x1xf32> to vector<168x1xf32>
      %194 = vector.broadcast %193 : vector<168x1xf32> to vector<168x128xf32>
      %195 = arith.mulf %167, %194 : vector<168x128xf32>
      %196 = arith.truncf %195 : vector<168x128xf32> to vector<168x128xbf16>
      %c166_i32_96 = arith.constant 166 : i32
      %197 = tpu.dynamic_rotate %167 by %c166_i32_96 dim 0 : vector<168x128xf32>, i32 -> vector<168x128xf32>
      %c5_97 = arith.constant 5 : index
      %c0_98 = arith.constant 0 : index
      %c0_99 = arith.constant 0 : index
      %198 = vector.load %arg2[%c5_97, %c0_98, %c0_99] : memref<9x168x1xf32, #tpu.memory_space<vmem>>, vector<1x168x1xf32>
      %199 = vector.shape_cast %198 : vector<1x168x1xf32> to vector<168x1xf32>
      %200 = vector.broadcast %199 : vector<168x1xf32> to vector<168x128xf32>
      %201 = arith.mulf %197, %200 : vector<168x128xf32>
      %202 = arith.truncf %201 : vector<168x128xf32> to vector<168x128xbf16>
      %c152_i32_100 = arith.constant 152 : i32
      %203 = tpu.dynamic_rotate %167 by %c152_i32_100 dim 0 : vector<168x128xf32>, i32 -> vector<168x128xf32>
      %c6_101 = arith.constant 6 : index
      %c0_102 = arith.constant 0 : index
      %c0_103 = arith.constant 0 : index
      %204 = vector.load %arg2[%c6_101, %c0_102, %c0_103] : memref<9x168x1xf32, #tpu.memory_space<vmem>>, vector<1x168x1xf32>
      %205 = vector.shape_cast %204 : vector<1x168x1xf32> to vector<168x1xf32>
      %206 = vector.broadcast %205 : vector<168x1xf32> to vector<168x128xf32>
      %207 = arith.mulf %203, %206 : vector<168x128xf32>
      %208 = arith.truncf %207 : vector<168x128xf32> to vector<168x128xbf16>
      %c150_i32_104 = arith.constant 150 : i32
      %209 = tpu.dynamic_rotate %167 by %c150_i32_104 dim 0 : vector<168x128xf32>, i32 -> vector<168x128xf32>
      %c7_105 = arith.constant 7 : index
      %c0_106 = arith.constant 0 : index
      %c0_107 = arith.constant 0 : index
      %210 = vector.load %arg2[%c7_105, %c0_106, %c0_107] : memref<9x168x1xf32, #tpu.memory_space<vmem>>, vector<1x168x1xf32>
      %211 = vector.shape_cast %210 : vector<1x168x1xf32> to vector<168x1xf32>
      %212 = vector.broadcast %211 : vector<168x1xf32> to vector<168x128xf32>
      %213 = arith.mulf %209, %212 : vector<168x128xf32>
      %214 = arith.truncf %213 : vector<168x128xf32> to vector<168x128xbf16>
      %c148_i32_108 = arith.constant 148 : i32
      %215 = tpu.dynamic_rotate %167 by %c148_i32_108 dim 0 : vector<168x128xf32>, i32 -> vector<168x128xf32>
      %c8_109 = arith.constant 8 : index
      %c0_110 = arith.constant 0 : index
      %c0_111 = arith.constant 0 : index
      %216 = vector.load %arg2[%c8_109, %c0_110, %c0_111] : memref<9x168x1xf32, #tpu.memory_space<vmem>>, vector<1x168x1xf32>
      %217 = vector.shape_cast %216 : vector<1x168x1xf32> to vector<168x1xf32>
      %218 = vector.broadcast %217 : vector<168x1xf32> to vector<168x128xf32>
      %219 = arith.mulf %215, %218 : vector<168x128xf32>
      %220 = arith.truncf %219 : vector<168x128xf32> to vector<168x128xbf16>
      %221 = tpu.concatenate %173, %179, %185, %191, %196, %202, %208, %214, %220 in 1 : vector<168x128xbf16>, vector<168x128xbf16>, vector<168x128xbf16>, vector<168x128xbf16>, vector<168x128xbf16>, vector<168x128xbf16>, vector<168x128xbf16>, vector<168x128xbf16>, vector<168x128xbf16> -> vector<168x1152xbf16>
      %c0_112 = arith.constant 0 : index
      %c0_113 = arith.constant 0 : index
      %222 = vector.load %arg5[%c0_112, %c0_113] : memref<1152x128xbf16, #tpu.memory_space<vmem>>, vector<1152x128xbf16>
      %cst_114 = arith.constant dense<0.000000e+00> : vector<168x128xf32>
      %223 = tpu.matmul %221, %222, %cst_114 {dimension_numbers = #tpu.dot_dimension_numbers<[1], [0], [0], [1], [0, 0, 1, 1], [], []>} : vector<168x1152xbf16>, vector<1152x128xbf16>, vector<168x128xf32> -> vector<168x128xf32>
      %c0_115 = arith.constant 0 : index
      %c0_116 = arith.constant 0 : index
      %224 = vector.load %arg6[%c0_115, %c0_116] : memref<1x128xf32, #tpu.memory_space<vmem>>, vector<1x128xf32>
      %225 = vector.broadcast %224 : vector<1x128xf32> to vector<168x128xf32>
      %226 = arith.addf %223, %225 : vector<168x128xf32>
      %cst_117 = arith.constant 0.000000e+00 : f32
      %227 = vector.broadcast %cst_117 : f32 to vector<168x128xf32>
      %228 = arith.maximumf %226, %227 : vector<168x128xf32>
      %c20_i32_118 = arith.constant 20 : i32
      %229 = tpu.dynamic_rotate %228 by %c20_i32_118 dim 0 : vector<168x128xf32>, i32 -> vector<168x128xf32>
      %c0_119 = arith.constant 0 : index
      %c0_120 = arith.constant 0 : index
      %c0_121 = arith.constant 0 : index
      %230 = vector.load %arg2[%c0_119, %c0_120, %c0_121] : memref<9x168x1xf32, #tpu.memory_space<vmem>>, vector<1x168x1xf32>
      %231 = vector.shape_cast %230 : vector<1x168x1xf32> to vector<168x1xf32>
      %232 = vector.broadcast %231 : vector<168x1xf32> to vector<168x128xf32>
      %233 = arith.mulf %229, %232 : vector<168x128xf32>
      %234 = arith.truncf %233 : vector<168x128xf32> to vector<168x128xbf16>
      %c18_i32_122 = arith.constant 18 : i32
      %235 = tpu.dynamic_rotate %228 by %c18_i32_122 dim 0 : vector<168x128xf32>, i32 -> vector<168x128xf32>
      %c1_123 = arith.constant 1 : index
      %c0_124 = arith.constant 0 : index
      %c0_125 = arith.constant 0 : index
      %236 = vector.load %arg2[%c1_123, %c0_124, %c0_125] : memref<9x168x1xf32, #tpu.memory_space<vmem>>, vector<1x168x1xf32>
      %237 = vector.shape_cast %236 : vector<1x168x1xf32> to vector<168x1xf32>
      %238 = vector.broadcast %237 : vector<168x1xf32> to vector<168x128xf32>
      %239 = arith.mulf %235, %238 : vector<168x128xf32>
      %240 = arith.truncf %239 : vector<168x128xf32> to vector<168x128xbf16>
      %c16_i32_126 = arith.constant 16 : i32
      %241 = tpu.dynamic_rotate %228 by %c16_i32_126 dim 0 : vector<168x128xf32>, i32 -> vector<168x128xf32>
      %c2_127 = arith.constant 2 : index
      %c0_128 = arith.constant 0 : index
      %c0_129 = arith.constant 0 : index
      %242 = vector.load %arg2[%c2_127, %c0_128, %c0_129] : memref<9x168x1xf32, #tpu.memory_space<vmem>>, vector<1x168x1xf32>
      %243 = vector.shape_cast %242 : vector<1x168x1xf32> to vector<168x1xf32>
      %244 = vector.broadcast %243 : vector<168x1xf32> to vector<168x128xf32>
      %245 = arith.mulf %241, %244 : vector<168x128xf32>
      %246 = arith.truncf %245 : vector<168x128xf32> to vector<168x128xbf16>
      %c2_i32_130 = arith.constant 2 : i32
      %247 = tpu.dynamic_rotate %228 by %c2_i32_130 dim 0 : vector<168x128xf32>, i32 -> vector<168x128xf32>
      %c3_131 = arith.constant 3 : index
      %c0_132 = arith.constant 0 : index
      %c0_133 = arith.constant 0 : index
      %248 = vector.load %arg2[%c3_131, %c0_132, %c0_133] : memref<9x168x1xf32, #tpu.memory_space<vmem>>, vector<1x168x1xf32>
      %249 = vector.shape_cast %248 : vector<1x168x1xf32> to vector<168x1xf32>
      %250 = vector.broadcast %249 : vector<168x1xf32> to vector<168x128xf32>
      %251 = arith.mulf %247, %250 : vector<168x128xf32>
      %252 = arith.truncf %251 : vector<168x128xf32> to vector<168x128xbf16>
      %c4_134 = arith.constant 4 : index
      %c0_135 = arith.constant 0 : index
      %c0_136 = arith.constant 0 : index
      %253 = vector.load %arg2[%c4_134, %c0_135, %c0_136] : memref<9x168x1xf32, #tpu.memory_space<vmem>>, vector<1x168x1xf32>
      %254 = vector.shape_cast %253 : vector<1x168x1xf32> to vector<168x1xf32>
      %255 = vector.broadcast %254 : vector<168x1xf32> to vector<168x128xf32>
      %256 = arith.mulf %228, %255 : vector<168x128xf32>
      %257 = arith.truncf %256 : vector<168x128xf32> to vector<168x128xbf16>
      %c166_i32_137 = arith.constant 166 : i32
      %258 = tpu.dynamic_rotate %228 by %c166_i32_137 dim 0 : vector<168x128xf32>, i32 -> vector<168x128xf32>
      %c5_138 = arith.constant 5 : index
      %c0_139 = arith.constant 0 : index
      %c0_140 = arith.constant 0 : index
      %259 = vector.load %arg2[%c5_138, %c0_139, %c0_140] : memref<9x168x1xf32, #tpu.memory_space<vmem>>, vector<1x168x1xf32>
      %260 = vector.shape_cast %259 : vector<1x168x1xf32> to vector<168x1xf32>
      %261 = vector.broadcast %260 : vector<168x1xf32> to vector<168x128xf32>
      %262 = arith.mulf %258, %261 : vector<168x128xf32>
      %263 = arith.truncf %262 : vector<168x128xf32> to vector<168x128xbf16>
      %c152_i32_141 = arith.constant 152 : i32
      %264 = tpu.dynamic_rotate %228 by %c152_i32_141 dim 0 : vector<168x128xf32>, i32 -> vector<168x128xf32>
      %c6_142 = arith.constant 6 : index
      %c0_143 = arith.constant 0 : index
      %c0_144 = arith.constant 0 : index
      %265 = vector.load %arg2[%c6_142, %c0_143, %c0_144] : memref<9x168x1xf32, #tpu.memory_space<vmem>>, vector<1x168x1xf32>
      %266 = vector.shape_cast %265 : vector<1x168x1xf32> to vector<168x1xf32>
      %267 = vector.broadcast %266 : vector<168x1xf32> to vector<168x128xf32>
      %268 = arith.mulf %264, %267 : vector<168x128xf32>
      %269 = arith.truncf %268 : vector<168x128xf32> to vector<168x128xbf16>
      %c150_i32_145 = arith.constant 150 : i32
      %270 = tpu.dynamic_rotate %228 by %c150_i32_145 dim 0 : vector<168x128xf32>, i32 -> vector<168x128xf32>
      %c7_146 = arith.constant 7 : index
      %c0_147 = arith.constant 0 : index
      %c0_148 = arith.constant 0 : index
      %271 = vector.load %arg2[%c7_146, %c0_147, %c0_148] : memref<9x168x1xf32, #tpu.memory_space<vmem>>, vector<1x168x1xf32>
      %272 = vector.shape_cast %271 : vector<1x168x1xf32> to vector<168x1xf32>
      %273 = vector.broadcast %272 : vector<168x1xf32> to vector<168x128xf32>
      %274 = arith.mulf %270, %273 : vector<168x128xf32>
      %275 = arith.truncf %274 : vector<168x128xf32> to vector<168x128xbf16>
      %c148_i32_149 = arith.constant 148 : i32
      %276 = tpu.dynamic_rotate %228 by %c148_i32_149 dim 0 : vector<168x128xf32>, i32 -> vector<168x128xf32>
      %c8_150 = arith.constant 8 : index
      %c0_151 = arith.constant 0 : index
      %c0_152 = arith.constant 0 : index
      %277 = vector.load %arg2[%c8_150, %c0_151, %c0_152] : memref<9x168x1xf32, #tpu.memory_space<vmem>>, vector<1x168x1xf32>
      %278 = vector.shape_cast %277 : vector<1x168x1xf32> to vector<168x1xf32>
      %279 = vector.broadcast %278 : vector<168x1xf32> to vector<168x128xf32>
      %280 = arith.mulf %276, %279 : vector<168x128xf32>
      %281 = arith.truncf %280 : vector<168x128xf32> to vector<168x128xbf16>
      %282 = tpu.concatenate %234, %240, %246, %252, %257, %263, %269, %275, %281 in 1 : vector<168x128xbf16>, vector<168x128xbf16>, vector<168x128xbf16>, vector<168x128xbf16>, vector<168x128xbf16>, vector<168x128xbf16>, vector<168x128xbf16>, vector<168x128xbf16>, vector<168x128xbf16> -> vector<168x1152xbf16>
      %c0_153 = arith.constant 0 : index
      %c0_154 = arith.constant 0 : index
      %283 = vector.load %arg7[%c0_153, %c0_154] : memref<1152x128xbf16, #tpu.memory_space<vmem>>, vector<1152x128xbf16>
      %cst_155 = arith.constant dense<0.000000e+00> : vector<168x128xf32>
      %284 = tpu.matmul %282, %283, %cst_155 {dimension_numbers = #tpu.dot_dimension_numbers<[1], [0], [0], [1], [0, 0, 1, 1], [], []>} : vector<168x1152xbf16>, vector<1152x128xbf16>, vector<168x128xf32> -> vector<168x128xf32>
      %c0_156 = arith.constant 0 : index
      %c0_157 = arith.constant 0 : index
      %285 = vector.load %arg8[%c0_156, %c0_157] : memref<1x128xf32, #tpu.memory_space<vmem>>, vector<1x128xf32>
      %286 = vector.broadcast %285 : vector<1x128xf32> to vector<168x128xf32>
      %287 = arith.addf %284, %286 : vector<168x128xf32>
      %cst_158 = arith.constant 0.000000e+00 : f32
      %288 = vector.broadcast %cst_158 : f32 to vector<168x128xf32>
      %289 = arith.maximumf %287, %288 : vector<168x128xf32>
      %c0_159 = arith.constant 0 : index
      %c0_160 = arith.constant 0 : index
      %290 = vector.load %arg12[%c0_159, %c0_160] : memref<168x128xf32, #tpu.memory_space<vmem>>, vector<168x128xf32>
      tpu.vector_store %arg12[%c0_159, %c0_160], %289 {strides = array<i32>} : memref<168x128xf32, #tpu.memory_space<vmem>>, vector<168x128xf32>,
      %cst_161 = arith.constant 0.000000e+00 : f32
      %291 = vector.broadcast %cst_161 : f32 to vector<648x128xf32>
      %c0_162 = arith.constant 0 : index
      %c0_163 = arith.constant 0 : index
      %292 = vector.load %arg13[%c0_162, %c0_163] : memref<648x128xf32, #tpu.memory_space<vmem>>, vector<648x128xf32>
      tpu.vector_store %arg13[%c0_162, %c0_163], %291 {strides = array<i32>} : memref<648x128xf32, #tpu.memory_space<vmem>>, vector<648x128xf32>,
      %c0_164 = arith.constant 0 : index
      %c0_165 = arith.constant 0 : index
      %293 = vector.load %arg12[%c0_164, %c0_165] : memref<168x128xf32, #tpu.memory_space<vmem>>, vector<2x128xf32>
      %c0_166 = arith.constant 0 : index
      %c0_167 = arith.constant 0 : index
      %294 = vector.load %arg13[%c0_166, %c0_167] : memref<648x128xf32, #tpu.memory_space<vmem>>, vector<2x128xf32>
      tpu.vector_store %arg13[%c0_166, %c0_167], %293 {strides = array<i32>} : memref<648x128xf32, #tpu.memory_space<vmem>>, vector<2x128xf32>,
      %c2_168 = arith.constant 2 : index
      %c0_169 = arith.constant 0 : index
      %295 = vector.load %arg12[%c2_168, %c0_169] : memref<168x128xf32, #tpu.memory_space<vmem>>, vector<2x128xf32>
      %c8_170 = arith.constant 8 : index
      %c0_171 = arith.constant 0 : index
      %296 = vector.load %arg13[%c8_170, %c0_171] : memref<648x128xf32, #tpu.memory_space<vmem>>, vector<2x128xf32>
      tpu.vector_store %arg13[%c8_170, %c0_171], %295 {strides = array<i32>} : memref<648x128xf32, #tpu.memory_space<vmem>>, vector<2x128xf32>,
      %c4_172 = arith.constant 4 : index
      %c0_173 = arith.constant 0 : index
      %297 = vector.load %arg12[%c4_172, %c0_173] : memref<168x128xf32, #tpu.memory_space<vmem>>, vector<2x128xf32>
      %c16 = arith.constant 16 : index
      %c0_174 = arith.constant 0 : index
      %298 = vector.load %arg13[%c16, %c0_174] : memref<648x128xf32, #tpu.memory_space<vmem>>, vector<2x128xf32>
      tpu.vector_store %arg13[%c16, %c0_174], %297 {strides = array<i32>} : memref<648x128xf32, #tpu.memory_space<vmem>>, vector<2x128xf32>,
      %c6_175 = arith.constant 6 : index
      %c0_176 = arith.constant 0 : index
      %299 = vector.load %arg12[%c6_175, %c0_176] : memref<168x128xf32, #tpu.memory_space<vmem>>, vector<2x128xf32>
      %c24 = arith.constant 24 : index
      %c0_177 = arith.constant 0 : index
      %300 = vector.load %arg13[%c24, %c0_177] : memref<648x128xf32, #tpu.memory_space<vmem>>, vector<2x128xf32>
      tpu.vector_store %arg13[%c24, %c0_177], %299 {strides = array<i32>} : memref<648x128xf32, #tpu.memory_space<vmem>>, vector<2x128xf32>,
      %c8_178 = arith.constant 8 : index
      %c0_179 = arith.constant 0 : index
      %301 = vector.load %arg12[%c8_178, %c0_179] : memref<168x128xf32, #tpu.memory_space<vmem>>, vector<2x128xf32>
      %c32 = arith.constant 32 : index
      %c0_180 = arith.constant 0 : index
      %302 = vector.load %arg13[%c32, %c0_180] : memref<648x128xf32, #tpu.memory_space<vmem>>, vector<2x128xf32>
      tpu.vector_store %arg13[%c32, %c0_180], %301 {strides = array<i32>} : memref<648x128xf32, #tpu.memory_space<vmem>>, vector<2x128xf32>,
      %c10 = arith.constant 10 : index
      %c0_181 = arith.constant 0 : index
      %303 = vector.load %arg12[%c10, %c0_181] : memref<168x128xf32, #tpu.memory_space<vmem>>, vector<2x128xf32>
      %c40 = arith.constant 40 : index
      %c0_182 = arith.constant 0 : index
      %304 = vector.load %arg13[%c40, %c0_182] : memref<648x128xf32, #tpu.memory_space<vmem>>, vector<2x128xf32>
      tpu.vector_store %arg13[%c40, %c0_182], %303 {strides = array<i32>} : memref<648x128xf32, #tpu.memory_space<vmem>>, vector<2x128xf32>,
      %c12 = arith.constant 12 : index
      %c0_183 = arith.constant 0 : index
      %305 = vector.load %arg12[%c12, %c0_183] : memref<168x128xf32, #tpu.memory_space<vmem>>, vector<2x128xf32>
      %c48 = arith.constant 48 : index
      %c0_184 = arith.constant 0 : index
      %306 = vector.load %arg13[%c48, %c0_184] : memref<648x128xf32, #tpu.memory_space<vmem>>, vector<2x128xf32>
      tpu.vector_store %arg13[%c48, %c0_184], %305 {strides = array<i32>} : memref<648x128xf32, #tpu.memory_space<vmem>>, vector<2x128xf32>,
      %c14 = arith.constant 14 : index
      %c0_185 = arith.constant 0 : index
      %307 = vector.load %arg12[%c14, %c0_185] : memref<168x128xf32, #tpu.memory_space<vmem>>, vector<2x128xf32>
      %c56 = arith.constant 56 : index
      %c0_186 = arith.constant 0 : index
      %308 = vector.load %arg13[%c56, %c0_186] : memref<648x128xf32, #tpu.memory_space<vmem>>, vector<2x128xf32>
      tpu.vector_store %arg13[%c56, %c0_186], %307 {strides = array<i32>} : memref<648x128xf32, #tpu.memory_space<vmem>>, vector<2x128xf32>,
      %c16_187 = arith.constant 16 : index
      %c0_188 = arith.constant 0 : index
      %309 = vector.load %arg12[%c16_187, %c0_188] : memref<168x128xf32, #tpu.memory_space<vmem>>, vector<2x128xf32>
      %c64 = arith.constant 64 : index
      %c0_189 = arith.constant 0 : index
      %310 = vector.load %arg13[%c64, %c0_189] : memref<648x128xf32, #tpu.memory_space<vmem>>, vector<2x128xf32>
      tpu.vector_store %arg13[%c64, %c0_189], %309 {strides = array<i32>} : memref<648x128xf32, #tpu.memory_space<vmem>>, vector<2x128xf32>,
      %c18 = arith.constant 18 : index
      %c0_190 = arith.constant 0 : index
      %311 = vector.load %arg12[%c18, %c0_190] : memref<168x128xf32, #tpu.memory_space<vmem>>, vector<2x128xf32>
      %c72 = arith.constant 72 : index
      %c0_191 = arith.constant 0 : index
      %312 = vector.load %arg13[%c72, %c0_191] : memref<648x128xf32, #tpu.memory_space<vmem>>, vector<2x128xf32>
      tpu.vector_store %arg13[%c72, %c0_191], %311 {strides = array<i32>} : memref<648x128xf32, #tpu.memory_space<vmem>>, vector<2x128xf32>,
      %c20 = arith.constant 20 : index
      %c0_192 = arith.constant 0 : index
      %313 = vector.load %arg12[%c20, %c0_192] : memref<168x128xf32, #tpu.memory_space<vmem>>, vector<2x128xf32>
      %c80 = arith.constant 80 : index
      %c0_193 = arith.constant 0 : index
      %314 = vector.load %arg13[%c80, %c0_193] : memref<648x128xf32, #tpu.memory_space<vmem>>, vector<2x128xf32>
      tpu.vector_store %arg13[%c80, %c0_193], %313 {strides = array<i32>} : memref<648x128xf32, #tpu.memory_space<vmem>>, vector<2x128xf32>,
      %c22 = arith.constant 22 : index
      %c0_194 = arith.constant 0 : index
      %315 = vector.load %arg12[%c22, %c0_194] : memref<168x128xf32, #tpu.memory_space<vmem>>, vector<2x128xf32>
      %c88 = arith.constant 88 : index
      %c0_195 = arith.constant 0 : index
      %316 = vector.load %arg13[%c88, %c0_195] : memref<648x128xf32, #tpu.memory_space<vmem>>, vector<2x128xf32>
      tpu.vector_store %arg13[%c88, %c0_195], %315 {strides = array<i32>} : memref<648x128xf32, #tpu.memory_space<vmem>>, vector<2x128xf32>,
      %c24_196 = arith.constant 24 : index
      %c0_197 = arith.constant 0 : index
      %317 = vector.load %arg12[%c24_196, %c0_197] : memref<168x128xf32, #tpu.memory_space<vmem>>, vector<2x128xf32>
      %c96 = arith.constant 96 : index
      %c0_198 = arith.constant 0 : index
      %318 = vector.load %arg13[%c96, %c0_198] : memref<648x128xf32, #tpu.memory_space<vmem>>, vector<2x128xf32>
      tpu.vector_store %arg13[%c96, %c0_198], %317 {strides = array<i32>} : memref<648x128xf32, #tpu.memory_space<vmem>>, vector<2x128xf32>,
      %c26 = arith.constant 26 : index
      %c0_199 = arith.constant 0 : index
      %319 = vector.load %arg12[%c26, %c0_199] : memref<168x128xf32, #tpu.memory_space<vmem>>, vector<2x128xf32>
      %c104 = arith.constant 104 : index
      %c0_200 = arith.constant 0 : index
      %320 = vector.load %arg13[%c104, %c0_200] : memref<648x128xf32, #tpu.memory_space<vmem>>, vector<2x128xf32>
      tpu.vector_store %arg13[%c104, %c0_200], %319 {strides = array<i32>} : memref<648x128xf32, #tpu.memory_space<vmem>>, vector<2x128xf32>,
      %c28 = arith.constant 28 : index
      %c0_201 = arith.constant 0 : index
      %321 = vector.load %arg12[%c28, %c0_201] : memref<168x128xf32, #tpu.memory_space<vmem>>, vector<2x128xf32>
      %c112 = arith.constant 112 : index
      %c0_202 = arith.constant 0 : index
      %322 = vector.load %arg13[%c112, %c0_202] : memref<648x128xf32, #tpu.memory_space<vmem>>, vector<2x128xf32>
      tpu.vector_store %arg13[%c112, %c0_202], %321 {strides = array<i32>} : memref<648x128xf32, #tpu.memory_space<vmem>>, vector<2x128xf32>,
      %c30 = arith.constant 30 : index
      %c0_203 = arith.constant 0 : index
      %323 = vector.load %arg12[%c30, %c0_203] : memref<168x128xf32, #tpu.memory_space<vmem>>, vector<2x128xf32>
      %c120 = arith.constant 120 : index
      %c0_204 = arith.constant 0 : index
      %324 = vector.load %arg13[%c120, %c0_204] : memref<648x128xf32, #tpu.memory_space<vmem>>, vector<2x128xf32>
      tpu.vector_store %arg13[%c120, %c0_204], %323 {strides = array<i32>} : memref<648x128xf32, #tpu.memory_space<vmem>>, vector<2x128xf32>,
      %c32_205 = arith.constant 32 : index
      %c0_206 = arith.constant 0 : index
      %325 = vector.load %arg12[%c32_205, %c0_206] : memref<168x128xf32, #tpu.memory_space<vmem>>, vector<2x128xf32>
      %c128_207 = arith.constant 128 : index
      %c0_208 = arith.constant 0 : index
      %326 = vector.load %arg13[%c128_207, %c0_208] : memref<648x128xf32, #tpu.memory_space<vmem>>, vector<2x128xf32>
      tpu.vector_store %arg13[%c128_207, %c0_208], %325 {strides = array<i32>} : memref<648x128xf32, #tpu.memory_space<vmem>>, vector<2x128xf32>,
      %c34 = arith.constant 34 : index
      %c0_209 = arith.constant 0 : index
      %327 = vector.load %arg12[%c34, %c0_209] : memref<168x128xf32, #tpu.memory_space<vmem>>, vector<2x128xf32>
      %c136 = arith.constant 136 : index
      %c0_210 = arith.constant 0 : index
      %328 = vector.load %arg13[%c136, %c0_210] : memref<648x128xf32, #tpu.memory_space<vmem>>, vector<2x128xf32>
      tpu.vector_store %arg13[%c136, %c0_210], %327 {strides = array<i32>} : memref<648x128xf32, #tpu.memory_space<vmem>>, vector<2x128xf32>,
      %c36 = arith.constant 36 : index
      %c0_211 = arith.constant 0 : index
      %329 = vector.load %arg12[%c36, %c0_211] : memref<168x128xf32, #tpu.memory_space<vmem>>, vector<2x128xf32>
      %c144 = arith.constant 144 : index
      %c0_212 = arith.constant 0 : index
      %330 = vector.load %arg13[%c144, %c0_212] : memref<648x128xf32, #tpu.memory_space<vmem>>, vector<2x128xf32>
      tpu.vector_store %arg13[%c144, %c0_212], %329 {strides = array<i32>} : memref<648x128xf32, #tpu.memory_space<vmem>>, vector<2x128xf32>,
      %c38 = arith.constant 38 : index
      %c0_213 = arith.constant 0 : index
      %331 = vector.load %arg12[%c38, %c0_213] : memref<168x128xf32, #tpu.memory_space<vmem>>, vector<2x128xf32>
      %c152 = arith.constant 152 : index
      %c0_214 = arith.constant 0 : index
      %332 = vector.load %arg13[%c152, %c0_214] : memref<648x128xf32, #tpu.memory_space<vmem>>, vector<2x128xf32>
      tpu.vector_store %arg13[%c152, %c0_214], %331 {strides = array<i32>} : memref<648x128xf32, #tpu.memory_space<vmem>>, vector<2x128xf32>,
      %c40_215 = arith.constant 40 : index
      %c0_216 = arith.constant 0 : index
      %333 = vector.load %arg12[%c40_215, %c0_216] : memref<168x128xf32, #tpu.memory_space<vmem>>, vector<2x128xf32>
      %c160 = arith.constant 160 : index
      %c0_217 = arith.constant 0 : index
      %334 = vector.load %arg13[%c160, %c0_217] : memref<648x128xf32, #tpu.memory_space<vmem>>, vector<2x128xf32>
      tpu.vector_store %arg13[%c160, %c0_217], %333 {strides = array<i32>} : memref<648x128xf32, #tpu.memory_space<vmem>>, vector<2x128xf32>,
      %c42 = arith.constant 42 : index
      %c0_218 = arith.constant 0 : index
      %335 = vector.load %arg12[%c42, %c0_218] : memref<168x128xf32, #tpu.memory_space<vmem>>, vector<2x128xf32>
      %c168 = arith.constant 168 : index
      %c0_219 = arith.constant 0 : index
      %336 = vector.load %arg13[%c168, %c0_219] : memref<648x128xf32, #tpu.memory_space<vmem>>, vector<2x128xf32>
      tpu.vector_store %arg13[%c168, %c0_219], %335 {strides = array<i32>} : memref<648x128xf32, #tpu.memory_space<vmem>>, vector<2x128xf32>,
      %c44 = arith.constant 44 : index
      %c0_220 = arith.constant 0 : index
      %337 = vector.load %arg12[%c44, %c0_220] : memref<168x128xf32, #tpu.memory_space<vmem>>, vector<2x128xf32>
      %c176 = arith.constant 176 : index
      %c0_221 = arith.constant 0 : index
      %338 = vector.load %arg13[%c176, %c0_221] : memref<648x128xf32, #tpu.memory_space<vmem>>, vector<2x128xf32>
      tpu.vector_store %arg13[%c176, %c0_221], %337 {strides = array<i32>} : memref<648x128xf32, #tpu.memory_space<vmem>>, vector<2x128xf32>,
      %c46 = arith.constant 46 : index
      %c0_222 = arith.constant 0 : index
      %339 = vector.load %arg12[%c46, %c0_222] : memref<168x128xf32, #tpu.memory_space<vmem>>, vector<2x128xf32>
      %c184 = arith.constant 184 : index
      %c0_223 = arith.constant 0 : index
      %340 = vector.load %arg13[%c184, %c0_223] : memref<648x128xf32, #tpu.memory_space<vmem>>, vector<2x128xf32>
      tpu.vector_store %arg13[%c184, %c0_223], %339 {strides = array<i32>} : memref<648x128xf32, #tpu.memory_space<vmem>>, vector<2x128xf32>,
      %c48_224 = arith.constant 48 : index
      %c0_225 = arith.constant 0 : index
      %341 = vector.load %arg12[%c48_224, %c0_225] : memref<168x128xf32, #tpu.memory_space<vmem>>, vector<2x128xf32>
      %c192 = arith.constant 192 : index
      %c0_226 = arith.constant 0 : index
      %342 = vector.load %arg13[%c192, %c0_226] : memref<648x128xf32, #tpu.memory_space<vmem>>, vector<2x128xf32>
      tpu.vector_store %arg13[%c192, %c0_226], %341 {strides = array<i32>} : memref<648x128xf32, #tpu.memory_space<vmem>>, vector<2x128xf32>,
      %c50 = arith.constant 50 : index
      %c0_227 = arith.constant 0 : index
      %343 = vector.load %arg12[%c50, %c0_227] : memref<168x128xf32, #tpu.memory_space<vmem>>, vector<2x128xf32>
      %c200 = arith.constant 200 : index
      %c0_228 = arith.constant 0 : index
      %344 = vector.load %arg13[%c200, %c0_228] : memref<648x128xf32, #tpu.memory_space<vmem>>, vector<2x128xf32>
      tpu.vector_store %arg13[%c200, %c0_228], %343 {strides = array<i32>} : memref<648x128xf32, #tpu.memory_space<vmem>>, vector<2x128xf32>,
      %c52 = arith.constant 52 : index
      %c0_229 = arith.constant 0 : index
      %345 = vector.load %arg12[%c52, %c0_229] : memref<168x128xf32, #tpu.memory_space<vmem>>, vector<2x128xf32>
      %c208 = arith.constant 208 : index
      %c0_230 = arith.constant 0 : index
      %346 = vector.load %arg13[%c208, %c0_230] : memref<648x128xf32, #tpu.memory_space<vmem>>, vector<2x128xf32>
      tpu.vector_store %arg13[%c208, %c0_230], %345 {strides = array<i32>} : memref<648x128xf32, #tpu.memory_space<vmem>>, vector<2x128xf32>,
      %c54 = arith.constant 54 : index
      %c0_231 = arith.constant 0 : index
      %347 = vector.load %arg12[%c54, %c0_231] : memref<168x128xf32, #tpu.memory_space<vmem>>, vector<2x128xf32>
      %c216 = arith.constant 216 : index
      %c0_232 = arith.constant 0 : index
      %348 = vector.load %arg13[%c216, %c0_232] : memref<648x128xf32, #tpu.memory_space<vmem>>, vector<2x128xf32>
      tpu.vector_store %arg13[%c216, %c0_232], %347 {strides = array<i32>} : memref<648x128xf32, #tpu.memory_space<vmem>>, vector<2x128xf32>,
      %c56_233 = arith.constant 56 : index
      %c0_234 = arith.constant 0 : index
      %349 = vector.load %arg12[%c56_233, %c0_234] : memref<168x128xf32, #tpu.memory_space<vmem>>, vector<2x128xf32>
      %c224 = arith.constant 224 : index
      %c0_235 = arith.constant 0 : index
      %350 = vector.load %arg13[%c224, %c0_235] : memref<648x128xf32, #tpu.memory_space<vmem>>, vector<2x128xf32>
      tpu.vector_store %arg13[%c224, %c0_235], %349 {strides = array<i32>} : memref<648x128xf32, #tpu.memory_space<vmem>>, vector<2x128xf32>,
      %c58 = arith.constant 58 : index
      %c0_236 = arith.constant 0 : index
      %351 = vector.load %arg12[%c58, %c0_236] : memref<168x128xf32, #tpu.memory_space<vmem>>, vector<2x128xf32>
      %c232 = arith.constant 232 : index
      %c0_237 = arith.constant 0 : index
      %352 = vector.load %arg13[%c232, %c0_237] : memref<648x128xf32, #tpu.memory_space<vmem>>, vector<2x128xf32>
      tpu.vector_store %arg13[%c232, %c0_237], %351 {strides = array<i32>} : memref<648x128xf32, #tpu.memory_space<vmem>>, vector<2x128xf32>,
      %c60 = arith.constant 60 : index
      %c0_238 = arith.constant 0 : index
      %353 = vector.load %arg12[%c60, %c0_238] : memref<168x128xf32, #tpu.memory_space<vmem>>, vector<2x128xf32>
      %c240 = arith.constant 240 : index
      %c0_239 = arith.constant 0 : index
      %354 = vector.load %arg13[%c240, %c0_239] : memref<648x128xf32, #tpu.memory_space<vmem>>, vector<2x128xf32>
      tpu.vector_store %arg13[%c240, %c0_239], %353 {strides = array<i32>} : memref<648x128xf32, #tpu.memory_space<vmem>>, vector<2x128xf32>,
      %c62 = arith.constant 62 : index
      %c0_240 = arith.constant 0 : index
      %355 = vector.load %arg12[%c62, %c0_240] : memref<168x128xf32, #tpu.memory_space<vmem>>, vector<2x128xf32>
      %c248 = arith.constant 248 : index
      %c0_241 = arith.constant 0 : index
      %356 = vector.load %arg13[%c248, %c0_241] : memref<648x128xf32, #tpu.memory_space<vmem>>, vector<2x128xf32>
      tpu.vector_store %arg13[%c248, %c0_241], %355 {strides = array<i32>} : memref<648x128xf32, #tpu.memory_space<vmem>>, vector<2x128xf32>,
      %c64_242 = arith.constant 64 : index
      %c0_243 = arith.constant 0 : index
      %357 = vector.load %arg12[%c64_242, %c0_243] : memref<168x128xf32, #tpu.memory_space<vmem>>, vector<2x128xf32>
      %c256_244 = arith.constant 256 : index
      %c0_245 = arith.constant 0 : index
      %358 = vector.load %arg13[%c256_244, %c0_245] : memref<648x128xf32, #tpu.memory_space<vmem>>, vector<2x128xf32>
      tpu.vector_store %arg13[%c256_244, %c0_245], %357 {strides = array<i32>} : memref<648x128xf32, #tpu.memory_space<vmem>>, vector<2x128xf32>,
      %c66 = arith.constant 66 : index
      %c0_246 = arith.constant 0 : index
      %359 = vector.load %arg12[%c66, %c0_246] : memref<168x128xf32, #tpu.memory_space<vmem>>, vector<2x128xf32>
      %c264 = arith.constant 264 : index
      %c0_247 = arith.constant 0 : index
      %360 = vector.load %arg13[%c264, %c0_247] : memref<648x128xf32, #tpu.memory_space<vmem>>, vector<2x128xf32>
      tpu.vector_store %arg13[%c264, %c0_247], %359 {strides = array<i32>} : memref<648x128xf32, #tpu.memory_space<vmem>>, vector<2x128xf32>,
      %c68 = arith.constant 68 : index
      %c0_248 = arith.constant 0 : index
      %361 = vector.load %arg12[%c68, %c0_248] : memref<168x128xf32, #tpu.memory_space<vmem>>, vector<2x128xf32>
      %c272 = arith.constant 272 : index
      %c0_249 = arith.constant 0 : index
      %362 = vector.load %arg13[%c272, %c0_249] : memref<648x128xf32, #tpu.memory_space<vmem>>, vector<2x128xf32>
      tpu.vector_store %arg13[%c272, %c0_249], %361 {strides = array<i32>} : memref<648x128xf32, #tpu.memory_space<vmem>>, vector<2x128xf32>,
      %c70 = arith.constant 70 : index
      %c0_250 = arith.constant 0 : index
      %363 = vector.load %arg12[%c70, %c0_250] : memref<168x128xf32, #tpu.memory_space<vmem>>, vector<2x128xf32>
      %c280 = arith.constant 280 : index
      %c0_251 = arith.constant 0 : index
      %364 = vector.load %arg13[%c280, %c0_251] : memref<648x128xf32, #tpu.memory_space<vmem>>, vector<2x128xf32>
      tpu.vector_store %arg13[%c280, %c0_251], %363 {strides = array<i32>} : memref<648x128xf32, #tpu.memory_space<vmem>>, vector<2x128xf32>,
      %c72_252 = arith.constant 72 : index
      %c0_253 = arith.constant 0 : index
      %365 = vector.load %arg12[%c72_252, %c0_253] : memref<168x128xf32, #tpu.memory_space<vmem>>, vector<2x128xf32>
      %c288 = arith.constant 288 : index
      %c0_254 = arith.constant 0 : index
      %366 = vector.load %arg13[%c288, %c0_254] : memref<648x128xf32, #tpu.memory_space<vmem>>, vector<2x128xf32>
      tpu.vector_store %arg13[%c288, %c0_254], %365 {strides = array<i32>} : memref<648x128xf32, #tpu.memory_space<vmem>>, vector<2x128xf32>,
      %c74 = arith.constant 74 : index
      %c0_255 = arith.constant 0 : index
      %367 = vector.load %arg12[%c74, %c0_255] : memref<168x128xf32, #tpu.memory_space<vmem>>, vector<2x128xf32>
      %c296 = arith.constant 296 : index
      %c0_256 = arith.constant 0 : index
      %368 = vector.load %arg13[%c296, %c0_256] : memref<648x128xf32, #tpu.memory_space<vmem>>, vector<2x128xf32>
      tpu.vector_store %arg13[%c296, %c0_256], %367 {strides = array<i32>} : memref<648x128xf32, #tpu.memory_space<vmem>>, vector<2x128xf32>,
      %c76 = arith.constant 76 : index
      %c0_257 = arith.constant 0 : index
      %369 = vector.load %arg12[%c76, %c0_257] : memref<168x128xf32, #tpu.memory_space<vmem>>, vector<2x128xf32>
      %c304 = arith.constant 304 : index
      %c0_258 = arith.constant 0 : index
      %370 = vector.load %arg13[%c304, %c0_258] : memref<648x128xf32, #tpu.memory_space<vmem>>, vector<2x128xf32>
      tpu.vector_store %arg13[%c304, %c0_258], %369 {strides = array<i32>} : memref<648x128xf32, #tpu.memory_space<vmem>>, vector<2x128xf32>,
      %c78 = arith.constant 78 : index
      %c0_259 = arith.constant 0 : index
      %371 = vector.load %arg12[%c78, %c0_259] : memref<168x128xf32, #tpu.memory_space<vmem>>, vector<2x128xf32>
      %c312 = arith.constant 312 : index
      %c0_260 = arith.constant 0 : index
      %372 = vector.load %arg13[%c312, %c0_260] : memref<648x128xf32, #tpu.memory_space<vmem>>, vector<2x128xf32>
      tpu.vector_store %arg13[%c312, %c0_260], %371 {strides = array<i32>} : memref<648x128xf32, #tpu.memory_space<vmem>>, vector<2x128xf32>,
      %c80_261 = arith.constant 80 : index
      %c0_262 = arith.constant 0 : index
      %373 = vector.load %arg12[%c80_261, %c0_262] : memref<168x128xf32, #tpu.memory_space<vmem>>, vector<2x128xf32>
      %c320 = arith.constant 320 : index
      %c0_263 = arith.constant 0 : index
      %374 = vector.load %arg13[%c320, %c0_263] : memref<648x128xf32, #tpu.memory_space<vmem>>, vector<2x128xf32>
      tpu.vector_store %arg13[%c320, %c0_263], %373 {strides = array<i32>} : memref<648x128xf32, #tpu.memory_space<vmem>>, vector<2x128xf32>,
      %c82 = arith.constant 82 : index
      %c0_264 = arith.constant 0 : index
      %375 = vector.load %arg12[%c82, %c0_264] : memref<168x128xf32, #tpu.memory_space<vmem>>, vector<2x128xf32>
      %c328 = arith.constant 328 : index
      %c0_265 = arith.constant 0 : index
      %376 = vector.load %arg13[%c328, %c0_265] : memref<648x128xf32, #tpu.memory_space<vmem>>, vector<2x128xf32>
      tpu.vector_store %arg13[%c328, %c0_265], %375 {strides = array<i32>} : memref<648x128xf32, #tpu.memory_space<vmem>>, vector<2x128xf32>,
      %c84 = arith.constant 84 : index
      %c0_266 = arith.constant 0 : index
      %377 = vector.load %arg12[%c84, %c0_266] : memref<168x128xf32, #tpu.memory_space<vmem>>, vector<2x128xf32>
      %c336 = arith.constant 336 : index
      %c0_267 = arith.constant 0 : index
      %378 = vector.load %arg13[%c336, %c0_267] : memref<648x128xf32, #tpu.memory_space<vmem>>, vector<2x128xf32>
      tpu.vector_store %arg13[%c336, %c0_267], %377 {strides = array<i32>} : memref<648x128xf32, #tpu.memory_space<vmem>>, vector<2x128xf32>,
      %c86 = arith.constant 86 : index
      %c0_268 = arith.constant 0 : index
      %379 = vector.load %arg12[%c86, %c0_268] : memref<168x128xf32, #tpu.memory_space<vmem>>, vector<2x128xf32>
      %c344 = arith.constant 344 : index
      %c0_269 = arith.constant 0 : index
      %380 = vector.load %arg13[%c344, %c0_269] : memref<648x128xf32, #tpu.memory_space<vmem>>, vector<2x128xf32>
      tpu.vector_store %arg13[%c344, %c0_269], %379 {strides = array<i32>} : memref<648x128xf32, #tpu.memory_space<vmem>>, vector<2x128xf32>,
      %c88_270 = arith.constant 88 : index
      %c0_271 = arith.constant 0 : index
      %381 = vector.load %arg12[%c88_270, %c0_271] : memref<168x128xf32, #tpu.memory_space<vmem>>, vector<2x128xf32>
      %c352 = arith.constant 352 : index
      %c0_272 = arith.constant 0 : index
      %382 = vector.load %arg13[%c352, %c0_272] : memref<648x128xf32, #tpu.memory_space<vmem>>, vector<2x128xf32>
      tpu.vector_store %arg13[%c352, %c0_272], %381 {strides = array<i32>} : memref<648x128xf32, #tpu.memory_space<vmem>>, vector<2x128xf32>,
      %c90 = arith.constant 90 : index
      %c0_273 = arith.constant 0 : index
      %383 = vector.load %arg12[%c90, %c0_273] : memref<168x128xf32, #tpu.memory_space<vmem>>, vector<2x128xf32>
      %c360 = arith.constant 360 : index
      %c0_274 = arith.constant 0 : index
      %384 = vector.load %arg13[%c360, %c0_274] : memref<648x128xf32, #tpu.memory_space<vmem>>, vector<2x128xf32>
      tpu.vector_store %arg13[%c360, %c0_274], %383 {strides = array<i32>} : memref<648x128xf32, #tpu.memory_space<vmem>>, vector<2x128xf32>,
      %c92 = arith.constant 92 : index
      %c0_275 = arith.constant 0 : index
      %385 = vector.load %arg12[%c92, %c0_275] : memref<168x128xf32, #tpu.memory_space<vmem>>, vector<2x128xf32>
      %c368 = arith.constant 368 : index
      %c0_276 = arith.constant 0 : index
      %386 = vector.load %arg13[%c368, %c0_276] : memref<648x128xf32, #tpu.memory_space<vmem>>, vector<2x128xf32>
      tpu.vector_store %arg13[%c368, %c0_276], %385 {strides = array<i32>} : memref<648x128xf32, #tpu.memory_space<vmem>>, vector<2x128xf32>,
      %c94 = arith.constant 94 : index
      %c0_277 = arith.constant 0 : index
      %387 = vector.load %arg12[%c94, %c0_277] : memref<168x128xf32, #tpu.memory_space<vmem>>, vector<2x128xf32>
      %c376 = arith.constant 376 : index
      %c0_278 = arith.constant 0 : index
      %388 = vector.load %arg13[%c376, %c0_278] : memref<648x128xf32, #tpu.memory_space<vmem>>, vector<2x128xf32>
      tpu.vector_store %arg13[%c376, %c0_278], %387 {strides = array<i32>} : memref<648x128xf32, #tpu.memory_space<vmem>>, vector<2x128xf32>,
      %c96_279 = arith.constant 96 : index
      %c0_280 = arith.constant 0 : index
      %389 = vector.load %arg12[%c96_279, %c0_280] : memref<168x128xf32, #tpu.memory_space<vmem>>, vector<2x128xf32>
      %c384_281 = arith.constant 384 : index
      %c0_282 = arith.constant 0 : index
      %390 = vector.load %arg13[%c384_281, %c0_282] : memref<648x128xf32, #tpu.memory_space<vmem>>, vector<2x128xf32>
      tpu.vector_store %arg13[%c384_281, %c0_282], %389 {strides = array<i32>} : memref<648x128xf32, #tpu.memory_space<vmem>>, vector<2x128xf32>,
      %c98 = arith.constant 98 : index
      %c0_283 = arith.constant 0 : index
      %391 = vector.load %arg12[%c98, %c0_283] : memref<168x128xf32, #tpu.memory_space<vmem>>, vector<2x128xf32>
      %c392 = arith.constant 392 : index
      %c0_284 = arith.constant 0 : index
      %392 = vector.load %arg13[%c392, %c0_284] : memref<648x128xf32, #tpu.memory_space<vmem>>, vector<2x128xf32>
      tpu.vector_store %arg13[%c392, %c0_284], %391 {strides = array<i32>} : memref<648x128xf32, #tpu.memory_space<vmem>>, vector<2x128xf32>,
      %c100 = arith.constant 100 : index
      %c0_285 = arith.constant 0 : index
      %393 = vector.load %arg12[%c100, %c0_285] : memref<168x128xf32, #tpu.memory_space<vmem>>, vector<2x128xf32>
      %c400 = arith.constant 400 : index
      %c0_286 = arith.constant 0 : index
      %394 = vector.load %arg13[%c400, %c0_286] : memref<648x128xf32, #tpu.memory_space<vmem>>, vector<2x128xf32>
      tpu.vector_store %arg13[%c400, %c0_286], %393 {strides = array<i32>} : memref<648x128xf32, #tpu.memory_space<vmem>>, vector<2x128xf32>,
      %c102 = arith.constant 102 : index
      %c0_287 = arith.constant 0 : index
      %395 = vector.load %arg12[%c102, %c0_287] : memref<168x128xf32, #tpu.memory_space<vmem>>, vector<2x128xf32>
      %c408 = arith.constant 408 : index
      %c0_288 = arith.constant 0 : index
      %396 = vector.load %arg13[%c408, %c0_288] : memref<648x128xf32, #tpu.memory_space<vmem>>, vector<2x128xf32>
      tpu.vector_store %arg13[%c408, %c0_288], %395 {strides = array<i32>} : memref<648x128xf32, #tpu.memory_space<vmem>>, vector<2x128xf32>,
      %c104_289 = arith.constant 104 : index
      %c0_290 = arith.constant 0 : index
      %397 = vector.load %arg12[%c104_289, %c0_290] : memref<168x128xf32, #tpu.memory_space<vmem>>, vector<2x128xf32>
      %c416 = arith.constant 416 : index
      %c0_291 = arith.constant 0 : index
      %398 = vector.load %arg13[%c416, %c0_291] : memref<648x128xf32, #tpu.memory_space<vmem>>, vector<2x128xf32>
      tpu.vector_store %arg13[%c416, %c0_291], %397 {strides = array<i32>} : memref<648x128xf32, #tpu.memory_space<vmem>>, vector<2x128xf32>,
      %c106 = arith.constant 106 : index
      %c0_292 = arith.constant 0 : index
      %399 = vector.load %arg12[%c106, %c0_292] : memref<168x128xf32, #tpu.memory_space<vmem>>, vector<2x128xf32>
      %c424 = arith.constant 424 : index
      %c0_293 = arith.constant 0 : index
      %400 = vector.load %arg13[%c424, %c0_293] : memref<648x128xf32, #tpu.memory_space<vmem>>, vector<2x128xf32>
      tpu.vector_store %arg13[%c424, %c0_293], %399 {strides = array<i32>} : memref<648x128xf32, #tpu.memory_space<vmem>>, vector<2x128xf32>,
      %c108 = arith.constant 108 : index
      %c0_294 = arith.constant 0 : index
      %401 = vector.load %arg12[%c108, %c0_294] : memref<168x128xf32, #tpu.memory_space<vmem>>, vector<2x128xf32>
      %c432 = arith.constant 432 : index
      %c0_295 = arith.constant 0 : index
      %402 = vector.load %arg13[%c432, %c0_295] : memref<648x128xf32, #tpu.memory_space<vmem>>, vector<2x128xf32>
      tpu.vector_store %arg13[%c432, %c0_295], %401 {strides = array<i32>} : memref<648x128xf32, #tpu.memory_space<vmem>>, vector<2x128xf32>,
      %c110 = arith.constant 110 : index
      %c0_296 = arith.constant 0 : index
      %403 = vector.load %arg12[%c110, %c0_296] : memref<168x128xf32, #tpu.memory_space<vmem>>, vector<2x128xf32>
      %c440 = arith.constant 440 : index
      %c0_297 = arith.constant 0 : index
      %404 = vector.load %arg13[%c440, %c0_297] : memref<648x128xf32, #tpu.memory_space<vmem>>, vector<2x128xf32>
      tpu.vector_store %arg13[%c440, %c0_297], %403 {strides = array<i32>} : memref<648x128xf32, #tpu.memory_space<vmem>>, vector<2x128xf32>,
      %c112_298 = arith.constant 112 : index
      %c0_299 = arith.constant 0 : index
      %405 = vector.load %arg12[%c112_298, %c0_299] : memref<168x128xf32, #tpu.memory_space<vmem>>, vector<2x128xf32>
      %c448 = arith.constant 448 : index
      %c0_300 = arith.constant 0 : index
      %406 = vector.load %arg13[%c448, %c0_300] : memref<648x128xf32, #tpu.memory_space<vmem>>, vector<2x128xf32>
      tpu.vector_store %arg13[%c448, %c0_300], %405 {strides = array<i32>} : memref<648x128xf32, #tpu.memory_space<vmem>>, vector<2x128xf32>,
      %c114 = arith.constant 114 : index
      %c0_301 = arith.constant 0 : index
      %407 = vector.load %arg12[%c114, %c0_301] : memref<168x128xf32, #tpu.memory_space<vmem>>, vector<2x128xf32>
      %c456 = arith.constant 456 : index
      %c0_302 = arith.constant 0 : index
      %408 = vector.load %arg13[%c456, %c0_302] : memref<648x128xf32, #tpu.memory_space<vmem>>, vector<2x128xf32>
      tpu.vector_store %arg13[%c456, %c0_302], %407 {strides = array<i32>} : memref<648x128xf32, #tpu.memory_space<vmem>>, vector<2x128xf32>,
      %c116 = arith.constant 116 : index
      %c0_303 = arith.constant 0 : index
      %409 = vector.load %arg12[%c116, %c0_303] : memref<168x128xf32, #tpu.memory_space<vmem>>, vector<2x128xf32>
      %c464 = arith.constant 464 : index
      %c0_304 = arith.constant 0 : index
      %410 = vector.load %arg13[%c464, %c0_304] : memref<648x128xf32, #tpu.memory_space<vmem>>, vector<2x128xf32>
      tpu.vector_store %arg13[%c464, %c0_304], %409 {strides = array<i32>} : memref<648x128xf32, #tpu.memory_space<vmem>>, vector<2x128xf32>,
      %c118 = arith.constant 118 : index
      %c0_305 = arith.constant 0 : index
      %411 = vector.load %arg12[%c118, %c0_305] : memref<168x128xf32, #tpu.memory_space<vmem>>, vector<2x128xf32>
      %c472 = arith.constant 472 : index
      %c0_306 = arith.constant 0 : index
      %412 = vector.load %arg13[%c472, %c0_306] : memref<648x128xf32, #tpu.memory_space<vmem>>, vector<2x128xf32>
      tpu.vector_store %arg13[%c472, %c0_306], %411 {strides = array<i32>} : memref<648x128xf32, #tpu.memory_space<vmem>>, vector<2x128xf32>,
      %c120_307 = arith.constant 120 : index
      %c0_308 = arith.constant 0 : index
      %413 = vector.load %arg12[%c120_307, %c0_308] : memref<168x128xf32, #tpu.memory_space<vmem>>, vector<2x128xf32>
      %c480 = arith.constant 480 : index
      %c0_309 = arith.constant 0 : index
      %414 = vector.load %arg13[%c480, %c0_309] : memref<648x128xf32, #tpu.memory_space<vmem>>, vector<2x128xf32>
      tpu.vector_store %arg13[%c480, %c0_309], %413 {strides = array<i32>} : memref<648x128xf32, #tpu.memory_space<vmem>>, vector<2x128xf32>,
      %c122 = arith.constant 122 : index
      %c0_310 = arith.constant 0 : index
      %415 = vector.load %arg12[%c122, %c0_310] : memref<168x128xf32, #tpu.memory_space<vmem>>, vector<2x128xf32>
      %c488 = arith.constant 488 : index
      %c0_311 = arith.constant 0 : index
      %416 = vector.load %arg13[%c488, %c0_311] : memref<648x128xf32, #tpu.memory_space<vmem>>, vector<2x128xf32>
      tpu.vector_store %arg13[%c488, %c0_311], %415 {strides = array<i32>} : memref<648x128xf32, #tpu.memory_space<vmem>>, vector<2x128xf32>,
      %c124 = arith.constant 124 : index
      %c0_312 = arith.constant 0 : index
      %417 = vector.load %arg12[%c124, %c0_312] : memref<168x128xf32, #tpu.memory_space<vmem>>, vector<2x128xf32>
      %c496 = arith.constant 496 : index
      %c0_313 = arith.constant 0 : index
      %418 = vector.load %arg13[%c496, %c0_313] : memref<648x128xf32, #tpu.memory_space<vmem>>, vector<2x128xf32>
      tpu.vector_store %arg13[%c496, %c0_313], %417 {strides = array<i32>} : memref<648x128xf32, #tpu.memory_space<vmem>>, vector<2x128xf32>,
      %c126 = arith.constant 126 : index
      %c0_314 = arith.constant 0 : index
      %419 = vector.load %arg12[%c126, %c0_314] : memref<168x128xf32, #tpu.memory_space<vmem>>, vector<2x128xf32>
      %c504 = arith.constant 504 : index
      %c0_315 = arith.constant 0 : index
      %420 = vector.load %arg13[%c504, %c0_315] : memref<648x128xf32, #tpu.memory_space<vmem>>, vector<2x128xf32>
      tpu.vector_store %arg13[%c504, %c0_315], %419 {strides = array<i32>} : memref<648x128xf32, #tpu.memory_space<vmem>>, vector<2x128xf32>,
      %c128_316 = arith.constant 128 : index
      %c0_317 = arith.constant 0 : index
      %421 = vector.load %arg12[%c128_316, %c0_317] : memref<168x128xf32, #tpu.memory_space<vmem>>, vector<2x128xf32>
      %c512_318 = arith.constant 512 : index
      %c0_319 = arith.constant 0 : index
      %422 = vector.load %arg13[%c512_318, %c0_319] : memref<648x128xf32, #tpu.memory_space<vmem>>, vector<2x128xf32>
      tpu.vector_store %arg13[%c512_318, %c0_319], %421 {strides = array<i32>} : memref<648x128xf32, #tpu.memory_space<vmem>>, vector<2x128xf32>,
      %c130 = arith.constant 130 : index
      %c0_320 = arith.constant 0 : index
      %423 = vector.load %arg12[%c130, %c0_320] : memref<168x128xf32, #tpu.memory_space<vmem>>, vector<2x128xf32>
      %c520 = arith.constant 520 : index
      %c0_321 = arith.constant 0 : index
      %424 = vector.load %arg13[%c520, %c0_321] : memref<648x128xf32, #tpu.memory_space<vmem>>, vector<2x128xf32>
      tpu.vector_store %arg13[%c520, %c0_321], %423 {strides = array<i32>} : memref<648x128xf32, #tpu.memory_space<vmem>>, vector<2x128xf32>,
      %c132 = arith.constant 132 : index
      %c0_322 = arith.constant 0 : index
      %425 = vector.load %arg12[%c132, %c0_322] : memref<168x128xf32, #tpu.memory_space<vmem>>, vector<2x128xf32>
      %c528 = arith.constant 528 : index
      %c0_323 = arith.constant 0 : index
      %426 = vector.load %arg13[%c528, %c0_323] : memref<648x128xf32, #tpu.memory_space<vmem>>, vector<2x128xf32>
      tpu.vector_store %arg13[%c528, %c0_323], %425 {strides = array<i32>} : memref<648x128xf32, #tpu.memory_space<vmem>>, vector<2x128xf32>,
      %c134 = arith.constant 134 : index
      %c0_324 = arith.constant 0 : index
      %427 = vector.load %arg12[%c134, %c0_324] : memref<168x128xf32, #tpu.memory_space<vmem>>, vector<2x128xf32>
      %c536 = arith.constant 536 : index
      %c0_325 = arith.constant 0 : index
      %428 = vector.load %arg13[%c536, %c0_325] : memref<648x128xf32, #tpu.memory_space<vmem>>, vector<2x128xf32>
      tpu.vector_store %arg13[%c536, %c0_325], %427 {strides = array<i32>} : memref<648x128xf32, #tpu.memory_space<vmem>>, vector<2x128xf32>,
      %c136_326 = arith.constant 136 : index
      %c0_327 = arith.constant 0 : index
      %429 = vector.load %arg12[%c136_326, %c0_327] : memref<168x128xf32, #tpu.memory_space<vmem>>, vector<2x128xf32>
      %c544 = arith.constant 544 : index
      %c0_328 = arith.constant 0 : index
      %430 = vector.load %arg13[%c544, %c0_328] : memref<648x128xf32, #tpu.memory_space<vmem>>, vector<2x128xf32>
      tpu.vector_store %arg13[%c544, %c0_328], %429 {strides = array<i32>} : memref<648x128xf32, #tpu.memory_space<vmem>>, vector<2x128xf32>,
      %c138 = arith.constant 138 : index
      %c0_329 = arith.constant 0 : index
      %431 = vector.load %arg12[%c138, %c0_329] : memref<168x128xf32, #tpu.memory_space<vmem>>, vector<2x128xf32>
      %c552 = arith.constant 552 : index
      %c0_330 = arith.constant 0 : index
      %432 = vector.load %arg13[%c552, %c0_330] : memref<648x128xf32, #tpu.memory_space<vmem>>, vector<2x128xf32>
      tpu.vector_store %arg13[%c552, %c0_330], %431 {strides = array<i32>} : memref<648x128xf32, #tpu.memory_space<vmem>>, vector<2x128xf32>,
      %c140 = arith.constant 140 : index
      %c0_331 = arith.constant 0 : index
      %433 = vector.load %arg12[%c140, %c0_331] : memref<168x128xf32, #tpu.memory_space<vmem>>, vector<2x128xf32>
      %c560 = arith.constant 560 : index
      %c0_332 = arith.constant 0 : index
      %434 = vector.load %arg13[%c560, %c0_332] : memref<648x128xf32, #tpu.memory_space<vmem>>, vector<2x128xf32>
      tpu.vector_store %arg13[%c560, %c0_332], %433 {strides = array<i32>} : memref<648x128xf32, #tpu.memory_space<vmem>>, vector<2x128xf32>,
      %c142 = arith.constant 142 : index
      %c0_333 = arith.constant 0 : index
      %435 = vector.load %arg12[%c142, %c0_333] : memref<168x128xf32, #tpu.memory_space<vmem>>, vector<2x128xf32>
      %c568 = arith.constant 568 : index
      %c0_334 = arith.constant 0 : index
      %436 = vector.load %arg13[%c568, %c0_334] : memref<648x128xf32, #tpu.memory_space<vmem>>, vector<2x128xf32>
      tpu.vector_store %arg13[%c568, %c0_334], %435 {strides = array<i32>} : memref<648x128xf32, #tpu.memory_space<vmem>>, vector<2x128xf32>,
      %c144_335 = arith.constant 144 : index
      %c0_336 = arith.constant 0 : index
      %437 = vector.load %arg12[%c144_335, %c0_336] : memref<168x128xf32, #tpu.memory_space<vmem>>, vector<2x128xf32>
      %c576 = arith.constant 576 : index
      %c0_337 = arith.constant 0 : index
      %438 = vector.load %arg13[%c576, %c0_337] : memref<648x128xf32, #tpu.memory_space<vmem>>, vector<2x128xf32>
      tpu.vector_store %arg13[%c576, %c0_337], %437 {strides = array<i32>} : memref<648x128xf32, #tpu.memory_space<vmem>>, vector<2x128xf32>,
      %c146 = arith.constant 146 : index
      %c0_338 = arith.constant 0 : index
      %439 = vector.load %arg12[%c146, %c0_338] : memref<168x128xf32, #tpu.memory_space<vmem>>, vector<2x128xf32>
      %c584 = arith.constant 584 : index
      %c0_339 = arith.constant 0 : index
      %440 = vector.load %arg13[%c584, %c0_339] : memref<648x128xf32, #tpu.memory_space<vmem>>, vector<2x128xf32>
      tpu.vector_store %arg13[%c584, %c0_339], %439 {strides = array<i32>} : memref<648x128xf32, #tpu.memory_space<vmem>>, vector<2x128xf32>,
      %c148 = arith.constant 148 : index
      %c0_340 = arith.constant 0 : index
      %441 = vector.load %arg12[%c148, %c0_340] : memref<168x128xf32, #tpu.memory_space<vmem>>, vector<2x128xf32>
      %c592 = arith.constant 592 : index
      %c0_341 = arith.constant 0 : index
      %442 = vector.load %arg13[%c592, %c0_341] : memref<648x128xf32, #tpu.memory_space<vmem>>, vector<2x128xf32>
      tpu.vector_store %arg13[%c592, %c0_341], %441 {strides = array<i32>} : memref<648x128xf32, #tpu.memory_space<vmem>>, vector<2x128xf32>,
      %c150 = arith.constant 150 : index
      %c0_342 = arith.constant 0 : index
      %443 = vector.load %arg12[%c150, %c0_342] : memref<168x128xf32, #tpu.memory_space<vmem>>, vector<2x128xf32>
      %c600 = arith.constant 600 : index
      %c0_343 = arith.constant 0 : index
      %444 = vector.load %arg13[%c600, %c0_343] : memref<648x128xf32, #tpu.memory_space<vmem>>, vector<2x128xf32>
      tpu.vector_store %arg13[%c600, %c0_343], %443 {strides = array<i32>} : memref<648x128xf32, #tpu.memory_space<vmem>>, vector<2x128xf32>,
      %c152_344 = arith.constant 152 : index
      %c0_345 = arith.constant 0 : index
      %445 = vector.load %arg12[%c152_344, %c0_345] : memref<168x128xf32, #tpu.memory_space<vmem>>, vector<2x128xf32>
      %c608 = arith.constant 608 : index
      %c0_346 = arith.constant 0 : index
      %446 = vector.load %arg13[%c608, %c0_346] : memref<648x128xf32, #tpu.memory_space<vmem>>, vector<2x128xf32>
      tpu.vector_store %arg13[%c608, %c0_346], %445 {strides = array<i32>} : memref<648x128xf32, #tpu.memory_space<vmem>>, vector<2x128xf32>,
      %c154 = arith.constant 154 : index
      %c0_347 = arith.constant 0 : index
      %447 = vector.load %arg12[%c154, %c0_347] : memref<168x128xf32, #tpu.memory_space<vmem>>, vector<2x128xf32>
      %c616 = arith.constant 616 : index
      %c0_348 = arith.constant 0 : index
      %448 = vector.load %arg13[%c616, %c0_348] : memref<648x128xf32, #tpu.memory_space<vmem>>, vector<2x128xf32>
      tpu.vector_store %arg13[%c616, %c0_348], %447 {strides = array<i32>} : memref<648x128xf32, #tpu.memory_space<vmem>>, vector<2x128xf32>,
      %c156 = arith.constant 156 : index
      %c0_349 = arith.constant 0 : index
      %449 = vector.load %arg12[%c156, %c0_349] : memref<168x128xf32, #tpu.memory_space<vmem>>, vector<2x128xf32>
      %c624 = arith.constant 624 : index
      %c0_350 = arith.constant 0 : index
      %450 = vector.load %arg13[%c624, %c0_350] : memref<648x128xf32, #tpu.memory_space<vmem>>, vector<2x128xf32>
      tpu.vector_store %arg13[%c624, %c0_350], %449 {strides = array<i32>} : memref<648x128xf32, #tpu.memory_space<vmem>>, vector<2x128xf32>,
      %c158 = arith.constant 158 : index
      %c0_351 = arith.constant 0 : index
      %451 = vector.load %arg12[%c158, %c0_351] : memref<168x128xf32, #tpu.memory_space<vmem>>, vector<2x128xf32>
      %c632 = arith.constant 632 : index
      %c0_352 = arith.constant 0 : index
      %452 = vector.load %arg13[%c632, %c0_352] : memref<648x128xf32, #tpu.memory_space<vmem>>, vector<2x128xf32>
      tpu.vector_store %arg13[%c632, %c0_352], %451 {strides = array<i32>} : memref<648x128xf32, #tpu.memory_space<vmem>>, vector<2x128xf32>,
      %c160_353 = arith.constant 160 : index
      %c0_354 = arith.constant 0 : index
      %453 = vector.load %arg12[%c160_353, %c0_354] : memref<168x128xf32, #tpu.memory_space<vmem>>, vector<2x128xf32>
      %c640_355 = arith.constant 640 : index
      %c0_356 = arith.constant 0 : index
      %454 = vector.load %arg13[%c640_355, %c0_356] : memref<648x128xf32, #tpu.memory_space<vmem>>, vector<2x128xf32>
      tpu.vector_store %arg13[%c640_355, %c0_356], %453 {strides = array<i32>} : memref<648x128xf32, #tpu.memory_space<vmem>>, vector<2x128xf32>,
      %c0_357 = arith.constant 0 : index
      %c0_358 = arith.constant 0 : index
      %455 = vector.load %arg10[%c0_357, %c0_358] : memref<1x768xf32, #tpu.memory_space<vmem>>, vector<1x768xf32>
      %456 = vector.shape_cast %455 : vector<1x768xf32> to vector<1x768xf32>
      %457 = vector.broadcast %456 : vector<1x768xf32> to vector<8x768xf32>
      %c0_359 = arith.constant 0 : index
      %c0_360 = arith.constant 0 : index
      %458 = vector.load %arg11[%c0_359, %c0_360] : memref<8x768xf32, #tpu.memory_space<vmem>>, vector<8x768xf32>
      tpu.vector_store %arg11[%c0_359, %c0_360], %457 {strides = array<i32>} : memref<8x768xf32, #tpu.memory_space<vmem>>, vector<8x768xf32>,
    } else {
    }
    %cst = arith.constant 0.000000e+00 : f32
    %3 = vector.broadcast %cst : f32 to vector<8x768xf32>
    %c72_i32 = arith.constant 72 : i32
    %4 = arith.muli %arg0, %c72_i32 : i32
    %5 = tpu.assume_multiple %4, 8 : i32
    %c0_i32_1 = arith.constant 0 : i32
    %6 = arith.addi %5, %c0_i32_1 : i32
    %7 = arith.index_cast %6 : i32 to index
    %c0 = arith.constant 0 : index
    %8 = vector.load %arg13[%7, %c0] : memref<648x128xf32, #tpu.memory_space<vmem>>, vector<8x128xf32>
    %9 = arith.truncf %8 : vector<8x128xf32> to vector<8x128xbf16>
    %c0_2 = arith.constant 0 : index
    %c0_3 = arith.constant 0 : index
    %10 = vector.load %arg9[%c0_2, %c0_3] : memref<1152x768xbf16, #tpu.memory_space<vmem>>, vector<128x768xbf16>
    %cst_4 = arith.constant dense<0.000000e+00> : vector<8x768xf32>
    %11 = tpu.matmul %9, %10, %cst_4 {dimension_numbers = #tpu.dot_dimension_numbers<[1], [0], [0], [1], [0, 0, 1, 1], [], []>} : vector<8x128xbf16>, vector<128x768xbf16>, vector<8x768xf32> -> vector<8x768xf32>
    %12 = arith.addf %3, %11 : vector<8x768xf32>
    %c8_i32 = arith.constant 8 : i32
    %13 = arith.addi %5, %c8_i32 : i32
    %14 = arith.index_cast %13 : i32 to index
    %c0_5 = arith.constant 0 : index
    %15 = vector.load %arg13[%14, %c0_5] : memref<648x128xf32, #tpu.memory_space<vmem>>, vector<8x128xf32>
    %16 = arith.truncf %15 : vector<8x128xf32> to vector<8x128xbf16>
    %c128 = arith.constant 128 : index
    %c0_6 = arith.constant 0 : index
    %17 = vector.load %arg9[%c128, %c0_6] : memref<1152x768xbf16, #tpu.memory_space<vmem>>, vector<128x768xbf16>
    %cst_7 = arith.constant dense<0.000000e+00> : vector<8x768xf32>
    %18 = tpu.matmul %16, %17, %cst_7 {dimension_numbers = #tpu.dot_dimension_numbers<[1], [0], [0], [1], [0, 0, 1, 1], [], []>} : vector<8x128xbf16>, vector<128x768xbf16>, vector<8x768xf32> -> vector<8x768xf32>
    %19 = arith.addf %12, %18 : vector<8x768xf32>
    %c16_i32 = arith.constant 16 : i32
    %20 = arith.addi %5, %c16_i32 : i32
    %21 = arith.index_cast %20 : i32 to index
    %c0_8 = arith.constant 0 : index
    %22 = vector.load %arg13[%21, %c0_8] : memref<648x128xf32, #tpu.memory_space<vmem>>, vector<8x128xf32>
    %23 = arith.truncf %22 : vector<8x128xf32> to vector<8x128xbf16>
    %c256 = arith.constant 256 : index
    %c0_9 = arith.constant 0 : index
    %24 = vector.load %arg9[%c256, %c0_9] : memref<1152x768xbf16, #tpu.memory_space<vmem>>, vector<128x768xbf16>
    %cst_10 = arith.constant dense<0.000000e+00> : vector<8x768xf32>
    %25 = tpu.matmul %23, %24, %cst_10 {dimension_numbers = #tpu.dot_dimension_numbers<[1], [0], [0], [1], [0, 0, 1, 1], [], []>} : vector<8x128xbf16>, vector<128x768xbf16>, vector<8x768xf32> -> vector<8x768xf32>
    %26 = arith.addf %19, %25 : vector<8x768xf32>
    %c24_i32 = arith.constant 24 : i32
    %27 = arith.addi %5, %c24_i32 : i32
    %28 = arith.index_cast %27 : i32 to index
    %c0_11 = arith.constant 0 : index
    %29 = vector.load %arg13[%28, %c0_11] : memref<648x128xf32, #tpu.memory_space<vmem>>, vector<8x128xf32>
    %30 = arith.truncf %29 : vector<8x128xf32> to vector<8x128xbf16>
    %c384 = arith.constant 384 : index
    %c0_12 = arith.constant 0 : index
    %31 = vector.load %arg9[%c384, %c0_12] : memref<1152x768xbf16, #tpu.memory_space<vmem>>, vector<128x768xbf16>
    %cst_13 = arith.constant dense<0.000000e+00> : vector<8x768xf32>
    %32 = tpu.matmul %30, %31, %cst_13 {dimension_numbers = #tpu.dot_dimension_numbers<[1], [0], [0], [1], [0, 0, 1, 1], [], []>} : vector<8x128xbf16>, vector<128x768xbf16>, vector<8x768xf32> -> vector<8x768xf32>
    %33 = arith.addf %26, %32 : vector<8x768xf32>
    %c32_i32 = arith.constant 32 : i32
    %34 = arith.addi %5, %c32_i32 : i32
    %35 = arith.index_cast %34 : i32 to index
    %c0_14 = arith.constant 0 : index
    %36 = vector.load %arg13[%35, %c0_14] : memref<648x128xf32, #tpu.memory_space<vmem>>, vector<8x128xf32>
    %37 = arith.truncf %36 : vector<8x128xf32> to vector<8x128xbf16>
    %c512 = arith.constant 512 : index
    %c0_15 = arith.constant 0 : index
    %38 = vector.load %arg9[%c512, %c0_15] : memref<1152x768xbf16, #tpu.memory_space<vmem>>, vector<128x768xbf16>
    %cst_16 = arith.constant dense<0.000000e+00> : vector<8x768xf32>
    %39 = tpu.matmul %37, %38, %cst_16 {dimension_numbers = #tpu.dot_dimension_numbers<[1], [0], [0], [1], [0, 0, 1, 1], [], []>} : vector<8x128xbf16>, vector<128x768xbf16>, vector<8x768xf32> -> vector<8x768xf32>
    %40 = arith.addf %33, %39 : vector<8x768xf32>
    %c40_i32 = arith.constant 40 : i32
    %41 = arith.addi %5, %c40_i32 : i32
    %42 = arith.index_cast %41 : i32 to index
    %c0_17 = arith.constant 0 : index
    %43 = vector.load %arg13[%42, %c0_17] : memref<648x128xf32, #tpu.memory_space<vmem>>, vector<8x128xf32>
    %44 = arith.truncf %43 : vector<8x128xf32> to vector<8x128xbf16>
    %c640 = arith.constant 640 : index
    %c0_18 = arith.constant 0 : index
    %45 = vector.load %arg9[%c640, %c0_18] : memref<1152x768xbf16, #tpu.memory_space<vmem>>, vector<128x768xbf16>
    %cst_19 = arith.constant dense<0.000000e+00> : vector<8x768xf32>
    %46 = tpu.matmul %44, %45, %cst_19 {dimension_numbers = #tpu.dot_dimension_numbers<[1], [0], [0], [1], [0, 0, 1, 1], [], []>} : vector<8x128xbf16>, vector<128x768xbf16>, vector<8x768xf32> -> vector<8x768xf32>
    %47 = arith.addf %40, %46 : vector<8x768xf32>
    %c48_i32 = arith.constant 48 : i32
    %48 = arith.addi %5, %c48_i32 : i32
    %49 = arith.index_cast %48 : i32 to index
    %c0_20 = arith.constant 0 : index
    %50 = vector.load %arg13[%49, %c0_20] : memref<648x128xf32, #tpu.memory_space<vmem>>, vector<8x128xf32>
    %51 = arith.truncf %50 : vector<8x128xf32> to vector<8x128xbf16>
    %c768 = arith.constant 768 : index
    %c0_21 = arith.constant 0 : index
    %52 = vector.load %arg9[%c768, %c0_21] : memref<1152x768xbf16, #tpu.memory_space<vmem>>, vector<128x768xbf16>
    %cst_22 = arith.constant dense<0.000000e+00> : vector<8x768xf32>
    %53 = tpu.matmul %51, %52, %cst_22 {dimension_numbers = #tpu.dot_dimension_numbers<[1], [0], [0], [1], [0, 0, 1, 1], [], []>} : vector<8x128xbf16>, vector<128x768xbf16>, vector<8x768xf32> -> vector<8x768xf32>
    %54 = arith.addf %47, %53 : vector<8x768xf32>
    %c56_i32 = arith.constant 56 : i32
    %55 = arith.addi %5, %c56_i32 : i32
    %56 = arith.index_cast %55 : i32 to index
    %c0_23 = arith.constant 0 : index
    %57 = vector.load %arg13[%56, %c0_23] : memref<648x128xf32, #tpu.memory_space<vmem>>, vector<8x128xf32>
    %58 = arith.truncf %57 : vector<8x128xf32> to vector<8x128xbf16>
    %c896 = arith.constant 896 : index
    %c0_24 = arith.constant 0 : index
    %59 = vector.load %arg9[%c896, %c0_24] : memref<1152x768xbf16, #tpu.memory_space<vmem>>, vector<128x768xbf16>
    %cst_25 = arith.constant dense<0.000000e+00> : vector<8x768xf32>
    %60 = tpu.matmul %58, %59, %cst_25 {dimension_numbers = #tpu.dot_dimension_numbers<[1], [0], [0], [1], [0, 0, 1, 1], [], []>} : vector<8x128xbf16>, vector<128x768xbf16>, vector<8x768xf32> -> vector<8x768xf32>
    %61 = arith.addf %54, %60 : vector<8x768xf32>
    %c64_i32 = arith.constant 64 : i32
    %62 = arith.addi %5, %c64_i32 : i32
    %63 = arith.index_cast %62 : i32 to index
    %c0_26 = arith.constant 0 : index
    %64 = vector.load %arg13[%63, %c0_26] : memref<648x128xf32, #tpu.memory_space<vmem>>, vector<8x128xf32>
    %65 = arith.truncf %64 : vector<8x128xf32> to vector<8x128xbf16>
    %c1024 = arith.constant 1024 : index
    %c0_27 = arith.constant 0 : index
    %66 = vector.load %arg9[%c1024, %c0_27] : memref<1152x768xbf16, #tpu.memory_space<vmem>>, vector<128x768xbf16>
    %cst_28 = arith.constant dense<0.000000e+00> : vector<8x768xf32>
    %67 = tpu.matmul %65, %66, %cst_28 {dimension_numbers = #tpu.dot_dimension_numbers<[1], [0], [0], [1], [0, 0, 1, 1], [], []>} : vector<8x128xbf16>, vector<128x768xbf16>, vector<8x768xf32> -> vector<8x768xf32>
    %68 = arith.addf %61, %67 : vector<8x768xf32>
    %c0_29 = arith.constant 0 : index
    %c0_30 = arith.constant 0 : index
    %69 = vector.load %arg11[%c0_29, %c0_30] : memref<8x768xf32, #tpu.memory_space<vmem>>, vector<8x768xf32>
    %70 = arith.addf %69, %68 : vector<8x768xf32>
    %c0_31 = arith.constant 0 : index
    %c0_32 = arith.constant 0 : index
    %71 = vector.load %arg11[%c0_31, %c0_32] : memref<8x768xf32, #tpu.memory_space<vmem>>, vector<8x768xf32>
    tpu.vector_store %arg11[%c0_31, %c0_32], %70 {strides = array<i32>} : memref<8x768xf32, #tpu.memory_space<vmem>>, vector<8x768xf32>,
    return
  }
  func.func @transform_0(%arg0: i32) -> (i32, i32) {
    %c0_i32 = arith.constant 0 : i32
    %c0_i32_0 = arith.constant 0 : i32
    %c0_i32_1 = arith.constant 0 : i32
    return %c0_i32, %c0_i32_0 : i32, i32
  }
  func.func @transform_1(%arg0: i32) -> (i32, i32, i32) {
    %c0_i32 = arith.constant 0 : i32
    %c0_i32_0 = arith.constant 0 : i32
    %c0_i32_1 = arith.constant 0 : i32
    %c0_i32_2 = arith.constant 0 : i32
    return %c0_i32, %c0_i32_0, %c0_i32_1 : i32, i32, i32
  }
  func.func @transform_2(%arg0: i32) -> (i32, i32) {
    %c0_i32 = arith.constant 0 : i32
    %c0_i32_0 = arith.constant 0 : i32
    %c0_i32_1 = arith.constant 0 : i32
    return %c0_i32, %c0_i32_0 : i32, i32
  }
  func.func @transform_3(%arg0: i32) -> (i32, i32) {
    %c0_i32 = arith.constant 0 : i32
    %c0_i32_0 = arith.constant 0 : i32
    %c0_i32_1 = arith.constant 0 : i32
    return %c0_i32, %c0_i32_0 : i32, i32
  }
  func.func @transform_4(%arg0: i32) -> (i32, i32) {
    %c0_i32 = arith.constant 0 : i32
    %c0_i32_0 = arith.constant 0 : i32
    %c0_i32_1 = arith.constant 0 : i32
    return %c0_i32, %c0_i32_0 : i32, i32
  }
  func.func @transform_5(%arg0: i32) -> (i32, i32) {
    %c0_i32 = arith.constant 0 : i32
    %c0_i32_0 = arith.constant 0 : i32
    %c0_i32_1 = arith.constant 0 : i32
    return %c0_i32, %c0_i32_0 : i32, i32
  }
  func.func @transform_6(%arg0: i32) -> (i32, i32) {
    %c0_i32 = arith.constant 0 : i32
    %c0_i32_0 = arith.constant 0 : i32
    %c0_i32_1 = arith.constant 0 : i32
    return %c0_i32, %c0_i32_0 : i32, i32
  }
  func.func @transform_7(%arg0: i32) -> (i32, i32) {
    %c0_i32 = arith.constant 0 : i32
    %c0_i32_0 = arith.constant 0 : i32
    %c0_i32_1 = arith.constant 0 : i32
    return %c0_i32, %c0_i32_0 : i32, i32
  }
  func.func @transform_8(%arg0: i32) -> (i32, i32) {
    %c0_i32 = arith.constant 0 : i32
    %c0_i32_0 = arith.constant 0 : i32
    return %arg0, %c0_i32 : i32, i32
  }
  func.func @transform_9(%arg0: i32) -> (i32, i32) {
    %c0_i32 = arith.constant 0 : i32
    %c0_i32_0 = arith.constant 0 : i32
    %c0_i32_1 = arith.constant 0 : i32
    return %c0_i32, %c0_i32_0 : i32, i32
  }
  func.func @transform_10(%arg0: i32) -> (i32, i32) {
    %c0_i32 = arith.constant 0 : i32
    %c0_i32_0 = arith.constant 0 : i32
    %c0_i32_1 = arith.constant 0 : i32
    return %c0_i32, %c0_i32_0 : i32, i32
  }
}

</mosaic_0001>

<llo_original>
// kernel: sudoku_forward.1
$region0: #{sudoku_forward.1}
  #allocation0 [shape = 'u32[]', space=smem, size = 0x4, offset = 0x4, fixed_abs, tag = 'smem constant byte address 0x4 - core index']
  #allocation1 [shape = 'u32[72,128]{1,0:T(1,128)}', space=vmem, size = 0x9000, scoped, tag = 'internal scratch']
  #allocation2 [shape = 'f32[168,128]{1,0:T(8,128)}', space=vmem, size = 0x15000, scoped, tag = 'scratch operand']
  #allocation3 [shape = 'f32[648,128]{1,0:T(8,128)}', space=vmem, size = 0x51000, scoped, tag = 'scratch operand']
  %s0 = inlined_call_operand.vmem [shape: f32[168,1], index: 0, kind: input, shape index: {}]
  %s1 = inlined_call_operand.vmem [shape: f32[9,168,1], index: 1, kind: input, shape index: {}]
  %s2 = inlined_call_operand.hbm [shape: f32[1,1152], index: 2, kind: input, shape index: {}]
  %s3 = inlined_call_operand.hbm [shape: f32[1,128], index: 3, kind: input, shape index: {}]
  %s4 = inlined_call_operand.hbm [shape: bf16[1152,128], index: 4, kind: input, shape index: {}]
  %s5 = inlined_call_operand.hbm [shape: f32[1,128], index: 5, kind: input, shape index: {}]
  %s6 = inlined_call_operand.hbm [shape: bf16[1152,128], index: 6, kind: input, shape index: {}]
  %s7 = inlined_call_operand.hbm [shape: f32[1,128], index: 7, kind: input, shape index: {}]
  %s8 = inlined_call_operand.hbm [shape: bf16[10368,768], index: 8, kind: input, shape index: {}]
  %s9 = inlined_call_operand.hbm [shape: f32[1,768], index: 9, kind: input, shape index: {}]
  %s10 = inlined_call_operand.vmem [shape: f32[8,768], index: 10, kind: output, shape index: {}]
  %s11 = sld [smem:[#allocation0]]
  $region109: #{sudoku_forward.1} parent=0
    _
  %s13 = ssub.s32 1, %s11
  %s14 = scalar_select 0, %s13, %s11
  $region1: #{sudoku_forward.1} parent=0
    #allocation4 [shape = 'u8[4608]{0}', space=vmem, size = 0x1400, scoped, tag = 'input window, operand 2, single buffered']
    #allocation5 [shape = 's32[2]{0}', space=sflag, size = 0x8, scoped, tag = 'scoped memory for sudoku_forward.1']
    #allocation6 [shape = 'u8[512]{0}', space=vmem, size = 0x400, scoped, tag = 'input window, operand 3, single buffered']
    #allocation7 [shape = 's32[1]{0}', space=sflag, size = 0x4, scoped, tag = 'scoped memory for sudoku_forward.1']
    #allocation8 [shape = 'u8[294912]{0}', space=vmem, size = 0x48000, scoped, tag = 'input window, operand 4, single buffered']
    #allocation9 [shape = 'u8[512]{0}', space=vmem, size = 0x400, scoped, tag = 'input window, operand 5, single buffered']
    #allocation10 [shape = 's32[1]{0}', space=sflag, size = 0x4, scoped, tag = 'scoped memory for sudoku_forward.1']
    #allocation11 [shape = 'u8[294912]{0}', space=vmem, size = 0x48000, scoped, tag = 'input window, operand 6, single buffered']
    #allocation12 [shape = 'u8[512]{0}', space=vmem, size = 0x400, scoped, tag = 'input window, operand 7, single buffered']
    #allocation13 [shape = 's32[1]{0}', space=sflag, size = 0x4, scoped, tag = 'scoped memory for sudoku_forward.1']
    #allocation14 [shape = 'u8[3538944]{0}', space=vmem, size = 0x360000, scoped, tag = 'input window, operand 8']
    #allocation15 [shape = 'u8[3072]{0}', space=vmem, size = 0xc00, scoped, tag = 'input window, operand 9, single buffered']
    %15 = vsyncpa [#allocation5], 0
    %16 = vsyncpa [#allocation7], 0
    %17 = vsyncpa [#allocation10], 0
    %18 = vsyncpa [#allocation13], 0
    loop: start=0, step=1, limit=11
    $region2: #{sudoku_forward.1} parent=1 // loop_pre_header
      _
    $region3: #{sudoku_forward.1} parent=1 // loop_header
      %s20 = sphi 0, %s24
      %p21 = scmp.ge.s32.totalorder %s20, 11
      %s28 = sphi 0, %s28
      %s30 = sphi 0, %s28
      %s31 = sphi 0, %s30
      %s45 = sphi 0, %s31
      %s49 = sphi 0, %s49
      %s51 = sphi 0, %s49
      %s52 = sphi 0, %s51
      %s66 = sphi 0, %s52
      %s70 = sphi 0, %s70
      %s72 = sphi 0, %s70
      %s73 = sphi 0, %s72
      %s87 = sphi 0, %s73
      %s91 = sphi 0, %s91
      %s93 = sphi 0, %s91
      %s94 = sphi 0, %s93
      %s108 = sphi 0, %s94
      %s112 = sphi 0, %s112
      %s114 = sphi 0, %s112
      %s115 = sphi 0, %s114
      %s129 = sphi 0, %s115
      %s133 = sphi 0, %s133
      %s135 = sphi 0, %s133
      %s136 = sphi 0, %s135
      %s150 = sphi 0, %s136
      %s154 = sphi 0, %s154
      %s156 = sphi 0, %s154
      %s157 = sphi 0, %s156
      %s171 = sphi 0, %s157
      %s175 = sphi 0, %s175
      %s177 = sphi 0, %s175
      %s178 = sphi 0, %s177
      %s192 = sphi 0, %s178
      %s198 = sphi 0, %s200
      %s201 = sphi 0, %s198
      %s202 = sphi 0, %s201
      %s218 = sphi 0, %s202
      %s222 = sphi 0, %s222
      %s224 = sphi 0, %s222
      %s225 = sphi 0, %s224
      %s239 = sphi 0, %s225
      %s243 = sphi 0, %s243
      %s245 = sphi 0, %s243
      %s246 = sphi 0, %s245
      %s260 = sphi 0, %s246
    $region4: #{sudoku_forward.1} parent=1 // loop_header_branch
      %23 = sbr.rel (%p21) target = $region8
    $region5: #{sudoku_forward.1} parent=1 // loop_body
      %s25 = ssub.s32 %s20, 1
      %s26 = ssub.s32 %s20, 2
      %s27 = sadd.s32 %s20, 1
      %s29 = sadd.s32 %s28, 1
      %p32 = scmp.eq.s32.totalorder %s20, 8
      %p33 = scmp.ne.s32.totalorder %s28, %s30
      %p34 = scmp.eq.s32.totalorder %s20, 0
      %p35 = por %p33, %p34
      %p36 = scmp.ne.s32.totalorder %s28, %s30
      %p37 = scmp.eq.s32.totalorder %s25, 8
      %p38 = por %p36, %p37
      %p39 = scmp.ne.s32.totalorder %s30, %s31
      %p40 = scmp.eq.s32.totalorder %s25, 0
      %p41 = por %p39, %p40
      %p42 = scmp.ne.s32.totalorder %s30, %s31
      %p43 = scmp.eq.s32.totalorder %s26, 8
      %p44 = por %p42, %p43
      %p46 = scmp.ne.s32.totalorder %s31, %s45
      %p47 = scmp.eq.s32.totalorder %s26, 0
      %p48 = por %p46, %p47
      %s50 = sadd.s32 %s49, 1
      %p53 = scmp.eq.s32.totalorder %s20, 8
      %p54 = scmp.ne.s32.totalorder %s49, %s51
      %p55 = scmp.eq.s32.totalorder %s20, 0
      %p56 = por %p54, %p55
      %p57 = scmp.ne.s32.totalorder %s49, %s51
      %p58 = scmp.eq.s32.totalorder %s25, 8
      %p59 = por %p57, %p58
      %p60 = scmp.ne.s32.totalorder %s51, %s52
      %p61 = scmp.eq.s32.totalorder %s25, 0
      %p62 = por %p60, %p61
      %p63 = scmp.ne.s32.totalorder %s51, %s52
      %p64 = scmp.eq.s32.totalorder %s26, 8
      %p65 = por %p63, %p64
      %p67 = scmp.ne.s32.totalorder %s52, %s66
      %p68 = scmp.eq.s32.totalorder %s26, 0
      %p69 = por %p67, %p68
      %s71 = sadd.s32 %s70, 1
      %p74 = scmp.eq.s32.totalorder %s20, 8
      %p75 = scmp.ne.s32.totalorder %s70, %s72
      %p76 = scmp.eq.s32.totalorder %s20, 0
      %p77 = por %p75, %p76
      %p78 = scmp.ne.s32.totalorder %s70, %s72
      %p79 = scmp.eq.s32.totalorder %s25, 8
      %p80 = por %p78, %p79
      %p81 = scmp.ne.s32.totalorder %s72, %s73
      %p82 = scmp.eq.s32.totalorder %s25, 0
      %p83 = por %p81, %p82
      %p84 = scmp.ne.s32.totalorder %s72, %s73
      %p85 = scmp.eq.s32.totalorder %s26, 8
      %p86 = por %p84, %p85
      %p88 = scmp.ne.s32.totalorder %s73, %s87
      %p89 = scmp.eq.s32.totalorder %s26, 0
      %p90 = por %p88, %p89
      %s92 = sadd.s32 %s91, 1
      %p95 = scmp.eq.s32.totalorder %s20, 8
      %p96 = scmp.ne.s32.totalorder %s91, %s93
      %p97 = scmp.eq.s32.totalorder %s20, 0
      %p98 = por %p96, %p97
      %p99 = scmp.ne.s32.totalorder %s91, %s93
      %p100 = scmp.eq.s32.totalorder %s25, 8
      %p101 = por %p99, %p100
      %p102 = scmp.ne.s32.totalorder %s93, %s94
      %p103 = scmp.eq.s32.totalorder %s25, 0
      %p104 = por %p102, %p103
      %p105 = scmp.ne.s32.totalorder %s93, %s94
      %p106 = scmp.eq.s32.totalorder %s26, 8
      %p107 = por %p105, %p106
      %p109 = scmp.ne.s32.totalorder %s94, %s108
      %p110 = scmp.eq.s32.totalorder %s26, 0
      %p111 = por %p109, %p110
      %s113 = sadd.s32 %s112, 1
      %p116 = scmp.eq.s32.totalorder %s20, 8
      %p117 = scmp.ne.s32.totalorder %s112, %s114
      %p118 = scmp.eq.s32.totalorder %s20, 0
      %p119 = por %p117, %p118
      %p120 = scmp.ne.s32.totalorder %s112, %s114
      %p121 = scmp.eq.s32.totalorder %s25, 8
      %p122 = por %p120, %p121
      %p123 = scmp.ne.s32.totalorder %s114, %s115
      %p124 = scmp.eq.s32.totalorder %s25, 0
      %p125 = por %p123, %p124
      %p126 = scmp.ne.s32.totalorder %s114, %s115
      %p127 = scmp.eq.s32.totalorder %s26, 8
      %p128 = por %p126, %p127
      %p130 = scmp.ne.s32.totalorder %s115, %s129
      %p131 = scmp.eq.s32.totalorder %s26, 0
      %p132 = por %p130, %p131
      %s134 = sadd.s32 %s133, 1
      %p137 = scmp.eq.s32.totalorder %s20, 8
      %p138 = scmp.ne.s32.totalorder %s133, %s135
      %p139 = scmp.eq.s32.totalorder %s20, 0
      %p140 = por %p138, %p139
      %p141 = scmp.ne.s32.totalorder %s133, %s135
      %p142 = scmp.eq.s32.totalorder %s25, 8
      %p143 = por %p141, %p142
      %p144 = scmp.ne.s32.totalorder %s135, %s136
      %p145 = scmp.eq.s32.totalorder %s25, 0
      %p146 = por %p144, %p145
      %p147 = scmp.ne.s32.totalorder %s135, %s136
      %p148 = scmp.eq.s32.totalorder %s26, 8
      %p149 = por %p147, %p148
      %p151 = scmp.ne.s32.totalorder %s136, %s150
      %p152 = scmp.eq.s32.totalorder %s26, 0
      %p153 = por %p151, %p152
      %s155 = sadd.s32 %s154, 1
      %p158 = scmp.eq.s32.totalorder %s20, 8
      %p159 = scmp.ne.s32.totalorder %s154, %s156
      %p160 = scmp.eq.s32.totalorder %s20, 0
      %p161 = por %p159, %p160
      %p162 = scmp.ne.s32.totalorder %s154, %s156
      %p163 = scmp.eq.s32.totalorder %s25, 8
      %p164 = por %p162, %p163
      %p165 = scmp.ne.s32.totalorder %s156, %s157
      %p166 = scmp.eq.s32.totalorder %s25, 0
      %p167 = por %p165, %p166
      %p168 = scmp.ne.s32.totalorder %s156, %s157
      %p169 = scmp.eq.s32.totalorder %s26, 8
      %p170 = por %p168, %p169
      %p172 = scmp.ne.s32.totalorder %s157, %s171
      %p173 = scmp.eq.s32.totalorder %s26, 0
      %p174 = por %p172, %p173
      %s176 = sadd.s32 %s175, 1
      %p179 = scmp.eq.s32.totalorder %s20, 8
      %p180 = scmp.ne.s32.totalorder %s175, %s177
      %p181 = scmp.eq.s32.totalorder %s20, 0
      %p182 = por %p180, %p181
      %p183 = scmp.ne.s32.totalorder %s175, %s177
      %p184 = scmp.eq.s32.totalorder %s25, 8
      %p185 = por %p183, %p184
      %p186 = scmp.ne.s32.totalorder %s177, %s178
      %p187 = scmp.eq.s32.totalorder %s25, 0
      %p188 = por %p186, %p187
      %p189 = scmp.ne.s32.totalorder %s177, %s178
      %p190 = scmp.eq.s32.totalorder %s26, 8
      %p191 = por %p189, %p190
      %p193 = scmp.ne.s32.totalorder %s178, %s192
      %p194 = scmp.eq.s32.totalorder %s26, 0
      %p195 = por %p193, %p194
      %s196 = ssub.s32 %s20, %s27
      %p197 = scmp.eq.s32.totalorder %s196, 0
      %s199 = sadd.s32 %s198, 1
      %s200 = scalar_select %p197, %s198, %s199
      %p203 = pneg %p197
      %p204 = scmp.eq.s32.totalorder %s20, 8
      %p205 = por %p203, %p204
      %p206 = scmp.ne.s32.totalorder %s198, %s201
      %p207 = scmp.eq.s32.totalorder %s20, 0
      %p208 = por %p206, %p207
      %p209 = scmp.ne.s32.totalorder %s198, %s201
      %p210 = scmp.eq.s32.totalorder %s25, 8
      %p211 = por %p209, %p210
      %p212 = scmp.ne.s32.totalorder %s201, %s202
      %p213 = scmp.eq.s32.totalorder %s25, 0
      %p214 = por %p212, %p213
      %p215 = scmp.ne.s32.totalorder %s201, %s202
      %p216 = scmp.eq.s32.totalorder %s26, 8
      %p217 = por %p215, %p216
      %p219 = scmp.ne.s32.totalorder %s202, %s218
      %p220 = scmp.eq.s32.totalorder %s26, 0
      %p221 = por %p219, %p220
      %s223 = sadd.s32 %s222, 1
      %p226 = scmp.eq.s32.totalorder %s20, 8
      %p227 = scmp.ne.s32.totalorder %s222, %s224
      %p228 = scmp.eq.s32.totalorder %s20, 0
      %p229 = por %p227, %p228
      %p230 = scmp.ne.s32.totalorder %s222, %s224
      %p231 = scmp.eq.s32.totalorder %s25, 8
      %p232 = por %p230, %p231
      %p233 = scmp.ne.s32.totalorder %s224, %s225
      %p234 = scmp.eq.s32.totalorder %s25, 0
      %p235 = por %p233, %p234
      %p236 = scmp.ne.s32.totalorder %s224, %s225
      %p237 = scmp.eq.s32.totalorder %s26, 8
      %p238 = por %p236, %p237
      %p240 = scmp.ne.s32.totalorder %s225, %s239
      %p241 = scmp.eq.s32.totalorder %s26, 0
      %p242 = por %p240, %p241
      %s244 = sadd.s32 %s243, 1
      %p247 = scmp.eq.s32.totalorder %s20, 8
      %p248 = scmp.ne.s32.totalorder %s243, %s245
      %p249 = scmp.eq.s32.totalorder %s20, 0
      %p250 = por %p248, %p249
      %p251 = scmp.ne.s32.totalorder %s243, %s245
      %p252 = scmp.eq.s32.totalorder %s25, 8
      %p253 = por %p251, %p252
      %p254 = scmp.ne.s32.totalorder %s245, %s246
      %p255 = scmp.eq.s32.totalorder %s25, 0
      %p256 = por %p254, %p255
      %p257 = scmp.ne.s32.totalorder %s245, %s246
      %p258 = scmp.eq.s32.totalorder %s26, 8
      %p259 = por %p257, %p258
      %p261 = scmp.ne.s32.totalorder %s246, %s260
      %p262 = scmp.eq.s32.totalorder %s26, 0
      %p263 = por %p261, %p262
      %p264 = scmp.le.s32.totalorder 1, %s20
      %p265 = scmp.lt.s32.totalorder %s20, 10
      %p266 = pnand %p264, %p265
      %p267 = pneg %p266
      // Predicated region
      $region9: #{sudoku_forward.1} parent=5 // pred_check
        _
      $region10: #{sudoku_forward.1} parent=5 // pred_check_branch
        %269 = sbr.rel (%p266) target = $region12
      $region11: #{sudoku_forward.1} parent=5 // pred_region
        %s270 = ssub.s32 %s20, 1
        // Predicated region
        $region13: #{sudoku_forward.1} parent=11 // pred_check
          %p271 = pneg %p41
        $region14: #{sudoku_forward.1} parent=11 // pred_check_branch
          %273 = sbr.rel (%p271) target = $region16
        $region15: #{sudoku_forward.1} parent=11 // pred_region
          _
        $region16: #{sudoku_forward.1} parent=11 // pred_fallthru
          _
        // Predicated region
        $region17: #{sudoku_forward.1} parent=11 // pred_check
          %p274 = pneg %p62
        $region18: #{sudoku_forward.1} parent=11 // pred_check_branch
          %276 = sbr.rel (%p274) target = $region20
        $region19: #{sudoku_forward.1} parent=11 // pred_region
          _
        $region20: #{sudoku_forward.1} parent=11 // pred_fallthru
          _
        // Predicated region
        $region21: #{sudoku_forward.1} parent=11 // pred_check
          %p277 = pneg %p83
        $region22: #{sudoku_forward.1} parent=11 // pred_check_branch
          %279 = sbr.rel (%p277) target = $region24
        $region23: #{sudoku_forward.1} parent=11 // pred_region
          %281 = vsyncadd [#allocation5], 0
          %s283 = sshll.u32 %s2, 4
          %s284 = int_to_ptr.hbm [resolvable:$true] %s283
          %s285 = sshll.u32 [#allocation4], 4
          %s286 = int_to_ptr.vmem [resolvable:$true] %s285
          %288 = dma.hbm_to_vmem [thread:$0]  %s284, 144, %s286, [#allocation5]
        $region24: #{sudoku_forward.1} parent=11 // pred_fallthru
          _
        // Predicated region
        $region25: #{sudoku_forward.1} parent=11 // pred_check
          %p289 = pneg %p104
        $region26: #{sudoku_forward.1} parent=11 // pred_check_branch
          %291 = sbr.rel (%p289) target = $region28
        $region27: #{sudoku_forward.1} parent=11 // pred_region
          %293 = vsyncadd [#allocation7], 0
          %s295 = sshll.u32 %s3, 4
          %s296 = int_to_ptr.hbm [resolvable:$true] %s295
          %s297 = sshll.u32 [#allocation6], 4
          %s298 = int_to_ptr.vmem [resolvable:$true] %s297
          %300 = dma.hbm_to_vmem [thread:$0]  %s296, 16, %s298, [#allocation7]
        $region28: #{sudoku_forward.1} parent=11 // pred_fallthru
          _
        // Predicated region
        $region29: #{sudoku_forward.1} parent=11 // pred_check
          %p301 = pneg %p125
        $region30: #{sudoku_forward.1} parent=11 // pred_check_branch
          %303 = sbr.rel (%p301) target = $region32
        $region31: #{sudoku_forward.1} parent=11 // pred_region
          %305 = vsyncadd [#allocation7], 0
          %s306 = sshll.u32 %s4, 4
          %s307 = int_to_ptr.hbm [resolvable:$true] %s306
          %s308 = sshll.u32 [#allocation8], 4
          %s309 = int_to_ptr.vmem [resolvable:$true] %s308
          %314 = dma.hbm_to_vmem [thread:$0]  %s307, 9216, %s309, [#allocation7], 64, 64, 4
        $region32: #{sudoku_forward.1} parent=11 // pred_fallthru
          _
        // Predicated region
        $region33: #{sudoku_forward.1} parent=11 // pred_check
          %p315 = pneg %p146
        $region34: #{sudoku_forward.1} parent=11 // pred_check_branch
          %317 = sbr.rel (%p315) target = $region36
        $region35: #{sudoku_forward.1} parent=11 // pred_region
          %319 = vsyncadd [#allocation10], 0
          %s321 = sshll.u32 %s5, 4
          %s322 = int_to_ptr.hbm [resolvable:$true] %s321
          %s323 = sshll.u32 [#allocation9], 4
          %s324 = int_to_ptr.vmem [resolvable:$true] %s323
          %326 = dma.hbm_to_vmem [thread:$0]  %s322, 16, %s324, [#allocation10]
        $region36: #{sudoku_forward.1} parent=11 // pred_fallthru
          _
        // Predicated region
        $region37: #{sudoku_forward.1} parent=11 // pred_check
          %p327 = pneg %p167
        $region38: #{sudoku_forward.1} parent=11 // pred_check_branch
          %329 = sbr.rel (%p327) target = $region40
        $region39: #{sudoku_forward.1} parent=11 // pred_region
          %331 = vsyncadd [#allocation10], 0
          %s332 = sshll.u32 %s6, 4
          %s333 = int_to_ptr.hbm [resolvable:$true] %s332
          %s334 = sshll.u32 [#allocation11], 4
          %s335 = int_to_ptr.vmem [resolvable:$true] %s334
          %340 = dma.hbm_to_vmem [thread:$0]  %s333, 9216, %s335, [#allocation10], 64, 64, 4
        $region40: #{sudoku_forward.1} parent=11 // pred_fallthru
          _
        // Predicated region
        $region41: #{sudoku_forward.1} parent=11 // pred_check
          %p341 = pneg %p188
        $region42: #{sudoku_forward.1} parent=11 // pred_check_branch
          %343 = sbr.rel (%p341) target = $region44
        $region43: #{sudoku_forward.1} parent=11 // pred_region
          %345 = vsyncadd [#allocation13], 0
          %s347 = sshll.u32 %s7, 4
          %s348 = int_to_ptr.hbm [resolvable:$true] %s347
          %s349 = sshll.u32 [#allocation12], 4
          %s350 = int_to_ptr.vmem [resolvable:$true] %s349
          %352 = dma.hbm_to_vmem [thread:$0]  %s348, 16, %s350, [#allocation13]
        $region44: #{sudoku_forward.1} parent=11 // pred_fallthru
          _
        // Predicated region
        $region45: #{sudoku_forward.1} parent=11 // pred_check
          %p353 = pneg %p235
        $region46: #{sudoku_forward.1} parent=11 // pred_check_branch
          %355 = sbr.rel (%p353) target = $region48
        $region47: #{sudoku_forward.1} parent=11 // pred_region
          %357 = vsyncadd [#allocation7], 0
          %s359 = sshll.u32 %s9, 4
          %s360 = int_to_ptr.hbm [resolvable:$true] %s359
          %s361 = sshll.u32 [#allocation15], 4
          %s362 = int_to_ptr.vmem [resolvable:$true] %s361
          %364 = dma.hbm_to_vmem [thread:$0]  %s360, 96, %s362, [#allocation7]
        $region48: #{sudoku_forward.1} parent=11 // pred_fallthru
          _
      $region12: #{sudoku_forward.1} parent=5 // pred_fallthru
        _
      %p365 = scmp.lt.s32.totalorder %s20, 9
      // Predicated region
      $region49: #{sudoku_forward.1} parent=5 // pred_check
        %p366 = pneg %p365
      $region50: #{sudoku_forward.1} parent=5 // pred_check_branch
        %368 = sbr.rel (%p366) target = $region52
      $region51: #{sudoku_forward.1} parent=5 // pred_region
        // Predicated region
        $region53: #{sudoku_forward.1} parent=51 // pred_check
          %p369 = pneg %p208
        $region54: #{sudoku_forward.1} parent=51 // pred_check_branch
          %371 = sbr.rel (%p369) target = $region56
        $region55: #{sudoku_forward.1} parent=51 // pred_region
          %s372 = sand.u32 %s20, 1
          %s373 = scalar_lea.sflag [#allocation5], %s372
          %s374 = sand.u32 %s198, 1
          %s375 = smul.addr %s374, 3456
          %s376 = scalar_lea.vmem [#allocation14], %s375
          %s377 = smul.u32 144, %s20
          %379 = vsyncadd %s373, 0
          %s380 = smul.addr %s377, 6
          %s381 = smul.addr %s380, 4
          %s382 = scalar_lea.hbm %s8, %s381
          %s383 = sshll.u32 %s382, 4
          %s384 = int_to_ptr.hbm [resolvable:$true] %s383
          %s385 = sshll.u32 %s376, 4
          %s386 = int_to_ptr.vmem [resolvable:$true] %s385
          %391 = dma.hbm_to_vmem [thread:$0]  %s384, 55296, %s386, %s373, 384, 384, 24
        $region56: #{sudoku_forward.1} parent=51 // pred_fallthru
          _
      $region52: #{sudoku_forward.1} parent=5 // pred_fallthru
        _
      %p392 = scmp.le.s32.totalorder 1, %s20
      %p393 = scmp.lt.s32.totalorder %s20, 10
      %p394 = pnand %p392, %p393
      %p395 = pneg %p394
      // Predicated region
      $region57: #{sudoku_forward.1} parent=5 // pred_check
        _
      $region58: #{sudoku_forward.1} parent=5 // pred_check_branch
        %397 = sbr.rel (%p394) target = $region60
      $region59: #{sudoku_forward.1} parent=5 // pred_region
        %s398 = ssub.s32 %s20, 1
        // Predicated region
        $region61: #{sudoku_forward.1} parent=59 // pred_check
          %p399 = pneg %p83
        $region62: #{sudoku_forward.1} parent=59 // pred_check_branch
          %401 = sbr.rel (%p399) target = $region64
        $region63: #{sudoku_forward.1} parent=59 // pred_region
          %403 = dma.done [#allocation5], 144
        $region64: #{sudoku_forward.1} parent=59 // pred_fallthru
          _
        // Predicated region
        $region65: #{sudoku_forward.1} parent=59 // pred_check
          %p404 = pneg %p104
        $region66: #{sudoku_forward.1} parent=59 // pred_check_branch
          %406 = sbr.rel (%p404) target = $region68
        $region67: #{sudoku_forward.1} parent=59 // pred_region
          %408 = dma.done [#allocation7], 16
        $region68: #{sudoku_forward.1} parent=59 // pred_fallthru
          _
        // Predicated region
        $region69: #{sudoku_forward.1} parent=59 // pred_check
          %p409 = pneg %p125
        $region70: #{sudoku_forward.1} parent=59 // pred_check_branch
          %411 = sbr.rel (%p409) target = $region72
        $region71: #{sudoku_forward.1} parent=59 // pred_region
          %413 = dma.done [#allocation7], 9216
        $region72: #{sudoku_forward.1} parent=59 // pred_fallthru
          _
        // Predicated region
        $region73: #{sudoku_forward.1} parent=59 // pred_check
          %p414 = pneg %p146
        $region74: #{sudoku_forward.1} parent=59 // pred_check_branch
          %416 = sbr.rel (%p414) target = $region76
        $region75: #{sudoku_forward.1} parent=59 // pred_region
          %418 = dma.done [#allocation10], 16
        $region76: #{sudoku_forward.1} parent=59 // pred_fallthru
          _
        // Predicated region
        $region77: #{sudoku_forward.1} parent=59 // pred_check
          %p419 = pneg %p167
        $region78: #{sudoku_forward.1} parent=59 // pred_check_branch
          %421 = sbr.rel (%p419) target = $region80
        $region79: #{sudoku_forward.1} parent=59 // pred_region
          %423 = dma.done [#allocation10], 9216
        $region80: #{sudoku_forward.1} parent=59 // pred_fallthru
          _
        // Predicated region
        $region81: #{sudoku_forward.1} parent=59 // pred_check
          %p424 = pneg %p188
        $region82: #{sudoku_forward.1} parent=59 // pred_check_branch
          %426 = sbr.rel (%p424) target = $region84
        $region83: #{sudoku_forward.1} parent=59 // pred_region
          %428 = dma.done [#allocation13], 16
        $region84: #{sudoku_forward.1} parent=59 // pred_fallthru
          _
        %s429 = sand.u32 %s25, 1
        %s430 = scalar_lea.sflag [#allocation5], %s429
        %s431 = sand.u32 %s201, 1
        %s432 = smul.addr %s431, 3456
        %s433 = scalar_lea.vmem [#allocation14], %s432
        // Predicated region
        $region85: #{sudoku_forward.1} parent=59 // pred_check
          %p434 = pneg %p214
        $region86: #{sudoku_forward.1} parent=59 // pred_check_branch
          %436 = sbr.rel (%p434) target = $region88
        $region87: #{sudoku_forward.1} parent=59 // pred_region
          %438 = dma.done %s430, 55296
        $region88: #{sudoku_forward.1} parent=59 // pred_fallthru
          _
        // Predicated region
        $region89: #{sudoku_forward.1} parent=59 // pred_check
          %p439 = pneg %p235
        $region90: #{sudoku_forward.1} parent=59 // pred_check_branch
          %441 = sbr.rel (%p439) target = $region92
        $region91: #{sudoku_forward.1} parent=59 // pred_region
          %443 = dma.done [#allocation7], 96
        $region92: #{sudoku_forward.1} parent=59 // pred_fallthru
          _
        %p444 = pneg %p41
        %p445 = pneg %p38
        %p446 = pneg %p62
        %p447 = pneg %p59
        %p448 = pneg %p83
        %p449 = pneg %p80
        %p450 = pneg %p104
        %p451 = pneg %p101
        %p452 = pneg %p125
        %p453 = pneg %p122
        %p454 = pneg %p146
        %p455 = pneg %p143
        %p456 = pneg %p167
        %p457 = pneg %p164
        %p458 = pneg %p188
        %p459 = pneg %p185
        %s460 = sand.u32 %s25, 1
        %s461 = scalar_lea.sflag [#allocation5], %s460
        %s462 = sand.u32 %s201, 1
        %s463 = smul.addr %s462, 3456
        %s464 = scalar_lea.vmem [#allocation14], %s463
        %p465 = pneg %p214
        %p466 = pneg %p211
        %p467 = pneg %p235
        %p468 = pneg %p232
        %p469 = pneg %p256
        %p470 = pneg %p253
        %s471 = smul.u32 144, %s25
        %p472 = scmp.eq.s32.totalorder %s25, 0
        // Predicated region
        $region93: #{sudoku_forward.1} parent=59 // pred_check
          %p473 = pneg %p472
        $region94: #{sudoku_forward.1} parent=59 // pred_check_branch
          %475 = sbr.rel (%p473) target = $region96
        $region95: #{sudoku_forward.1} parent=59 // pred_region
          %v476 = vld [vmem:[%s0] sm:$0xff]
          %v477 = vld [vmem:[%s0 + $0x8] sm:$0xff]
          %v478 = vld [vmem:[%s0 + $0x10] sm:$0xff]
          %v479 = vld [vmem:[%s0 + $0x18] sm:$0xff]
          %v480 = vld [vmem:[%s0 + $0x20] sm:$0xff]
          %v481 = vld [vmem:[%s0 + $0x28] sm:$0xff]
          %v482 = vld [vmem:[%s0 + $0x30] sm:$0xff]
          %v483 = vld [vmem:[%s0 + $0x38] sm:$0xff]
          %v484 = vld [vmem:[%s0 + $0x40] sm:$0xff]
          %v485 = vld [vmem:[%s0 + $0x48] sm:$0xff]
          %v486 = vld [vmem:[%s0 + $0x50] sm:$0xff]
          %v487 = vld [vmem:[%s0 + $0x58] sm:$0xff]
          %v488 = vld [vmem:[%s0 + $0x60] sm:$0xff]
          %v489 = vld [vmem:[%s0 + $0x68] sm:$0xff]
          %v490 = vld [vmem:[%s0 + $0x70] sm:$0xff]
          %v491 = vld [vmem:[%s0 + $0x78] sm:$0xff]
          %v492 = vld [vmem:[%s0 + $0x80] sm:$0xff]
          %v493 = vld [vmem:[%s0 + $0x88] sm:$0xff]
          %v494 = vld [vmem:[%s0 + $0x90] sm:$0xff]
          %v495 = vld [vmem:[%s0 + $0x98] sm:$0xff]
          %v496 = vld [vmem:[%s0 + $0xa0] sm:$0xff]
          %v497 = vld [vmem:[#allocation4] sm:$0x1]
          %499 = vset.pattern.permute.xlu0 0
          %500 = vperm.xlu0 %499, %v476
          %v501 = vpop.permute.xlu0 %500
          %504 = vset.pattern.permute.xlu0 0
          %505 = vperm.xlu0 %504, %v477
          %v506 = vpop.permute.xlu0 %505
          %509 = vset.pattern.permute.xlu0 0
          %510 = vperm.xlu0 %509, %v478
          %v511 = vpop.permute.xlu0 %510
          %514 = vset.pattern.permute.xlu0 0
          %515 = vperm.xlu0 %514, %v479
          %v516 = vpop.permute.xlu0 %515
          %519 = vset.pattern.permute.xlu0 0
          %520 = vperm.xlu0 %519, %v480
          %v521 = vpop.permute.xlu0 %520
          %524 = vset.pattern.permute.xlu0 0
          %525 = vperm.xlu0 %524, %v481
          %v526 = vpop.permute.xlu0 %525
          %529 = vset.pattern.permute.xlu0 0
          %530 = vperm.xlu0 %529, %v482
          %v531 = vpop.permute.xlu0 %530
          %534 = vset.pattern.permute.xlu0 0
          %535 = vperm.xlu0 %534, %v483
          %v536 = vpop.permute.xlu0 %535
          %539 = vset.pattern.permute.xlu0 0
          %540 = vperm.xlu0 %539, %v484
          %v541 = vpop.permute.xlu0 %540
          %544 = vset.pattern.permute.xlu0 0
          %545 = vperm.xlu0 %544, %v485
          %v546 = vpop.permute.xlu0 %545
          %549 = vset.pattern.permute.xlu0 0
          %550 = vperm.xlu0 %549, %v486
          %v551 = vpop.permute.xlu0 %550
          %554 = vset.pattern.permute.xlu0 0
          %555 = vperm.xlu0 %554, %v487
          %v556 = vpop.permute.xlu0 %555
          %559 = vset.pattern.permute.xlu0 0
          %560 = vperm.xlu0 %559, %v488
          %v561 = vpop.permute.xlu0 %560
          %564 = vset.pattern.permute.xlu0 0
          %565 = vperm.xlu0 %564, %v489
          %v566 = vpop.permute.xlu0 %565
          %569 = vset.pattern.permute.xlu0 0
          %570 = vperm.xlu0 %569, %v490
          %v571 = vpop.permute.xlu0 %570
          %574 = vset.pattern.permute.xlu0 0
          %575 = vperm.xlu0 %574, %v491
          %v576 = vpop.permute.xlu0 %575
          %579 = vset.pattern.permute.xlu0 0
          %580 = vperm.xlu0 %579, %v492
          %v581 = vpop.permute.xlu0 %580
          %584 = vset.pattern.permute.xlu0 0
          %585 = vperm.xlu0 %584, %v493
          %v586 = vpop.permute.xlu0 %585
          %589 = vset.pattern.permute.xlu0 0
          %590 = vperm.xlu0 %589, %v494
          %v591 = vpop.permute.xlu0 %590
          %594 = vset.pattern.permute.xlu0 0
          %595 = vperm.xlu0 %594, %v495
          %v596 = vpop.permute.xlu0 %595
          %599 = vset.pattern.permute.xlu0 0
          %600 = vperm.xlu0 %599, %v496
          %v601 = vpop.permute.xlu0 %600
          %v604 = vperm.slane %v497, 0
          %v606 = vmul.f32 %v501, %v604
          %v607 = vmul.f32 %v506, %v604
          %v608 = vmul.f32 %v511, %v604
          %v609 = vmul.f32 %v516, %v604
          %v610 = vmul.f32 %v521, %v604
          %v611 = vmul.f32 %v526, %v604
          %v612 = vmul.f32 %v531, %v604
          %v613 = vmul.f32 %v536, %v604
          %v614 = vmul.f32 %v541, %v604
          %v615 = vmul.f32 %v546, %v604
          %v616 = vmul.f32 %v551, %v604
          %v617 = vmul.f32 %v556, %v604
          %v618 = vmul.f32 %v561, %v604
          %v619 = vmul.f32 %v566, %v604
          %v620 = vmul.f32 %v571, %v604
          %v621 = vmul.f32 %v576, %v604
          %v622 = vmul.f32 %v581, %v604
          %v623 = vmul.f32 %v586, %v604
          %v624 = vmul.f32 %v591, %v604
          %v625 = vmul.f32 %v596, %v604
          %v626 = vmul.f32 %v601, %v604
          %v627 = vrot.slane %v606, 4
          %v628 = vrot.slane %v607, 4
          %v629 = vrot.slane %v608, 4
          %v630 = vrot.slane %v609, 4
          %v631 = vrot.slane %v610, 4
          %v632 = vrot.slane %v611, 4
          %v633 = vrot.slane %v612, 4
          %v634 = vrot.slane %v613, 4
          %v635 = vrot.slane %v614, 4
          %v636 = vrot.slane %v615, 4
          %v637 = vrot.slane %v616, 4
          %v638 = vrot.slane %v617, 4
          %v639 = vrot.slane %v618, 4
          %v640 = vrot.slane %v619, 4
          %v641 = vrot.slane %v620, 4
          %v642 = vrot.slane %v621, 4
          %v643 = vrot.slane %v622, 4
          %v644 = vrot.slane %v623, 4
          %v645 = vrot.slane %v624, 4
          %v646 = vrot.slane %v625, 4
          %v647 = vrot.slane %v626, 4
          %v648 = vlaneseq
          %v649 = vshrl.u32 %v648, 7
          %vm650 = vcmp.lt.s32.totalorder %v649, 4
          %v651 = vsel %vm650, %v646, %v647
          %v652 = vsel %vm650, %v645, %v646
          %v653 = vsel %vm650, %v644, %v645
          %v654 = vsel %vm650, %v643, %v644
          %v655 = vsel %vm650, %v642, %v643
          %v656 = vsel %vm650, %v641, %v642
          %v657 = vsel %vm650, %v640, %v641
          %v658 = vsel %vm650, %v639, %v640
          %v659 = vsel %vm650, %v638, %v639
          %v660 = vsel %vm650, %v637, %v638
          %v661 = vsel %vm650, %v636, %v637
          %v662 = vsel %vm650, %v635, %v636
          %v663 = vsel %vm650, %v634, %v635
          %v664 = vsel %vm650, %v633, %v634
          %v665 = vsel %vm650, %v632, %v633
          %v666 = vsel %vm650, %v631, %v632
          %v667 = vsel %vm650, %v630, %v631
          %v668 = vsel %vm650, %v629, %v630
          %v669 = vsel %vm650, %v628, %v629
          %v670 = vsel %vm650, %v627, %v628
          %v671 = vsel %vm650, %v647, %v627
          %v672 = vld [vmem:[%s1] sm:$0xff]
          %v673 = vld [vmem:[%s1 + $0x8] sm:$0xff]
          %v674 = vld [vmem:[%s1 + $0x10] sm:$0xff]
          %v675 = vld [vmem:[%s1 + $0x18] sm:$0xff]
          %v676 = vld [vmem:[%s1 + $0x20] sm:$0xff]
          %v677 = vld [vmem:[%s1 + $0x28] sm:$0xff]
          %v678 = vld [vmem:[%s1 + $0x30] sm:$0xff]
          %v679 = vld [vmem:[%s1 + $0x38] sm:$0xff]
          %v680 = vld [vmem:[%s1 + $0x40] sm:$0xff]
          %v681 = vld [vmem:[%s1 + $0x48] sm:$0xff]
          %v682 = vld [vmem:[%s1 + $0x50] sm:$0xff]
          %v683 = vld [vmem:[%s1 + $0x58] sm:$0xff]
          %v684 = vld [vmem:[%s1 + $0x60] sm:$0xff]
          %v685 = vld [vmem:[%s1 + $0x68] sm:$0xff]
          %v686 = vld [vmem:[%s1 + $0x70] sm:$0xff]
          %v687 = vld [vmem:[%s1 + $0x78] sm:$0xff]
          %v688 = vld [vmem:[%s1 + $0x80] sm:$0xff]
          %v689 = vld [vmem:[%s1 + $0x88] sm:$0xff]
          %v690 = vld [vmem:[%s1 + $0x90] sm:$0xff]
          %v691 = vld [vmem:[%s1 + $0x98] sm:$0xff]
          %v692 = vld [vmem:[%s1 + $0xa0] sm:$0xff]
          %694 = vset.pattern.permute.xlu0 0
          %695 = vperm.xlu0 %694, %v672
          %v696 = vpop.permute.xlu0 %695
          %699 = vset.pattern.permute.xlu0 0
          %700 = vperm.xlu0 %699, %v673
          %v701 = vpop.permute.xlu0 %700
          %704 = vset.pattern.permute.xlu0 0
          %705 = vperm.xlu0 %704, %v674
          %v706 = vpop.permute.xlu0 %705
          %709 = vset.pattern.permute.xlu0 0
          %710 = vperm.xlu0 %709, %v675
          %v711 = vpop.permute.xlu0 %710
          %714 = vset.pattern.permute.xlu0 0
          %715 = vperm.xlu0 %714, %v676
          %v716 = vpop.permute.xlu0 %715
          %719 = vset.pattern.permute.xlu0 0
          %720 = vperm.xlu0 %719, %v677
          %v721 = vpop.permute.xlu0 %720
          %724 = vset.pattern.permute.xlu0 0
          %725 = vperm.xlu0 %724, %v678
          %v726 = vpop.permute.xlu0 %725
          %729 = vset.pattern.permute.xlu0 0
          %730 = vperm.xlu0 %729, %v679
          %v731 = vpop.permute.xlu0 %730
          %734 = vset.pattern.permute.xlu0 0
          %735 = vperm.xlu0 %734, %v680
          %v736 = vpop.permute.xlu0 %735
          %739 = vset.pattern.permute.xlu0 0
          %740 = vperm.xlu0 %739, %v681
          %v741 = vpop.permute.xlu0 %740
          %744 = vset.pattern.permute.xlu0 0
          %745 = vperm.xlu0 %744, %v682
          %v746 = vpop.permute.xlu0 %745
          %749 = vset.pattern.permute.xlu0 0
          %750 = vperm.xlu0 %749, %v683
          %v751 = vpop.permute.xlu0 %750
          %754 = vset.pattern.permute.xlu0 0
          %755 = vperm.xlu0 %754, %v684
          %v756 = vpop.permute.xlu0 %755
          %759 = vset.pattern.permute.xlu0 0
          %760 = vperm.xlu0 %759, %v685
          %v761 = vpop.permute.xlu0 %760
          %764 = vset.pattern.permute.xlu0 0
          %765 = vperm.xlu0 %764, %v686
          %v766 = vpop.permute.xlu0 %765
          %769 = vset.pattern.permute.xlu0 0
          %770 = vperm.xlu0 %769, %v687
          %v771 = vpop.permute.xlu0 %770
          %774 = vset.pattern.permute.xlu0 0
          %775 = vperm.xlu0 %774, %v688
          %v776 = vpop.permute.xlu0 %775
          %779 = vset.pattern.permute.xlu0 0
          %780 = vperm.xlu0 %779, %v689
          %v781 = vpop.permute.xlu0 %780
          %784 = vset.pattern.permute.xlu0 0
          %785 = vperm.xlu0 %784, %v690
          %v786 = vpop.permute.xlu0 %785
          %789 = vset.pattern.permute.xlu0 0
          %790 = vperm.xlu0 %789, %v691
          %v791 = vpop.permute.xlu0 %790
          %794 = vset.pattern.permute.xlu0 0
          %795 = vperm.xlu0 %794, %v692
          %v796 = vpop.permute.xlu0 %795
          %v798 = vmul.f32 %v652, %v696
          %v799 = vmul.f32 %v651, %v701
          %v800 = vmul.f32 %v671, %v706
          %v801 = vmul.f32 %v670, %v711
          %v802 = vmul.f32 %v669, %v716
          %v803 = vmul.f32 %v668, %v721
          %v804 = vmul.f32 %v667, %v726
          %v805 = vmul.f32 %v666, %v731
          %v806 = vmul.f32 %v665, %v736
          %v807 = vmul.f32 %v664, %v741
          %v808 = vmul.f32 %v663, %v746
          %v809 = vmul.f32 %v662, %v751
          %v810 = vmul.f32 %v661, %v756
          %v811 = vmul.f32 %v660, %v761
          %v812 = vmul.f32 %v659, %v766
          %v813 = vmul.f32 %v658, %v771
          %v814 = vmul.f32 %v657, %v776
          %v815 = vmul.f32 %v656, %v781
          %v816 = vmul.f32 %v655, %v786
          %v817 = vmul.f32 %v654, %v791
          %v818 = vmul.f32 %v653, %v796
          %v819 = vadd.f32 %v798, 0.0
          %v820 = vadd.f32 %v799, 0.0
          %v821 = vadd.f32 %v800, 0.0
          %v822 = vadd.f32 %v801, 0.0
          %v823 = vadd.f32 %v802, 0.0
          %v824 = vadd.f32 %v803, 0.0
          %v825 = vadd.f32 %v804, 0.0
          %v826 = vadd.f32 %v805, 0.0
          %v827 = vadd.f32 %v806, 0.0
          %v828 = vadd.f32 %v807, 0.0
          %v829 = vadd.f32 %v808, 0.0
          %v830 = vadd.f32 %v809, 0.0
          %v831 = vadd.f32 %v810, 0.0
          %v832 = vadd.f32 %v811, 0.0
          %v833 = vadd.f32 %v812, 0.0
          %v834 = vadd.f32 %v813, 0.0
          %v835 = vadd.f32 %v814, 0.0
          %v836 = vadd.f32 %v815, 0.0
          %v837 = vadd.f32 %v816, 0.0
          %v838 = vadd.f32 %v817, 0.0
          %v839 = vadd.f32 %v818, 0.0
          %v840 = vld [vmem:[#allocation4 + $0x1] sm:$0x1]
          %v842 = vperm.slane %v840, 0
          %v844 = vmul.f32 %v501, %v842
          %v845 = vmul.f32 %v506, %v842
          %v846 = vmul.f32 %v511, %v842
          %v847 = vmul.f32 %v516, %v842
          %v848 = vmul.f32 %v521, %v842
          %v849 = vmul.f32 %v526, %v842
          %v850 = vmul.f32 %v531, %v842
          %v851 = vmul.f32 %v536, %v842
          %v852 = vmul.f32 %v541, %v842
          %v853 = vmul.f32 %v546, %v842
          %v854 = vmul.f32 %v551, %v842
          %v855 = vmul.f32 %v556, %v842
          %v856 = vmul.f32 %v561, %v842
          %v857 = vmul.f32 %v566, %v842
          %v858 = vmul.f32 %v571, %v842
          %v859 = vmul.f32 %v576, %v842
          %v860 = vmul.f32 %v581, %v842
          %v861 = vmul.f32 %v586, %v842
          %v862 = vmul.f32 %v591, %v842
          %v863 = vmul.f32 %v596, %v842
          %v864 = vmul.f32 %v601, %v842
          %v865 = vrot.slane %v844, 6
          %v866 = vrot.slane %v845, 6
          %v867 = vrot.slane %v846, 6
          %v868 = vrot.slane %v847, 6
          %v869 = vrot.slane %v848, 6
          %v870 = vrot.slane %v849, 6
          %v871 = vrot.slane %v850, 6
          %v872 = vrot.slane %v851, 6
          %v873 = vrot.slane %v852, 6
          %v874 = vrot.slane %v853, 6
          %v875 = vrot.slane %v854, 6
          %v876 = vrot.slane %v855, 6
          %v877 = vrot.slane %v856, 6
          %v878 = vrot.slane %v857, 6
          %v879 = vrot.slane %v858, 6
          %v880 = vrot.slane %v859, 6
          %v881 = vrot.slane %v860, 6
          %v882 = vrot.slane %v861, 6
          %v883 = vrot.slane %v862, 6
          %v884 = vrot.slane %v863, 6
          %v885 = vrot.slane %v864, 6
          %vm886 = vcmp.lt.s32.totalorder %v649, 2
          %v887 = vsel %vm886, %v884, %v885
          %v888 = vsel %vm886, %v883, %v884
          %v889 = vsel %vm886, %v882, %v883
          %v890 = vsel %vm886, %v881, %v882
          %v891 = vsel %vm886, %v880, %v881
          %v892 = vsel %vm886, %v879, %v880
          %v893 = vsel %vm886, %v878, %v879
          %v894 = vsel %vm886, %v877, %v878
          %v895 = vsel %vm886, %v876, %v877
          %v896 = vsel %vm886, %v875, %v876
          %v897 = vsel %vm886, %v874, %v875
          %v898 = vsel %vm886, %v873, %v874
          %v899 = vsel %vm886, %v872, %v873
          %v900 = vsel %vm886, %v871, %v872
          %v901 = vsel %vm886, %v870, %v871
          %v902 = vsel %vm886, %v869, %v870
          %v903 = vsel %vm886, %v868, %v869
          %v904 = vsel %vm886, %v867, %v868
          %v905 = vsel %vm886, %v866, %v867
          %v906 = vsel %vm886, %v865, %v866
          %v907 = vsel %vm886, %v885, %v865
          %s908 = scalar_lea.vmem %s1, 168
          %v909 = vld [vmem:[%s908] sm:$0xff]
          %v910 = vld [vmem:[%s908 + $0x8] sm:$0xff]
          %v911 = vld [vmem:[%s908 + $0x10] sm:$0xff]
          %v912 = vld [vmem:[%s908 + $0x18] sm:$0xff]
          %v913 = vld [vmem:[%s908 + $0x20] sm:$0xff]
          %v914 = vld [vmem:[%s908 + $0x28] sm:$0xff]
          %v915 = vld [vmem:[%s908 + $0x30] sm:$0xff]
          %v916 = vld [vmem:[%s908 + $0x38] sm:$0xff]
          %v917 = vld [vmem:[%s908 + $0x40] sm:$0xff]
          %v918 = vld [vmem:[%s908 + $0x48] sm:$0xff]
          %v919 = vld [vmem:[%s908 + $0x50] sm:$0xff]
          %v920 = vld [vmem:[%s908 + $0x58] sm:$0xff]
          %v921 = vld [vmem:[%s908 + $0x60] sm:$0xff]
          %v922 = vld [vmem:[%s908 + $0x68] sm:$0xff]
          %v923 = vld [vmem:[%s908 + $0x70] sm:$0xff]
          %v924 = vld [vmem:[%s908 + $0x78] sm:$0xff]
          %v925 = vld [vmem:[%s908 + $0x80] sm:$0xff]
          %v926 = vld [vmem:[%s908 + $0x88] sm:$0xff]
          %v927 = vld [vmem:[%s908 + $0x90] sm:$0xff]
          %v928 = vld [vmem:[%s908 + $0x98] sm:$0xff]
          %v929 = vld [vmem:[%s908 + $0xa0] sm:$0xff]
          %931 = vset.pattern.permute.xlu0 0
          %932 = vperm.xlu0 %931, %v909
          %v933 = vpop.permute.xlu0 %932
          %936 = vset.pattern.permute.xlu0 0
          %937 = vperm.xlu0 %936, %v910
          %v938 = vpop.permute.xlu0 %937
          %941 = vset.pattern.permute.xlu0 0
          %942 = vperm.xlu0 %941, %v911
          %v943 = vpop.permute.xlu0 %942
          %946 = vset.pattern.permute.xlu0 0
          %947 = vperm.xlu0 %946, %v912
          %v948 = vpop.permute.xlu0 %947
          %951 = vset.pattern.permute.xlu0 0
          %952 = vperm.xlu0 %951, %v913
          %v953 = vpop.permute.xlu0 %952
          %956 = vset.pattern.permute.xlu0 0
          %957 = vperm.xlu0 %956, %v914
          %v958 = vpop.permute.xlu0 %957
          %961 = vset.pattern.permute.xlu0 0
          %962 = vperm.xlu0 %961, %v915
          %v963 = vpop.permute.xlu0 %962
          %966 = vset.pattern.permute.xlu0 0
          %967 = vperm.xlu0 %966, %v916
          %v968 = vpop.permute.xlu0 %967
          %971 = vset.pattern.permute.xlu0 0
          %972 = vperm.xlu0 %971, %v917
          %v973 = vpop.permute.xlu0 %972
          %976 = vset.pattern.permute.xlu0 0
          %977 = vperm.xlu0 %976, %v918
          %v978 = vpop.permute.xlu0 %977
          %981 = vset.pattern.permute.xlu0 0
          %982 = vperm.xlu0 %981, %v919
          %v983 = vpop.permute.xlu0 %982
          %986 = vset.pattern.permute.xlu0 0
          %987 = vperm.xlu0 %986, %v920
          %v988 = vpop.permute.xlu0 %987
          %991 = vset.pattern.permute.xlu0 0
          %992 = vperm.xlu0 %991, %v921
          %v993 = vpop.permute.xlu0 %992
          %996 = vset.pattern.permute.xlu0 0
          %997 = vperm.xlu0 %996, %v922
          %v998 = vpop.permute.xlu0 %997
          %1001 = vset.pattern.permute.xlu0 0
          %1002 = vperm.xlu0 %1001, %v923
          %v1003 = vpop.permute.xlu0 %1002
          %1006 = vset.pattern.permute.xlu0 0
          %1007 = vperm.xlu0 %1006, %v924
          %v1008 = vpop.permute.xlu0 %1007
          %1011 = vset.pattern.permute.xlu0 0
          %1012 = vperm.xlu0 %1011, %v925
          %v1013 = vpop.permute.xlu0 %1012
          %1016 = vset.pattern.permute.xlu0 0
          %1017 = vperm.xlu0 %1016, %v926
          %v1018 = vpop.permute.xlu0 %1017
          %1021 = vset.pattern.permute.xlu0 0
          %1022 = vperm.xlu0 %1021, %v927
          %v1023 = vpop.permute.xlu0 %1022
          %1026 = vset.pattern.permute.xlu0 0
          %1027 = vperm.xlu0 %1026, %v928
          %v1028 = vpop.permute.xlu0 %1027
          %1031 = vset.pattern.permute.xlu0 0
          %1032 = vperm.xlu0 %1031, %v929
          %v1033 = vpop.permute.xlu0 %1032
          %v1035 = vmul.f32 %v888, %v933
          %v1036 = vmul.f32 %v887, %v938
          %v1037 = vmul.f32 %v907, %v943
          %v1038 = vmul.f32 %v906, %v948
          %v1039 = vmul.f32 %v905, %v953
          %v1040 = vmul.f32 %v904, %v958
          %v1041 = vmul.f32 %v903, %v963
          %v1042 = vmul.f32 %v902, %v968
          %v1043 = vmul.f32 %v901, %v973
          %v1044 = vmul.f32 %v900, %v978
          %v1045 = vmul.f32 %v899, %v983
          %v1046 = vmul.f32 %v898, %v988
          %v1047 = vmul.f32 %v897, %v993
          %v1048 = vmul.f32 %v896, %v998
          %v1049 = vmul.f32 %v895, %v1003
          %v1050 = vmul.f32 %v894, %v1008
          %v1051 = vmul.f32 %v893, %v1013
          %v1052 = vmul.f32 %v892, %v1018
          %v1053 = vmul.f32 %v891, %v1023
          %v1054 = vmul.f32 %v890, %v1028
          %v1055 = vmul.f32 %v889, %v1033
          %v1056 = vadd.f32 %v819, %v1035
          %v1057 = vadd.f32 %v820, %v1036
          %v1058 = vadd.f32 %v821, %v1037
          %v1059 = vadd.f32 %v822, %v1038
          %v1060 = vadd.f32 %v823, %v1039
          %v1061 = vadd.f32 %v824, %v1040
          %v1062 = vadd.f32 %v825, %v1041
          %v1063 = vadd.f32 %v826, %v1042
          %v1064 = vadd.f32 %v827, %v1043
          %v1065 = vadd.f32 %v828, %v1044
          %v1066 = vadd.f32 %v829, %v1045
          %v1067 = vadd.f32 %v830, %v1046
          %v1068 = vadd.f32 %v831, %v1047
          %v1069 = vadd.f32 %v832, %v1048
          %v1070 = vadd.f32 %v833, %v1049
          %v1071 = vadd.f32 %v834, %v1050
          %v1072 = vadd.f32 %v835, %v1051
          %v1073 = vadd.f32 %v836, %v1052
          %v1074 = vadd.f32 %v837, %v1053
          %v1075 = vadd.f32 %v838, %v1054
          %v1076 = vadd.f32 %v839, %v1055
          %v1077 = vld [vmem:[#allocation4 + $0x2] sm:$0x1]
          %v1079 = vperm.slane %v1077, 0
          %v1081 = vmul.f32 %v501, %v1079
          %v1082 = vmul.f32 %v506, %v1079
          %v1083 = vmul.f32 %v511, %v1079
          %v1084 = vmul.f32 %v516, %v1079
          %v1085 = vmul.f32 %v521, %v1079
          %v1086 = vmul.f32 %v526, %v1079
          %v1087 = vmul.f32 %v531, %v1079
          %v1088 = vmul.f32 %v536, %v1079
          %v1089 = vmul.f32 %v541, %v1079
          %v1090 = vmul.f32 %v546, %v1079
          %v1091 = vmul.f32 %v551, %v1079
          %v1092 = vmul.f32 %v556, %v1079
          %v1093 = vmul.f32 %v561, %v1079
          %v1094 = vmul.f32 %v566, %v1079
          %v1095 = vmul.f32 %v571, %v1079
          %v1096 = vmul.f32 %v576, %v1079
          %v1097 = vmul.f32 %v581, %v1079
          %v1098 = vmul.f32 %v586, %v1079
          %v1099 = vmul.f32 %v591, %v1079
          %v1100 = vmul.f32 %v596, %v1079
          %v1101 = vmul.f32 %v601, %v1079
          %s1102 = scalar_lea.vmem %s1, 336
          %v1103 = vld [vmem:[%s1102] sm:$0xff]
          %v1104 = vld [vmem:[%s1102 + $0x8] sm:$0xff]
          %v1105 = vld [vmem:[%s1102 + $0x10] sm:$0xff]
          %v1106 = vld [vmem:[%s1102 + $0x18] sm:$0xff]
          %v1107 = vld [vmem:[%s1102 + $0x20] sm:$0xff]
          %v1108 = vld [vmem:[%s1102 + $0x28] sm:$0xff]
          %v1109 = vld [vmem:[%s1102 + $0x30] sm:$0xff]
          %v1110 = vld [vmem:[%s1102 + $0x38] sm:$0xff]
          %v1111 = vld [vmem:[%s1102 + $0x40] sm:$0xff]
          %v1112 = vld [vmem:[%s1102 + $0x48] sm:$0xff]
          %v1113 = vld [vmem:[%s1102 + $0x50] sm:$0xff]
          %v1114 = vld [vmem:[%s1102 + $0x58] sm:$0xff]
          %v1115 = vld [vmem:[%s1102 + $0x60] sm:$0xff]
          %v1116 = vld [vmem:[%s1102 + $0x68] sm:$0xff]
          %v1117 = vld [vmem:[%s1102 + $0x70] sm:$0xff]
          %v1118 = vld [vmem:[%s1102 + $0x78] sm:$0xff]
          %v1119 = vld [vmem:[%s1102 + $0x80] sm:$0xff]
          %v1120 = vld [vmem:[%s1102 + $0x88] sm:$0xff]
          %v1121 = vld [vmem:[%s1102 + $0x90] sm:$0xff]
          %v1122 = vld [vmem:[%s1102 + $0x98] sm:$0xff]
          %v1123 = vld [vmem:[%s1102 + $0xa0] sm:$0xff]
          %1125 = vset.pattern.permute.xlu0 0
          %1126 = vperm.xlu0 %1125, %v1103
          %v1127 = vpop.permute.xlu0 %1126
          %1130 = vset.pattern.permute.xlu0 0
          %1131 = vperm.xlu0 %1130, %v1104
          %v1132 = vpop.permute.xlu0 %1131
          %1135 = vset.pattern.permute.xlu0 0
          %1136 = vperm.xlu0 %1135, %v1105
          %v1137 = vpop.permute.xlu0 %1136
          %1140 = vset.pattern.permute.xlu0 0
          %1141 = vperm.xlu0 %1140, %v1106
          %v1142 = vpop.permute.xlu0 %1141
          %1145 = vset.pattern.permute.xlu0 0
          %1146 = vperm.xlu0 %1145, %v1107
          %v1147 = vpop.permute.xlu0 %1146
          %1150 = vset.pattern.permute.xlu0 0
          %1151 = vperm.xlu0 %1150, %v1108
          %v1152 = vpop.permute.xlu0 %1151
          %1155 = vset.pattern.permute.xlu0 0
          %1156 = vperm.xlu0 %1155, %v1109
          %v1157 = vpop.permute.xlu0 %1156
          %1160 = vset.pattern.permute.xlu0 0
          %1161 = vperm.xlu0 %1160, %v1110
          %v1162 = vpop.permute.xlu0 %1161
          %1165 = vset.pattern.permute.xlu0 0
          %1166 = vperm.xlu0 %1165, %v1111
          %v1167 = vpop.permute.xlu0 %1166
          %1170 = vset.pattern.permute.xlu0 0
          %1171 = vperm.xlu0 %1170, %v1112
          %v1172 = vpop.permute.xlu0 %1171
          %1175 = vset.pattern.permute.xlu0 0
          %1176 = vperm.xlu0 %1175, %v1113
          %v1177 = vpop.permute.xlu0 %1176
          %1180 = vset.pattern.permute.xlu0 0
          %1181 = vperm.xlu0 %1180, %v1114
          %v1182 = vpop.permute.xlu0 %1181
          %1185 = vset.pattern.permute.xlu0 0
          %1186 = vperm.xlu0 %1185, %v1115
          %v1187 = vpop.permute.xlu0 %1186
          %1190 = vset.pattern.permute.xlu0 0
          %1191 = vperm.xlu0 %1190, %v1116
          %v1192 = vpop.permute.xlu0 %1191
          %1195 = vset.pattern.permute.xlu0 0
          %1196 = vperm.xlu0 %1195, %v1117
          %v1197 = vpop.permute.xlu0 %1196
          %1200 = vset.pattern.permute.xlu0 0
          %1201 = vperm.xlu0 %1200, %v1118
          %v1202 = vpop.permute.xlu0 %1201
          %1205 = vset.pattern.permute.xlu0 0
          %1206 = vperm.xlu0 %1205, %v1119
          %v1207 = vpop.permute.xlu0 %1206
          %1210 = vset.pattern.permute.xlu0 0
          %1211 = vperm.xlu0 %1210, %v1120
          %v1212 = vpop.permute.xlu0 %1211
          %1215 = vset.pattern.permute.xlu0 0
          %1216 = vperm.xlu0 %1215, %v1121
          %v1217 = vpop.permute.xlu0 %1216
          %1220 = vset.pattern.permute.xlu0 0
          %1221 = vperm.xlu0 %1220, %v1122
          %v1222 = vpop.permute.xlu0 %1221
          %1225 = vset.pattern.permute.xlu0 0
          %1226 = vperm.xlu0 %1225, %v1123
          %v1227 = vpop.permute.xlu0 %1226
          %v1229 = vmul.f32 %v1100, %v1127
          %v1230 = vmul.f32 %v1101, %v1132
          %v1231 = vmul.f32 %v1081, %v1137
          %v1232 = vmul.f32 %v1082, %v1142
          %v1233 = vmul.f32 %v1083, %v1147
          %v1234 = vmul.f32 %v1084, %v1152
          %v1235 = vmul.f32 %v1085, %v1157
          %v1236 = vmul.f32 %v1086, %v1162
          %v1237 = vmul.f32 %v1087, %v1167
          %v1238 = vmul.f32 %v1088, %v1172
          %v1239 = vmul.f32 %v1089, %v1177
          %v1240 = vmul.f32 %v1090, %v1182
          %v1241 = vmul.f32 %v1091, %v1187
          %v1242 = vmul.f32 %v1092, %v1192
          %v1243 = vmul.f32 %v1093, %v1197
          %v1244 = vmul.f32 %v1094, %v1202
          %v1245 = vmul.f32 %v1095, %v1207
          %v1246 = vmul.f32 %v1096, %v1212
          %v1247 = vmul.f32 %v1097, %v1217
          %v1248 = vmul.f32 %v1098, %v1222
          %v1249 = vmul.f32 %v1099, %v1227
          %v1250 = vadd.f32 %v1056, %v1229
          %v1251 = vadd.f32 %v1057, %v1230
          %v1252 = vadd.f32 %v1058, %v1231
          %v1253 = vadd.f32 %v1059, %v1232
          %v1254 = vadd.f32 %v1060, %v1233
          %v1255 = vadd.f32 %v1061, %v1234
          %v1256 = vadd.f32 %v1062, %v1235
          %v1257 = vadd.f32 %v1063, %v1236
          %v1258 = vadd.f32 %v1064, %v1237
          %v1259 = vadd.f32 %v1065, %v1238
          %v1260 = vadd.f32 %v1066, %v1239
          %v1261 = vadd.f32 %v1067, %v1240
          %v1262 = vadd.f32 %v1068, %v1241
          %v1263 = vadd.f32 %v1069, %v1242
          %v1264 = vadd.f32 %v1070, %v1243
          %v1265 = vadd.f32 %v1071, %v1244
          %v1266 = vadd.f32 %v1072, %v1245
          %v1267 = vadd.f32 %v1073, %v1246
          %v1268 = vadd.f32 %v1074, %v1247
          %v1269 = vadd.f32 %v1075, %v1248
          %v1270 = vadd.f32 %v1076, %v1249
          %v1271 = vld [vmem:[#allocation4 + $0x3] sm:$0x1]
          %v1273 = vperm.slane %v1271, 0
          %v1275 = vmul.f32 %v501, %v1273
          %v1276 = vmul.f32 %v506, %v1273
          %v1277 = vmul.f32 %v511, %v1273
          %v1278 = vmul.f32 %v516, %v1273
          %v1279 = vmul.f32 %v521, %v1273
          %v1280 = vmul.f32 %v526, %v1273
          %v1281 = vmul.f32 %v531, %v1273
          %v1282 = vmul.f32 %v536, %v1273
          %v1283 = vmul.f32 %v541, %v1273
          %v1284 = vmul.f32 %v546, %v1273
          %v1285 = vmul.f32 %v551, %v1273
          %v1286 = vmul.f32 %v556, %v1273
          %v1287 = vmul.f32 %v561, %v1273
          %v1288 = vmul.f32 %v566, %v1273
          %v1289 = vmul.f32 %v571, %v1273
          %v1290 = vmul.f32 %v576, %v1273
          %v1291 = vmul.f32 %v581, %v1273
          %v1292 = vmul.f32 %v586, %v1273
          %v1293 = vmul.f32 %v591, %v1273
          %v1294 = vmul.f32 %v596, %v1273
          %v1295 = vmul.f32 %v601, %v1273
          %v1296 = vrot.slane %v1275, 6
          %v1297 = vrot.slane %v1276, 6
          %v1298 = vrot.slane %v1277, 6
          %v1299 = vrot.slane %v1278, 6
          %v1300 = vrot.slane %v1279, 6
          %v1301 = vrot.slane %v1280, 6
          %v1302 = vrot.slane %v1281, 6
          %v1303 = vrot.slane %v1282, 6
          %v1304 = vrot.slane %v1283, 6
          %v1305 = vrot.slane %v1284, 6
          %v1306 = vrot.slane %v1285, 6
          %v1307 = vrot.slane %v1286, 6
          %v1308 = vrot.slane %v1287, 6
          %v1309 = vrot.slane %v1288, 6
          %v1310 = vrot.slane %v1289, 6
          %v1311 = vrot.slane %v1290, 6
          %v1312 = vrot.slane %v1291, 6
          %v1313 = vrot.slane %v1292, 6
          %v1314 = vrot.slane %v1293, 6
          %v1315 = vrot.slane %v1294, 6
          %v1316 = vrot.slane %v1295, 6
          %v1317 = vsel %vm886, %v1315, %v1316
          %v1318 = vsel %vm886, %v1314, %v1315
          %v1319 = vsel %vm886, %v1313, %v1314
          %v1320 = vsel %vm886, %v1312, %v1313
          %v1321 = vsel %vm886, %v1311, %v1312
          %v1322 = vsel %vm886, %v1310, %v1311
          %v1323 = vsel %vm886, %v1309, %v1310
          %v1324 = vsel %vm886, %v1308, %v1309
          %v1325 = vsel %vm886, %v1307, %v1308
          %v1326 = vsel %vm886, %v1306, %v1307
          %v1327 = vsel %vm886, %v1305, %v1306
          %v1328 = vsel %vm886, %v1304, %v1305
          %v1329 = vsel %vm886, %v1303, %v1304
          %v1330 = vsel %vm886, %v1302, %v1303
          %v1331 = vsel %vm886, %v1301, %v1302
          %v1332 = vsel %vm886, %v1300, %v1301
          %v1333 = vsel %vm886, %v1299, %v1300
          %v1334 = vsel %vm886, %v1298, %v1299
          %v1335 = vsel %vm886, %v1297, %v1298
          %v1336 = vsel %vm886, %v1296, %v1297
          %v1337 = vsel %vm886, %v1316, %v1296
          %s1338 = scalar_lea.vmem %s1, 504
          %v1339 = vld [vmem:[%s1338] sm:$0xff]
          %v1340 = vld [vmem:[%s1338 + $0x8] sm:$0xff]
          %v1341 = vld [vmem:[%s1338 + $0x10] sm:$0xff]
          %v1342 = vld [vmem:[%s1338 + $0x18] sm:$0xff]
          %v1343 = vld [vmem:[%s1338 + $0x20] sm:$0xff]
          %v1344 = vld [vmem:[%s1338 + $0x28] sm:$0xff]
          %v1345 = vld [vmem:[%s1338 + $0x30] sm:$0xff]
          %v1346 = vld [vmem:[%s1338 + $0x38] sm:$0xff]
          %v1347 = vld [vmem:[%s1338 + $0x40] sm:$0xff]
          %v1348 = vld [vmem:[%s1338 + $0x48] sm:$0xff]
          %v1349 = vld [vmem:[%s1338 + $0x50] sm:$0xff]
          %v1350 = vld [vmem:[%s1338 + $0x58] sm:$0xff]
          %v1351 = vld [vmem:[%s1338 + $0x60] sm:$0xff]
          %v1352 = vld [vmem:[%s1338 + $0x68] sm:$0xff]
          %v1353 = vld [vmem:[%s1338 + $0x70] sm:$0xff]
          %v1354 = vld [vmem:[%s1338 + $0x78] sm:$0xff]
          %v1355 = vld [vmem:[%s1338 + $0x80] sm:$0xff]
          %v1356 = vld [vmem:[%s1338 + $0x88] sm:$0xff]
          %v1357 = vld [vmem:[%s1338 + $0x90] sm:$0xff]
          %v1358 = vld [vmem:[%s1338 + $0x98] sm:$0xff]
          %v1359 = vld [vmem:[%s1338 + $0xa0] sm:$0xff]
          %1361 = vset.pattern.permute.xlu0 0
          %1362 = vperm.xlu0 %1361, %v1339
          %v1363 = vpop.permute.xlu0 %1362
          %1366 = vset.pattern.permute.xlu0 0
          %1367 = vperm.xlu0 %1366, %v1340
          %v1368 = vpop.permute.xlu0 %1367
          %1371 = vset.pattern.permute.xlu0 0
          %1372 = vperm.xlu0 %1371, %v1341
          %v1373 = vpop.permute.xlu0 %1372
          %1376 = vset.pattern.permute.xlu0 0
          %1377 = vperm.xlu0 %1376, %v1342
          %v1378 = vpop.permute.xlu0 %1377
          %1381 = vset.pattern.permute.xlu0 0
          %1382 = vperm.xlu0 %1381, %v1343
          %v1383 = vpop.permute.xlu0 %1382
          %1386 = vset.pattern.permute.xlu0 0
          %1387 = vperm.xlu0 %1386, %v1344
          %v1388 = vpop.permute.xlu0 %1387
          %1391 = vset.pattern.permute.xlu0 0
          %1392 = vperm.xlu0 %1391, %v1345
          %v1393 = vpop.permute.xlu0 %1392
          %1396 = vset.pattern.permute.xlu0 0
          %1397 = vperm.xlu0 %1396, %v1346
          %v1398 = vpop.permute.xlu0 %1397
          %1401 = vset.pattern.permute.xlu0 0
          %1402 = vperm.xlu0 %1401, %v1347
          %v1403 = vpop.permute.xlu0 %1402
          %1406 = vset.pattern.permute.xlu0 0
          %1407 = vperm.xlu0 %1406, %v1348
          %v1408 = vpop.permute.xlu0 %1407
          %1411 = vset.pattern.permute.xlu0 0
          %1412 = vperm.xlu0 %1411, %v1349
          %v1413 = vpop.permute.xlu0 %1412
          %1416 = vset.pattern.permute.xlu0 0
          %1417 = vperm.xlu0 %1416, %v1350
          %v1418 = vpop.permute.xlu0 %1417
          %1421 = vset.pattern.permute.xlu0 0
          %1422 = vperm.xlu0 %1421, %v1351
          %v1423 = vpop.permute.xlu0 %1422
          %1426 = vset.pattern.permute.xlu0 0
          %1427 = vperm.xlu0 %1426, %v1352
          %v1428 = vpop.permute.xlu0 %1427
          %1431 = vset.pattern.permute.xlu0 0
          %1432 = vperm.xlu0 %1431, %v1353
          %v1433 = vpop.permute.xlu0 %1432
          %1436 = vset.pattern.permute.xlu0 0
          %1437 = vperm.xlu0 %1436, %v1354
          %v1438 = vpop.permute.xlu0 %1437
          %1441 = vset.pattern.permute.xlu0 0
          %1442 = vperm.xlu0 %1441, %v1355
          %v1443 = vpop.permute.xlu0 %1442
          %1446 = vset.pattern.permute.xlu0 0
          %1447 = vperm.xlu0 %1446, %v1356
          %v1448 = vpop.permute.xlu0 %1447
          %1451 = vset.pattern.permute.xlu0 0
          %1452 = vperm.xlu0 %1451, %v1357
          %v1453 = vpop.permute.xlu0 %1452
          %1456 = vset.pattern.permute.xlu0 0
          %1457 = vperm.xlu0 %1456, %v1358
          %v1458 = vpop.permute.xlu0 %1457
          %1461 = vset.pattern.permute.xlu0 0
          %1462 = vperm.xlu0 %1461, %v1359
          %v1463 = vpop.permute.xlu0 %1462
          %v1465 = vmul.f32 %v1337, %v1363
          %v1466 = vmul.f32 %v1336, %v1368
          %v1467 = vmul.f32 %v1335, %v1373
          %v1468 = vmul.f32 %v1334, %v1378
          %v1469 = vmul.f32 %v1333, %v1383
          %v1470 = vmul.f32 %v1332, %v1388
          %v1471 = vmul.f32 %v1331, %v1393
          %v1472 = vmul.f32 %v1330, %v1398
          %v1473 = vmul.f32 %v1329, %v1403
          %v1474 = vmul.f32 %v1328, %v1408
          %v1475 = vmul.f32 %v1327, %v1413
          %v1476 = vmul.f32 %v1326, %v1418
          %v1477 = vmul.f32 %v1325, %v1423
          %v1478 = vmul.f32 %v1324, %v1428
          %v1479 = vmul.f32 %v1323, %v1433
          %v1480 = vmul.f32 %v1322, %v1438
          %v1481 = vmul.f32 %v1321, %v1443
          %v1482 = vmul.f32 %v1320, %v1448
          %v1483 = vmul.f32 %v1319, %v1453
          %v1484 = vmul.f32 %v1318, %v1458
          %v1485 = vmul.f32 %v1317, %v1463
          %v1486 = vadd.f32 %v1250, %v1465
          %v1487 = vadd.f32 %v1251, %v1466
          %v1488 = vadd.f32 %v1252, %v1467
          %v1489 = vadd.f32 %v1253, %v1468
          %v1490 = vadd.f32 %v1254, %v1469
          %v1491 = vadd.f32 %v1255, %v1470
          %v1492 = vadd.f32 %v1256, %v1471
          %v1493 = vadd.f32 %v1257, %v1472
          %v1494 = vadd.f32 %v1258, %v1473
          %v1495 = vadd.f32 %v1259, %v1474
          %v1496 = vadd.f32 %v1260, %v1475
          %v1497 = vadd.f32 %v1261, %v1476
          %v1498 = vadd.f32 %v1262, %v1477
          %v1499 = vadd.f32 %v1263, %v1478
          %v1500 = vadd.f32 %v1264, %v1479
          %v1501 = vadd.f32 %v1265, %v1480
          %v1502 = vadd.f32 %v1266, %v1481
          %v1503 = vadd.f32 %v1267, %v1482
          %v1504 = vadd.f32 %v1268, %v1483
          %v1505 = vadd.f32 %v1269, %v1484
          %v1506 = vadd.f32 %v1270, %v1485
          %v1507 = vld [vmem:[#allocation4 + $0x4] sm:$0x1]
          %v1509 = vperm.slane %v1507, 0
          %v1511 = vmul.f32 %v501, %v1509
          %v1512 = vmul.f32 %v506, %v1509
          %v1513 = vmul.f32 %v511, %v1509
          %v1514 = vmul.f32 %v516, %v1509
          %v1515 = vmul.f32 %v521, %v1509
          %v1516 = vmul.f32 %v526, %v1509
          %v1517 = vmul.f32 %v531, %v1509
          %v1518 = vmul.f32 %v536, %v1509
          %v1519 = vmul.f32 %v541, %v1509
          %v1520 = vmul.f32 %v546, %v1509
          %v1521 = vmul.f32 %v551, %v1509
          %v1522 = vmul.f32 %v556, %v1509
          %v1523 = vmul.f32 %v561, %v1509
          %v1524 = vmul.f32 %v566, %v1509
          %v1525 = vmul.f32 %v571, %v1509
          %v1526 = vmul.f32 %v576, %v1509
          %v1527 = vmul.f32 %v581, %v1509
          %v1528 = vmul.f32 %v586, %v1509
          %v1529 = vmul.f32 %v591, %v1509
          %v1530 = vmul.f32 %v596, %v1509
          %v1531 = vmul.f32 %v601, %v1509
          %s1532 = scalar_lea.vmem %s1, 672
          %v1533 = vld [vmem:[%s1532] sm:$0xff]
          %v1534 = vld [vmem:[%s1532 + $0x8] sm:$0xff]
          %v1535 = vld [vmem:[%s1532 + $0x10] sm:$0xff]
          %v1536 = vld [vmem:[%s1532 + $0x18] sm:$0xff]
          %v1537 = vld [vmem:[%s1532 + $0x20] sm:$0xff]
          %v1538 = vld [vmem:[%s1532 + $0x28] sm:$0xff]
          %v1539 = vld [vmem:[%s1532 + $0x30] sm:$0xff]
          %v1540 = vld [vmem:[%s1532 + $0x38] sm:$0xff]
          %v1541 = vld [vmem:[%s1532 + $0x40] sm:$0xff]
          %v1542 = vld [vmem:[%s1532 + $0x48] sm:$0xff]
          %v1543 = vld [vmem:[%s1532 + $0x50] sm:$0xff]
          %v1544 = vld [vmem:[%s1532 + $0x58] sm:$0xff]
          %v1545 = vld [vmem:[%s1532 + $0x60] sm:$0xff]
          %v1546 = vld [vmem:[%s1532 + $0x68] sm:$0xff]
          %v1547 = vld [vmem:[%s1532 + $0x70] sm:$0xff]
          %v1548 = vld [vmem:[%s1532 + $0x78] sm:$0xff]
          %v1549 = vld [vmem:[%s1532 + $0x80] sm:$0xff]
          %v1550 = vld [vmem:[%s1532 + $0x88] sm:$0xff]
          %v1551 = vld [vmem:[%s1532 + $0x90] sm:$0xff]
          %v1552 = vld [vmem:[%s1532 + $0x98] sm:$0xff]
          %v1553 = vld [vmem:[%s1532 + $0xa0] sm:$0xff]
          %1555 = vset.pattern.permute.xlu0 0
          %1556 = vperm.xlu0 %1555, %v1533
          %v1557 = vpop.permute.xlu0 %1556
          %1560 = vset.pattern.permute.xlu0 0
          %1561 = vperm.xlu0 %1560, %v1534
          %v1562 = vpop.permute.xlu0 %1561
          %1565 = vset.pattern.permute.xlu0 0
          %1566 = vperm.xlu0 %1565, %v1535
          %v1567 = vpop.permute.xlu0 %1566
          %1570 = vset.pattern.permute.xlu0 0
          %1571 = vperm.xlu0 %1570, %v1536
          %v1572 = vpop.permute.xlu0 %1571
          %1575 = vset.pattern.permute.xlu0 0
          %1576 = vperm.xlu0 %1575, %v1537
          %v1577 = vpop.permute.xlu0 %1576
          %1580 = vset.pattern.permute.xlu0 0
          %1581 = vperm.xlu0 %1580, %v1538
          %v1582 = vpop.permute.xlu0 %1581
          %1585 = vset.pattern.permute.xlu0 0
          %1586 = vperm.xlu0 %1585, %v1539
          %v1587 = vpop.permute.xlu0 %1586
          %1590 = vset.pattern.permute.xlu0 0
          %1591 = vperm.xlu0 %1590, %v1540
          %v1592 = vpop.permute.xlu0 %1591
          %1595 = vset.pattern.permute.xlu0 0
          %1596 = vperm.xlu0 %1595, %v1541
          %v1597 = vpop.permute.xlu0 %1596
          %1600 = vset.pattern.permute.xlu0 0
          %1601 = vperm.xlu0 %1600, %v1542
          %v1602 = vpop.permute.xlu0 %1601
          %1605 = vset.pattern.permute.xlu0 0
          %1606 = vperm.xlu0 %1605, %v1543
          %v1607 = vpop.permute.xlu0 %1606
          %1610 = vset.pattern.permute.xlu0 0
          %1611 = vperm.xlu0 %1610, %v1544
          %v1612 = vpop.permute.xlu0 %1611
          %1615 = vset.pattern.permute.xlu0 0
          %1616 = vperm.xlu0 %1615, %v1545
          %v1617 = vpop.permute.xlu0 %1616
          %1620 = vset.pattern.permute.xlu0 0
          %1621 = vperm.xlu0 %1620, %v1546
          %v1622 = vpop.permute.xlu0 %1621
          %1625 = vset.pattern.permute.xlu0 0
          %1626 = vperm.xlu0 %1625, %v1547
          %v1627 = vpop.permute.xlu0 %1626
          %1630 = vset.pattern.permute.xlu0 0
          %1631 = vperm.xlu0 %1630, %v1548
          %v1632 = vpop.permute.xlu0 %1631
          %1635 = vset.pattern.permute.xlu0 0
          %1636 = vperm.xlu0 %1635, %v1549
          %v1637 = vpop.permute.xlu0 %1636
          %1640 = vset.pattern.permute.xlu0 0
          %1641 = vperm.xlu0 %1640, %v1550
          %v1642 = vpop.permute.xlu0 %1641
          %1645 = vset.pattern.permute.xlu0 0
          %1646 = vperm.xlu0 %1645, %v1551
          %v1647 = vpop.permute.xlu0 %1646
          %1650 = vset.pattern.permute.xlu0 0
          %1651 = vperm.xlu0 %1650, %v1552
          %v1652 = vpop.permute.xlu0 %1651
          %1655 = vset.pattern.permute.xlu0 0
          %1656 = vperm.xlu0 %1655, %v1553
          %v1657 = vpop.permute.xlu0 %1656
          %v1659 = vmul.f32 %v1511, %v1557
          %v1660 = vmul.f32 %v1512, %v1562
          %v1661 = vmul.f32 %v1513, %v1567
          %v1662 = vmul.f32 %v1514, %v1572
          %v1663 = vmul.f32 %v1515, %v1577
          %v1664 = vmul.f32 %v1516, %v1582
          %v1665 = vmul.f32 %v1517, %v1587
          %v1666 = vmul.f32 %v1518, %v1592
          %v1667 = vmul.f32 %v1519, %v1597
          %v1668 = vmul.f32 %v1520, %v1602
          %v1669 = vmul.f32 %v1521, %v1607
          %v1670 = vmul.f32 %v1522, %v1612
          %v1671 = vmul.f32 %v1523, %v1617
          %v1672 = vmul.f32 %v1524, %v1622
          %v1673 = vmul.f32 %v1525, %v1627
          %v1674 = vmul.f32 %v1526, %v1632
          %v1675 = vmul.f32 %v1527, %v1637
          %v1676 = vmul.f32 %v1528, %v1642
          %v1677 = vmul.f32 %v1529, %v1647
          %v1678 = vmul.f32 %v1530, %v1652
          %v1679 = vmul.f32 %v1531, %v1657
          %v1680 = vadd.f32 %v1486, %v1659
          %v1681 = vadd.f32 %v1487, %v1660
          %v1682 = vadd.f32 %v1488, %v1661
          %v1683 = vadd.f32 %v1489, %v1662
          %v1684 = vadd.f32 %v1490, %v1663
          %v1685 = vadd.f32 %v1491, %v1664
          %v1686 = vadd.f32 %v1492, %v1665
          %v1687 = vadd.f32 %v1493, %v1666
          %v1688 = vadd.f32 %v1494, %v1667
          %v1689 = vadd.f32 %v1495, %v1668
          %v1690 = vadd.f32 %v1496, %v1669
          %v1691 = vadd.f32 %v1497, %v1670
          %v1692 = vadd.f32 %v1498, %v1671
          %v1693 = vadd.f32 %v1499, %v1672
          %v1694 = vadd.f32 %v1500, %v1673
          %v1695 = vadd.f32 %v1501, %v1674
          %v1696 = vadd.f32 %v1502, %v1675
          %v1697 = vadd.f32 %v1503, %v1676
          %v1698 = vadd.f32 %v1504, %v1677
          %v1699 = vadd.f32 %v1505, %v1678
          %v1700 = vadd.f32 %v1506, %v1679
          %v1701 = vld [vmem:[#allocation4 + $0x5] sm:$0x1]
          %v1703 = vperm.slane %v1701, 0
          %v1705 = vmul.f32 %v501, %v1703
          %v1706 = vmul.f32 %v506, %v1703
          %v1707 = vmul.f32 %v511, %v1703
          %v1708 = vmul.f32 %v516, %v1703
          %v1709 = vmul.f32 %v521, %v1703
          %v1710 = vmul.f32 %v526, %v1703
          %v1711 = vmul.f32 %v531, %v1703
          %v1712 = vmul.f32 %v536, %v1703
          %v1713 = vmul.f32 %v541, %v1703
          %v1714 = vmul.f32 %v546, %v1703
          %v1715 = vmul.f32 %v551, %v1703
          %v1716 = vmul.f32 %v556, %v1703
          %v1717 = vmul.f32 %v561, %v1703
          %v1718 = vmul.f32 %v566, %v1703
          %v1719 = vmul.f32 %v571, %v1703
          %v1720 = vmul.f32 %v576, %v1703
          %v1721 = vmul.f32 %v581, %v1703
          %v1722 = vmul.f32 %v586, %v1703
          %v1723 = vmul.f32 %v591, %v1703
          %v1724 = vmul.f32 %v596, %v1703
          %v1725 = vmul.f32 %v601, %v1703
          %v1726 = vrot.slane %v1705, 2
          %v1727 = vrot.slane %v1706, 2
          %v1728 = vrot.slane %v1707, 2
          %v1729 = vrot.slane %v1708, 2
          %v1730 = vrot.slane %v1709, 2
          %v1731 = vrot.slane %v1710, 2
          %v1732 = vrot.slane %v1711, 2
          %v1733 = vrot.slane %v1712, 2
          %v1734 = vrot.slane %v1713, 2
          %v1735 = vrot.slane %v1714, 2
          %v1736 = vrot.slane %v1715, 2
          %v1737 = vrot.slane %v1716, 2
          %v1738 = vrot.slane %v1717, 2
          %v1739 = vrot.slane %v1718, 2
          %v1740 = vrot.slane %v1719, 2
          %v1741 = vrot.slane %v1720, 2
          %v1742 = vrot.slane %v1721, 2
          %v1743 = vrot.slane %v1722, 2
          %v1744 = vrot.slane %v1723, 2
          %v1745 = vrot.slane %v1724, 2
          %v1746 = vrot.slane %v1725, 2
          %vm1747 = vcmp.lt.s32.totalorder %v649, 6
          %v1748 = vsel %vm1747, %v1745, %v1746
          %v1749 = vsel %vm1747, %v1744, %v1745
          %v1750 = vsel %vm1747, %v1743, %v1744
          %v1751 = vsel %vm1747, %v1742, %v1743
          %v1752 = vsel %vm1747, %v1741, %v1742
          %v1753 = vsel %vm1747, %v1740, %v1741
          %v1754 = vsel %vm1747, %v1739, %v1740
          %v1755 = vsel %vm1747, %v1738, %v1739
          %v1756 = vsel %vm1747, %v1737, %v1738
          %v1757 = vsel %vm1747, %v1736, %v1737
          %v1758 = vsel %vm1747, %v1735, %v1736
          %v1759 = vsel %vm1747, %v1734, %v1735
          %v1760 = vsel %vm1747, %v1733, %v1734
          %v1761 = vsel %vm1747, %v1732, %v1733
          %v1762 = vsel %vm1747, %v1731, %v1732
          %v1763 = vsel %vm1747, %v1730, %v1731
          %v1764 = vsel %vm1747, %v1729, %v1730
          %v1765 = vsel %vm1747, %v1728, %v1729
          %v1766 = vsel %vm1747, %v1727, %v1728
          %v1767 = vsel %vm1747, %v1726, %v1727
          %v1768 = vsel %vm1747, %v1746, %v1726
          %s1769 = scalar_lea.vmem %s1, 840
          %v1770 = vld [vmem:[%s1769] sm:$0xff]
          %v1771 = vld [vmem:[%s1769 + $0x8] sm:$0xff]
          %v1772 = vld [vmem:[%s1769 + $0x10] sm:$0xff]
          %v1773 = vld [vmem:[%s1769 + $0x18] sm:$0xff]
          %v1774 = vld [vmem:[%s1769 + $0x20] sm:$0xff]
          %v1775 = vld [vmem:[%s1769 + $0x28] sm:$0xff]
          %v1776 = vld [vmem:[%s1769 + $0x30] sm:$0xff]
          %v1777 = vld [vmem:[%s1769 + $0x38] sm:$0xff]
          %v1778 = vld [vmem:[%s1769 + $0x40] sm:$0xff]
          %v1779 = vld [vmem:[%s1769 + $0x48] sm:$0xff]
          %v1780 = vld [vmem:[%s1769 + $0x50] sm:$0xff]
          %v1781 = vld [vmem:[%s1769 + $0x58] sm:$0xff]
          %v1782 = vld [vmem:[%s1769 + $0x60] sm:$0xff]
          %v1783 = vld [vmem:[%s1769 + $0x68] sm:$0xff]
          %v1784 = vld [vmem:[%s1769 + $0x70] sm:$0xff]
          %v1785 = vld [vmem:[%s1769 + $0x78] sm:$0xff]
          %v1786 = vld [vmem:[%s1769 + $0x80] sm:$0xff]
          %v1787 = vld [vmem:[%s1769 + $0x88] sm:$0xff]
          %v1788 = vld [vmem:[%s1769 + $0x90] sm:$0xff]
          %v1789 = vld [vmem:[%s1769 + $0x98] sm:$0xff]
          %v1790 = vld [vmem:[%s1769 + $0xa0] sm:$0xff]
          %1792 = vset.pattern.permute.xlu0 0
          %1793 = vperm.xlu0 %1792, %v1770
          %v1794 = vpop.permute.xlu0 %1793
          %1797 = vset.pattern.permute.xlu0 0
          %1798 = vperm.xlu0 %1797, %v1771
          %v1799 = vpop.permute.xlu0 %1798
          %1802 = vset.pattern.permute.xlu0 0
          %1803 = vperm.xlu0 %1802, %v1772
          %v1804 = vpop.permute.xlu0 %1803
          %1807 = vset.pattern.permute.xlu0 0
          %1808 = vperm.xlu0 %1807, %v1773
          %v1809 = vpop.permute.xlu0 %1808
          %1812 = vset.pattern.permute.xlu0 0
          %1813 = vperm.xlu0 %1812, %v1774
          %v1814 = vpop.permute.xlu0 %1813
          %1817 = vset.pattern.permute.xlu0 0
          %1818 = vperm.xlu0 %1817, %v1775
          %v1819 = vpop.permute.xlu0 %1818
          %1822 = vset.pattern.permute.xlu0 0
          %1823 = vperm.xlu0 %1822, %v1776
          %v1824 = vpop.permute.xlu0 %1823
          %1827 = vset.pattern.permute.xlu0 0
          %1828 = vperm.xlu0 %1827, %v1777
          %v1829 = vpop.permute.xlu0 %1828
          %1832 = vset.pattern.permute.xlu0 0
          %1833 = vperm.xlu0 %1832, %v1778
          %v1834 = vpop.permute.xlu0 %1833
          %1837 = vset.pattern.permute.xlu0 0
          %1838 = vperm.xlu0 %1837, %v1779
          %v1839 = vpop.permute.xlu0 %1838
          %1842 = vset.pattern.permute.xlu0 0
          %1843 = vperm.xlu0 %1842, %v1780
          %v1844 = vpop.permute.xlu0 %1843
          %1847 = vset.pattern.permute.xlu0 0
          %1848 = vperm.xlu0 %1847, %v1781
          %v1849 = vpop.permute.xlu0 %1848
          %1852 = vset.pattern.permute.xlu0 0
          %1853 = vperm.xlu0 %1852, %v1782
          %v1854 = vpop.permute.xlu0 %1853
          %1857 = vset.pattern.permute.xlu0 0
          %1858 = vperm.xlu0 %1857, %v1783
          %v1859 = vpop.permute.xlu0 %1858
          %1862 = vset.pattern.permute.xlu0 0
          %1863 = vperm.xlu0 %1862, %v1784
          %v1864 = vpop.permute.xlu0 %1863
          %1867 = vset.pattern.permute.xlu0 0
          %1868 = vperm.xlu0 %1867, %v1785
          %v1869 = vpop.permute.xlu0 %1868
          %1872 = vset.pattern.permute.xlu0 0
          %1873 = vperm.xlu0 %1872, %v1786
          %v1874 = vpop.permute.xlu0 %1873
          %1877 = vset.pattern.permute.xlu0 0
          %1878 = vperm.xlu0 %1877, %v1787
          %v1879 = vpop.permute.xlu0 %1878
          %1882 = vset.pattern.permute.xlu0 0
          %1883 = vperm.xlu0 %1882, %v1788
          %v1884 = vpop.permute.xlu0 %1883
          %1887 = vset.pattern.permute.xlu0 0
          %1888 = vperm.xlu0 %1887, %v1789
          %v1889 = vpop.permute.xlu0 %1888
          %1892 = vset.pattern.permute.xlu0 0
          %1893 = vperm.xlu0 %1892, %v1790
          %v1894 = vpop.permute.xlu0 %1893
          %v1896 = vmul.f32 %v1767, %v1794
          %v1897 = vmul.f32 %v1766, %v1799
          %v1898 = vmul.f32 %v1765, %v1804
          %v1899 = vmul.f32 %v1764, %v1809
          %v1900 = vmul.f32 %v1763, %v1814
          %v1901 = vmul.f32 %v1762, %v1819
          %v1902 = vmul.f32 %v1761, %v1824
          %v1903 = vmul.f32 %v1760, %v1829
          %v1904 = vmul.f32 %v1759, %v1834
          %v1905 = vmul.f32 %v1758, %v1839
          %v1906 = vmul.f32 %v1757, %v1844
          %v1907 = vmul.f32 %v1756, %v1849
          %v1908 = vmul.f32 %v1755, %v1854
          %v1909 = vmul.f32 %v1754, %v1859
          %v1910 = vmul.f32 %v1753, %v1864
          %v1911 = vmul.f32 %v1752, %v1869
          %v1912 = vmul.f32 %v1751, %v1874
          %v1913 = vmul.f32 %v1750, %v1879
          %v1914 = vmul.f32 %v1749, %v1884
          %v1915 = vmul.f32 %v1748, %v1889
          %v1916 = vmul.f32 %v1768, %v1894
          %v1917 = vadd.f32 %v1680, %v1896
          %v1918 = vadd.f32 %v1681, %v1897
          %v1919 = vadd.f32 %v1682, %v1898
          %v1920 = vadd.f32 %v1683, %v1899
          %v1921 = vadd.f32 %v1684, %v1900
          %v1922 = vadd.f32 %v1685, %v1901
          %v1923 = vadd.f32 %v1686, %v1902
          %v1924 = vadd.f32 %v1687, %v1903
          %v1925 = vadd.f32 %v1688, %v1904
          %v1926 = vadd.f32 %v1689, %v1905
          %v1927 = vadd.f32 %v1690, %v1906
          %v1928 = vadd.f32 %v1691, %v1907
          %v1929 = vadd.f32 %v1692, %v1908
          %v1930 = vadd.f32 %v1693, %v1909
          %v1931 = vadd.f32 %v1694, %v1910
          %v1932 = vadd.f32 %v1695, %v1911
          %v1933 = vadd.f32 %v1696, %v1912
          %v1934 = vadd.f32 %v1697, %v1913
          %v1935 = vadd.f32 %v1698, %v1914
          %v1936 = vadd.f32 %v1699, %v1915
          %v1937 = vadd.f32 %v1700, %v1916
          %v1938 = vld [vmem:[#allocation4 + $0x6] sm:$0x1]
          %v1940 = vperm.slane %v1938, 0
          %v1942 = vmul.f32 %v501, %v1940
          %v1943 = vmul.f32 %v506, %v1940
          %v1944 = vmul.f32 %v511, %v1940
          %v1945 = vmul.f32 %v516, %v1940
          %v1946 = vmul.f32 %v521, %v1940
          %v1947 = vmul.f32 %v526, %v1940
          %v1948 = vmul.f32 %v531, %v1940
          %v1949 = vmul.f32 %v536, %v1940
          %v1950 = vmul.f32 %v541, %v1940
          %v1951 = vmul.f32 %v546, %v1940
          %v1952 = vmul.f32 %v551, %v1940
          %v1953 = vmul.f32 %v556, %v1940
          %v1954 = vmul.f32 %v561, %v1940
          %v1955 = vmul.f32 %v566, %v1940
          %v1956 = vmul.f32 %v571, %v1940
          %v1957 = vmul.f32 %v576, %v1940
          %v1958 = vmul.f32 %v581, %v1940
          %v1959 = vmul.f32 %v586, %v1940
          %v1960 = vmul.f32 %v591, %v1940
          %v1961 = vmul.f32 %v596, %v1940
          %v1962 = vmul.f32 %v601, %v1940
          %s1963 = scalar_lea.vmem %s1, 1008
          %v1964 = vld [vmem:[%s1963] sm:$0xff]
          %v1965 = vld [vmem:[%s1963 + $0x8] sm:$0xff]
          %v1966 = vld [vmem:[%s1963 + $0x10] sm:$0xff]
          %v1967 = vld [vmem:[%s1963 + $0x18] sm:$0xff]
          %v1968 = vld [vmem:[%s1963 + $0x20] sm:$0xff]
          %v1969 = vld [vmem:[%s1963 + $0x28] sm:$0xff]
          %v1970 = vld [vmem:[%s1963 + $0x30] sm:$0xff]
          %v1971 = vld [vmem:[%s1963 + $0x38] sm:$0xff]
          %v1972 = vld [vmem:[%s1963 + $0x40] sm:$0xff]
          %v1973 = vld [vmem:[%s1963 + $0x48] sm:$0xff]
          %v1974 = vld [vmem:[%s1963 + $0x50] sm:$0xff]
          %v1975 = vld [vmem:[%s1963 + $0x58] sm:$0xff]
          %v1976 = vld [vmem:[%s1963 + $0x60] sm:$0xff]
          %v1977 = vld [vmem:[%s1963 + $0x68] sm:$0xff]
          %v1978 = vld [vmem:[%s1963 + $0x70] sm:$0xff]
          %v1979 = vld [vmem:[%s1963 + $0x78] sm:$0xff]
          %v1980 = vld [vmem:[%s1963 + $0x80] sm:$0xff]
          %v1981 = vld [vmem:[%s1963 + $0x88] sm:$0xff]
          %v1982 = vld [vmem:[%s1963 + $0x90] sm:$0xff]
          %v1983 = vld [vmem:[%s1963 + $0x98] sm:$0xff]
          %v1984 = vld [vmem:[%s1963 + $0xa0] sm:$0xff]
          %1986 = vset.pattern.permute.xlu0 0
          %1987 = vperm.xlu0 %1986, %v1964
          %v1988 = vpop.permute.xlu0 %1987
          %1991 = vset.pattern.permute.xlu0 0
          %1992 = vperm.xlu0 %1991, %v1965
          %v1993 = vpop.permute.xlu0 %1992
          %1996 = vset.pattern.permute.xlu0 0
          %1997 = vperm.xlu0 %1996, %v1966
          %v1998 = vpop.permute.xlu0 %1997
          %2001 = vset.pattern.permute.xlu0 0
          %2002 = vperm.xlu0 %2001, %v1967
          %v2003 = vpop.permute.xlu0 %2002
          %2006 = vset.pattern.permute.xlu0 0
          %2007 = vperm.xlu0 %2006, %v1968
          %v2008 = vpop.permute.xlu0 %2007
          %2011 = vset.pattern.permute.xlu0 0
          %2012 = vperm.xlu0 %2011, %v1969
          %v2013 = vpop.permute.xlu0 %2012
          %2016 = vset.pattern.permute.xlu0 0
          %2017 = vperm.xlu0 %2016, %v1970
          %v2018 = vpop.permute.xlu0 %2017
          %2021 = vset.pattern.permute.xlu0 0
          %2022 = vperm.xlu0 %2021, %v1971
          %v2023 = vpop.permute.xlu0 %2022
          %2026 = vset.pattern.permute.xlu0 0
          %2027 = vperm.xlu0 %2026, %v1972
          %v2028 = vpop.permute.xlu0 %2027
          %2031 = vset.pattern.permute.xlu0 0
          %2032 = vperm.xlu0 %2031, %v1973
          %v2033 = vpop.permute.xlu0 %2032
          %2036 = vset.pattern.permute.xlu0 0
          %2037 = vperm.xlu0 %2036, %v1974
          %v2038 = vpop.permute.xlu0 %2037
          %2041 = vset.pattern.permute.xlu0 0
          %2042 = vperm.xlu0 %2041, %v1975
          %v2043 = vpop.permute.xlu0 %2042
          %2046 = vset.pattern.permute.xlu0 0
          %2047 = vperm.xlu0 %2046, %v1976
          %v2048 = vpop.permute.xlu0 %2047
          %2051 = vset.pattern.permute.xlu0 0
          %2052 = vperm.xlu0 %2051, %v1977
          %v2053 = vpop.permute.xlu0 %2052
          %2056 = vset.pattern.permute.xlu0 0
          %2057 = vperm.xlu0 %2056, %v1978
          %v2058 = vpop.permute.xlu0 %2057
          %2061 = vset.pattern.permute.xlu0 0
          %2062 = vperm.xlu0 %2061, %v1979
          %v2063 = vpop.permute.xlu0 %2062
          %2066 = vset.pattern.permute.xlu0 0
          %2067 = vperm.xlu0 %2066, %v1980
          %v2068 = vpop.permute.xlu0 %2067
          %2071 = vset.pattern.permute.xlu0 0
          %2072 = vperm.xlu0 %2071, %v1981
          %v2073 = vpop.permute.xlu0 %2072
          %2076 = vset.pattern.permute.xlu0 0
          %2077 = vperm.xlu0 %2076, %v1982
          %v2078 = vpop.permute.xlu0 %2077
          %2081 = vset.pattern.permute.xlu0 0
          %2082 = vperm.xlu0 %2081, %v1983
          %v2083 = vpop.permute.xlu0 %2082
          %2086 = vset.pattern.permute.xlu0 0
          %2087 = vperm.xlu0 %2086, %v1984
          %v2088 = vpop.permute.xlu0 %2087
          %v2090 = vmul.f32 %v1944, %v1988
          %v2091 = vmul.f32 %v1945, %v1993
          %v2092 = vmul.f32 %v1946, %v1998
          %v2093 = vmul.f32 %v1947, %v2003
          %v2094 = vmul.f32 %v1948, %v2008
          %v2095 = vmul.f32 %v1949, %v2013
          %v2096 = vmul.f32 %v1950, %v2018
          %v2097 = vmul.f32 %v1951, %v2023
          %v2098 = vmul.f32 %v1952, %v2028
          %v2099 = vmul.f32 %v1953, %v2033
          %v2100 = vmul.f32 %v1954, %v2038
          %v2101 = vmul.f32 %v1955, %v2043
          %v2102 = vmul.f32 %v1956, %v2048
          %v2103 = vmul.f32 %v1957, %v2053
          %v2104 = vmul.f32 %v1958, %v2058
          %v2105 = vmul.f32 %v1959, %v2063
          %v2106 = vmul.f32 %v1960, %v2068
          %v2107 = vmul.f32 %v1961, %v2073
          %v2108 = vmul.f32 %v1962, %v2078
          %v2109 = vmul.f32 %v1942, %v2083
          %v2110 = vmul.f32 %v1943, %v2088
          %v2111 = vadd.f32 %v1917, %v2090
          %v2112 = vadd.f32 %v1918, %v2091
          %v2113 = vadd.f32 %v1919, %v2092
          %v2114 = vadd.f32 %v1920, %v2093
          %v2115 = vadd.f32 %v1921, %v2094
          %v2116 = vadd.f32 %v1922, %v2095
          %v2117 = vadd.f32 %v1923, %v2096
          %v2118 = vadd.f32 %v1924, %v2097
          %v2119 = vadd.f32 %v1925, %v2098
          %v2120 = vadd.f32 %v1926, %v2099
          %v2121 = vadd.f32 %v1927, %v2100
          %v2122 = vadd.f32 %v1928, %v2101
          %v2123 = vadd.f32 %v1929, %v2102
          %v2124 = vadd.f32 %v1930, %v2103
          %v2125 = vadd.f32 %v1931, %v2104
          %v2126 = vadd.f32 %v1932, %v2105
          %v2127 = vadd.f32 %v1933, %v2106
          %v2128 = vadd.f32 %v1934, %v2107
          %v2129 = vadd.f32 %v1935, %v2108
          %v2130 = vadd.f32 %v1936, %v2109
          %v2131 = vadd.f32 %v1937, %v2110
          %v2132 = vld [vmem:[#allocation4 + $0x7] sm:$0x1]
          %v2134 = vperm.slane %v2132, 0
          %v2136 = vmul.f32 %v501, %v2134
          %v2137 = vmul.f32 %v506, %v2134
          %v2138 = vmul.f32 %v511, %v2134
          %v2139 = vmul.f32 %v516, %v2134
          %v2140 = vmul.f32 %v521, %v2134
          %v2141 = vmul.f32 %v526, %v2134
          %v2142 = vmul.f32 %v531, %v2134
          %v2143 = vmul.f32 %v536, %v2134
          %v2144 = vmul.f32 %v541, %v2134
          %v2145 = vmul.f32 %v546, %v2134
          %v2146 = vmul.f32 %v551, %v2134
          %v2147 = vmul.f32 %v556, %v2134
          %v2148 = vmul.f32 %v561, %v2134
          %v2149 = vmul.f32 %v566, %v2134
          %v2150 = vmul.f32 %v571, %v2134
          %v2151 = vmul.f32 %v576, %v2134
          %v2152 = vmul.f32 %v581, %v2134
          %v2153 = vmul.f32 %v586, %v2134
          %v2154 = vmul.f32 %v591, %v2134
          %v2155 = vmul.f32 %v596, %v2134
          %v2156 = vmul.f32 %v601, %v2134
          %v2157 = vrot.slane %v2136, 2
          %v2158 = vrot.slane %v2137, 2
          %v2159 = vrot.slane %v2138, 2
          %v2160 = vrot.slane %v2139, 2
          %v2161 = vrot.slane %v2140, 2
          %v2162 = vrot.slane %v2141, 2
          %v2163 = vrot.slane %v2142, 2
          %v2164 = vrot.slane %v2143, 2
          %v2165 = vrot.slane %v2144, 2
          %v2166 = vrot.slane %v2145, 2
          %v2167 = vrot.slane %v2146, 2
          %v2168 = vrot.slane %v2147, 2
          %v2169 = vrot.slane %v2148, 2
          %v2170 = vrot.slane %v2149, 2
          %v2171 = vrot.slane %v2150, 2
          %v2172 = vrot.slane %v2151, 2
          %v2173 = vrot.slane %v2152, 2
          %v2174 = vrot.slane %v2153, 2
          %v2175 = vrot.slane %v2154, 2
          %v2176 = vrot.slane %v2155, 2
          %v2177 = vrot.slane %v2156, 2
          %v2178 = vsel %vm1747, %v2176, %v2177
          %v2179 = vsel %vm1747, %v2175, %v2176
          %v2180 = vsel %vm1747, %v2174, %v2175
          %v2181 = vsel %vm1747, %v2173, %v2174
          %v2182 = vsel %vm1747, %v2172, %v2173
          %v2183 = vsel %vm1747, %v2171, %v2172
          %v2184 = vsel %vm1747, %v2170, %v2171
          %v2185 = vsel %vm1747, %v2169, %v2170
          %v2186 = vsel %vm1747, %v2168, %v2169
          %v2187 = vsel %vm1747, %v2167, %v2168
          %v2188 = vsel %vm1747, %v2166, %v2167
          %v2189 = vsel %vm1747, %v2165, %v2166
          %v2190 = vsel %vm1747, %v2164, %v2165
          %v2191 = vsel %vm1747, %v2163, %v2164
          %v2192 = vsel %vm1747, %v2162, %v2163
          %v2193 = vsel %vm1747, %v2161, %v2162
          %v2194 = vsel %vm1747, %v2160, %v2161
          %v2195 = vsel %vm1747, %v2159, %v2160
          %v2196 = vsel %vm1747, %v2158, %v2159
          %v2197 = vsel %vm1747, %v2157, %v2158
          %v2198 = vsel %vm1747, %v2177, %v2157
          %s2199 = scalar_lea.vmem %s1, 1176
          %v2200 = vld [vmem:[%s2199] sm:$0xff]
          %v2201 = vld [vmem:[%s2199 + $0x8] sm:$0xff]
          %v2202 = vld [vmem:[%s2199 + $0x10] sm:$0xff]
          %v2203 = vld [vmem:[%s2199 + $0x18] sm:$0xff]
          %v2204 = vld [vmem:[%s2199 + $0x20] sm:$0xff]
          %v2205 = vld [vmem:[%s2199 + $0x28] sm:$0xff]
          %v2206 = vld [vmem:[%s2199 + $0x30] sm:$0xff]
          %v2207 = vld [vmem:[%s2199 + $0x38] sm:$0xff]
          %v2208 = vld [vmem:[%s2199 + $0x40] sm:$0xff]
          %v2209 = vld [vmem:[%s2199 + $0x48] sm:$0xff]
          %v2210 = vld [vmem:[%s2199 + $0x50] sm:$0xff]
          %v2211 = vld [vmem:[%s2199 + $0x58] sm:$0xff]
          %v2212 = vld [vmem:[%s2199 + $0x60] sm:$0xff]
          %v2213 = vld [vmem:[%s2199 + $0x68] sm:$0xff]
          %v2214 = vld [vmem:[%s2199 + $0x70] sm:$0xff]
          %v2215 = vld [vmem:[%s2199 + $0x78] sm:$0xff]
          %v2216 = vld [vmem:[%s2199 + $0x80] sm:$0xff]
          %v2217 = vld [vmem:[%s2199 + $0x88] sm:$0xff]
          %v2218 = vld [vmem:[%s2199 + $0x90] sm:$0xff]
          %v2219 = vld [vmem:[%s2199 + $0x98] sm:$0xff]
          %v2220 = vld [vmem:[%s2199 + $0xa0] sm:$0xff]
          %2222 = vset.pattern.permute.xlu0 0
          %2223 = vperm.xlu0 %2222, %v2200
          %v2224 = vpop.permute.xlu0 %2223
          %2227 = vset.pattern.permute.xlu0 0
          %2228 = vperm.xlu0 %2227, %v2201
          %v2229 = vpop.permute.xlu0 %2228
          %2232 = vset.pattern.permute.xlu0 0
          %2233 = vperm.xlu0 %2232, %v2202
          %v2234 = vpop.permute.xlu0 %2233
          %2237 = vset.pattern.permute.xlu0 0
          %2238 = vperm.xlu0 %2237, %v2203
          %v2239 = vpop.permute.xlu0 %2238
          %2242 = vset.pattern.permute.xlu0 0
          %2243 = vperm.xlu0 %2242, %v2204
          %v2244 = vpop.permute.xlu0 %2243
          %2247 = vset.pattern.permute.xlu0 0
          %2248 = vperm.xlu0 %2247, %v2205
          %v2249 = vpop.permute.xlu0 %2248
          %2252 = vset.pattern.permute.xlu0 0
          %2253 = vperm.xlu0 %2252, %v2206
          %v2254 = vpop.permute.xlu0 %2253
          %2257 = vset.pattern.permute.xlu0 0
          %2258 = vperm.xlu0 %2257, %v2207
          %v2259 = vpop.permute.xlu0 %2258
          %2262 = vset.pattern.permute.xlu0 0
          %2263 = vperm.xlu0 %2262, %v2208
          %v2264 = vpop.permute.xlu0 %2263
          %2267 = vset.pattern.permute.xlu0 0
          %2268 = vperm.xlu0 %2267, %v2209
          %v2269 = vpop.permute.xlu0 %2268
          %2272 = vset.pattern.permute.xlu0 0
          %2273 = vperm.xlu0 %2272, %v2210
          %v2274 = vpop.permute.xlu0 %2273
          %2277 = vset.pattern.permute.xlu0 0
          %2278 = vperm.xlu0 %2277, %v2211
          %v2279 = vpop.permute.xlu0 %2278
          %2282 = vset.pattern.permute.xlu0 0
          %2283 = vperm.xlu0 %2282, %v2212
          %v2284 = vpop.permute.xlu0 %2283
          %2287 = vset.pattern.permute.xlu0 0
          %2288 = vperm.xlu0 %2287, %v2213
          %v2289 = vpop.permute.xlu0 %2288
          %2292 = vset.pattern.permute.xlu0 0
          %2293 = vperm.xlu0 %2292, %v2214
          %v2294 = vpop.permute.xlu0 %2293
          %2297 = vset.pattern.permute.xlu0 0
          %2298 = vperm.xlu0 %2297, %v2215
          %v2299 = vpop.permute.xlu0 %2298
          %2302 = vset.pattern.permute.xlu0 0
          %2303 = vperm.xlu0 %2302, %v2216
          %v2304 = vpop.permute.xlu0 %2303
          %2307 = vset.pattern.permute.xlu0 0
          %2308 = vperm.xlu0 %2307, %v2217
          %v2309 = vpop.permute.xlu0 %2308
          %2312 = vset.pattern.permute.xlu0 0
          %2313 = vperm.xlu0 %2312, %v2218
          %v2314 = vpop.permute.xlu0 %2313
          %2317 = vset.pattern.permute.xlu0 0
          %2318 = vperm.xlu0 %2317, %v2219
          %v2319 = vpop.permute.xlu0 %2318
          %2322 = vset.pattern.permute.xlu0 0
          %2323 = vperm.xlu0 %2322, %v2220
          %v2324 = vpop.permute.xlu0 %2323
          %v2326 = vmul.f32 %v2195, %v2224
          %v2327 = vmul.f32 %v2194, %v2229
          %v2328 = vmul.f32 %v2193, %v2234
          %v2329 = vmul.f32 %v2192, %v2239
          %v2330 = vmul.f32 %v2191, %v2244
          %v2331 = vmul.f32 %v2190, %v2249
          %v2332 = vmul.f32 %v2189, %v2254
          %v2333 = vmul.f32 %v2188, %v2259
          %v2334 = vmul.f32 %v2187, %v2264
          %v2335 = vmul.f32 %v2186, %v2269
          %v2336 = vmul.f32 %v2185, %v2274
          %v2337 = vmul.f32 %v2184, %v2279
          %v2338 = vmul.f32 %v2183, %v2284
          %v2339 = vmul.f32 %v2182, %v2289
          %v2340 = vmul.f32 %v2181, %v2294
          %v2341 = vmul.f32 %v2180, %v2299
          %v2342 = vmul.f32 %v2179, %v2304
          %v2343 = vmul.f32 %v2178, %v2309
          %v2344 = vmul.f32 %v2198, %v2314
          %v2345 = vmul.f32 %v2197, %v2319
          %v2346 = vmul.f32 %v2196, %v2324
          %v2347 = vadd.f32 %v2111, %v2326
          %v2348 = vadd.f32 %v2112, %v2327
          %v2349 = vadd.f32 %v2113, %v2328
          %v2350 = vadd.f32 %v2114, %v2329
          %v2351 = vadd.f32 %v2115, %v2330
          %v2352 = vadd.f32 %v2116, %v2331
          %v2353 = vadd.f32 %v2117, %v2332
          %v2354 = vadd.f32 %v2118, %v2333
          %v2355 = vadd.f32 %v2119, %v2334
          %v2356 = vadd.f32 %v2120, %v2335
          %v2357 = vadd.f32 %v2121, %v2336
          %v2358 = vadd.f32 %v2122, %v2337
          %v2359 = vadd.f32 %v2123, %v2338
          %v2360 = vadd.f32 %v2124, %v2339
          %v2361 = vadd.f32 %v2125, %v2340
          %v2362 = vadd.f32 %v2126, %v2341
          %v2363 = vadd.f32 %v2127, %v2342
          %v2364 = vadd.f32 %v2128, %v2343
          %v2365 = vadd.f32 %v2129, %v2344
          %v2366 = vadd.f32 %v2130, %v2345
          %v2367 = vadd.f32 %v2131, %v2346
          %v2368 = vld [vmem:[#allocation4 + $0x8] sm:$0x1]
          %v2370 = vperm.slane %v2368, 0
          %v2372 = vmul.f32 %v501, %v2370
          %v2373 = vmul.f32 %v506, %v2370
          %v2374 = vmul.f32 %v511, %v2370
          %v2375 = vmul.f32 %v516, %v2370
          %v2376 = vmul.f32 %v521, %v2370
          %v2377 = vmul.f32 %v526, %v2370
          %v2378 = vmul.f32 %v531, %v2370
          %v2379 = vmul.f32 %v536, %v2370
          %v2380 = vmul.f32 %v541, %v2370
          %v2381 = vmul.f32 %v546, %v2370
          %v2382 = vmul.f32 %v551, %v2370
          %v2383 = vmul.f32 %v556, %v2370
          %v2384 = vmul.f32 %v561, %v2370
          %v2385 = vmul.f32 %v566, %v2370
          %v2386 = vmul.f32 %v571, %v2370
          %v2387 = vmul.f32 %v576, %v2370
          %v2388 = vmul.f32 %v581, %v2370
          %v2389 = vmul.f32 %v586, %v2370
          %v2390 = vmul.f32 %v591, %v2370
          %v2391 = vmul.f32 %v596, %v2370
          %v2392 = vmul.f32 %v601, %v2370
          %v2393 = vrot.slane %v2372, 4
          %v2394 = vrot.slane %v2373, 4
          %v2395 = vrot.slane %v2374, 4
          %v2396 = vrot.slane %v2375, 4
          %v2397 = vrot.slane %v2376, 4
          %v2398 = vrot.slane %v2377, 4
          %v2399 = vrot.slane %v2378, 4
          %v2400 = vrot.slane %v2379, 4
          %v2401 = vrot.slane %v2380, 4
          %v2402 = vrot.slane %v2381, 4
          %v2403 = vrot.slane %v2382, 4
          %v2404 = vrot.slane %v2383, 4
          %v2405 = vrot.slane %v2384, 4
          %v2406 = vrot.slane %v2385, 4
          %v2407 = vrot.slane %v2386, 4
          %v2408 = vrot.slane %v2387, 4
          %v2409 = vrot.slane %v2388, 4
          %v2410 = vrot.slane %v2389, 4
          %v2411 = vrot.slane %v2390, 4
          %v2412 = vrot.slane %v2391, 4
          %v2413 = vrot.slane %v2392, 4
          %v2414 = vsel %vm650, %v2412, %v2413
          %v2415 = vsel %vm650, %v2411, %v2412
          %v2416 = vsel %vm650, %v2410, %v2411
          %v2417 = vsel %vm650, %v2409, %v2410
          %v2418 = vsel %vm650, %v2408, %v2409
          %v2419 = vsel %vm650, %v2407, %v2408
          %v2420 = vsel %vm650, %v2406, %v2407
          %v2421 = vsel %vm650, %v2405, %v2406
          %v2422 = vsel %vm650, %v2404, %v2405
          %v2423 = vsel %vm650, %v2403, %v2404
          %v2424 = vsel %vm650, %v2402, %v2403
          %v2425 = vsel %vm650, %v2401, %v2402
          %v2426 = vsel %vm650, %v2400, %v2401
          %v2427 = vsel %vm650, %v2399, %v2400
          %v2428 = vsel %vm650, %v2398, %v2399
          %v2429 = vsel %vm650, %v2397, %v2398
          %v2430 = vsel %vm650, %v2396, %v2397
          %v2431 = vsel %vm650, %v2395, %v2396
          %v2432 = vsel %vm650, %v2394, %v2395
          %v2433 = vsel %vm650, %v2393, %v2394
          %v2434 = vsel %vm650, %v2413, %v2393
          %s2435 = scalar_lea.vmem %s1, 1344
          %v2436 = vld [vmem:[%s2435] sm:$0xff]
          %v2437 = vld [vmem:[%s2435 + $0x8] sm:$0xff]
          %v2438 = vld [vmem:[%s2435 + $0x10] sm:$0xff]
          %v2439 = vld [vmem:[%s2435 + $0x18] sm:$0xff]
          %v2440 = vld [vmem:[%s2435 + $0x20] sm:$0xff]
          %v2441 = vld [vmem:[%s2435 + $0x28] sm:$0xff]
          %v2442 = vld [vmem:[%s2435 + $0x30] sm:$0xff]
          %v2443 = vld [vmem:[%s2435 + $0x38] sm:$0xff]
          %v2444 = vld [vmem:[%s2435 + $0x40] sm:$0xff]
          %v2445 = vld [vmem:[%s2435 + $0x48] sm:$0xff]
          %v2446 = vld [vmem:[%s2435 + $0x50] sm:$0xff]
          %v2447 = vld [vmem:[%s2435 + $0x58] sm:$0xff]
          %v2448 = vld [vmem:[%s2435 + $0x60] sm:$0xff]
          %v2449 = vld [vmem:[%s2435 + $0x68] sm:$0xff]
          %v2450 = vld [vmem:[%s2435 + $0x70] sm:$0xff]
          %v2451 = vld [vmem:[%s2435 + $0x78] sm:$0xff]
          %v2452 = vld [vmem:[%s2435 + $0x80] sm:$0xff]
          %v2453 = vld [vmem:[%s2435 + $0x88] sm:$0xff]
          %v2454 = vld [vmem:[%s2435 + $0x90] sm:$0xff]
          %v2455 = vld [vmem:[%s2435 + $0x98] sm:$0xff]
          %v2456 = vld [vmem:[%s2435 + $0xa0] sm:$0xff]
          %2458 = vset.pattern.permute.xlu0 0
          %2459 = vperm.xlu0 %2458, %v2436
          %v2460 = vpop.permute.xlu0 %2459
          %2463 = vset.pattern.permute.xlu0 0
          %2464 = vperm.xlu0 %2463, %v2437
          %v2465 = vpop.permute.xlu0 %2464
          %2468 = vset.pattern.permute.xlu0 0
          %2469 = vperm.xlu0 %2468, %v2438
          %v2470 = vpop.permute.xlu0 %2469
          %2473 = vset.pattern.permute.xlu0 0
          %2474 = vperm.xlu0 %2473, %v2439
          %v2475 = vpop.permute.xlu0 %2474
          %2478 = vset.pattern.permute.xlu0 0
          %2479 = vperm.xlu0 %2478, %v2440
          %v2480 = vpop.permute.xlu0 %2479
          %2483 = vset.pattern.permute.xlu0 0
          %2484 = vperm.xlu0 %2483, %v2441
          %v2485 = vpop.permute.xlu0 %2484
          %2488 = vset.pattern.permute.xlu0 0
          %2489 = vperm.xlu0 %2488, %v2442
          %v2490 = vpop.permute.xlu0 %2489
          %2493 = vset.pattern.permute.xlu0 0
          %2494 = vperm.xlu0 %2493, %v2443
          %v2495 = vpop.permute.xlu0 %2494
          %2498 = vset.pattern.permute.xlu0 0
          %2499 = vperm.xlu0 %2498, %v2444
          %v2500 = vpop.permute.xlu0 %2499
          %2503 = vset.pattern.permute.xlu0 0
          %2504 = vperm.xlu0 %2503, %v2445
          %v2505 = vpop.permute.xlu0 %2504
          %2508 = vset.pattern.permute.xlu0 0
          %2509 = vperm.xlu0 %2508, %v2446
          %v2510 = vpop.permute.xlu0 %2509
          %2513 = vset.pattern.permute.xlu0 0
          %2514 = vperm.xlu0 %2513, %v2447
          %v2515 = vpop.permute.xlu0 %2514
          %2518 = vset.pattern.permute.xlu0 0
          %2519 = vperm.xlu0 %2518, %v2448
          %v2520 = vpop.permute.xlu0 %2519
          %2523 = vset.pattern.permute.xlu0 0
          %2524 = vperm.xlu0 %2523, %v2449
          %v2525 = vpop.permute.xlu0 %2524
          %2528 = vset.pattern.permute.xlu0 0
          %2529 = vperm.xlu0 %2528, %v2450
          %v2530 = vpop.permute.xlu0 %2529
          %2533 = vset.pattern.permute.xlu0 0
          %2534 = vperm.xlu0 %2533, %v2451
          %v2535 = vpop.permute.xlu0 %2534
          %2538 = vset.pattern.permute.xlu0 0
          %2539 = vperm.xlu0 %2538, %v2452
          %v2540 = vpop.permute.xlu0 %2539
          %2543 = vset.pattern.permute.xlu0 0
          %2544 = vperm.xlu0 %2543, %v2453
          %v2545 = vpop.permute.xlu0 %2544
          %2548 = vset.pattern.permute.xlu0 0
          %2549 = vperm.xlu0 %2548, %v2454
          %v2550 = vpop.permute.xlu0 %2549
          %2553 = vset.pattern.permute.xlu0 0
          %2554 = vperm.xlu0 %2553, %v2455
          %v2555 = vpop.permute.xlu0 %2554
          %2558 = vset.pattern.permute.xlu0 0
          %2559 = vperm.xlu0 %2558, %v2456
          %v2560 = vpop.permute.xlu0 %2559
          %v2562 = vmul.f32 %v2431, %v2460
          %v2563 = vmul.f32 %v2430, %v2465
          %v2564 = vmul.f32 %v2429, %v2470
          %v2565 = vmul.f32 %v2428, %v2475
          %v2566 = vmul.f32 %v2427, %v2480
          %v2567 = vmul.f32 %v2426, %v2485
          %v2568 = vmul.f32 %v2425, %v2490
          %v2569 = vmul.f32 %v2424, %v2495
          %v2570 = vmul.f32 %v2423, %v2500
          %v2571 = vmul.f32 %v2422, %v2505
          %v2572 = vmul.f32 %v2421, %v2510
          %v2573 = vmul.f32 %v2420, %v2515
          %v2574 = vmul.f32 %v2419, %v2520
          %v2575 = vmul.f32 %v2418, %v2525
          %v2576 = vmul.f32 %v2417, %v2530
          %v2577 = vmul.f32 %v2416, %v2535
          %v2578 = vmul.f32 %v2415, %v2540
          %v2579 = vmul.f32 %v2414, %v2545
          %v2580 = vmul.f32 %v2434, %v2550
          %v2581 = vmul.f32 %v2433, %v2555
          %v2582 = vmul.f32 %v2432, %v2560
          %v2583 = vadd.f32 %v2347, %v2562
          %v2584 = vadd.f32 %v2348, %v2563
          %v2585 = vadd.f32 %v2349, %v2564
          %v2586 = vadd.f32 %v2350, %v2565
          %v2587 = vadd.f32 %v2351, %v2566
          %v2588 = vadd.f32 %v2352, %v2567
          %v2589 = vadd.f32 %v2353, %v2568
          %v2590 = vadd.f32 %v2354, %v2569
          %v2591 = vadd.f32 %v2355, %v2570
          %v2592 = vadd.f32 %v2356, %v2571
          %v2593 = vadd.f32 %v2357, %v2572
          %v2594 = vadd.f32 %v2358, %v2573
          %v2595 = vadd.f32 %v2359, %v2574
          %v2596 = vadd.f32 %v2360, %v2575
          %v2597 = vadd.f32 %v2361, %v2576
          %v2598 = vadd.f32 %v2362, %v2577
          %v2599 = vadd.f32 %v2363, %v2578
          %v2600 = vadd.f32 %v2364, %v2579
          %v2601 = vadd.f32 %v2365, %v2580
          %v2602 = vadd.f32 %v2366, %v2581
          %v2603 = vadd.f32 %v2367, %v2582
          %v2604 = vld [vmem:[#allocation6] sm:$0x1]
          %v2606 = vperm.slane %v2604, 0
          %v2608 = vadd.f32 %v2583, %v2606
          %v2609 = vadd.f32 %v2584, %v2606
          %v2610 = vadd.f32 %v2585, %v2606
          %v2611 = vadd.f32 %v2586, %v2606
          %v2612 = vadd.f32 %v2587, %v2606
          %v2613 = vadd.f32 %v2588, %v2606
          %v2614 = vadd.f32 %v2589, %v2606
          %v2615 = vadd.f32 %v2590, %v2606
          %v2616 = vadd.f32 %v2591, %v2606
          %v2617 = vadd.f32 %v2592, %v2606
          %v2618 = vadd.f32 %v2593, %v2606
          %v2619 = vadd.f32 %v2594, %v2606
          %v2620 = vadd.f32 %v2595, %v2606
          %v2621 = vadd.f32 %v2596, %v2606
          %v2622 = vadd.f32 %v2597, %v2606
          %v2623 = vadd.f32 %v2598, %v2606
          %v2624 = vadd.f32 %v2599, %v2606
          %v2625 = vadd.f32 %v2600, %v2606
          %v2626 = vadd.f32 %v2601, %v2606
          %v2627 = vadd.f32 %v2602, %v2606
          %v2628 = vadd.f32 %v2603, %v2606
          %v2629 = vmax.f32 %v2608, 0.0
          %v2630 = vmax.f32 %v2609, 0.0
          %v2631 = vmax.f32 %v2610, 0.0
          %v2632 = vmax.f32 %v2611, 0.0
          %v2633 = vmax.f32 %v2612, 0.0
          %v2634 = vmax.f32 %v2613, 0.0
          %v2635 = vmax.f32 %v2614, 0.0
          %v2636 = vmax.f32 %v2615, 0.0
          %v2637 = vmax.f32 %v2616, 0.0
          %v2638 = vmax.f32 %v2617, 0.0
          %v2639 = vmax.f32 %v2618, 0.0
          %v2640 = vmax.f32 %v2619, 0.0
          %v2641 = vmax.f32 %v2620, 0.0
          %v2642 = vmax.f32 %v2621, 0.0
          %v2643 = vmax.f32 %v2622, 0.0
          %v2644 = vmax.f32 %v2623, 0.0
          %v2645 = vmax.f32 %v2624, 0.0
          %v2646 = vmax.f32 %v2625, 0.0
          %v2647 = vmax.f32 %v2626, 0.0
          %v2648 = vmax.f32 %v2627, 0.0
          %v2649 = vmax.f32 %v2628, 0.0
          %v2650 = vrot.slane %v2629, 4
          %v2651 = vrot.slane %v2630, 4
          %v2652 = vrot.slane %v2631, 4
          %v2653 = vrot.slane %v2632, 4
          %v2654 = vrot.slane %v2633, 4
          %v2655 = vrot.slane %v2634, 4
          %v2656 = vrot.slane %v2635, 4
          %v2657 = vrot.slane %v2636, 4
          %v2658 = vrot.slane %v2637, 4
          %v2659 = vrot.slane %v2638, 4
          %v2660 = vrot.slane %v2639, 4
          %v2661 = vrot.slane %v2640, 4
          %v2662 = vrot.slane %v2641, 4
          %v2663 = vrot.slane %v2642, 4
          %v2664 = vrot.slane %v2643, 4
          %v2665 = vrot.slane %v2644, 4
          %v2666 = vrot.slane %v2645, 4
          %v2667 = vrot.slane %v2646, 4
          %v2668 = vrot.slane %v2647, 4
          %v2669 = vrot.slane %v2648, 4
          %v2670 = vrot.slane %v2649, 4
          %v2671 = vsel %vm650, %v2669, %v2670
          %v2672 = vsel %vm650, %v2668, %v2669
          %v2673 = vsel %vm650, %v2667, %v2668
          %v2674 = vsel %vm650, %v2666, %v2667
          %v2675 = vsel %vm650, %v2665, %v2666
          %v2676 = vsel %vm650, %v2664, %v2665
          %v2677 = vsel %vm650, %v2663, %v2664
          %v2678 = vsel %vm650, %v2662, %v2663
          %v2679 = vsel %vm650, %v2661, %v2662
          %v2680 = vsel %vm650, %v2660, %v2661
          %v2681 = vsel %vm650, %v2659, %v2660
          %v2682 = vsel %vm650, %v2658, %v2659
          %v2683 = vsel %vm650, %v2657, %v2658
          %v2684 = vsel %vm650, %v2656, %v2657
          %v2685 = vsel %vm650, %v2655, %v2656
          %v2686 = vsel %vm650, %v2654, %v2655
          %v2687 = vsel %vm650, %v2653, %v2654
          %v2688 = vsel %vm650, %v2652, %v2653
          %v2689 = vsel %vm650, %v2651, %v2652
          %v2690 = vsel %vm650, %v2650, %v2651
          %v2691 = vsel %vm650, %v2670, %v2650
          %v2692 = vmul.f32 %v2672, %v696
          %v2693 = vmul.f32 %v2671, %v701
          %v2694 = vmul.f32 %v2691, %v706
          %v2695 = vmul.f32 %v2690, %v711
          %v2696 = vmul.f32 %v2689, %v716
          %v2697 = vmul.f32 %v2688, %v721
          %v2698 = vmul.f32 %v2687, %v726
          %v2699 = vmul.f32 %v2686, %v731
          %v2700 = vmul.f32 %v2685, %v736
          %v2701 = vmul.f32 %v2684, %v741
          %v2702 = vmul.f32 %v2683, %v746
          %v2703 = vmul.f32 %v2682, %v751
          %v2704 = vmul.f32 %v2681, %v756
          %v2705 = vmul.f32 %v2680, %v761
          %v2706 = vmul.f32 %v2679, %v766
          %v2707 = vmul.f32 %v2678, %v771
          %v2708 = vmul.f32 %v2677, %v776
          %v2709 = vmul.f32 %v2676, %v781
          %v2710 = vmul.f32 %v2675, %v786
          %v2711 = vmul.f32 %v2674, %v791
          %v2712 = vmul.f32 %v2673, %v796
          %v2713 = vpack.c.bf16 %v2692, %v2692
          %v2714 = vpack.c.bf16 %v2693, %v2693
          %v2715 = vpack.c.bf16 %v2694, %v2694
          %v2716 = vpack.c.bf16 %v2695, %v2695
          %v2717 = vpack.c.bf16 %v2696, %v2696
          %v2718 = vpack.c.bf16 %v2697, %v2697
          %v2719 = vpack.c.bf16 %v2698, %v2698
          %v2720 = vpack.c.bf16 %v2699, %v2699
          %v2721 = vpack.c.bf16 %v2700, %v2700
          %v2722 = vpack.c.bf16 %v2701, %v2701
          %v2723 = vpack.c.bf16 %v2702, %v2702
          %v2724 = vpack.c.bf16 %v2703, %v2703
          %v2725 = vpack.c.bf16 %v2704, %v2704
          %v2726 = vpack.c.bf16 %v2705, %v2705
          %v2727 = vpack.c.bf16 %v2706, %v2706
          %v2728 = vpack.c.bf16 %v2707, %v2707
          %v2729 = vpack.c.bf16 %v2708, %v2708
          %v2730 = vpack.c.bf16 %v2709, %v2709
          %v2731 = vpack.c.bf16 %v2710, %v2710
          %v2732 = vpack.c.bf16 %v2711, %v2711
          %v2733 = vpack.c.bf16 %v2712, %v2712
          %v2734 = vrot.slane %v2629, 6
          %v2735 = vrot.slane %v2630, 6
          %v2736 = vrot.slane %v2631, 6
          %v2737 = vrot.slane %v2632, 6
          %v2738 = vrot.slane %v2633, 6
          %v2739 = vrot.slane %v2634, 6
          %v2740 = vrot.slane %v2635, 6
          %v2741 = vrot.slane %v2636, 6
          %v2742 = vrot.slane %v2637, 6
          %v2743 = vrot.slane %v2638, 6
          %v2744 = vrot.slane %v2639, 6
          %v2745 = vrot.slane %v2640, 6
          %v2746 = vrot.slane %v2641, 6
          %v2747 = vrot.slane %v2642, 6
          %v2748 = vrot.slane %v2643, 6
          %v2749 = vrot.slane %v2644, 6
          %v2750 = vrot.slane %v2645, 6
          %v2751 = vrot.slane %v2646, 6
          %v2752 = vrot.slane %v2647, 6
          %v2753 = vrot.slane %v2648, 6
          %v2754 = vrot.slane %v2649, 6
          %v2755 = vsel %vm886, %v2753, %v2754
          %v2756 = vsel %vm886, %v2752, %v2753
          %v2757 = vsel %vm886, %v2751, %v2752
          %v2758 = vsel %vm886, %v2750, %v2751
          %v2759 = vsel %vm886, %v2749, %v2750
          %v2760 = vsel %vm886, %v2748, %v2749
          %v2761 = vsel %vm886, %v2747, %v2748
          %v2762 = vsel %vm886, %v2746, %v2747
          %v2763 = vsel %vm886, %v2745, %v2746
          %v2764 = vsel %vm886, %v2744, %v2745
          %v2765 = vsel %vm886, %v2743, %v2744
          %v2766 = vsel %vm886, %v2742, %v2743
          %v2767 = vsel %vm886, %v2741, %v2742
          %v2768 = vsel %vm886, %v2740, %v2741
          %v2769 = vsel %vm886, %v2739, %v2740
          %v2770 = vsel %vm886, %v2738, %v2739
          %v2771 = vsel %vm886, %v2737, %v2738
          %v2772 = vsel %vm886, %v2736, %v2737
          %v2773 = vsel %vm886, %v2735, %v2736
          %v2774 = vsel %vm886, %v2734, %v2735
          %v2775 = vsel %vm886, %v2754, %v2734
          %v2776 = vmul.f32 %v2756, %v933
          %v2777 = vmul.f32 %v2755, %v938
          %v2778 = vmul.f32 %v2775, %v943
          %v2779 = vmul.f32 %v2774, %v948
          %v2780 = vmul.f32 %v2773, %v953
          %v2781 = vmul.f32 %v2772, %v958
          %v2782 = vmul.f32 %v2771, %v963
          %v2783 = vmul.f32 %v2770, %v968
          %v2784 = vmul.f32 %v2769, %v973
          %v2785 = vmul.f32 %v2768, %v978
          %v2786 = vmul.f32 %v2767, %v983
          %v2787 = vmul.f32 %v2766, %v988
          %v2788 = vmul.f32 %v2765, %v993
          %v2789 = vmul.f32 %v2764, %v998
          %v2790 = vmul.f32 %v2763, %v1003
          %v2791 = vmul.f32 %v2762, %v1008
          %v2792 = vmul.f32 %v2761, %v1013
          %v2793 = vmul.f32 %v2760, %v1018
          %v2794 = vmul.f32 %v2759, %v1023
          %v2795 = vmul.f32 %v2758, %v1028
          %v2796 = vmul.f32 %v2757, %v1033
          %v2797 = vpack.c.bf16 %v2776, %v2776
          %v2798 = vpack.c.bf16 %v2777, %v2777
          %v2799 = vpack.c.bf16 %v2778, %v2778
          %v2800 = vpack.c.bf16 %v2779, %v2779
          %v2801 = vpack.c.bf16 %v2780, %v2780
          %v2802 = vpack.c.bf16 %v2781, %v2781
          %v2803 = vpack.c.bf16 %v2782, %v2782
          %v2804 = vpack.c.bf16 %v2783, %v2783
          %v2805 = vpack.c.bf16 %v2784, %v2784
          %v2806 = vpack.c.bf16 %v2785, %v2785
          %v2807 = vpack.c.bf16 %v2786, %v2786
          %v2808 = vpack.c.bf16 %v2787, %v2787
          %v2809 = vpack.c.bf16 %v2788, %v2788
          %v2810 = vpack.c.bf16 %v2789, %v2789
          %v2811 = vpack.c.bf16 %v2790, %v2790
          %v2812 = vpack.c.bf16 %v2791, %v2791
          %v2813 = vpack.c.bf16 %v2792, %v2792
          %v2814 = vpack.c.bf16 %v2793, %v2793
          %v2815 = vpack.c.bf16 %v2794, %v2794
          %v2816 = vpack.c.bf16 %v2795, %v2795
          %v2817 = vpack.c.bf16 %v2796, %v2796
          %v2818 = vmul.f32 %v2648, %v1127
          %v2819 = vmul.f32 %v2649, %v1132
          %v2820 = vmul.f32 %v2629, %v1137
          %v2821 = vmul.f32 %v2630, %v1142
          %v2822 = vmul.f32 %v2631, %v1147
          %v2823 = vmul.f32 %v2632, %v1152
          %v2824 = vmul.f32 %v2633, %v1157
          %v2825 = vmul.f32 %v2634, %v1162
          %v2826 = vmul.f32 %v2635, %v1167
          %v2827 = vmul.f32 %v2636, %v1172
          %v2828 = vmul.f32 %v2637, %v1177
          %v2829 = vmul.f32 %v2638, %v1182
          %v2830 = vmul.f32 %v2639, %v1187
          %v2831 = vmul.f32 %v2640, %v1192
          %v2832 = vmul.f32 %v2641, %v1197
          %v2833 = vmul.f32 %v2642, %v1202
          %v2834 = vmul.f32 %v2643, %v1207
          %v2835 = vmul.f32 %v2644, %v1212
          %v2836 = vmul.f32 %v2645, %v1217
          %v2837 = vmul.f32 %v2646, %v1222
          %v2838 = vmul.f32 %v2647, %v1227
          %v2839 = vpack.c.bf16 %v2818, %v2818
          %v2840 = vpack.c.bf16 %v2819, %v2819
          %v2841 = vpack.c.bf16 %v2820, %v2820
          %v2842 = vpack.c.bf16 %v2821, %v2821
          %v2843 = vpack.c.bf16 %v2822, %v2822
          %v2844 = vpack.c.bf16 %v2823, %v2823
          %v2845 = vpack.c.bf16 %v2824, %v2824
          %v2846 = vpack.c.bf16 %v2825, %v2825
          %v2847 = vpack.c.bf16 %v2826, %v2826
          %v2848 = vpack.c.bf16 %v2827, %v2827
          %v2849 = vpack.c.bf16 %v2828, %v2828
          %v2850 = vpack.c.bf16 %v2829, %v2829
          %v2851 = vpack.c.bf16 %v2830, %v2830
          %v2852 = vpack.c.bf16 %v2831, %v2831
          %v2853 = vpack.c.bf16 %v2832, %v2832
          %v2854 = vpack.c.bf16 %v2833, %v2833
          %v2855 = vpack.c.bf16 %v2834, %v2834
          %v2856 = vpack.c.bf16 %v2835, %v2835
          %v2857 = vpack.c.bf16 %v2836, %v2836
          %v2858 = vpack.c.bf16 %v2837, %v2837
          %v2859 = vpack.c.bf16 %v2838, %v2838
          %v2860 = vmul.f32 %v2775, %v1363
          %v2861 = vmul.f32 %v2774, %v1368
          %v2862 = vmul.f32 %v2773, %v1373
          %v2863 = vmul.f32 %v2772, %v1378
          %v2864 = vmul.f32 %v2771, %v1383
          %v2865 = vmul.f32 %v2770, %v1388
          %v2866 = vmul.f32 %v2769, %v1393
          %v2867 = vmul.f32 %v2768, %v1398
          %v2868 = vmul.f32 %v2767, %v1403
          %v2869 = vmul.f32 %v2766, %v1408
          %v2870 = vmul.f32 %v2765, %v1413
          %v2871 = vmul.f32 %v2764, %v1418
          %v2872 = vmul.f32 %v2763, %v1423
          %v2873 = vmul.f32 %v2762, %v1428
          %v2874 = vmul.f32 %v2761, %v1433
          %v2875 = vmul.f32 %v2760, %v1438
          %v2876 = vmul.f32 %v2759, %v1443
          %v2877 = vmul.f32 %v2758, %v1448
          %v2878 = vmul.f32 %v2757, %v1453
          %v2879 = vmul.f32 %v2756, %v1458
          %v2880 = vmul.f32 %v2755, %v1463
          %v2881 = vpack.c.bf16 %v2860, %v2860
          %v2882 = vpack.c.bf16 %v2861, %v2861
          %v2883 = vpack.c.bf16 %v2862, %v2862
          %v2884 = vpack.c.bf16 %v2863, %v2863
          %v2885 = vpack.c.bf16 %v2864, %v2864
          %v2886 = vpack.c.bf16 %v2865, %v2865
          %v2887 = vpack.c.bf16 %v2866, %v2866
          %v2888 = vpack.c.bf16 %v2867, %v2867
          %v2889 = vpack.c.bf16 %v2868, %v2868
          %v2890 = vpack.c.bf16 %v2869, %v2869
          %v2891 = vpack.c.bf16 %v2870, %v2870
          %v2892 = vpack.c.bf16 %v2871, %v2871
          %v2893 = vpack.c.bf16 %v2872, %v2872
          %v2894 = vpack.c.bf16 %v2873, %v2873
          %v2895 = vpack.c.bf16 %v2874, %v2874
          %v2896 = vpack.c.bf16 %v2875, %v2875
          %v2897 = vpack.c.bf16 %v2876, %v2876
          %v2898 = vpack.c.bf16 %v2877, %v2877
          %v2899 = vpack.c.bf16 %v2878, %v2878
          %v2900 = vpack.c.bf16 %v2879, %v2879
          %v2901 = vpack.c.bf16 %v2880, %v2880
          %v2902 = vmul.f32 %v2629, %v1557
          %v2903 = vmul.f32 %v2630, %v1562
          %v2904 = vmul.f32 %v2631, %v1567
          %v2905 = vmul.f32 %v2632, %v1572
          %v2906 = vmul.f32 %v2633, %v1577
          %v2907 = vmul.f32 %v2634, %v1582
          %v2908 = vmul.f32 %v2635, %v1587
          %v2909 = vmul.f32 %v2636, %v1592
          %v2910 = vmul.f32 %v2637, %v1597
          %v2911 = vmul.f32 %v2638, %v1602
          %v2912 = vmul.f32 %v2639, %v1607
          %v2913 = vmul.f32 %v2640, %v1612
          %v2914 = vmul.f32 %v2641, %v1617
          %v2915 = vmul.f32 %v2642, %v1622
          %v2916 = vmul.f32 %v2643, %v1627
          %v2917 = vmul.f32 %v2644, %v1632
          %v2918 = vmul.f32 %v2645, %v1637
          %v2919 = vmul.f32 %v2646, %v1642
          %v2920 = vmul.f32 %v2647, %v1647
          %v2921 = vmul.f32 %v2648, %v1652
          %v2922 = vmul.f32 %v2649, %v1657
          %v2923 = vpack.c.bf16 %v2902, %v2902
          %v2924 = vpack.c.bf16 %v2903, %v2903
          %v2925 = vpack.c.bf16 %v2904, %v2904
          %v2926 = vpack.c.bf16 %v2905, %v2905
          %v2927 = vpack.c.bf16 %v2906, %v2906
          %v2928 = vpack.c.bf16 %v2907, %v2907
          %v2929 = vpack.c.bf16 %v2908, %v2908
          %v2930 = vpack.c.bf16 %v2909, %v2909
          %v2931 = vpack.c.bf16 %v2910, %v2910
          %v2932 = vpack.c.bf16 %v2911, %v2911
          %v2933 = vpack.c.bf16 %v2912, %v2912
          %v2934 = vpack.c.bf16 %v2913, %v2913
          %v2935 = vpack.c.bf16 %v2914, %v2914
          %v2936 = vpack.c.bf16 %v2915, %v2915
          %v2937 = vpack.c.bf16 %v2916, %v2916
          %v2938 = vpack.c.bf16 %v2917, %v2917
          %v2939 = vpack.c.bf16 %v2918, %v2918
          %v2940 = vpack.c.bf16 %v2919, %v2919
          %v2941 = vpack.c.bf16 %v2920, %v2920
          %v2942 = vpack.c.bf16 %v2921, %v2921
          %v2943 = vpack.c.bf16 %v2922, %v2922
          %v2944 = vrot.slane %v2629, 2
          %v2945 = vrot.slane %v2630, 2
          %v2946 = vrot.slane %v2631, 2
          %v2947 = vrot.slane %v2632, 2
          %v2948 = vrot.slane %v2633, 2
          %v2949 = vrot.slane %v2634, 2
          %v2950 = vrot.slane %v2635, 2
          %v2951 = vrot.slane %v2636, 2
          %v2952 = vrot.slane %v2637, 2
          %v2953 = vrot.slane %v2638, 2
          %v2954 = vrot.slane %v2639, 2
          %v2955 = vrot.slane %v2640, 2
          %v2956 = vrot.slane %v2641, 2
          %v2957 = vrot.slane %v2642, 2
          %v2958 = vrot.slane %v2643, 2
          %v2959 = vrot.slane %v2644, 2
          %v2960 = vrot.slane %v2645, 2
          %v2961 = vrot.slane %v2646, 2
          %v2962 = vrot.slane %v2647, 2
          %v2963 = vrot.slane %v2648, 2
          %v2964 = vrot.slane %v2649, 2
          %v2965 = vsel %vm1747, %v2963, %v2964
          %v2966 = vsel %vm1747, %v2962, %v2963
          %v2967 = vsel %vm1747, %v2961, %v2962
          %v2968 = vsel %vm1747, %v2960, %v2961
          %v2969 = vsel %vm1747, %v2959, %v2960
          %v2970 = vsel %vm1747, %v2958, %v2959
          %v2971 = vsel %vm1747, %v2957, %v2958
          %v2972 = vsel %vm1747, %v2956, %v2957
          %v2973 = vsel %vm1747, %v2955, %v2956
          %v2974 = vsel %vm1747, %v2954, %v2955
          %v2975 = vsel %vm1747, %v2953, %v2954
          %v2976 = vsel %vm1747, %v2952, %v2953
          %v2977 = vsel %vm1747, %v2951, %v2952
          %v2978 = vsel %vm1747, %v2950, %v2951
          %v2979 = vsel %vm1747, %v2949, %v2950
          %v2980 = vsel %vm1747, %v2948, %v2949
          %v2981 = vsel %vm1747, %v2947, %v2948
          %v2982 = vsel %vm1747, %v2946, %v2947
          %v2983 = vsel %vm1747, %v2945, %v2946
          %v2984 = vsel %vm1747, %v2944, %v2945
          %v2985 = vsel %vm1747, %v2964, %v2944
          %v2986 = vmul.f32 %v2984, %v1794
          %v2987 = vmul.f32 %v2983, %v1799
          %v2988 = vmul.f32 %v2982, %v1804
          %v2989 = vmul.f32 %v2981, %v1809
          %v2990 = vmul.f32 %v2980, %v1814
          %v2991 = vmul.f32 %v2979, %v1819
          %v2992 = vmul.f32 %v2978, %v1824
          %v2993 = vmul.f32 %v2977, %v1829
          %v2994 = vmul.f32 %v2976, %v1834
          %v2995 = vmul.f32 %v2975, %v1839
          %v2996 = vmul.f32 %v2974, %v1844
          %v2997 = vmul.f32 %v2973, %v1849
          %v2998 = vmul.f32 %v2972, %v1854
          %v2999 = vmul.f32 %v2971, %v1859
          %v3000 = vmul.f32 %v2970, %v1864
          %v3001 = vmul.f32 %v2969, %v1869
          %v3002 = vmul.f32 %v2968, %v1874
          %v3003 = vmul.f32 %v2967, %v1879
          %v3004 = vmul.f32 %v2966, %v1884
          %v3005 = vmul.f32 %v2965, %v1889
          %v3006 = vmul.f32 %v2985, %v1894
          %v3007 = vpack.c.bf16 %v2986, %v2986
          %v3008 = vpack.c.bf16 %v2987, %v2987
          %v3009 = vpack.c.bf16 %v2988, %v2988
          %v3010 = vpack.c.bf16 %v2989, %v2989
          %v3011 = vpack.c.bf16 %v2990, %v2990
          %v3012 = vpack.c.bf16 %v2991, %v2991
          %v3013 = vpack.c.bf16 %v2992, %v2992
          %v3014 = vpack.c.bf16 %v2993, %v2993
          %v3015 = vpack.c.bf16 %v2994, %v2994
          %v3016 = vpack.c.bf16 %v2995, %v2995
          %v3017 = vpack.c.bf16 %v2996, %v2996
          %v3018 = vpack.c.bf16 %v2997, %v2997
          %v3019 = vpack.c.bf16 %v2998, %v2998
          %v3020 = vpack.c.bf16 %v2999, %v2999
          %v3021 = vpack.c.bf16 %v3000, %v3000
          %v3022 = vpack.c.bf16 %v3001, %v3001
          %v3023 = vpack.c.bf16 %v3002, %v3002
          %v3024 = vpack.c.bf16 %v3003, %v3003
          %v3025 = vpack.c.bf16 %v3004, %v3004
          %v3026 = vpack.c.bf16 %v3005, %v3005
          %v3027 = vpack.c.bf16 %v3006, %v3006
          %v3028 = vmul.f32 %v2631, %v1988
          %v3029 = vmul.f32 %v2632, %v1993
          %v3030 = vmul.f32 %v2633, %v1998
          %v3031 = vmul.f32 %v2634, %v2003
          %v3032 = vmul.f32 %v2635, %v2008
          %v3033 = vmul.f32 %v2636, %v2013
          %v3034 = vmul.f32 %v2637, %v2018
          %v3035 = vmul.f32 %v2638, %v2023
          %v3036 = vmul.f32 %v2639, %v2028
          %v3037 = vmul.f32 %v2640, %v2033
          %v3038 = vmul.f32 %v2641, %v2038
          %v3039 = vmul.f32 %v2642, %v2043
          %v3040 = vmul.f32 %v2643, %v2048
          %v3041 = vmul.f32 %v2644, %v2053
          %v3042 = vmul.f32 %v2645, %v2058
          %v3043 = vmul.f32 %v2646, %v2063
          %v3044 = vmul.f32 %v2647, %v2068
          %v3045 = vmul.f32 %v2648, %v2073
          %v3046 = vmul.f32 %v2649, %v2078
          %v3047 = vmul.f32 %v2629, %v2083
          %v3048 = vmul.f32 %v2630, %v2088
          %v3049 = vpack.c.bf16 %v3028, %v3028
          %v3050 = vpack.c.bf16 %v3029, %v3029
          %v3051 = vpack.c.bf16 %v3030, %v3030
          %v3052 = vpack.c.bf16 %v3031, %v3031
          %v3053 = vpack.c.bf16 %v3032, %v3032
          %v3054 = vpack.c.bf16 %v3033, %v3033
          %v3055 = vpack.c.bf16 %v3034, %v3034
          %v3056 = vpack.c.bf16 %v3035, %v3035
          %v3057 = vpack.c.bf16 %v3036, %v3036
          %v3058 = vpack.c.bf16 %v3037, %v3037
          %v3059 = vpack.c.bf16 %v3038, %v3038
          %v3060 = vpack.c.bf16 %v3039, %v3039
          %v3061 = vpack.c.bf16 %v3040, %v3040
          %v3062 = vpack.c.bf16 %v3041, %v3041
          %v3063 = vpack.c.bf16 %v3042, %v3042
          %v3064 = vpack.c.bf16 %v3043, %v3043
          %v3065 = vpack.c.bf16 %v3044, %v3044
          %v3066 = vpack.c.bf16 %v3045, %v3045
          %v3067 = vpack.c.bf16 %v3046, %v3046
          %v3068 = vpack.c.bf16 %v3047, %v3047
          %v3069 = vpack.c.bf16 %v3048, %v3048
          %v3070 = vmul.f32 %v2982, %v2224
          %v3071 = vmul.f32 %v2981, %v2229
          %v3072 = vmul.f32 %v2980, %v2234
          %v3073 = vmul.f32 %v2979, %v2239
          %v3074 = vmul.f32 %v2978, %v2244
          %v3075 = vmul.f32 %v2977, %v2249
          %v3076 = vmul.f32 %v2976, %v2254
          %v3077 = vmul.f32 %v2975, %v2259
          %v3078 = vmul.f32 %v2974, %v2264
          %v3079 = vmul.f32 %v2973, %v2269
          %v3080 = vmul.f32 %v2972, %v2274
          %v3081 = vmul.f32 %v2971, %v2279
          %v3082 = vmul.f32 %v2970, %v2284
          %v3083 = vmul.f32 %v2969, %v2289
          %v3084 = vmul.f32 %v2968, %v2294
          %v3085 = vmul.f32 %v2967, %v2299
          %v3086 = vmul.f32 %v2966, %v2304
          %v3087 = vmul.f32 %v2965, %v2309
          %v3088 = vmul.f32 %v2985, %v2314
          %v3089 = vmul.f32 %v2984, %v2319
          %v3090 = vmul.f32 %v2983, %v2324
          %v3091 = vpack.c.bf16 %v3070, %v3070
          %v3092 = vpack.c.bf16 %v3071, %v3071
          %v3093 = vpack.c.bf16 %v3072, %v3072
          %v3094 = vpack.c.bf16 %v3073, %v3073
          %v3095 = vpack.c.bf16 %v3074, %v3074
          %v3096 = vpack.c.bf16 %v3075, %v3075
          %v3097 = vpack.c.bf16 %v3076, %v3076
          %v3098 = vpack.c.bf16 %v3077, %v3077
          %v3099 = vpack.c.bf16 %v3078, %v3078
          %v3100 = vpack.c.bf16 %v3079, %v3079
          %v3101 = vpack.c.bf16 %v3080, %v3080
          %v3102 = vpack.c.bf16 %v3081, %v3081
          %v3103 = vpack.c.bf16 %v3082, %v3082
          %v3104 = vpack.c.bf16 %v3083, %v3083
          %v3105 = vpack.c.bf16 %v3084, %v3084
          %v3106 = vpack.c.bf16 %v3085, %v3085
          %v3107 = vpack.c.bf16 %v3086, %v3086
          %v3108 = vpack.c.bf16 %v3087, %v3087
          %v3109 = vpack.c.bf16 %v3088, %v3088
          %v3110 = vpack.c.bf16 %v3089, %v3089
          %v3111 = vpack.c.bf16 %v3090, %v3090
          %v3112 = vmul.f32 %v2688, %v2460
          %v3113 = vmul.f32 %v2687, %v2465
          %v3114 = vmul.f32 %v2686, %v2470
          %v3115 = vmul.f32 %v2685, %v2475
          %v3116 = vmul.f32 %v2684, %v2480
          %v3117 = vmul.f32 %v2683, %v2485
          %v3118 = vmul.f32 %v2682, %v2490
          %v3119 = vmul.f32 %v2681, %v2495
          %v3120 = vmul.f32 %v2680, %v2500
          %v3121 = vmul.f32 %v2679, %v2505
          %v3122 = vmul.f32 %v2678, %v2510
          %v3123 = vmul.f32 %v2677, %v2515
          %v3124 = vmul.f32 %v2676, %v2520
          %v3125 = vmul.f32 %v2675, %v2525
          %v3126 = vmul.f32 %v2674, %v2530
          %v3127 = vmul.f32 %v2673, %v2535
          %v3128 = vmul.f32 %v2672, %v2540
          %v3129 = vmul.f32 %v2671, %v2545
          %v3130 = vmul.f32 %v2691, %v2550
          %v3131 = vmul.f32 %v2690, %v2555
          %v3132 = vmul.f32 %v2689, %v2560
          %v3133 = vpack.c.bf16 %v3112, %v3112
          %v3134 = vpack.c.bf16 %v3113, %v3113
          %v3135 = vpack.c.bf16 %v3114, %v3114
          %v3136 = vpack.c.bf16 %v3115, %v3115
          %v3137 = vpack.c.bf16 %v3116, %v3116
          %v3138 = vpack.c.bf16 %v3117, %v3117
          %v3139 = vpack.c.bf16 %v3118, %v3118
          %v3140 = vpack.c.bf16 %v3119, %v3119
          %v3141 = vpack.c.bf16 %v3120, %v3120
          %v3142 = vpack.c.bf16 %v3121, %v3121
          %v3143 = vpack.c.bf16 %v3122, %v3122
          %v3144 = vpack.c.bf16 %v3123, %v3123
          %v3145 = vpack.c.bf16 %v3124, %v3124
          %v3146 = vpack.c.bf16 %v3125, %v3125
          %v3147 = vpack.c.bf16 %v3126, %v3126
          %v3148 = vpack.c.bf16 %v3127, %v3127
          %v3149 = vpack.c.bf16 %v3128, %v3128
          %v3150 = vpack.c.bf16 %v3129, %v3129
          %v3151 = vpack.c.bf16 %v3130, %v3130
          %v3152 = vpack.c.bf16 %v3131, %v3131
          %v3153 = vpack.c.bf16 %v3132, %v3132
          %v3175 = vunpack.c.l.b16 %v2713
          %v3176 = vunpack.c.l.b16 %v2714
          %v3177 = vunpack.c.l.b16 %v2715
          %v3178 = vunpack.c.l.b16 %v2716
          %v3179 = vunpack.c.l.b16 %v2717
          %v3180 = vunpack.c.l.b16 %v2718
          %v3181 = vunpack.c.l.b16 %v2719
          %v3182 = vunpack.c.l.b16 %v2720
          %v3183 = vunpack.c.l.b16 %v2721
          %v3184 = vunpack.c.l.b16 %v2722
          %v3185 = vunpack.c.l.b16 %v2723
          %v3186 = vunpack.c.l.b16 %v2724
          %v3187 = vunpack.c.l.b16 %v2725
          %v3188 = vunpack.c.l.b16 %v2726
          %v3189 = vunpack.c.l.b16 %v2727
          %v3190 = vunpack.c.l.b16 %v2728
          %v3191 = vunpack.c.l.b16 %v2729
          %v3192 = vunpack.c.l.b16 %v2730
          %v3193 = vunpack.c.l.b16 %v2731
          %v3194 = vunpack.c.l.b16 %v2732
          %v3195 = vunpack.c.l.b16 %v2733
          %v3196 = vpack.c.b16 %v3176, %v3175
          %v3197 = vpack.c.b16 %v3178, %v3177
          %v3198 = vpack.c.b16 %v3180, %v3179
          %v3199 = vpack.c.b16 %v3182, %v3181
          %v3200 = vpack.c.b16 %v3184, %v3183
          %v3201 = vpack.c.b16 %v3186, %v3185
          %v3202 = vpack.c.b16 %v3188, %v3187
          %v3203 = vpack.c.b16 %v3190, %v3189
          %v3204 = vpack.c.b16 %v3192, %v3191
          %v3205 = vpack.c.b16 %v3194, %v3193
          %v3206 = vpack.c.b16 %v3195, %v3195
          %v3239 = vunpack.c.l.b16 %v2797
          %v3240 = vunpack.c.l.b16 %v2798
          %v3241 = vunpack.c.l.b16 %v2799
          %v3242 = vunpack.c.l.b16 %v2800
          %v3243 = vunpack.c.l.b16 %v2801
          %v3244 = vunpack.c.l.b16 %v2802
          %v3245 = vunpack.c.l.b16 %v2803
          %v3246 = vunpack.c.l.b16 %v2804
          %v3247 = vunpack.c.l.b16 %v2805
          %v3248 = vunpack.c.l.b16 %v2806
          %v3249 = vunpack.c.l.b16 %v2807
          %v3250 = vunpack.c.l.b16 %v2808
          %v3251 = vunpack.c.l.b16 %v2809
          %v3252 = vunpack.c.l.b16 %v2810
          %v3253 = vunpack.c.l.b16 %v2811
          %v3254 = vunpack.c.l.b16 %v2812
          %v3255 = vunpack.c.l.b16 %v2813
          %v3256 = vunpack.c.l.b16 %v2814
          %v3257 = vunpack.c.l.b16 %v2815
          %v3258 = vunpack.c.l.b16 %v2816
          %v3259 = vunpack.c.l.b16 %v2817
          %v3260 = vpack.c.b16 %v3240, %v3239
          %v3261 = vpack.c.b16 %v3242, %v3241
          %v3262 = vpack.c.b16 %v3244, %v3243
          %v3263 = vpack.c.b16 %v3246, %v3245
          %v3264 = vpack.c.b16 %v3248, %v3247
          %v3265 = vpack.c.b16 %v3250, %v3249
          %v3266 = vpack.c.b16 %v3252, %v3251
          %v3267 = vpack.c.b16 %v3254, %v3253
          %v3268 = vpack.c.b16 %v3256, %v3255
          %v3269 = vpack.c.b16 %v3258, %v3257
          %v3270 = vpack.c.b16 %v3259, %v3259
          %v3303 = vunpack.c.l.b16 %v2839
          %v3304 = vunpack.c.l.b16 %v2840
          %v3305 = vunpack.c.l.b16 %v2841
          %v3306 = vunpack.c.l.b16 %v2842
          %v3307 = vunpack.c.l.b16 %v2843
          %v3308 = vunpack.c.l.b16 %v2844
          %v3309 = vunpack.c.l.b16 %v2845
          %v3310 = vunpack.c.l.b16 %v2846
          %v3311 = vunpack.c.l.b16 %v2847
          %v3312 = vunpack.c.l.b16 %v2848
          %v3313 = vunpack.c.l.b16 %v2849
          %v3314 = vunpack.c.l.b16 %v2850
          %v3315 = vunpack.c.l.b16 %v2851
          %v3316 = vunpack.c.l.b16 %v2852
          %v3317 = vunpack.c.l.b16 %v2853
          %v3318 = vunpack.c.l.b16 %v2854
          %v3319 = vunpack.c.l.b16 %v2855
          %v3320 = vunpack.c.l.b16 %v2856
          %v3321 = vunpack.c.l.b16 %v2857
          %v3322 = vunpack.c.l.b16 %v2858
          %v3323 = vunpack.c.l.b16 %v2859
          %v3324 = vpack.c.b16 %v3304, %v3303
          %v3325 = vpack.c.b16 %v3306, %v3305
          %v3326 = vpack.c.b16 %v3308, %v3307
          %v3327 = vpack.c.b16 %v3310, %v3309
          %v3328 = vpack.c.b16 %v3312, %v3311
          %v3329 = vpack.c.b16 %v3314, %v3313
          %v3330 = vpack.c.b16 %v3316, %v3315
          %v3331 = vpack.c.b16 %v3318, %v3317
          %v3332 = vpack.c.b16 %v3320, %v3319
          %v3333 = vpack.c.b16 %v3322, %v3321
          %v3334 = vpack.c.b16 %v3323, %v3323
          %v3367 = vunpack.c.l.b16 %v2881
          %v3368 = vunpack.c.l.b16 %v2882
          %v3369 = vunpack.c.l.b16 %v2883
          %v3370 = vunpack.c.l.b16 %v2884
          %v3371 = vunpack.c.l.b16 %v2885
          %v3372 = vunpack.c.l.b16 %v2886
          %v3373 = vunpack.c.l.b16 %v2887
          %v3374 = vunpack.c.l.b16 %v2888
          %v3375 = vunpack.c.l.b16 %v2889
          %v3376 = vunpack.c.l.b16 %v2890
          %v3377 = vunpack.c.l.b16 %v2891
          %v3378 = vunpack.c.l.b16 %v2892
          %v3379 = vunpack.c.l.b16 %v2893
          %v3380 = vunpack.c.l.b16 %v2894
          %v3381 = vunpack.c.l.b16 %v2895
          %v3382 = vunpack.c.l.b16 %v2896
          %v3383 = vunpack.c.l.b16 %v2897
          %v3384 = vunpack.c.l.b16 %v2898
          %v3385 = vunpack.c.l.b16 %v2899
          %v3386 = vunpack.c.l.b16 %v2900
          %v3387 = vunpack.c.l.b16 %v2901
          %v3388 = vpack.c.b16 %v3368, %v3367
          %v3389 = vpack.c.b16 %v3370, %v3369
          %v3390 = vpack.c.b16 %v3372, %v3371
          %v3391 = vpack.c.b16 %v3374, %v3373
          %v3392 = vpack.c.b16 %v3376, %v3375
          %v3393 = vpack.c.b16 %v3378, %v3377
          %v3394 = vpack.c.b16 %v3380, %v3379
          %v3395 = vpack.c.b16 %v3382, %v3381
          %v3396 = vpack.c.b16 %v3384, %v3383
          %v3397 = vpack.c.b16 %v3386, %v3385
          %v3398 = vpack.c.b16 %v3387, %v3387
          %v3431 = vunpack.c.l.b16 %v2923
          %v3432 = vunpack.c.l.b16 %v2924
          %v3433 = vunpack.c.l.b16 %v2925
          %v3434 = vunpack.c.l.b16 %v2926
          %v3435 = vunpack.c.l.b16 %v2927
          %v3436 = vunpack.c.l.b16 %v2928
          %v3437 = vunpack.c.l.b16 %v2929
          %v3438 = vunpack.c.l.b16 %v2930
          %v3439 = vunpack.c.l.b16 %v2931
          %v3440 = vunpack.c.l.b16 %v2932
          %v3441 = vunpack.c.l.b16 %v2933
          %v3442 = vunpack.c.l.b16 %v2934
          %v3443 = vunpack.c.l.b16 %v2935
          %v3444 = vunpack.c.l.b16 %v2936
          %v3445 = vunpack.c.l.b16 %v2937
          %v3446 = vunpack.c.l.b16 %v2938
          %v3447 = vunpack.c.l.b16 %v2939
          %v3448 = vunpack.c.l.b16 %v2940
          %v3449 = vunpack.c.l.b16 %v2941
          %v3450 = vunpack.c.l.b16 %v2942
          %v3451 = vunpack.c.l.b16 %v2943
          %v3452 = vpack.c.b16 %v3432, %v3431
          %v3453 = vpack.c.b16 %v3434, %v3433
          %v3454 = vpack.c.b16 %v3436, %v3435
          %v3455 = vpack.c.b16 %v3438, %v3437
          %v3456 = vpack.c.b16 %v3440, %v3439
          %v3457 = vpack.c.b16 %v3442, %v3441
          %v3458 = vpack.c.b16 %v3444, %v3443
          %v3459 = vpack.c.b16 %v3446, %v3445
          %v3460 = vpack.c.b16 %v3448, %v3447
          %v3461 = vpack.c.b16 %v3450, %v3449
          %v3462 = vpack.c.b16 %v3451, %v3451
          %v3495 = vunpack.c.l.b16 %v3007
          %v3496 = vunpack.c.l.b16 %v3008
          %v3497 = vunpack.c.l.b16 %v3009
          %v3498 = vunpack.c.l.b16 %v3010
          %v3499 = vunpack.c.l.b16 %v3011
          %v3500 = vunpack.c.l.b16 %v3012
          %v3501 = vunpack.c.l.b16 %v3013
          %v3502 = vunpack.c.l.b16 %v3014
          %v3503 = vunpack.c.l.b16 %v3015
          %v3504 = vunpack.c.l.b16 %v3016
          %v3505 = vunpack.c.l.b16 %v3017
          %v3506 = vunpack.c.l.b16 %v3018
          %v3507 = vunpack.c.l.b16 %v3019
          %v3508 = vunpack.c.l.b16 %v3020
          %v3509 = vunpack.c.l.b16 %v3021
          %v3510 = vunpack.c.l.b16 %v3022
          %v3511 = vunpack.c.l.b16 %v3023
          %v3512 = vunpack.c.l.b16 %v3024
          %v3513 = vunpack.c.l.b16 %v3025
          %v3514 = vunpack.c.l.b16 %v3026
          %v3515 = vunpack.c.l.b16 %v3027
          %v3516 = vpack.c.b16 %v3496, %v3495
          %v3517 = vpack.c.b16 %v3498, %v3497
          %v3518 = vpack.c.b16 %v3500, %v3499
          %v3519 = vpack.c.b16 %v3502, %v3501
          %v3520 = vpack.c.b16 %v3504, %v3503
          %v3521 = vpack.c.b16 %v3506, %v3505
          %v3522 = vpack.c.b16 %v3508, %v3507
          %v3523 = vpack.c.b16 %v3510, %v3509
          %v3524 = vpack.c.b16 %v3512, %v3511
          %v3525 = vpack.c.b16 %v3514, %v3513
          %v3526 = vpack.c.b16 %v3515, %v3515
          %v3559 = vunpack.c.l.b16 %v3049
          %v3560 = vunpack.c.l.b16 %v3050
          %v3561 = vunpack.c.l.b16 %v3051
          %v3562 = vunpack.c.l.b16 %v3052
          %v3563 = vunpack.c.l.b16 %v3053
          %v3564 = vunpack.c.l.b16 %v3054
          %v3565 = vunpack.c.l.b16 %v3055
          %v3566 = vunpack.c.l.b16 %v3056
          %v3567 = vunpack.c.l.b16 %v3057
          %v3568 = vunpack.c.l.b16 %v3058
          %v3569 = vunpack.c.l.b16 %v3059
          %v3570 = vunpack.c.l.b16 %v3060
          %v3571 = vunpack.c.l.b16 %v3061
          %v3572 = vunpack.c.l.b16 %v3062
          %v3573 = vunpack.c.l.b16 %v3063
          %v3574 = vunpack.c.l.b16 %v3064
          %v3575 = vunpack.c.l.b16 %v3065
          %v3576 = vunpack.c.l.b16 %v3066
          %v3577 = vunpack.c.l.b16 %v3067
          %v3578 = vunpack.c.l.b16 %v3068
          %v3579 = vunpack.c.l.b16 %v3069
          %v3580 = vpack.c.b16 %v3560, %v3559
          %v3581 = vpack.c.b16 %v3562, %v3561
          %v3582 = vpack.c.b16 %v3564, %v3563
          %v3583 = vpack.c.b16 %v3566, %v3565
          %v3584 = vpack.c.b16 %v3568, %v3567
          %v3585 = vpack.c.b16 %v3570, %v3569
          %v3586 = vpack.c.b16 %v3572, %v3571
          %v3587 = vpack.c.b16 %v3574, %v3573
          %v3588 = vpack.c.b16 %v3576, %v3575
          %v3589 = vpack.c.b16 %v3578, %v3577
          %v3590 = vpack.c.b16 %v3579, %v3579
          %v3623 = vunpack.c.l.b16 %v3091
          %v3624 = vunpack.c.l.b16 %v3092
          %v3625 = vunpack.c.l.b16 %v3093
          %v3626 = vunpack.c.l.b16 %v3094
          %v3627 = vunpack.c.l.b16 %v3095
          %v3628 = vunpack.c.l.b16 %v3096
          %v3629 = vunpack.c.l.b16 %v3097
          %v3630 = vunpack.c.l.b16 %v3098
          %v3631 = vunpack.c.l.b16 %v3099
          %v3632 = vunpack.c.l.b16 %v3100
          %v3633 = vunpack.c.l.b16 %v3101
          %v3634 = vunpack.c.l.b16 %v3102
          %v3635 = vunpack.c.l.b16 %v3103
          %v3636 = vunpack.c.l.b16 %v3104
          %v3637 = vunpack.c.l.b16 %v3105
          %v3638 = vunpack.c.l.b16 %v3106
          %v3639 = vunpack.c.l.b16 %v3107
          %v3640 = vunpack.c.l.b16 %v3108
          %v3641 = vunpack.c.l.b16 %v3109
          %v3642 = vunpack.c.l.b16 %v3110
          %v3643 = vunpack.c.l.b16 %v3111
          %v3644 = vpack.c.b16 %v3624, %v3623
          %v3645 = vpack.c.b16 %v3626, %v3625
          %v3646 = vpack.c.b16 %v3628, %v3627
          %v3647 = vpack.c.b16 %v3630, %v3629
          %v3648 = vpack.c.b16 %v3632, %v3631
          %v3649 = vpack.c.b16 %v3634, %v3633
          %v3650 = vpack.c.b16 %v3636, %v3635
          %v3651 = vpack.c.b16 %v3638, %v3637
          %v3652 = vpack.c.b16 %v3640, %v3639
          %v3653 = vpack.c.b16 %v3642, %v3641
          %v3654 = vpack.c.b16 %v3643, %v3643
          %v3687 = vunpack.c.l.b16 %v3133
          %v3688 = vunpack.c.l.b16 %v3134
          %v3689 = vunpack.c.l.b16 %v3135
          %v3690 = vunpack.c.l.b16 %v3136
          %v3691 = vunpack.c.l.b16 %v3137
          %v3692 = vunpack.c.l.b16 %v3138
          %v3693 = vunpack.c.l.b16 %v3139
          %v3694 = vunpack.c.l.b16 %v3140
          %v3695 = vunpack.c.l.b16 %v3141
          %v3696 = vunpack.c.l.b16 %v3142
          %v3697 = vunpack.c.l.b16 %v3143
          %v3698 = vunpack.c.l.b16 %v3144
          %v3699 = vunpack.c.l.b16 %v3145
          %v3700 = vunpack.c.l.b16 %v3146
          %v3701 = vunpack.c.l.b16 %v3147
          %v3702 = vunpack.c.l.b16 %v3148
          %v3703 = vunpack.c.l.b16 %v3149
          %v3704 = vunpack.c.l.b16 %v3150
          %v3705 = vunpack.c.l.b16 %v3151
          %v3706 = vunpack.c.l.b16 %v3152
          %v3707 = vunpack.c.l.b16 %v3153
          %v3708 = vpack.c.b16 %v3688, %v3687
          %v3709 = vpack.c.b16 %v3690, %v3689
          %v3710 = vpack.c.b16 %v3692, %v3691
          %v3711 = vpack.c.b16 %v3694, %v3693
          %v3712 = vpack.c.b16 %v3696, %v3695
          %v3713 = vpack.c.b16 %v3698, %v3697
          %v3714 = vpack.c.b16 %v3700, %v3699
          %v3715 = vpack.c.b16 %v3702, %v3701
          %v3716 = vpack.c.b16 %v3704, %v3703
          %v3717 = vpack.c.b16 %v3706, %v3705
          %v3718 = vpack.c.b16 %v3707, %v3707
          %v3730 = vld [vmem:[#allocation8] sm:$0xf]
          %v3731 = vld [vmem:[#allocation8 + $0x4] sm:$0xf]
          %v3732 = vld [vmem:[#allocation8 + $0x8] sm:$0xf]
          %v3733 = vld [vmem:[#allocation8 + $0xc] sm:$0xf]
          %v3734 = vld [vmem:[#allocation8 + $0x10] sm:$0xf]
          %v3735 = vld [vmem:[#allocation8 + $0x14] sm:$0xf]
          %v3736 = vld [vmem:[#allocation8 + $0x18] sm:$0xf]
          %v3737 = vld [vmem:[#allocation8 + $0x1c] sm:$0xf]
          %v3738 = vld [vmem:[#allocation8 + $0x20] sm:$0xf]
          %v3739 = vld [vmem:[#allocation8 + $0x24] sm:$0xf]
          %v3740 = vld [vmem:[#allocation8 + $0x28] sm:$0xf]
          %v3741 = vld [vmem:[#allocation8 + $0x2c] sm:$0xf]
          %v3742 = vld [vmem:[#allocation8 + $0x30] sm:$0xf]
          %v3743 = vld [vmem:[#allocation8 + $0x34] sm:$0xf]
          %v3744 = vld [vmem:[#allocation8 + $0x38] sm:$0xf]
          %v3745 = vld [vmem:[#allocation8 + $0x3c] sm:$0xf]
          %v3746 = vld [vmem:[#allocation8 + $0x40] sm:$0xf]
          %v3747 = vld [vmem:[#allocation8 + $0x44] sm:$0xf]
          %v3748 = vld [vmem:[#allocation8 + $0x48] sm:$0xf]
          %v3749 = vld [vmem:[#allocation8 + $0x4c] sm:$0xf]
          %v3750 = vld [vmem:[#allocation8 + $0x50] sm:$0xf]
          %v3751 = vld [vmem:[#allocation8 + $0x54] sm:$0xf]
          %v3752 = vld [vmem:[#allocation8 + $0x58] sm:$0xf]
          %v3753 = vld [vmem:[#allocation8 + $0x5c] sm:$0xf]
          %v3754 = vld [vmem:[#allocation8 + $0x60] sm:$0xf]
          %v3755 = vld [vmem:[#allocation8 + $0x64] sm:$0xf]
          %v3756 = vld [vmem:[#allocation8 + $0x68] sm:$0xf]
          %v3757 = vld [vmem:[#allocation8 + $0x6c] sm:$0xf]
          %v3758 = vld [vmem:[#allocation8 + $0x70] sm:$0xf]
          %v3759 = vld [vmem:[#allocation8 + $0x74] sm:$0xf]
          %v3760 = vld [vmem:[#allocation8 + $0x78] sm:$0xf]
          %v3761 = vld [vmem:[#allocation8 + $0x7c] sm:$0xf]
          %v3762 = vld [vmem:[#allocation8 + $0x80] sm:$0xf]
          %v3763 = vld [vmem:[#allocation8 + $0x84] sm:$0xf]
          %v3764 = vld [vmem:[#allocation8 + $0x88] sm:$0xf]
          %v3765 = vld [vmem:[#allocation8 + $0x8c] sm:$0xf]
          %v3766 = vld [vmem:[#allocation8 + $0x90] sm:$0xf]
          %v3767 = vld [vmem:[#allocation8 + $0x94] sm:$0xf]
          %v3768 = vld [vmem:[#allocation8 + $0x98] sm:$0xf]
          %v3769 = vld [vmem:[#allocation8 + $0x9c] sm:$0xf]
          %v3770 = vld [vmem:[#allocation8 + $0xa0] sm:$0xf]
          %v3771 = vld [vmem:[#allocation8 + $0xa4] sm:$0xf]
          %v3772 = vld [vmem:[#allocation8 + $0xa8] sm:$0xf]
          %v3773 = vld [vmem:[#allocation8 + $0xac] sm:$0xf]
          %v3774 = vld [vmem:[#allocation8 + $0xb0] sm:$0xf]
          %v3775 = vld [vmem:[#allocation8 + $0xb4] sm:$0xf]
          %v3776 = vld [vmem:[#allocation8 + $0xb8] sm:$0xf]
          %v3777 = vld [vmem:[#allocation8 + $0xbc] sm:$0xf]
          %v3778 = vld [vmem:[#allocation8 + $0xc0] sm:$0xf]
          %v3779 = vld [vmem:[#allocation8 + $0xc4] sm:$0xf]
          %v3780 = vld [vmem:[#allocation8 + $0xc8] sm:$0xf]
          %v3781 = vld [vmem:[#allocation8 + $0xcc] sm:$0xf]
          %v3782 = vld [vmem:[#allocation8 + $0xd0] sm:$0xf]
          %v3783 = vld [vmem:[#allocation8 + $0xd4] sm:$0xf]
          %v3784 = vld [vmem:[#allocation8 + $0xd8] sm:$0xf]
          %v3785 = vld [vmem:[#allocation8 + $0xdc] sm:$0xf]
          %v3786 = vld [vmem:[#allocation8 + $0xe0] sm:$0xf]
          %v3787 = vld [vmem:[#allocation8 + $0xe4] sm:$0xf]
          %v3788 = vld [vmem:[#allocation8 + $0xe8] sm:$0xf]
          %v3789 = vld [vmem:[#allocation8 + $0xec] sm:$0xf]
          %v3790 = vld [vmem:[#allocation8 + $0xf0] sm:$0xf]
          %v3791 = vld [vmem:[#allocation8 + $0xf4] sm:$0xf]
          %v3792 = vld [vmem:[#allocation8 + $0xf8] sm:$0xf]
          %v3793 = vld [vmem:[#allocation8 + $0xfc] sm:$0xf]
          %v3794 = vld [vmem:[#allocation8 + $0x100] sm:$0xf]
          %v3795 = vld [vmem:[#allocation8 + $0x104] sm:$0xf]
          %v3796 = vld [vmem:[#allocation8 + $0x108] sm:$0xf]
          %v3797 = vld [vmem:[#allocation8 + $0x10c] sm:$0xf]
          %v3798 = vld [vmem:[#allocation8 + $0x110] sm:$0xf]
          %v3799 = vld [vmem:[#allocation8 + $0x114] sm:$0xf]
          %v3800 = vld [vmem:[#allocation8 + $0x118] sm:$0xf]
          %v3801 = vld [vmem:[#allocation8 + $0x11c] sm:$0xf]
          %v3802 = vld [vmem:[#allocation8 + $0x120] sm:$0xf]
          %v3803 = vld [vmem:[#allocation8 + $0x124] sm:$0xf]
          %v3804 = vld [vmem:[#allocation8 + $0x128] sm:$0xf]
          %v3805 = vld [vmem:[#allocation8 + $0x12c] sm:$0xf]
          %v3806 = vld [vmem:[#allocation8 + $0x130] sm:$0xf]
          %v3807 = vld [vmem:[#allocation8 + $0x134] sm:$0xf]
          %v3808 = vld [vmem:[#allocation8 + $0x138] sm:$0xf]
          %v3809 = vld [vmem:[#allocation8 + $0x13c] sm:$0xf]
          %v3810 = vld [vmem:[#allocation8 + $0x140] sm:$0xf]
          %v3811 = vld [vmem:[#allocation8 + $0x144] sm:$0xf]
          %v3812 = vld [vmem:[#allocation8 + $0x148] sm:$0xf]
          %v3813 = vld [vmem:[#allocation8 + $0x14c] sm:$0xf]
          %v3814 = vld [vmem:[#allocation8 + $0x150] sm:$0xf]
          %v3815 = vld [vmem:[#allocation8 + $0x154] sm:$0xf]
          %v3816 = vld [vmem:[#allocation8 + $0x158] sm:$0xf]
          %v3817 = vld [vmem:[#allocation8 + $0x15c] sm:$0xf]
          %v3818 = vld [vmem:[#allocation8 + $0x160] sm:$0xf]
          %v3819 = vld [vmem:[#allocation8 + $0x164] sm:$0xf]
          %v3820 = vld [vmem:[#allocation8 + $0x168] sm:$0xf]
          %v3821 = vld [vmem:[#allocation8 + $0x16c] sm:$0xf]
          %v3822 = vld [vmem:[#allocation8 + $0x170] sm:$0xf]
          %v3823 = vld [vmem:[#allocation8 + $0x174] sm:$0xf]
          %v3824 = vld [vmem:[#allocation8 + $0x178] sm:$0xf]
          %v3825 = vld [vmem:[#allocation8 + $0x17c] sm:$0xf]
          %v3826 = vld [vmem:[#allocation8 + $0x180] sm:$0xf]
          %v3827 = vld [vmem:[#allocation8 + $0x184] sm:$0xf]
          %v3828 = vld [vmem:[#allocation8 + $0x188] sm:$0xf]
          %v3829 = vld [vmem:[#allocation8 + $0x18c] sm:$0xf]
          %v3830 = vld [vmem:[#allocation8 + $0x190] sm:$0xf]
          %v3831 = vld [vmem:[#allocation8 + $0x194] sm:$0xf]
          %v3832 = vld [vmem:[#allocation8 + $0x198] sm:$0xf]
          %v3833 = vld [vmem:[#allocation8 + $0x19c] sm:$0xf]
          %v3834 = vld [vmem:[#allocation8 + $0x1a0] sm:$0xf]
          %v3835 = vld [vmem:[#allocation8 + $0x1a4] sm:$0xf]
          %v3836 = vld [vmem:[#allocation8 + $0x1a8] sm:$0xf]
          %v3837 = vld [vmem:[#allocation8 + $0x1ac] sm:$0xf]
          %v3838 = vld [vmem:[#allocation8 + $0x1b0] sm:$0xf]
          %v3839 = vld [vmem:[#allocation8 + $0x1b4] sm:$0xf]
          %v3840 = vld [vmem:[#allocation8 + $0x1b8] sm:$0xf]
          %v3841 = vld [vmem:[#allocation8 + $0x1bc] sm:$0xf]
          %v3842 = vld [vmem:[#allocation8 + $0x1c0] sm:$0xf]
          %v3843 = vld [vmem:[#allocation8 + $0x1c4] sm:$0xf]
          %v3844 = vld [vmem:[#allocation8 + $0x1c8] sm:$0xf]
          %v3845 = vld [vmem:[#allocation8 + $0x1cc] sm:$0xf]
          %v3846 = vld [vmem:[#allocation8 + $0x1d0] sm:$0xf]
          %v3847 = vld [vmem:[#allocation8 + $0x1d4] sm:$0xf]
          %v3848 = vld [vmem:[#allocation8 + $0x1d8] sm:$0xf]
          %v3849 = vld [vmem:[#allocation8 + $0x1dc] sm:$0xf]
          %v3850 = vld [vmem:[#allocation8 + $0x1e0] sm:$0xf]
          %v3851 = vld [vmem:[#allocation8 + $0x1e4] sm:$0xf]
          %v3852 = vld [vmem:[#allocation8 + $0x1e8] sm:$0xf]
          %v3853 = vld [vmem:[#allocation8 + $0x1ec] sm:$0xf]
          %v3854 = vld [vmem:[#allocation8 + $0x1f0] sm:$0xf]
          %v3855 = vld [vmem:[#allocation8 + $0x1f4] sm:$0xf]
          %v3856 = vld [vmem:[#allocation8 + $0x1f8] sm:$0xf]
          %v3857 = vld [vmem:[#allocation8 + $0x1fc] sm:$0xf]
          %v3858 = vld [vmem:[#allocation8 + $0x200] sm:$0xf]
          %v3859 = vld [vmem:[#allocation8 + $0x204] sm:$0xf]
          %v3860 = vld [vmem:[#allocation8 + $0x208] sm:$0xf]
          %v3861 = vld [vmem:[#allocation8 + $0x20c] sm:$0xf]
          %v3862 = vld [vmem:[#allocation8 + $0x210] sm:$0xf]
          %v3863 = vld [vmem:[#allocation8 + $0x214] sm:$0xf]
          %v3864 = vld [vmem:[#allocation8 + $0x218] sm:$0xf]
          %v3865 = vld [vmem:[#allocation8 + $0x21c] sm:$0xf]
          %v3866 = vld [vmem:[#allocation8 + $0x220] sm:$0xf]
          %v3867 = vld [vmem:[#allocation8 + $0x224] sm:$0xf]
          %v3868 = vld [vmem:[#allocation8 + $0x228] sm:$0xf]
          %v3869 = vld [vmem:[#allocation8 + $0x22c] sm:$0xf]
          %v3870 = vld [vmem:[#allocation8 + $0x230] sm:$0xf]
          %v3871 = vld [vmem:[#allocation8 + $0x234] sm:$0xf]
          %v3872 = vld [vmem:[#allocation8 + $0x238] sm:$0xf]
          %v3873 = vld [vmem:[#allocation8 + $0x23c] sm:$0xf]
          %v3874 = vld [vmem:[#allocation9] sm:$0x1]
          %v3876 = vperm.slane %v3874, 0
          %v4022 = vunpack.c.l.b16 %v3730
          %v4023 = vunpack.c.l.b16 %v3731
          %v4024 = vunpack.c.l.b16 %v3732
          %v4025 = vunpack.c.l.b16 %v3733
          %v4026 = vunpack.c.l.b16 %v3734
          %v4027 = vunpack.c.l.b16 %v3735
          %v4028 = vunpack.c.l.b16 %v3736
          %v4029 = vunpack.c.l.b16 %v3737
          %v4030 = vunpack.c.l.b16 %v3738
          %v4031 = vunpack.c.l.b16 %v3739
          %v4032 = vunpack.c.l.b16 %v3740
          %v4033 = vunpack.c.l.b16 %v3741
          %v4034 = vunpack.c.l.b16 %v3742
          %v4035 = vunpack.c.l.b16 %v3743
          %v4036 = vunpack.c.l.b16 %v3744
          %v4037 = vunpack.c.l.b16 %v3745
          %v4038 = vunpack.c.l.b16 %v3746
          %v4039 = vunpack.c.l.b16 %v3747
          %v4040 = vunpack.c.l.b16 %v3748
          %v4041 = vunpack.c.l.b16 %v3749
          %v4042 = vunpack.c.l.b16 %v3750
          %v4043 = vunpack.c.l.b16 %v3751
          %v4044 = vunpack.c.l.b16 %v3752
          %v4045 = vunpack.c.l.b16 %v3753
          %v4046 = vunpack.c.l.b16 %v3754
          %v4047 = vunpack.c.l.b16 %v3755
          %v4048 = vunpack.c.l.b16 %v3756
          %v4049 = vunpack.c.l.b16 %v3757
          %v4050 = vunpack.c.l.b16 %v3758
          %v4051 = vunpack.c.l.b16 %v3759
          %v4052 = vunpack.c.l.b16 %v3760
          %v4053 = vunpack.c.l.b16 %v3761
          %v4054 = vunpack.c.l.b16 %v3762
          %v4055 = vunpack.c.l.b16 %v3763
          %v4056 = vunpack.c.l.b16 %v3764
          %v4057 = vunpack.c.l.b16 %v3765
          %v4058 = vunpack.c.l.b16 %v3766
          %v4059 = vunpack.c.l.b16 %v3767
          %v4060 = vunpack.c.l.b16 %v3768
          %v4061 = vunpack.c.l.b16 %v3769
          %v4062 = vunpack.c.l.b16 %v3770
          %v4063 = vunpack.c.l.b16 %v3771
          %v4064 = vunpack.c.l.b16 %v3772
          %v4065 = vunpack.c.l.b16 %v3773
          %v4066 = vunpack.c.l.b16 %v3774
          %v4067 = vunpack.c.l.b16 %v3775
          %v4068 = vunpack.c.l.b16 %v3776
          %v4069 = vunpack.c.l.b16 %v3777
          %v4070 = vunpack.c.l.b16 %v3778
          %v4071 = vunpack.c.l.b16 %v3779
          %v4072 = vunpack.c.l.b16 %v3780
          %v4073 = vunpack.c.l.b16 %v3781
          %v4074 = vunpack.c.l.b16 %v3782
          %v4075 = vunpack.c.l.b16 %v3783
          %v4076 = vunpack.c.l.b16 %v3784
          %v4077 = vunpack.c.l.b16 %v3785
          %v4078 = vunpack.c.l.b16 %v3786
          %v4079 = vunpack.c.l.b16 %v3787
          %v4080 = vunpack.c.l.b16 %v3788
          %v4081 = vunpack.c.l.b16 %v3789
          %v4082 = vunpack.c.l.b16 %v3790
          %v4083 = vunpack.c.l.b16 %v3791
          %v4084 = vunpack.c.l.b16 %v3792
          %v4085 = vunpack.c.l.b16 %v3793
          %v4086 = vunpack.c.l.b16 %v3794
          %v4087 = vunpack.c.l.b16 %v3795
          %v4088 = vunpack.c.l.b16 %v3796
          %v4089 = vunpack.c.l.b16 %v3797
          %v4090 = vunpack.c.l.b16 %v3798
          %v4091 = vunpack.c.l.b16 %v3799
          %v4092 = vunpack.c.l.b16 %v3800
          %v4093 = vunpack.c.l.b16 %v3801
          %v4094 = vunpack.c.l.b16 %v3802
          %v4095 = vunpack.c.l.b16 %v3803
          %v4096 = vunpack.c.l.b16 %v3804
          %v4097 = vunpack.c.l.b16 %v3805
          %v4098 = vunpack.c.l.b16 %v3806
          %v4099 = vunpack.c.l.b16 %v3807
          %v4100 = vunpack.c.l.b16 %v3808
          %v4101 = vunpack.c.l.b16 %v3809
          %v4102 = vunpack.c.l.b16 %v3810
          %v4103 = vunpack.c.l.b16 %v3811
          %v4104 = vunpack.c.l.b16 %v3812
          %v4105 = vunpack.c.l.b16 %v3813
          %v4106 = vunpack.c.l.b16 %v3814
          %v4107 = vunpack.c.l.b16 %v3815
          %v4108 = vunpack.c.l.b16 %v3816
          %v4109 = vunpack.c.l.b16 %v3817
          %v4110 = vunpack.c.l.b16 %v3818
          %v4111 = vunpack.c.l.b16 %v3819
          %v4112 = vunpack.c.l.b16 %v3820
          %v4113 = vunpack.c.l.b16 %v3821
          %v4114 = vunpack.c.l.b16 %v3822
          %v4115 = vunpack.c.l.b16 %v3823
          %v4116 = vunpack.c.l.b16 %v3824
          %v4117 = vunpack.c.l.b16 %v3825
          %v4118 = vunpack.c.l.b16 %v3826
          %v4119 = vunpack.c.l.b16 %v3827
          %v4120 = vunpack.c.l.b16 %v3828
          %v4121 = vunpack.c.l.b16 %v3829
          %v4122 = vunpack.c.l.b16 %v3830
          %v4123 = vunpack.c.l.b16 %v3831
          %v4124 = vunpack.c.l.b16 %v3832
          %v4125 = vunpack.c.l.b16 %v3833
          %v4126 = vunpack.c.l.b16 %v3834
          %v4127 = vunpack.c.l.b16 %v3835
          %v4128 = vunpack.c.l.b16 %v3836
          %v4129 = vunpack.c.l.b16 %v3837
          %v4130 = vunpack.c.l.b16 %v3838
          %v4131 = vunpack.c.l.b16 %v3839
          %v4132 = vunpack.c.l.b16 %v3840
          %v4133 = vunpack.c.l.b16 %v3841
          %v4134 = vunpack.c.l.b16 %v3842
          %v4135 = vunpack.c.l.b16 %v3843
          %v4136 = vunpack.c.l.b16 %v3844
          %v4137 = vunpack.c.l.b16 %v3845
          %v4138 = vunpack.c.l.b16 %v3846
          %v4139 = vunpack.c.l.b16 %v3847
          %v4140 = vunpack.c.l.b16 %v3848
          %v4141 = vunpack.c.l.b16 %v3849
          %v4142 = vunpack.c.l.b16 %v3850
          %v4143 = vunpack.c.l.b16 %v3851
          %v4144 = vunpack.c.l.b16 %v3852
          %v4145 = vunpack.c.l.b16 %v3853
          %v4146 = vunpack.c.l.b16 %v3854
          %v4147 = vunpack.c.l.b16 %v3855
          %v4148 = vunpack.c.l.b16 %v3856
          %v4149 = vunpack.c.l.b16 %v3857
          %v4150 = vunpack.c.l.b16 %v3858
          %v4151 = vunpack.c.l.b16 %v3859
          %v4152 = vunpack.c.l.b16 %v3860
          %v4153 = vunpack.c.l.b16 %v3861
          %v4154 = vunpack.c.l.b16 %v3862
          %v4155 = vunpack.c.l.b16 %v3863
          %v4156 = vunpack.c.l.b16 %v3864
          %v4157 = vunpack.c.l.b16 %v3865
          %v4158 = vunpack.c.l.b16 %v3866
          %v4159 = vunpack.c.l.b16 %v3867
          %v4160 = vunpack.c.l.b16 %v3868
          %v4161 = vunpack.c.l.b16 %v3869
          %v4162 = vunpack.c.l.b16 %v3870
          %v4163 = vunpack.c.l.b16 %v3871
          %v4164 = vunpack.c.l.b16 %v3872
          %v4165 = vunpack.c.l.b16 %v3873
          %v4166 = vpack.c.b16 %v4023, %v4022
          %v4167 = vpack.c.b16 %v4025, %v4024
          %v4168 = vpack.c.b16 %v4027, %v4026
          %v4169 = vpack.c.b16 %v4029, %v4028
          %v4170 = vpack.c.b16 %v4031, %v4030
          %v4171 = vpack.c.b16 %v4033, %v4032
          %v4172 = vpack.c.b16 %v4035, %v4034
          %v4173 = vpack.c.b16 %v4037, %v4036
          %v4174 = vpack.c.b16 %v4039, %v4038
          %v4175 = vpack.c.b16 %v4041, %v4040
          %v4176 = vpack.c.b16 %v4043, %v4042
          %v4177 = vpack.c.b16 %v4045, %v4044
          %v4178 = vpack.c.b16 %v4047, %v4046
          %v4179 = vpack.c.b16 %v4049, %v4048
          %v4180 = vpack.c.b16 %v4051, %v4050
          %v4181 = vpack.c.b16 %v4053, %v4052
          %v4182 = vpack.c.b16 %v4055, %v4054
          %v4183 = vpack.c.b16 %v4057, %v4056
          %v4184 = vpack.c.b16 %v4059, %v4058
          %v4185 = vpack.c.b16 %v4061, %v4060
          %v4186 = vpack.c.b16 %v4063, %v4062
          %v4187 = vpack.c.b16 %v4065, %v4064
          %v4188 = vpack.c.b16 %v4067, %v4066
          %v4189 = vpack.c.b16 %v4069, %v4068
          %v4190 = vpack.c.b16 %v4071, %v4070
          %v4191 = vpack.c.b16 %v4073, %v4072
          %v4192 = vpack.c.b16 %v4075, %v4074
          %v4193 = vpack.c.b16 %v4077, %v4076
          %v4194 = vpack.c.b16 %v4079, %v4078
          %v4195 = vpack.c.b16 %v4081, %v4080
          %v4196 = vpack.c.b16 %v4083, %v4082
          %v4197 = vpack.c.b16 %v4085, %v4084
          %v4198 = vpack.c.b16 %v4087, %v4086
          %v4199 = vpack.c.b16 %v4089, %v4088
          %v4200 = vpack.c.b16 %v4091, %v4090
          %v4201 = vpack.c.b16 %v4093, %v4092
          %v4202 = vpack.c.b16 %v4095, %v4094
          %v4203 = vpack.c.b16 %v4097, %v4096
          %v4204 = vpack.c.b16 %v4099, %v4098
          %v4205 = vpack.c.b16 %v4101, %v4100
          %v4206 = vpack.c.b16 %v4103, %v4102
          %v4207 = vpack.c.b16 %v4105, %v4104
          %v4208 = vpack.c.b16 %v4107, %v4106
          %v4209 = vpack.c.b16 %v4109, %v4108
          %v4210 = vpack.c.b16 %v4111, %v4110
          %v4211 = vpack.c.b16 %v4113, %v4112
          %v4212 = vpack.c.b16 %v4115, %v4114
          %v4213 = vpack.c.b16 %v4117, %v4116
          %v4214 = vpack.c.b16 %v4119, %v4118
          %v4215 = vpack.c.b16 %v4121, %v4120
          %v4216 = vpack.c.b16 %v4123, %v4122
          %v4217 = vpack.c.b16 %v4125, %v4124
          %v4218 = vpack.c.b16 %v4127, %v4126
          %v4219 = vpack.c.b16 %v4129, %v4128
          %v4220 = vpack.c.b16 %v4131, %v4130
          %v4221 = vpack.c.b16 %v4133, %v4132
          %v4222 = vpack.c.b16 %v4135, %v4134
          %v4223 = vpack.c.b16 %v4137, %v4136
          %v4224 = vpack.c.b16 %v4139, %v4138
          %v4225 = vpack.c.b16 %v4141, %v4140
          %v4226 = vpack.c.b16 %v4143, %v4142
          %v4227 = vpack.c.b16 %v4145, %v4144
          %v4228 = vpack.c.b16 %v4147, %v4146
          %v4229 = vpack.c.b16 %v4149, %v4148
          %v4230 = vpack.c.b16 %v4151, %v4150
          %v4231 = vpack.c.b16 %v4153, %v4152
          %v4232 = vpack.c.b16 %v4155, %v4154
          %v4233 = vpack.c.b16 %v4157, %v4156
          %v4234 = vpack.c.b16 %v4159, %v4158
          %v4235 = vpack.c.b16 %v4161, %v4160
          %v4236 = vpack.c.b16 %v4163, %v4162
          %v4237 = vpack.c.b16 %v4165, %v4164
          %4310 = vmatpush.bf16.msra.mxu0 %v4173
          %4311 = vmatpush.bf16.msra.mxu0 %v4172
          %4312 = vmatpush.bf16.msra.mxu0 %v4171
          %4313 = vmatpush.bf16.msra.mxu0 %v4170
          %4314 = vmatpush.bf16.msra.mxu0 %v4169
          %4315 = vmatpush.bf16.msra.mxu0 %v4168
          %4316 = vmatpush.bf16.msra.mxu0 %v4167
          %4317 = vmatpush.bf16.msra.mxu0 %v4166
          %4318 = vmatmul.bf16.gmra.mxu0 %v3196
          %v4319 = vpop.f32.mrf.mxu0
          %v4320 = vadd.f32 %v3876, %v4319
          %v4321 = vpop.f32.mrf.mxu0
          %v4322 = vadd.f32 %v3876, %v4321
          %4323 = vmatmul.bf16.gmra.mxu0 %v3197
          %v4324 = vpop.f32.mrf.mxu0
          %v4325 = vadd.f32 %v3876, %v4324
          %v4326 = vpop.f32.mrf.mxu0
          %v4327 = vadd.f32 %v3876, %v4326
          %4328 = vmatmul.bf16.gmra.mxu0 %v3198
          %v4329 = vpop.f32.mrf.mxu0
          %v4330 = vadd.f32 %v3876, %v4329
          %v4331 = vpop.f32.mrf.mxu0
          %v4332 = vadd.f32 %v3876, %v4331
          %4333 = vmatmul.bf16.gmra.mxu0 %v3199
          %v4334 = vpop.f32.mrf.mxu0
          %v4335 = vadd.f32 %v3876, %v4334
          %v4336 = vpop.f32.mrf.mxu0
          %v4337 = vadd.f32 %v3876, %v4336
          %4338 = vmatmul.bf16.gmra.mxu0 %v3200
          %v4339 = vpop.f32.mrf.mxu0
          %v4340 = vadd.f32 %v3876, %v4339
          %v4341 = vpop.f32.mrf.mxu0
          %v4342 = vadd.f32 %v3876, %v4341
          %4343 = vmatmul.bf16.gmra.mxu0 %v3201
          %v4344 = vpop.f32.mrf.mxu0
          %v4345 = vadd.f32 %v3876, %v4344
          %v4346 = vpop.f32.mrf.mxu0
          %v4347 = vadd.f32 %v3876, %v4346
          %4348 = vmatmul.bf16.gmra.mxu0 %v3202
          %v4349 = vpop.f32.mrf.mxu0
          %v4350 = vadd.f32 %v3876, %v4349
          %v4351 = vpop.f32.mrf.mxu0
          %v4352 = vadd.f32 %v3876, %v4351
          %4353 = vmatmul.bf16.gmra.mxu0 %v3203
          %v4354 = vpop.f32.mrf.mxu0
          %v4355 = vadd.f32 %v3876, %v4354
          %v4356 = vpop.f32.mrf.mxu0
          %v4357 = vadd.f32 %v3876, %v4356
          %4358 = vmatmul.bf16.gmra.mxu0 %v3204
          %v4359 = vpop.f32.mrf.mxu0
          %v4360 = vadd.f32 %v3876, %v4359
          %v4361 = vpop.f32.mrf.mxu0
          %v4362 = vadd.f32 %v3876, %v4361
          %4363 = vmatmul.bf16.gmra.mxu0 %v3205
          %v4364 = vpop.f32.mrf.mxu0
          %v4365 = vadd.f32 %v3876, %v4364
          %v4366 = vpop.f32.mrf.mxu0
          %v4367 = vadd.f32 %v3876, %v4366
          %4368 = vmatmul.bf16.gmra.mxu0 %v3206
          %v4369 = vpop.f32.mrf.mxu0
          %v4370 = vadd.f32 %v3876, %v4369
          %v4371 = vpop.f32.mrf.mxu0
          %4372 = vdwg.mxu0
          %4373 = vmatpush.bf16.msra.mxu0 %v4181
          %4374 = vmatpush.bf16.msra.mxu0 %v4180
          %4375 = vmatpush.bf16.msra.mxu0 %v4179
          %4376 = vmatpush.bf16.msra.mxu0 %v4178
          %4377 = vmatpush.bf16.msra.mxu0 %v4177
          %4378 = vmatpush.bf16.msra.mxu0 %v4176
          %4379 = vmatpush.bf16.msra.mxu0 %v4175
          %4380 = vmatpush.bf16.msra.mxu0 %v4174
          %4381 = vmatmul.bf16.gmra.mxu0 %v3260
          %v4382 = vpop.f32.mrf.mxu0
          %v4383 = vadd.f32 %v4320, %v4382
          %v4384 = vpop.f32.mrf.mxu0
          %v4385 = vadd.f32 %v4322, %v4384
          %4386 = vmatmul.bf16.gmra.mxu0 %v3261
          %v4387 = vpop.f32.mrf.mxu0
          %v4388 = vadd.f32 %v4325, %v4387
          %v4389 = vpop.f32.mrf.mxu0
          %v4390 = vadd.f32 %v4327, %v4389
          %4391 = vmatmul.bf16.gmra.mxu0 %v3262
          %v4392 = vpop.f32.mrf.mxu0
          %v4393 = vadd.f32 %v4330, %v4392
          %v4394 = vpop.f32.mrf.mxu0
          %v4395 = vadd.f32 %v4332, %v4394
          %4396 = vmatmul.bf16.gmra.mxu0 %v3263
          %v4397 = vpop.f32.mrf.mxu0
          %v4398 = vadd.f32 %v4335, %v4397
          %v4399 = vpop.f32.mrf.mxu0
          %v4400 = vadd.f32 %v4337, %v4399
          %4401 = vmatmul.bf16.gmra.mxu0 %v3264
          %v4402 = vpop.f32.mrf.mxu0
          %v4403 = vadd.f32 %v4340, %v4402
          %v4404 = vpop.f32.mrf.mxu0
          %v4405 = vadd.f32 %v4342, %v4404
          %4406 = vmatmul.bf16.gmra.mxu0 %v3265
          %v4407 = vpop.f32.mrf.mxu0
          %v4408 = vadd.f32 %v4345, %v4407
          %v4409 = vpop.f32.mrf.mxu0
          %v4410 = vadd.f32 %v4347, %v4409
          %4411 = vmatmul.bf16.gmra.mxu0 %v3266
          %v4412 = vpop.f32.mrf.mxu0
          %v4413 = vadd.f32 %v4350, %v4412
          %v4414 = vpop.f32.mrf.mxu0
          %v4415 = vadd.f32 %v4352, %v4414
          %4416 = vmatmul.bf16.gmra.mxu0 %v3267
          %v4417 = vpop.f32.mrf.mxu0
          %v4418 = vadd.f32 %v4355, %v4417
          %v4419 = vpop.f32.mrf.mxu0
          %v4420 = vadd.f32 %v4357, %v4419
          %4421 = vmatmul.bf16.gmra.mxu0 %v3268
          %v4422 = vpop.f32.mrf.mxu0
          %v4423 = vadd.f32 %v4360, %v4422
          %v4424 = vpop.f32.mrf.mxu0
          %v4425 = vadd.f32 %v4362, %v4424
          %4426 = vmatmul.bf16.gmra.mxu0 %v3269
          %v4427 = vpop.f32.mrf.mxu0
          %v4428 = vadd.f32 %v4365, %v4427
          %v4429 = vpop.f32.mrf.mxu0
          %v4430 = vadd.f32 %v4367, %v4429
          %4431 = vmatmul.bf16.gmra.mxu0 %v3270
          %v4432 = vpop.f32.mrf.mxu0
          %v4433 = vadd.f32 %v4370, %v4432
          %v4434 = vpop.f32.mrf.mxu0
          %4435 = vdwg.mxu0
          %4436 = vmatpush.bf16.msra.mxu0 %v4189
          %4437 = vmatpush.bf16.msra.mxu0 %v4188
          %4438 = vmatpush.bf16.msra.mxu0 %v4187
          %4439 = vmatpush.bf16.msra.mxu0 %v4186
          %4440 = vmatpush.bf16.msra.mxu0 %v4185
          %4441 = vmatpush.bf16.msra.mxu0 %v4184
          %4442 = vmatpush.bf16.msra.mxu0 %v4183
          %4443 = vmatpush.bf16.msra.mxu0 %v4182
          %4444 = vmatmul.bf16.gmra.mxu0 %v3324
          %v4445 = vpop.f32.mrf.mxu0
          %v4446 = vadd.f32 %v4383, %v4445
          %v4447 = vpop.f32.mrf.mxu0
          %v4448 = vadd.f32 %v4385, %v4447
          %4449 = vmatmul.bf16.gmra.mxu0 %v3325
          %v4450 = vpop.f32.mrf.mxu0
          %v4451 = vadd.f32 %v4388, %v4450
          %v4452 = vpop.f32.mrf.mxu0
          %v4453 = vadd.f32 %v4390, %v4452
          %4454 = vmatmul.bf16.gmra.mxu0 %v3326
          %v4455 = vpop.f32.mrf.mxu0
          %v4456 = vadd.f32 %v4393, %v4455
          %v4457 = vpop.f32.mrf.mxu0
          %v4458 = vadd.f32 %v4395, %v4457
          %4459 = vmatmul.bf16.gmra.mxu0 %v3327
          %v4460 = vpop.f32.mrf.mxu0
          %v4461 = vadd.f32 %v4398, %v4460
          %v4462 = vpop.f32.mrf.mxu0
          %v4463 = vadd.f32 %v4400, %v4462
          %4464 = vmatmul.bf16.gmra.mxu0 %v3328
          %v4465 = vpop.f32.mrf.mxu0
          %v4466 = vadd.f32 %v4403, %v4465
          %v4467 = vpop.f32.mrf.mxu0
          %v4468 = vadd.f32 %v4405, %v4467
          %4469 = vmatmul.bf16.gmra.mxu0 %v3329
          %v4470 = vpop.f32.mrf.mxu0
          %v4471 = vadd.f32 %v4408, %v4470
          %v4472 = vpop.f32.mrf.mxu0
          %v4473 = vadd.f32 %v4410, %v4472
          %4474 = vmatmul.bf16.gmra.mxu0 %v3330
          %v4475 = vpop.f32.mrf.mxu0
          %v4476 = vadd.f32 %v4413, %v4475
          %v4477 = vpop.f32.mrf.mxu0
          %v4478 = vadd.f32 %v4415, %v4477
          %4479 = vmatmul.bf16.gmra.mxu0 %v3331
          %v4480 = vpop.f32.mrf.mxu0
          %v4481 = vadd.f32 %v4418, %v4480
          %v4482 = vpop.f32.mrf.mxu0
          %v4483 = vadd.f32 %v4420, %v4482
          %4484 = vmatmul.bf16.gmra.mxu0 %v3332
          %v4485 = vpop.f32.mrf.mxu0
          %v4486 = vadd.f32 %v4423, %v4485
          %v4487 = vpop.f32.mrf.mxu0
          %v4488 = vadd.f32 %v4425, %v4487
          %4489 = vmatmul.bf16.gmra.mxu0 %v3333
          %v4490 = vpop.f32.mrf.mxu0
          %v4491 = vadd.f32 %v4428, %v4490
          %v4492 = vpop.f32.mrf.mxu0
          %v4493 = vadd.f32 %v4430, %v4492
          %4494 = vmatmul.bf16.gmra.mxu0 %v3334
          %v4495 = vpop.f32.mrf.mxu0
          %v4496 = vadd.f32 %v4433, %v4495
          %v4497 = vpop.f32.mrf.mxu0
          %4498 = vdwg.mxu0
          %4499 = vmatpush.bf16.msra.mxu0 %v4197
          %4500 = vmatpush.bf16.msra.mxu0 %v4196
          %4501 = vmatpush.bf16.msra.mxu0 %v4195
          %4502 = vmatpush.bf16.msra.mxu0 %v4194
          %4503 = vmatpush.bf16.msra.mxu0 %v4193
          %4504 = vmatpush.bf16.msra.mxu0 %v4192
          %4505 = vmatpush.bf16.msra.mxu0 %v4191
          %4506 = vmatpush.bf16.msra.mxu0 %v4190
          %4507 = vmatmul.bf16.gmra.mxu0 %v3388
          %v4508 = vpop.f32.mrf.mxu0
          %v4509 = vadd.f32 %v4446, %v4508
          %v4510 = vpop.f32.mrf.mxu0
          %v4511 = vadd.f32 %v4448, %v4510
          %4512 = vmatmul.bf16.gmra.mxu0 %v3389
          %v4513 = vpop.f32.mrf.mxu0
          %v4514 = vadd.f32 %v4451, %v4513
          %v4515 = vpop.f32.mrf.mxu0
          %v4516 = vadd.f32 %v4453, %v4515
          %4517 = vmatmul.bf16.gmra.mxu0 %v3390
          %v4518 = vpop.f32.mrf.mxu0
          %v4519 = vadd.f32 %v4456, %v4518
          %v4520 = vpop.f32.mrf.mxu0
          %v4521 = vadd.f32 %v4458, %v4520
          %4522 = vmatmul.bf16.gmra.mxu0 %v3391
          %v4523 = vpop.f32.mrf.mxu0
          %v4524 = vadd.f32 %v4461, %v4523
          %v4525 = vpop.f32.mrf.mxu0
          %v4526 = vadd.f32 %v4463, %v4525
          %4527 = vmatmul.bf16.gmra.mxu0 %v3392
          %v4528 = vpop.f32.mrf.mxu0
          %v4529 = vadd.f32 %v4466, %v4528
          %v4530 = vpop.f32.mrf.mxu0
          %v4531 = vadd.f32 %v4468, %v4530
          %4532 = vmatmul.bf16.gmra.mxu0 %v3393
          %v4533 = vpop.f32.mrf.mxu0
          %v4534 = vadd.f32 %v4471, %v4533
          %v4535 = vpop.f32.mrf.mxu0
          %v4536 = vadd.f32 %v4473, %v4535
          %4537 = vmatmul.bf16.gmra.mxu0 %v3394
          %v4538 = vpop.f32.mrf.mxu0
          %v4539 = vadd.f32 %v4476, %v4538
          %v4540 = vpop.f32.mrf.mxu0
          %v4541 = vadd.f32 %v4478, %v4540
          %4542 = vmatmul.bf16.gmra.mxu0 %v3395
          %v4543 = vpop.f32.mrf.mxu0
          %v4544 = vadd.f32 %v4481, %v4543
          %v4545 = vpop.f32.mrf.mxu0
          %v4546 = vadd.f32 %v4483, %v4545
          %4547 = vmatmul.bf16.gmra.mxu0 %v3396
          %v4548 = vpop.f32.mrf.mxu0
          %v4549 = vadd.f32 %v4486, %v4548
          %v4550 = vpop.f32.mrf.mxu0
          %v4551 = vadd.f32 %v4488, %v4550
          %4552 = vmatmul.bf16.gmra.mxu0 %v3397
          %v4553 = vpop.f32.mrf.mxu0
          %v4554 = vadd.f32 %v4491, %v4553
          %v4555 = vpop.f32.mrf.mxu0
          %v4556 = vadd.f32 %v4493, %v4555
          %4557 = vmatmul.bf16.gmra.mxu0 %v3398
          %v4558 = vpop.f32.mrf.mxu0
          %v4559 = vadd.f32 %v4496, %v4558
          %v4560 = vpop.f32.mrf.mxu0
          %4561 = vdwg.mxu0
          %4562 = vmatpush.bf16.msra.mxu0 %v4205
          %4563 = vmatpush.bf16.msra.mxu0 %v4204
          %4564 = vmatpush.bf16.msra.mxu0 %v4203
          %4565 = vmatpush.bf16.msra.mxu0 %v4202
          %4566 = vmatpush.bf16.msra.mxu0 %v4201
          %4567 = vmatpush.bf16.msra.mxu0 %v4200
          %4568 = vmatpush.bf16.msra.mxu0 %v4199
          %4569 = vmatpush.bf16.msra.mxu0 %v4198
          %4570 = vmatmul.bf16.gmra.mxu0 %v3452
          %v4571 = vpop.f32.mrf.mxu0
          %v4572 = vadd.f32 %v4509, %v4571
          %v4573 = vpop.f32.mrf.mxu0
          %v4574 = vadd.f32 %v4511, %v4573
          %4575 = vmatmul.bf16.gmra.mxu0 %v3453
          %v4576 = vpop.f32.mrf.mxu0
          %v4577 = vadd.f32 %v4514, %v4576
          %v4578 = vpop.f32.mrf.mxu0
          %v4579 = vadd.f32 %v4516, %v4578
          %4580 = vmatmul.bf16.gmra.mxu0 %v3454
          %v4581 = vpop.f32.mrf.mxu0
          %v4582 = vadd.f32 %v4519, %v4581
          %v4583 = vpop.f32.mrf.mxu0
          %v4584 = vadd.f32 %v4521, %v4583
          %4585 = vmatmul.bf16.gmra.mxu0 %v3455
          %v4586 = vpop.f32.mrf.mxu0
          %v4587 = vadd.f32 %v4524, %v4586
          %v4588 = vpop.f32.mrf.mxu0
          %v4589 = vadd.f32 %v4526, %v4588
          %4590 = vmatmul.bf16.gmra.mxu0 %v3456
          %v4591 = vpop.f32.mrf.mxu0
          %v4592 = vadd.f32 %v4529, %v4591
          %v4593 = vpop.f32.mrf.mxu0
          %v4594 = vadd.f32 %v4531, %v4593
          %4595 = vmatmul.bf16.gmra.mxu0 %v3457
          %v4596 = vpop.f32.mrf.mxu0
          %v4597 = vadd.f32 %v4534, %v4596
          %v4598 = vpop.f32.mrf.mxu0
          %v4599 = vadd.f32 %v4536, %v4598
          %4600 = vmatmul.bf16.gmra.mxu0 %v3458
          %v4601 = vpop.f32.mrf.mxu0
          %v4602 = vadd.f32 %v4539, %v4601
          %v4603 = vpop.f32.mrf.mxu0
          %v4604 = vadd.f32 %v4541, %v4603
          %4605 = vmatmul.bf16.gmra.mxu0 %v3459
          %v4606 = vpop.f32.mrf.mxu0
          %v4607 = vadd.f32 %v4544, %v4606
          %v4608 = vpop.f32.mrf.mxu0
          %v4609 = vadd.f32 %v4546, %v4608
          %4610 = vmatmul.bf16.gmra.mxu0 %v3460
          %v4611 = vpop.f32.mrf.mxu0
          %v4612 = vadd.f32 %v4549, %v4611
          %v4613 = vpop.f32.mrf.mxu0
          %v4614 = vadd.f32 %v4551, %v4613
          %4615 = vmatmul.bf16.gmra.mxu0 %v3461
          %v4616 = vpop.f32.mrf.mxu0
          %v4617 = vadd.f32 %v4554, %v4616
          %v4618 = vpop.f32.mrf.mxu0
          %v4619 = vadd.f32 %v4556, %v4618
          %4620 = vmatmul.bf16.gmra.mxu0 %v3462
          %v4621 = vpop.f32.mrf.mxu0
          %v4622 = vadd.f32 %v4559, %v4621
          %v4623 = vpop.f32.mrf.mxu0
          %4624 = vdwg.mxu0
          %4625 = vmatpush.bf16.msra.mxu0 %v4213
          %4626 = vmatpush.bf16.msra.mxu0 %v4212
          %4627 = vmatpush.bf16.msra.mxu0 %v4211
          %4628 = vmatpush.bf16.msra.mxu0 %v4210
          %4629 = vmatpush.bf16.msra.mxu0 %v4209
          %4630 = vmatpush.bf16.msra.mxu0 %v4208
          %4631 = vmatpush.bf16.msra.mxu0 %v4207
          %4632 = vmatpush.bf16.msra.mxu0 %v4206
          %4633 = vmatmul.bf16.gmra.mxu0 %v3516
          %v4634 = vpop.f32.mrf.mxu0
          %v4635 = vadd.f32 %v4572, %v4634
          %v4636 = vpop.f32.mrf.mxu0
          %v4637 = vadd.f32 %v4574, %v4636
          %4638 = vmatmul.bf16.gmra.mxu0 %v3517
          %v4639 = vpop.f32.mrf.mxu0
          %v4640 = vadd.f32 %v4577, %v4639
          %v4641 = vpop.f32.mrf.mxu0
          %v4642 = vadd.f32 %v4579, %v4641
          %4643 = vmatmul.bf16.gmra.mxu0 %v3518
          %v4644 = vpop.f32.mrf.mxu0
          %v4645 = vadd.f32 %v4582, %v4644
          %v4646 = vpop.f32.mrf.mxu0
          %v4647 = vadd.f32 %v4584, %v4646
          %4648 = vmatmul.bf16.gmra.mxu0 %v3519
          %v4649 = vpop.f32.mrf.mxu0
          %v4650 = vadd.f32 %v4587, %v4649
          %v4651 = vpop.f32.mrf.mxu0
          %v4652 = vadd.f32 %v4589, %v4651
          %4653 = vmatmul.bf16.gmra.mxu0 %v3520
          %v4654 = vpop.f32.mrf.mxu0
          %v4655 = vadd.f32 %v4592, %v4654
          %v4656 = vpop.f32.mrf.mxu0
          %v4657 = vadd.f32 %v4594, %v4656
          %4658 = vmatmul.bf16.gmra.mxu0 %v3521
          %v4659 = vpop.f32.mrf.mxu0
          %v4660 = vadd.f32 %v4597, %v4659
          %v4661 = vpop.f32.mrf.mxu0
          %v4662 = vadd.f32 %v4599, %v4661
          %4663 = vmatmul.bf16.gmra.mxu0 %v3522
          %v4664 = vpop.f32.mrf.mxu0
          %v4665 = vadd.f32 %v4602, %v4664
          %v4666 = vpop.f32.mrf.mxu0
          %v4667 = vadd.f32 %v4604, %v4666
          %4668 = vmatmul.bf16.gmra.mxu0 %v3523
          %v4669 = vpop.f32.mrf.mxu0
          %v4670 = vadd.f32 %v4607, %v4669
          %v4671 = vpop.f32.mrf.mxu0
          %v4672 = vadd.f32 %v4609, %v4671
          %4673 = vmatmul.bf16.gmra.mxu0 %v3524
          %v4674 = vpop.f32.mrf.mxu0
          %v4675 = vadd.f32 %v4612, %v4674
          %v4676 = vpop.f32.mrf.mxu0
          %v4677 = vadd.f32 %v4614, %v4676
          %4678 = vmatmul.bf16.gmra.mxu0 %v3525
          %v4679 = vpop.f32.mrf.mxu0
          %v4680 = vadd.f32 %v4617, %v4679
          %v4681 = vpop.f32.mrf.mxu0
          %v4682 = vadd.f32 %v4619, %v4681
          %4683 = vmatmul.bf16.gmra.mxu0 %v3526
          %v4684 = vpop.f32.mrf.mxu0
          %v4685 = vadd.f32 %v4622, %v4684
          %v4686 = vpop.f32.mrf.mxu0
          %4687 = vdwg.mxu0
          %4688 = vmatpush.bf16.msra.mxu0 %v4221
          %4689 = vmatpush.bf16.msra.mxu0 %v4220
          %4690 = vmatpush.bf16.msra.mxu0 %v4219
          %4691 = vmatpush.bf16.msra.mxu0 %v4218
          %4692 = vmatpush.bf16.msra.mxu0 %v4217
          %4693 = vmatpush.bf16.msra.mxu0 %v4216
          %4694 = vmatpush.bf16.msra.mxu0 %v4215
          %4695 = vmatpush.bf16.msra.mxu0 %v4214
          %4696 = vmatmul.bf16.gmra.mxu0 %v3580
          %v4697 = vpop.f32.mrf.mxu0
          %v4698 = vadd.f32 %v4635, %v4697
          %v4699 = vpop.f32.mrf.mxu0
          %v4700 = vadd.f32 %v4637, %v4699
          %4701 = vmatmul.bf16.gmra.mxu0 %v3581
          %v4702 = vpop.f32.mrf.mxu0
          %v4703 = vadd.f32 %v4640, %v4702
          %v4704 = vpop.f32.mrf.mxu0
          %v4705 = vadd.f32 %v4642, %v4704
          %4706 = vmatmul.bf16.gmra.mxu0 %v3582
          %v4707 = vpop.f32.mrf.mxu0
          %v4708 = vadd.f32 %v4645, %v4707
          %v4709 = vpop.f32.mrf.mxu0
          %v4710 = vadd.f32 %v4647, %v4709
          %4711 = vmatmul.bf16.gmra.mxu0 %v3583
          %v4712 = vpop.f32.mrf.mxu0
          %v4713 = vadd.f32 %v4650, %v4712
          %v4714 = vpop.f32.mrf.mxu0
          %v4715 = vadd.f32 %v4652, %v4714
          %4716 = vmatmul.bf16.gmra.mxu0 %v3584
          %v4717 = vpop.f32.mrf.mxu0
          %v4718 = vadd.f32 %v4655, %v4717
          %v4719 = vpop.f32.mrf.mxu0
          %v4720 = vadd.f32 %v4657, %v4719
          %4721 = vmatmul.bf16.gmra.mxu0 %v3585
          %v4722 = vpop.f32.mrf.mxu0
          %v4723 = vadd.f32 %v4660, %v4722
          %v4724 = vpop.f32.mrf.mxu0
          %v4725 = vadd.f32 %v4662, %v4724
          %4726 = vmatmul.bf16.gmra.mxu0 %v3586
          %v4727 = vpop.f32.mrf.mxu0
          %v4728 = vadd.f32 %v4665, %v4727
          %v4729 = vpop.f32.mrf.mxu0
          %v4730 = vadd.f32 %v4667, %v4729
          %4731 = vmatmul.bf16.gmra.mxu0 %v3587
          %v4732 = vpop.f32.mrf.mxu0
          %v4733 = vadd.f32 %v4670, %v4732
          %v4734 = vpop.f32.mrf.mxu0
          %v4735 = vadd.f32 %v4672, %v4734
          %4736 = vmatmul.bf16.gmra.mxu0 %v3588
          %v4737 = vpop.f32.mrf.mxu0
          %v4738 = vadd.f32 %v4675, %v4737
          %v4739 = vpop.f32.mrf.mxu0
          %v4740 = vadd.f32 %v4677, %v4739
          %4741 = vmatmul.bf16.gmra.mxu0 %v3589
          %v4742 = vpop.f32.mrf.mxu0
          %v4743 = vadd.f32 %v4680, %v4742
          %v4744 = vpop.f32.mrf.mxu0
          %v4745 = vadd.f32 %v4682, %v4744
          %4746 = vmatmul.bf16.gmra.mxu0 %v3590
          %v4747 = vpop.f32.mrf.mxu0
          %v4748 = vadd.f32 %v4685, %v4747
          %v4749 = vpop.f32.mrf.mxu0
          %4750 = vdwg.mxu0
          %4751 = vmatpush.bf16.msra.mxu0 %v4229
          %4752 = vmatpush.bf16.msra.mxu0 %v4228
          %4753 = vmatpush.bf16.msra.mxu0 %v4227
          %4754 = vmatpush.bf16.msra.mxu0 %v4226
          %4755 = vmatpush.bf16.msra.mxu0 %v4225
          %4756 = vmatpush.bf16.msra.mxu0 %v4224
          %4757 = vmatpush.bf16.msra.mxu0 %v4223
          %4758 = vmatpush.bf16.msra.mxu0 %v4222
          %4759 = vmatmul.bf16.gmra.mxu0 %v3644
          %v4760 = vpop.f32.mrf.mxu0
          %v4761 = vadd.f32 %v4698, %v4760
          %v4762 = vpop.f32.mrf.mxu0
          %v4763 = vadd.f32 %v4700, %v4762
          %4764 = vmatmul.bf16.gmra.mxu0 %v3645
          %v4765 = vpop.f32.mrf.mxu0
          %v4766 = vadd.f32 %v4703, %v4765
          %v4767 = vpop.f32.mrf.mxu0
          %v4768 = vadd.f32 %v4705, %v4767
          %4769 = vmatmul.bf16.gmra.mxu0 %v3646
          %v4770 = vpop.f32.mrf.mxu0
          %v4771 = vadd.f32 %v4708, %v4770
          %v4772 = vpop.f32.mrf.mxu0
          %v4773 = vadd.f32 %v4710, %v4772
          %4774 = vmatmul.bf16.gmra.mxu0 %v3647
          %v4775 = vpop.f32.mrf.mxu0
          %v4776 = vadd.f32 %v4713, %v4775
          %v4777 = vpop.f32.mrf.mxu0
          %v4778 = vadd.f32 %v4715, %v4777
          %4779 = vmatmul.bf16.gmra.mxu0 %v3648
          %v4780 = vpop.f32.mrf.mxu0
          %v4781 = vadd.f32 %v4718, %v4780
          %v4782 = vpop.f32.mrf.mxu0
          %v4783 = vadd.f32 %v4720, %v4782
          %4784 = vmatmul.bf16.gmra.mxu0 %v3649
          %v4785 = vpop.f32.mrf.mxu0
          %v4786 = vadd.f32 %v4723, %v4785
          %v4787 = vpop.f32.mrf.mxu0
          %v4788 = vadd.f32 %v4725, %v4787
          %4789 = vmatmul.bf16.gmra.mxu0 %v3650
          %v4790 = vpop.f32.mrf.mxu0
          %v4791 = vadd.f32 %v4728, %v4790
          %v4792 = vpop.f32.mrf.mxu0
          %v4793 = vadd.f32 %v4730, %v4792
          %4794 = vmatmul.bf16.gmra.mxu0 %v3651
          %v4795 = vpop.f32.mrf.mxu0
          %v4796 = vadd.f32 %v4733, %v4795
          %v4797 = vpop.f32.mrf.mxu0
          %v4798 = vadd.f32 %v4735, %v4797
          %4799 = vmatmul.bf16.gmra.mxu0 %v3652
          %v4800 = vpop.f32.mrf.mxu0
          %v4801 = vadd.f32 %v4738, %v4800
          %v4802 = vpop.f32.mrf.mxu0
          %v4803 = vadd.f32 %v4740, %v4802
          %4804 = vmatmul.bf16.gmra.mxu0 %v3653
          %v4805 = vpop.f32.mrf.mxu0
          %v4806 = vadd.f32 %v4743, %v4805
          %v4807 = vpop.f32.mrf.mxu0
          %v4808 = vadd.f32 %v4745, %v4807
          %4809 = vmatmul.bf16.gmra.mxu0 %v3654
          %v4810 = vpop.f32.mrf.mxu0
          %v4811 = vadd.f32 %v4748, %v4810
          %v4812 = vpop.f32.mrf.mxu0
          %4813 = vdwg.mxu0
          %4814 = vmatpush.bf16.msra.mxu0 %v4237
          %4815 = vmatpush.bf16.msra.mxu0 %v4236
          %4816 = vmatpush.bf16.msra.mxu0 %v4235
          %4817 = vmatpush.bf16.msra.mxu0 %v4234
          %4818 = vmatpush.bf16.msra.mxu0 %v4233
          %4819 = vmatpush.bf16.msra.mxu0 %v4232
          %4820 = vmatpush.bf16.msra.mxu0 %v4231
          %4821 = vmatpush.bf16.msra.mxu0 %v4230
          %4822 = vmatmul.bf16.gmra.mxu0 %v3708
          %v4823 = vpop.f32.mrf.mxu0
          %v4824 = vadd.f32 %v4761, %v4823
          %v4825 = vpop.f32.mrf.mxu0
          %v4826 = vadd.f32 %v4763, %v4825
          %4827 = vmatmul.bf16.gmra.mxu0 %v3709
          %v4828 = vpop.f32.mrf.mxu0
          %v4829 = vadd.f32 %v4766, %v4828
          %v4830 = vpop.f32.mrf.mxu0
          %v4831 = vadd.f32 %v4768, %v4830
          %4832 = vmatmul.bf16.gmra.mxu0 %v3710
          %v4833 = vpop.f32.mrf.mxu0
          %v4834 = vadd.f32 %v4771, %v4833
          %v4835 = vpop.f32.mrf.mxu0
          %v4836 = vadd.f32 %v4773, %v4835
          %4837 = vmatmul.bf16.gmra.mxu0 %v3711
          %v4838 = vpop.f32.mrf.mxu0
          %v4839 = vadd.f32 %v4776, %v4838
          %v4840 = vpop.f32.mrf.mxu0
          %v4841 = vadd.f32 %v4778, %v4840
          %4842 = vmatmul.bf16.gmra.mxu0 %v3712
          %v4843 = vpop.f32.mrf.mxu0
          %v4844 = vadd.f32 %v4781, %v4843
          %v4845 = vpop.f32.mrf.mxu0
          %v4846 = vadd.f32 %v4783, %v4845
          %4847 = vmatmul.bf16.gmra.mxu0 %v3713
          %v4848 = vpop.f32.mrf.mxu0
          %v4849 = vadd.f32 %v4786, %v4848
          %v4850 = vpop.f32.mrf.mxu0
          %v4851 = vadd.f32 %v4788, %v4850
          %4852 = vmatmul.bf16.gmra.mxu0 %v3714
          %v4853 = vpop.f32.mrf.mxu0
          %v4854 = vadd.f32 %v4791, %v4853
          %v4855 = vpop.f32.mrf.mxu0
          %v4856 = vadd.f32 %v4793, %v4855
          %4857 = vmatmul.bf16.gmra.mxu0 %v3715
          %v4858 = vpop.f32.mrf.mxu0
          %v4859 = vadd.f32 %v4796, %v4858
          %v4860 = vpop.f32.mrf.mxu0
          %v4861 = vadd.f32 %v4798, %v4860
          %4862 = vmatmul.bf16.gmra.mxu0 %v3716
          %v4863 = vpop.f32.mrf.mxu0
          %v4864 = vadd.f32 %v4801, %v4863
          %v4865 = vpop.f32.mrf.mxu0
          %v4866 = vadd.f32 %v4803, %v4865
          %4867 = vmatmul.bf16.gmra.mxu0 %v3717
          %v4868 = vpop.f32.mrf.mxu0
          %v4869 = vadd.f32 %v4806, %v4868
          %v4870 = vpop.f32.mrf.mxu0
          %v4871 = vadd.f32 %v4808, %v4870
          %4872 = vmatmul.bf16.gmra.mxu0 %v3718
          %v4873 = vpop.f32.mrf.mxu0
          %v4874 = vadd.f32 %v4811, %v4873
          %v4875 = vpop.f32.mrf.mxu0
          %4876 = vdwg.mxu0
          %v4877 = vmax.f32 %v4824, 0.0
          %v4878 = vmax.f32 %v4826, 0.0
          %v4879 = vmax.f32 %v4829, 0.0
          %v4880 = vmax.f32 %v4831, 0.0
          %v4881 = vmax.f32 %v4834, 0.0
          %v4882 = vmax.f32 %v4836, 0.0
          %v4883 = vmax.f32 %v4839, 0.0
          %v4884 = vmax.f32 %v4841, 0.0
          %v4885 = vmax.f32 %v4844, 0.0
          %v4886 = vmax.f32 %v4846, 0.0
          %v4887 = vmax.f32 %v4849, 0.0
          %v4888 = vmax.f32 %v4851, 0.0
          %v4889 = vmax.f32 %v4854, 0.0
          %v4890 = vmax.f32 %v4856, 0.0
          %v4891 = vmax.f32 %v4859, 0.0
          %v4892 = vmax.f32 %v4861, 0.0
          %v4893 = vmax.f32 %v4864, 0.0
          %v4894 = vmax.f32 %v4866, 0.0
          %v4895 = vmax.f32 %v4869, 0.0
          %v4896 = vmax.f32 %v4871, 0.0
          %v4897 = vmax.f32 %v4874, 0.0
          %v4898 = vrot.slane %v4877, 4
          %v4899 = vrot.slane %v4878, 4
          %v4900 = vrot.slane %v4879, 4
          %v4901 = vrot.slane %v4880, 4
          %v4902 = vrot.slane %v4881, 4
          %v4903 = vrot.slane %v4882, 4
          %v4904 = vrot.slane %v4883, 4
          %v4905 = vrot.slane %v4884, 4
          %v4906 = vrot.slane %v4885, 4
          %v4907 = vrot.slane %v4886, 4
          %v4908 = vrot.slane %v4887, 4
          %v4909 = vrot.slane %v4888, 4
          %v4910 = vrot.slane %v4889, 4
          %v4911 = vrot.slane %v4890, 4
          %v4912 = vrot.slane %v4891, 4
          %v4913 = vrot.slane %v4892, 4
          %v4914 = vrot.slane %v4893, 4
          %v4915 = vrot.slane %v4894, 4
          %v4916 = vrot.slane %v4895, 4
          %v4917 = vrot.slane %v4896, 4
          %v4918 = vrot.slane %v4897, 4
          %v4919 = vsel %vm650, %v4917, %v4918
          %v4920 = vsel %vm650, %v4916, %v4917
          %v4921 = vsel %vm650, %v4915, %v4916
          %v4922 = vsel %vm650, %v4914, %v4915
          %v4923 = vsel %vm650, %v4913, %v4914
          %v4924 = vsel %vm650, %v4912, %v4913
          %v4925 = vsel %vm650, %v4911, %v4912
          %v4926 = vsel %vm650, %v4910, %v4911
          %v4927 = vsel %vm650, %v4909, %v4910
          %v4928 = vsel %vm650, %v4908, %v4909
          %v4929 = vsel %vm650, %v4907, %v4908
          %v4930 = vsel %vm650, %v4906, %v4907
          %v4931 = vsel %vm650, %v4905, %v4906
          %v4932 = vsel %vm650, %v4904, %v4905
          %v4933 = vsel %vm650, %v4903, %v4904
          %v4934 = vsel %vm650, %v4902, %v4903
          %v4935 = vsel %vm650, %v4901, %v4902
          %v4936 = vsel %vm650, %v4900, %v4901
          %v4937 = vsel %vm650, %v4899, %v4900
          %v4938 = vsel %vm650, %v4898, %v4899
          %v4939 = vsel %vm650, %v4918, %v4898
          %v4940 = vmul.f32 %v4920, %v696
          %v4941 = vmul.f32 %v4919, %v701
          %v4942 = vmul.f32 %v4939, %v706
          %v4943 = vmul.f32 %v4938, %v711
          %v4944 = vmul.f32 %v4937, %v716
          %v4945 = vmul.f32 %v4936, %v721
          %v4946 = vmul.f32 %v4935, %v726
          %v4947 = vmul.f32 %v4934, %v731
          %v4948 = vmul.f32 %v4933, %v736
          %v4949 = vmul.f32 %v4932, %v741
          %v4950 = vmul.f32 %v4931, %v746
          %v4951 = vmul.f32 %v4930, %v751
          %v4952 = vmul.f32 %v4929, %v756
          %v4953 = vmul.f32 %v4928, %v761
          %v4954 = vmul.f32 %v4927, %v766
          %v4955 = vmul.f32 %v4926, %v771
          %v4956 = vmul.f32 %v4925, %v776
          %v4957 = vmul.f32 %v4924, %v781
          %v4958 = vmul.f32 %v4923, %v786
          %v4959 = vmul.f32 %v4922, %v791
          %v4960 = vmul.f32 %v4921, %v796
          %v4961 = vpack.c.bf16 %v4940, %v4940
          %v4962 = vpack.c.bf16 %v4941, %v4941
          %v4963 = vpack.c.bf16 %v4942, %v4942
          %v4964 = vpack.c.bf16 %v4943, %v4943
          %v4965 = vpack.c.bf16 %v4944, %v4944
          %v4966 = vpack.c.bf16 %v4945, %v4945
          %v4967 = vpack.c.bf16 %v4946, %v4946
          %v4968 = vpack.c.bf16 %v4947, %v4947
          %v4969 = vpack.c.bf16 %v4948, %v4948
          %v4970 = vpack.c.bf16 %v4949, %v4949
          %v4971 = vpack.c.bf16 %v4950, %v4950
          %v4972 = vpack.c.bf16 %v4951, %v4951
          %v4973 = vpack.c.bf16 %v4952, %v4952
          %v4974 = vpack.c.bf16 %v4953, %v4953
          %v4975 = vpack.c.bf16 %v4954, %v4954
          %v4976 = vpack.c.bf16 %v4955, %v4955
          %v4977 = vpack.c.bf16 %v4956, %v4956
          %v4978 = vpack.c.bf16 %v4957, %v4957
          %v4979 = vpack.c.bf16 %v4958, %v4958
          %v4980 = vpack.c.bf16 %v4959, %v4959
          %v4981 = vpack.c.bf16 %v4960, %v4960
          %v4982 = vrot.slane %v4877, 6
          %v4983 = vrot.slane %v4878, 6
          %v4984 = vrot.slane %v4879, 6
          %v4985 = vrot.slane %v4880, 6
          %v4986 = vrot.slane %v4881, 6
          %v4987 = vrot.slane %v4882, 6
          %v4988 = vrot.slane %v4883, 6
          %v4989 = vrot.slane %v4884, 6
          %v4990 = vrot.slane %v4885, 6
          %v4991 = vrot.slane %v4886, 6
          %v4992 = vrot.slane %v4887, 6
          %v4993 = vrot.slane %v4888, 6
          %v4994 = vrot.slane %v4889, 6
          %v4995 = vrot.slane %v4890, 6
          %v4996 = vrot.slane %v4891, 6
          %v4997 = vrot.slane %v4892, 6
          %v4998 = vrot.slane %v4893, 6
          %v4999 = vrot.slane %v4894, 6
          %v5000 = vrot.slane %v4895, 6
          %v5001 = vrot.slane %v4896, 6
          %v5002 = vrot.slane %v4897, 6
          %v5003 = vsel %vm886, %v5001, %v5002
          %v5004 = vsel %vm886, %v5000, %v5001
          %v5005 = vsel %vm886, %v4999, %v5000
          %v5006 = vsel %vm886, %v4998, %v4999
          %v5007 = vsel %vm886, %v4997, %v4998
          %v5008 = vsel %vm886, %v4996, %v4997
          %v5009 = vsel %vm886, %v4995, %v4996
          %v5010 = vsel %vm886, %v4994, %v4995
          %v5011 = vsel %vm886, %v4993, %v4994
          %v5012 = vsel %vm886, %v4992, %v4993
          %v5013 = vsel %vm886, %v4991, %v4992
          %v5014 = vsel %vm886, %v4990, %v4991
          %v5015 = vsel %vm886, %v4989, %v4990
          %v5016 = vsel %vm886, %v4988, %v4989
          %v5017 = vsel %vm886, %v4987, %v4988
          %v5018 = vsel %vm886, %v4986, %v4987
          %v5019 = vsel %vm886, %v4985, %v4986
          %v5020 = vsel %vm886, %v4984, %v4985
          %v5021 = vsel %vm886, %v4983, %v4984
          %v5022 = vsel %vm886, %v4982, %v4983
          %v5023 = vsel %vm886, %v5002, %v4982
          %v5024 = vmul.f32 %v5004, %v933
          %v5025 = vmul.f32 %v5003, %v938
          %v5026 = vmul.f32 %v5023, %v943
          %v5027 = vmul.f32 %v5022, %v948
          %v5028 = vmul.f32 %v5021, %v953
          %v5029 = vmul.f32 %v5020, %v958
          %v5030 = vmul.f32 %v5019, %v963
          %v5031 = vmul.f32 %v5018, %v968
          %v5032 = vmul.f32 %v5017, %v973
          %v5033 = vmul.f32 %v5016, %v978
          %v5034 = vmul.f32 %v5015, %v983
          %v5035 = vmul.f32 %v5014, %v988
          %v5036 = vmul.f32 %v5013, %v993
          %v5037 = vmul.f32 %v5012, %v998
          %v5038 = vmul.f32 %v5011, %v1003
          %v5039 = vmul.f32 %v5010, %v1008
          %v5040 = vmul.f32 %v5009, %v1013
          %v5041 = vmul.f32 %v5008, %v1018
          %v5042 = vmul.f32 %v5007, %v1023
          %v5043 = vmul.f32 %v5006, %v1028
          %v5044 = vmul.f32 %v5005, %v1033
          %v5045 = vpack.c.bf16 %v5024, %v5024
          %v5046 = vpack.c.bf16 %v5025, %v5025
          %v5047 = vpack.c.bf16 %v5026, %v5026
          %v5048 = vpack.c.bf16 %v5027, %v5027
          %v5049 = vpack.c.bf16 %v5028, %v5028
          %v5050 = vpack.c.bf16 %v5029, %v5029
          %v5051 = vpack.c.bf16 %v5030, %v5030
          %v5052 = vpack.c.bf16 %v5031, %v5031
          %v5053 = vpack.c.bf16 %v5032, %v5032
          %v5054 = vpack.c.bf16 %v5033, %v5033
          %v5055 = vpack.c.bf16 %v5034, %v5034
          %v5056 = vpack.c.bf16 %v5035, %v5035
          %v5057 = vpack.c.bf16 %v5036, %v5036
          %v5058 = vpack.c.bf16 %v5037, %v5037
          %v5059 = vpack.c.bf16 %v5038, %v5038
          %v5060 = vpack.c.bf16 %v5039, %v5039
          %v5061 = vpack.c.bf16 %v5040, %v5040
          %v5062 = vpack.c.bf16 %v5041, %v5041
          %v5063 = vpack.c.bf16 %v5042, %v5042
          %v5064 = vpack.c.bf16 %v5043, %v5043
          %v5065 = vpack.c.bf16 %v5044, %v5044
          %v5066 = vmul.f32 %v4896, %v1127
          %v5067 = vmul.f32 %v4897, %v1132
          %v5068 = vmul.f32 %v4877, %v1137
          %v5069 = vmul.f32 %v4878, %v1142
          %v5070 = vmul.f32 %v4879, %v1147
          %v5071 = vmul.f32 %v4880, %v1152
          %v5072 = vmul.f32 %v4881, %v1157
          %v5073 = vmul.f32 %v4882, %v1162
          %v5074 = vmul.f32 %v4883, %v1167
          %v5075 = vmul.f32 %v4884, %v1172
          %v5076 = vmul.f32 %v4885, %v1177
          %v5077 = vmul.f32 %v4886, %v1182
          %v5078 = vmul.f32 %v4887, %v1187
          %v5079 = vmul.f32 %v4888, %v1192
          %v5080 = vmul.f32 %v4889, %v1197
          %v5081 = vmul.f32 %v4890, %v1202
          %v5082 = vmul.f32 %v4891, %v1207
          %v5083 = vmul.f32 %v4892, %v1212
          %v5084 = vmul.f32 %v4893, %v1217
          %v5085 = vmul.f32 %v4894, %v1222
          %v5086 = vmul.f32 %v4895, %v1227
          %v5087 = vpack.c.bf16 %v5066, %v5066
          %v5088 = vpack.c.bf16 %v5067, %v5067
          %v5089 = vpack.c.bf16 %v5068, %v5068
          %v5090 = vpack.c.bf16 %v5069, %v5069
          %v5091 = vpack.c.bf16 %v5070, %v5070
          %v5092 = vpack.c.bf16 %v5071, %v5071
          %v5093 = vpack.c.bf16 %v5072, %v5072
          %v5094 = vpack.c.bf16 %v5073, %v5073
          %v5095 = vpack.c.bf16 %v5074, %v5074
          %v5096 = vpack.c.bf16 %v5075, %v5075
          %v5097 = vpack.c.bf16 %v5076, %v5076
          %v5098 = vpack.c.bf16 %v5077, %v5077
          %v5099 = vpack.c.bf16 %v5078, %v5078
          %v5100 = vpack.c.bf16 %v5079, %v5079
          %v5101 = vpack.c.bf16 %v5080, %v5080
          %v5102 = vpack.c.bf16 %v5081, %v5081
          %v5103 = vpack.c.bf16 %v5082, %v5082
          %v5104 = vpack.c.bf16 %v5083, %v5083
          %v5105 = vpack.c.bf16 %v5084, %v5084
          %v5106 = vpack.c.bf16 %v5085, %v5085
          %v5107 = vpack.c.bf16 %v5086, %v5086
          %v5108 = vmul.f32 %v5023, %v1363
          %v5109 = vmul.f32 %v5022, %v1368
          %v5110 = vmul.f32 %v5021, %v1373
          %v5111 = vmul.f32 %v5020, %v1378
          %v5112 = vmul.f32 %v5019, %v1383
          %v5113 = vmul.f32 %v5018, %v1388
          %v5114 = vmul.f32 %v5017, %v1393
          %v5115 = vmul.f32 %v5016, %v1398
          %v5116 = vmul.f32 %v5015, %v1403
          %v5117 = vmul.f32 %v5014, %v1408
          %v5118 = vmul.f32 %v5013, %v1413
          %v5119 = vmul.f32 %v5012, %v1418
          %v5120 = vmul.f32 %v5011, %v1423
          %v5121 = vmul.f32 %v5010, %v1428
          %v5122 = vmul.f32 %v5009, %v1433
          %v5123 = vmul.f32 %v5008, %v1438
          %v5124 = vmul.f32 %v5007, %v1443
          %v5125 = vmul.f32 %v5006, %v1448
          %v5126 = vmul.f32 %v5005, %v1453
          %v5127 = vmul.f32 %v5004, %v1458
          %v5128 = vmul.f32 %v5003, %v1463
          %v5129 = vpack.c.bf16 %v5108, %v5108
          %v5130 = vpack.c.bf16 %v5109, %v5109
          %v5131 = vpack.c.bf16 %v5110, %v5110
          %v5132 = vpack.c.bf16 %v5111, %v5111
          %v5133 = vpack.c.bf16 %v5112, %v5112
          %v5134 = vpack.c.bf16 %v5113, %v5113
          %v5135 = vpack.c.bf16 %v5114, %v5114
          %v5136 = vpack.c.bf16 %v5115, %v5115
          %v5137 = vpack.c.bf16 %v5116, %v5116
          %v5138 = vpack.c.bf16 %v5117, %v5117
          %v5139 = vpack.c.bf16 %v5118, %v5118
          %v5140 = vpack.c.bf16 %v5119, %v5119
          %v5141 = vpack.c.bf16 %v5120, %v5120
          %v5142 = vpack.c.bf16 %v5121, %v5121
          %v5143 = vpack.c.bf16 %v5122, %v5122
          %v5144 = vpack.c.bf16 %v5123, %v5123
          %v5145 = vpack.c.bf16 %v5124, %v5124
          %v5146 = vpack.c.bf16 %v5125, %v5125
          %v5147 = vpack.c.bf16 %v5126, %v5126
          %v5148 = vpack.c.bf16 %v5127, %v5127
          %v5149 = vpack.c.bf16 %v5128, %v5128
          %v5150 = vmul.f32 %v4877, %v1557
          %v5151 = vmul.f32 %v4878, %v1562
          %v5152 = vmul.f32 %v4879, %v1567
          %v5153 = vmul.f32 %v4880, %v1572
          %v5154 = vmul.f32 %v4881, %v1577
          %v5155 = vmul.f32 %v4882, %v1582
          %v5156 = vmul.f32 %v4883, %v1587
          %v5157 = vmul.f32 %v4884, %v1592
          %v5158 = vmul.f32 %v4885, %v1597
          %v5159 = vmul.f32 %v4886, %v1602
          %v5160 = vmul.f32 %v4887, %v1607
          %v5161 = vmul.f32 %v4888, %v1612
          %v5162 = vmul.f32 %v4889, %v1617
          %v5163 = vmul.f32 %v4890, %v1622
          %v5164 = vmul.f32 %v4891, %v1627
          %v5165 = vmul.f32 %v4892, %v1632
          %v5166 = vmul.f32 %v4893, %v1637
          %v5167 = vmul.f32 %v4894, %v1642
          %v5168 = vmul.f32 %v4895, %v1647
          %v5169 = vmul.f32 %v4896, %v1652
          %v5170 = vmul.f32 %v4897, %v1657
          %v5171 = vpack.c.bf16 %v5150, %v5150
          %v5172 = vpack.c.bf16 %v5151, %v5151
          %v5173 = vpack.c.bf16 %v5152, %v5152
          %v5174 = vpack.c.bf16 %v5153, %v5153
          %v5175 = vpack.c.bf16 %v5154, %v5154
          %v5176 = vpack.c.bf16 %v5155, %v5155
          %v5177 = vpack.c.bf16 %v5156, %v5156
          %v5178 = vpack.c.bf16 %v5157, %v5157
          %v5179 = vpack.c.bf16 %v5158, %v5158
          %v5180 = vpack.c.bf16 %v5159, %v5159
          %v5181 = vpack.c.bf16 %v5160, %v5160
          %v5182 = vpack.c.bf16 %v5161, %v5161
          %v5183 = vpack.c.bf16 %v5162, %v5162
          %v5184 = vpack.c.bf16 %v5163, %v5163
          %v5185 = vpack.c.bf16 %v5164, %v5164
          %v5186 = vpack.c.bf16 %v5165, %v5165
          %v5187 = vpack.c.bf16 %v5166, %v5166
          %v5188 = vpack.c.bf16 %v5167, %v5167
          %v5189 = vpack.c.bf16 %v5168, %v5168
          %v5190 = vpack.c.bf16 %v5169, %v5169
          %v5191 = vpack.c.bf16 %v5170, %v5170
          %v5192 = vrot.slane %v4877, 2
          %v5193 = vrot.slane %v4878, 2
          %v5194 = vrot.slane %v4879, 2
          %v5195 = vrot.slane %v4880, 2
          %v5196 = vrot.slane %v4881, 2
          %v5197 = vrot.slane %v4882, 2
          %v5198 = vrot.slane %v4883, 2
          %v5199 = vrot.slane %v4884, 2
          %v5200 = vrot.slane %v4885, 2
          %v5201 = vrot.slane %v4886, 2
          %v5202 = vrot.slane %v4887, 2
          %v5203 = vrot.slane %v4888, 2
          %v5204 = vrot.slane %v4889, 2
          %v5205 = vrot.slane %v4890, 2
          %v5206 = vrot.slane %v4891, 2
          %v5207 = vrot.slane %v4892, 2
          %v5208 = vrot.slane %v4893, 2
          %v5209 = vrot.slane %v4894, 2
          %v5210 = vrot.slane %v4895, 2
          %v5211 = vrot.slane %v4896, 2
          %v5212 = vrot.slane %v4897, 2
          %v5213 = vsel %vm1747, %v5211, %v5212
          %v5214 = vsel %vm1747, %v5210, %v5211
          %v5215 = vsel %vm1747, %v5209, %v5210
          %v5216 = vsel %vm1747, %v5208, %v5209
          %v5217 = vsel %vm1747, %v5207, %v5208
          %v5218 = vsel %vm1747, %v5206, %v5207
          %v5219 = vsel %vm1747, %v5205, %v5206
          %v5220 = vsel %vm1747, %v5204, %v5205
          %v5221 = vsel %vm1747, %v5203, %v5204
          %v5222 = vsel %vm1747, %v5202, %v5203
          %v5223 = vsel %vm1747, %v5201, %v5202
          %v5224 = vsel %vm1747, %v5200, %v5201
          %v5225 = vsel %vm1747, %v5199, %v5200
          %v5226 = vsel %vm1747, %v5198, %v5199
          %v5227 = vsel %vm1747, %v5197, %v5198
          %v5228 = vsel %vm1747, %v5196, %v5197
          %v5229 = vsel %vm1747, %v5195, %v5196
          %v5230 = vsel %vm1747, %v5194, %v5195
          %v5231 = vsel %vm1747, %v5193, %v5194
          %v5232 = vsel %vm1747, %v5192, %v5193
          %v5233 = vsel %vm1747, %v5212, %v5192
          %v5234 = vmul.f32 %v5232, %v1794
          %v5235 = vmul.f32 %v5231, %v1799
          %v5236 = vmul.f32 %v5230, %v1804
          %v5237 = vmul.f32 %v5229, %v1809
          %v5238 = vmul.f32 %v5228, %v1814
          %v5239 = vmul.f32 %v5227, %v1819
          %v5240 = vmul.f32 %v5226, %v1824
          %v5241 = vmul.f32 %v5225, %v1829
          %v5242 = vmul.f32 %v5224, %v1834
          %v5243 = vmul.f32 %v5223, %v1839
          %v5244 = vmul.f32 %v5222, %v1844
          %v5245 = vmul.f32 %v5221, %v1849
          %v5246 = vmul.f32 %v5220, %v1854
          %v5247 = vmul.f32 %v5219, %v1859
          %v5248 = vmul.f32 %v5218, %v1864
          %v5249 = vmul.f32 %v5217, %v1869
          %v5250 = vmul.f32 %v5216, %v1874
          %v5251 = vmul.f32 %v5215, %v1879
          %v5252 = vmul.f32 %v5214, %v1884
          %v5253 = vmul.f32 %v5213, %v1889
          %v5254 = vmul.f32 %v5233, %v1894
          %v5255 = vpack.c.bf16 %v5234, %v5234
          %v5256 = vpack.c.bf16 %v5235, %v5235
          %v5257 = vpack.c.bf16 %v5236, %v5236
          %v5258 = vpack.c.bf16 %v5237, %v5237
          %v5259 = vpack.c.bf16 %v5238, %v5238
          %v5260 = vpack.c.bf16 %v5239, %v5239
          %v5261 = vpack.c.bf16 %v5240, %v5240
          %v5262 = vpack.c.bf16 %v5241, %v5241
          %v5263 = vpack.c.bf16 %v5242, %v5242
          %v5264 = vpack.c.bf16 %v5243, %v5243
          %v5265 = vpack.c.bf16 %v5244, %v5244
          %v5266 = vpack.c.bf16 %v5245, %v5245
          %v5267 = vpack.c.bf16 %v5246, %v5246
          %v5268 = vpack.c.bf16 %v5247, %v5247
          %v5269 = vpack.c.bf16 %v5248, %v5248
          %v5270 = vpack.c.bf16 %v5249, %v5249
          %v5271 = vpack.c.bf16 %v5250, %v5250
          %v5272 = vpack.c.bf16 %v5251, %v5251
          %v5273 = vpack.c.bf16 %v5252, %v5252
          %v5274 = vpack.c.bf16 %v5253, %v5253
          %v5275 = vpack.c.bf16 %v5254, %v5254
          %v5276 = vmul.f32 %v4879, %v1988
          %v5277 = vmul.f32 %v4880, %v1993
          %v5278 = vmul.f32 %v4881, %v1998
          %v5279 = vmul.f32 %v4882, %v2003
          %v5280 = vmul.f32 %v4883, %v2008
          %v5281 = vmul.f32 %v4884, %v2013
          %v5282 = vmul.f32 %v4885, %v2018
          %v5283 = vmul.f32 %v4886, %v2023
          %v5284 = vmul.f32 %v4887, %v2028
          %v5285 = vmul.f32 %v4888, %v2033
          %v5286 = vmul.f32 %v4889, %v2038
          %v5287 = vmul.f32 %v4890, %v2043
          %v5288 = vmul.f32 %v4891, %v2048
          %v5289 = vmul.f32 %v4892, %v2053
          %v5290 = vmul.f32 %v4893, %v2058
          %v5291 = vmul.f32 %v4894, %v2063
          %v5292 = vmul.f32 %v4895, %v2068
          %v5293 = vmul.f32 %v4896, %v2073
          %v5294 = vmul.f32 %v4897, %v2078
          %v5295 = vmul.f32 %v4877, %v2083
          %v5296 = vmul.f32 %v4878, %v2088
          %v5297 = vpack.c.bf16 %v5276, %v5276
          %v5298 = vpack.c.bf16 %v5277, %v5277
          %v5299 = vpack.c.bf16 %v5278, %v5278
          %v5300 = vpack.c.bf16 %v5279, %v5279
          %v5301 = vpack.c.bf16 %v5280, %v5280
          %v5302 = vpack.c.bf16 %v5281, %v5281
          %v5303 = vpack.c.bf16 %v5282, %v5282
          %v5304 = vpack.c.bf16 %v5283, %v5283
          %v5305 = vpack.c.bf16 %v5284, %v5284
          %v5306 = vpack.c.bf16 %v5285, %v5285
          %v5307 = vpack.c.bf16 %v5286, %v5286
          %v5308 = vpack.c.bf16 %v5287, %v5287
          %v5309 = vpack.c.bf16 %v5288, %v5288
          %v5310 = vpack.c.bf16 %v5289, %v5289
          %v5311 = vpack.c.bf16 %v5290, %v5290
          %v5312 = vpack.c.bf16 %v5291, %v5291
          %v5313 = vpack.c.bf16 %v5292, %v5292
          %v5314 = vpack.c.bf16 %v5293, %v5293
          %v5315 = vpack.c.bf16 %v5294, %v5294
          %v5316 = vpack.c.bf16 %v5295, %v5295
          %v5317 = vpack.c.bf16 %v5296, %v5296
          %v5318 = vmul.f32 %v5230, %v2224
          %v5319 = vmul.f32 %v5229, %v2229
          %v5320 = vmul.f32 %v5228, %v2234
          %v5321 = vmul.f32 %v5227, %v2239
          %v5322 = vmul.f32 %v5226, %v2244
          %v5323 = vmul.f32 %v5225, %v2249
          %v5324 = vmul.f32 %v5224, %v2254
          %v5325 = vmul.f32 %v5223, %v2259
          %v5326 = vmul.f32 %v5222, %v2264
          %v5327 = vmul.f32 %v5221, %v2269
          %v5328 = vmul.f32 %v5220, %v2274
          %v5329 = vmul.f32 %v5219, %v2279
          %v5330 = vmul.f32 %v5218, %v2284
          %v5331 = vmul.f32 %v5217, %v2289
          %v5332 = vmul.f32 %v5216, %v2294
          %v5333 = vmul.f32 %v5215, %v2299
          %v5334 = vmul.f32 %v5214, %v2304
          %v5335 = vmul.f32 %v5213, %v2309
          %v5336 = vmul.f32 %v5233, %v2314
          %v5337 = vmul.f32 %v5232, %v2319
          %v5338 = vmul.f32 %v5231, %v2324
          %v5339 = vpack.c.bf16 %v5318, %v5318
          %v5340 = vpack.c.bf16 %v5319, %v5319
          %v5341 = vpack.c.bf16 %v5320, %v5320
          %v5342 = vpack.c.bf16 %v5321, %v5321
          %v5343 = vpack.c.bf16 %v5322, %v5322
          %v5344 = vpack.c.bf16 %v5323, %v5323
          %v5345 = vpack.c.bf16 %v5324, %v5324
          %v5346 = vpack.c.bf16 %v5325, %v5325
          %v5347 = vpack.c.bf16 %v5326, %v5326
          %v5348 = vpack.c.bf16 %v5327, %v5327
          %v5349 = vpack.c.bf16 %v5328, %v5328
          %v5350 = vpack.c.bf16 %v5329, %v5329
          %v5351 = vpack.c.bf16 %v5330, %v5330
          %v5352 = vpack.c.bf16 %v5331, %v5331
          %v5353 = vpack.c.bf16 %v5332, %v5332
          %v5354 = vpack.c.bf16 %v5333, %v5333
          %v5355 = vpack.c.bf16 %v5334, %v5334
          %v5356 = vpack.c.bf16 %v5335, %v5335
          %v5357 = vpack.c.bf16 %v5336, %v5336
          %v5358 = vpack.c.bf16 %v5337, %v5337
          %v5359 = vpack.c.bf16 %v5338, %v5338
          %v5360 = vmul.f32 %v4936, %v2460
          %v5361 = vmul.f32 %v4935, %v2465
          %v5362 = vmul.f32 %v4934, %v2470
          %v5363 = vmul.f32 %v4933, %v2475
          %v5364 = vmul.f32 %v4932, %v2480
          %v5365 = vmul.f32 %v4931, %v2485
          %v5366 = vmul.f32 %v4930, %v2490
          %v5367 = vmul.f32 %v4929, %v2495
          %v5368 = vmul.f32 %v4928, %v2500
          %v5369 = vmul.f32 %v4927, %v2505
          %v5370 = vmul.f32 %v4926, %v2510
          %v5371 = vmul.f32 %v4925, %v2515
          %v5372 = vmul.f32 %v4924, %v2520
          %v5373 = vmul.f32 %v4923, %v2525
          %v5374 = vmul.f32 %v4922, %v2530
          %v5375 = vmul.f32 %v4921, %v2535
          %v5376 = vmul.f32 %v4920, %v2540
          %v5377 = vmul.f32 %v4919, %v2545
          %v5378 = vmul.f32 %v4939, %v2550
          %v5379 = vmul.f32 %v4938, %v2555
          %v5380 = vmul.f32 %v4937, %v2560
          %v5381 = vpack.c.bf16 %v5360, %v5360
          %v5382 = vpack.c.bf16 %v5361, %v5361
          %v5383 = vpack.c.bf16 %v5362, %v5362
          %v5384 = vpack.c.bf16 %v5363, %v5363
          %v5385 = vpack.c.bf16 %v5364, %v5364
          %v5386 = vpack.c.bf16 %v5365, %v5365
          %v5387 = vpack.c.bf16 %v5366, %v5366
          %v5388 = vpack.c.bf16 %v5367, %v5367
          %v5389 = vpack.c.bf16 %v5368, %v5368
          %v5390 = vpack.c.bf16 %v5369, %v5369
          %v5391 = vpack.c.bf16 %v5370, %v5370
          %v5392 = vpack.c.bf16 %v5371, %v5371
          %v5393 = vpack.c.bf16 %v5372, %v5372
          %v5394 = vpack.c.bf16 %v5373, %v5373
          %v5395 = vpack.c.bf16 %v5374, %v5374
          %v5396 = vpack.c.bf16 %v5375, %v5375
          %v5397 = vpack.c.bf16 %v5376, %v5376
          %v5398 = vpack.c.bf16 %v5377, %v5377
          %v5399 = vpack.c.bf16 %v5378, %v5378
          %v5400 = vpack.c.bf16 %v5379, %v5379
          %v5401 = vpack.c.bf16 %v5380, %v5380
          %v5423 = vunpack.c.l.b16 %v4961
          %v5424 = vunpack.c.l.b16 %v4962
          %v5425 = vunpack.c.l.b16 %v4963
          %v5426 = vunpack.c.l.b16 %v4964
          %v5427 = vunpack.c.l.b16 %v4965
          %v5428 = vunpack.c.l.b16 %v4966
          %v5429 = vunpack.c.l.b16 %v4967
          %v5430 = vunpack.c.l.b16 %v4968
          %v5431 = vunpack.c.l.b16 %v4969
          %v5432 = vunpack.c.l.b16 %v4970
          %v5433 = vunpack.c.l.b16 %v4971
          %v5434 = vunpack.c.l.b16 %v4972
          %v5435 = vunpack.c.l.b16 %v4973
          %v5436 = vunpack.c.l.b16 %v4974
          %v5437 = vunpack.c.l.b16 %v4975
          %v5438 = vunpack.c.l.b16 %v4976
          %v5439 = vunpack.c.l.b16 %v4977
          %v5440 = vunpack.c.l.b16 %v4978
          %v5441 = vunpack.c.l.b16 %v4979
          %v5442 = vunpack.c.l.b16 %v4980
          %v5443 = vunpack.c.l.b16 %v4981
          %v5444 = vpack.c.b16 %v5424, %v5423
          %v5445 = vpack.c.b16 %v5426, %v5425
          %v5446 = vpack.c.b16 %v5428, %v5427
          %v5447 = vpack.c.b16 %v5430, %v5429
          %v5448 = vpack.c.b16 %v5432, %v5431
          %v5449 = vpack.c.b16 %v5434, %v5433
          %v5450 = vpack.c.b16 %v5436, %v5435
          %v5451 = vpack.c.b16 %v5438, %v5437
          %v5452 = vpack.c.b16 %v5440, %v5439
          %v5453 = vpack.c.b16 %v5442, %v5441
          %v5454 = vpack.c.b16 %v5443, %v5443
          %v5487 = vunpack.c.l.b16 %v5045
          %v5488 = vunpack.c.l.b16 %v5046
          %v5489 = vunpack.c.l.b16 %v5047
          %v5490 = vunpack.c.l.b16 %v5048
          %v5491 = vunpack.c.l.b16 %v5049
          %v5492 = vunpack.c.l.b16 %v5050
          %v5493 = vunpack.c.l.b16 %v5051
          %v5494 = vunpack.c.l.b16 %v5052
          %v5495 = vunpack.c.l.b16 %v5053
          %v5496 = vunpack.c.l.b16 %v5054
          %v5497 = vunpack.c.l.b16 %v5055
          %v5498 = vunpack.c.l.b16 %v5056
          %v5499 = vunpack.c.l.b16 %v5057
          %v5500 = vunpack.c.l.b16 %v5058
          %v5501 = vunpack.c.l.b16 %v5059
          %v5502 = vunpack.c.l.b16 %v5060
          %v5503 = vunpack.c.l.b16 %v5061
          %v5504 = vunpack.c.l.b16 %v5062
          %v5505 = vunpack.c.l.b16 %v5063
          %v5506 = vunpack.c.l.b16 %v5064
          %v5507 = vunpack.c.l.b16 %v5065
          %v5508 = vpack.c.b16 %v5488, %v5487
          %v5509 = vpack.c.b16 %v5490, %v5489
          %v5510 = vpack.c.b16 %v5492, %v5491
          %v5511 = vpack.c.b16 %v5494, %v5493
          %v5512 = vpack.c.b16 %v5496, %v5495
          %v5513 = vpack.c.b16 %v5498, %v5497
          %v5514 = vpack.c.b16 %v5500, %v5499
          %v5515 = vpack.c.b16 %v5502, %v5501
          %v5516 = vpack.c.b16 %v5504, %v5503
          %v5517 = vpack.c.b16 %v5506, %v5505
          %v5518 = vpack.c.b16 %v5507, %v5507
          %v5551 = vunpack.c.l.b16 %v5087
          %v5552 = vunpack.c.l.b16 %v5088
          %v5553 = vunpack.c.l.b16 %v5089
          %v5554 = vunpack.c.l.b16 %v5090
          %v5555 = vunpack.c.l.b16 %v5091
          %v5556 = vunpack.c.l.b16 %v5092
          %v5557 = vunpack.c.l.b16 %v5093
          %v5558 = vunpack.c.l.b16 %v5094
          %v5559 = vunpack.c.l.b16 %v5095
          %v5560 = vunpack.c.l.b16 %v5096
          %v5561 = vunpack.c.l.b16 %v5097
          %v5562 = vunpack.c.l.b16 %v5098
          %v5563 = vunpack.c.l.b16 %v5099
          %v5564 = vunpack.c.l.b16 %v5100
          %v5565 = vunpack.c.l.b16 %v5101
          %v5566 = vunpack.c.l.b16 %v5102
          %v5567 = vunpack.c.l.b16 %v5103
          %v5568 = vunpack.c.l.b16 %v5104
          %v5569 = vunpack.c.l.b16 %v5105
          %v5570 = vunpack.c.l.b16 %v5106
          %v5571 = vunpack.c.l.b16 %v5107
          %v5572 = vpack.c.b16 %v5552, %v5551
          %v5573 = vpack.c.b16 %v5554, %v5553
          %v5574 = vpack.c.b16 %v5556, %v5555
          %v5575 = vpack.c.b16 %v5558, %v5557
          %v5576 = vpack.c.b16 %v5560, %v5559
          %v5577 = vpack.c.b16 %v5562, %v5561
          %v5578 = vpack.c.b16 %v5564, %v5563
          %v5579 = vpack.c.b16 %v5566, %v5565
          %v5580 = vpack.c.b16 %v5568, %v5567
          %v5581 = vpack.c.b16 %v5570, %v5569
          %v5582 = vpack.c.b16 %v5571, %v5571
          %v5615 = vunpack.c.l.b16 %v5129
          %v5616 = vunpack.c.l.b16 %v5130
          %v5617 = vunpack.c.l.b16 %v5131
          %v5618 = vunpack.c.l.b16 %v5132
          %v5619 = vunpack.c.l.b16 %v5133
          %v5620 = vunpack.c.l.b16 %v5134
          %v5621 = vunpack.c.l.b16 %v5135
          %v5622 = vunpack.c.l.b16 %v5136
          %v5623 = vunpack.c.l.b16 %v5137
          %v5624 = vunpack.c.l.b16 %v5138
          %v5625 = vunpack.c.l.b16 %v5139
          %v5626 = vunpack.c.l.b16 %v5140
          %v5627 = vunpack.c.l.b16 %v5141
          %v5628 = vunpack.c.l.b16 %v5142
          %v5629 = vunpack.c.l.b16 %v5143
          %v5630 = vunpack.c.l.b16 %v5144
          %v5631 = vunpack.c.l.b16 %v5145
          %v5632 = vunpack.c.l.b16 %v5146
          %v5633 = vunpack.c.l.b16 %v5147
          %v5634 = vunpack.c.l.b16 %v5148
          %v5635 = vunpack.c.l.b16 %v5149
          %v5636 = vpack.c.b16 %v5616, %v5615
          %v5637 = vpack.c.b16 %v5618, %v5617
          %v5638 = vpack.c.b16 %v5620, %v5619
          %v5639 = vpack.c.b16 %v5622, %v5621
          %v5640 = vpack.c.b16 %v5624, %v5623
          %v5641 = vpack.c.b16 %v5626, %v5625
          %v5642 = vpack.c.b16 %v5628, %v5627
          %v5643 = vpack.c.b16 %v5630, %v5629
          %v5644 = vpack.c.b16 %v5632, %v5631
          %v5645 = vpack.c.b16 %v5634, %v5633
          %v5646 = vpack.c.b16 %v5635, %v5635
          %v5679 = vunpack.c.l.b16 %v5171
          %v5680 = vunpack.c.l.b16 %v5172
          %v5681 = vunpack.c.l.b16 %v5173
          %v5682 = vunpack.c.l.b16 %v5174
          %v5683 = vunpack.c.l.b16 %v5175
          %v5684 = vunpack.c.l.b16 %v5176
          %v5685 = vunpack.c.l.b16 %v5177
          %v5686 = vunpack.c.l.b16 %v5178
          %v5687 = vunpack.c.l.b16 %v5179
          %v5688 = vunpack.c.l.b16 %v5180
          %v5689 = vunpack.c.l.b16 %v5181
          %v5690 = vunpack.c.l.b16 %v5182
          %v5691 = vunpack.c.l.b16 %v5183
          %v5692 = vunpack.c.l.b16 %v5184
          %v5693 = vunpack.c.l.b16 %v5185
          %v5694 = vunpack.c.l.b16 %v5186
          %v5695 = vunpack.c.l.b16 %v5187
          %v5696 = vunpack.c.l.b16 %v5188
          %v5697 = vunpack.c.l.b16 %v5189
          %v5698 = vunpack.c.l.b16 %v5190
          %v5699 = vunpack.c.l.b16 %v5191
          %v5700 = vpack.c.b16 %v5680, %v5679
          %v5701 = vpack.c.b16 %v5682, %v5681
          %v5702 = vpack.c.b16 %v5684, %v5683
          %v5703 = vpack.c.b16 %v5686, %v5685
          %v5704 = vpack.c.b16 %v5688, %v5687
          %v5705 = vpack.c.b16 %v5690, %v5689
          %v5706 = vpack.c.b16 %v5692, %v5691
          %v5707 = vpack.c.b16 %v5694, %v5693
          %v5708 = vpack.c.b16 %v5696, %v5695
          %v5709 = vpack.c.b16 %v5698, %v5697
          %v5710 = vpack.c.b16 %v5699, %v5699
          %v5743 = vunpack.c.l.b16 %v5255
          %v5744 = vunpack.c.l.b16 %v5256
          %v5745 = vunpack.c.l.b16 %v5257
          %v5746 = vunpack.c.l.b16 %v5258
          %v5747 = vunpack.c.l.b16 %v5259
          %v5748 = vunpack.c.l.b16 %v5260
          %v5749 = vunpack.c.l.b16 %v5261
          %v5750 = vunpack.c.l.b16 %v5262
          %v5751 = vunpack.c.l.b16 %v5263
          %v5752 = vunpack.c.l.b16 %v5264
          %v5753 = vunpack.c.l.b16 %v5265
          %v5754 = vunpack.c.l.b16 %v5266
          %v5755 = vunpack.c.l.b16 %v5267
          %v5756 = vunpack.c.l.b16 %v5268
          %v5757 = vunpack.c.l.b16 %v5269
          %v5758 = vunpack.c.l.b16 %v5270
          %v5759 = vunpack.c.l.b16 %v5271
          %v5760 = vunpack.c.l.b16 %v5272
          %v5761 = vunpack.c.l.b16 %v5273
          %v5762 = vunpack.c.l.b16 %v5274
          %v5763 = vunpack.c.l.b16 %v5275
          %v5764 = vpack.c.b16 %v5744, %v5743
          %v5765 = vpack.c.b16 %v5746, %v5745
          %v5766 = vpack.c.b16 %v5748, %v5747
          %v5767 = vpack.c.b16 %v5750, %v5749
          %v5768 = vpack.c.b16 %v5752, %v5751
          %v5769 = vpack.c.b16 %v5754, %v5753
          %v5770 = vpack.c.b16 %v5756, %v5755
          %v5771 = vpack.c.b16 %v5758, %v5757
          %v5772 = vpack.c.b16 %v5760, %v5759
          %v5773 = vpack.c.b16 %v5762, %v5761
          %v5774 = vpack.c.b16 %v5763, %v5763
          %v5807 = vunpack.c.l.b16 %v5297
          %v5808 = vunpack.c.l.b16 %v5298
          %v5809 = vunpack.c.l.b16 %v5299
          %v5810 = vunpack.c.l.b16 %v5300
          %v5811 = vunpack.c.l.b16 %v5301
          %v5812 = vunpack.c.l.b16 %v5302
          %v5813 = vunpack.c.l.b16 %v5303
          %v5814 = vunpack.c.l.b16 %v5304
          %v5815 = vunpack.c.l.b16 %v5305
          %v5816 = vunpack.c.l.b16 %v5306
          %v5817 = vunpack.c.l.b16 %v5307
          %v5818 = vunpack.c.l.b16 %v5308
          %v5819 = vunpack.c.l.b16 %v5309
          %v5820 = vunpack.c.l.b16 %v5310
          %v5821 = vunpack.c.l.b16 %v5311
          %v5822 = vunpack.c.l.b16 %v5312
          %v5823 = vunpack.c.l.b16 %v5313
          %v5824 = vunpack.c.l.b16 %v5314
          %v5825 = vunpack.c.l.b16 %v5315
          %v5826 = vunpack.c.l.b16 %v5316
          %v5827 = vunpack.c.l.b16 %v5317
          %v5828 = vpack.c.b16 %v5808, %v5807
          %v5829 = vpack.c.b16 %v5810, %v5809
          %v5830 = vpack.c.b16 %v5812, %v5811
          %v5831 = vpack.c.b16 %v5814, %v5813
          %v5832 = vpack.c.b16 %v5816, %v5815
          %v5833 = vpack.c.b16 %v5818, %v5817
          %v5834 = vpack.c.b16 %v5820, %v5819
          %v5835 = vpack.c.b16 %v5822, %v5821
          %v5836 = vpack.c.b16 %v5824, %v5823
          %v5837 = vpack.c.b16 %v5826, %v5825
          %v5838 = vpack.c.b16 %v5827, %v5827
          %v5871 = vunpack.c.l.b16 %v5339
          %v5872 = vunpack.c.l.b16 %v5340
          %v5873 = vunpack.c.l.b16 %v5341
          %v5874 = vunpack.c.l.b16 %v5342
          %v5875 = vunpack.c.l.b16 %v5343
          %v5876 = vunpack.c.l.b16 %v5344
          %v5877 = vunpack.c.l.b16 %v5345
          %v5878 = vunpack.c.l.b16 %v5346
          %v5879 = vunpack.c.l.b16 %v5347
          %v5880 = vunpack.c.l.b16 %v5348
          %v5881 = vunpack.c.l.b16 %v5349
          %v5882 = vunpack.c.l.b16 %v5350
          %v5883 = vunpack.c.l.b16 %v5351
          %v5884 = vunpack.c.l.b16 %v5352
          %v5885 = vunpack.c.l.b16 %v5353
          %v5886 = vunpack.c.l.b16 %v5354
          %v5887 = vunpack.c.l.b16 %v5355
          %v5888 = vunpack.c.l.b16 %v5356
          %v5889 = vunpack.c.l.b16 %v5357
          %v5890 = vunpack.c.l.b16 %v5358
          %v5891 = vunpack.c.l.b16 %v5359
          %v5892 = vpack.c.b16 %v5872, %v5871
          %v5893 = vpack.c.b16 %v5874, %v5873
          %v5894 = vpack.c.b16 %v5876, %v5875
          %v5895 = vpack.c.b16 %v5878, %v5877
          %v5896 = vpack.c.b16 %v5880, %v5879
          %v5897 = vpack.c.b16 %v5882, %v5881
          %v5898 = vpack.c.b16 %v5884, %v5883
          %v5899 = vpack.c.b16 %v5886, %v5885
          %v5900 = vpack.c.b16 %v5888, %v5887
          %v5901 = vpack.c.b16 %v5890, %v5889
          %v5902 = vpack.c.b16 %v5891, %v5891
          %v5935 = vunpack.c.l.b16 %v5381
          %v5936 = vunpack.c.l.b16 %v5382
          %v5937 = vunpack.c.l.b16 %v5383
          %v5938 = vunpack.c.l.b16 %v5384
          %v5939 = vunpack.c.l.b16 %v5385
          %v5940 = vunpack.c.l.b16 %v5386
          %v5941 = vunpack.c.l.b16 %v5387
          %v5942 = vunpack.c.l.b16 %v5388
          %v5943 = vunpack.c.l.b16 %v5389
          %v5944 = vunpack.c.l.b16 %v5390
          %v5945 = vunpack.c.l.b16 %v5391
          %v5946 = vunpack.c.l.b16 %v5392
          %v5947 = vunpack.c.l.b16 %v5393
          %v5948 = vunpack.c.l.b16 %v5394
          %v5949 = vunpack.c.l.b16 %v5395
          %v5950 = vunpack.c.l.b16 %v5396
          %v5951 = vunpack.c.l.b16 %v5397
          %v5952 = vunpack.c.l.b16 %v5398
          %v5953 = vunpack.c.l.b16 %v5399
          %v5954 = vunpack.c.l.b16 %v5400
          %v5955 = vunpack.c.l.b16 %v5401
          %v5956 = vpack.c.b16 %v5936, %v5935
          %v5957 = vpack.c.b16 %v5938, %v5937
          %v5958 = vpack.c.b16 %v5940, %v5939
          %v5959 = vpack.c.b16 %v5942, %v5941
          %v5960 = vpack.c.b16 %v5944, %v5943
          %v5961 = vpack.c.b16 %v5946, %v5945
          %v5962 = vpack.c.b16 %v5948, %v5947
          %v5963 = vpack.c.b16 %v5950, %v5949
          %v5964 = vpack.c.b16 %v5952, %v5951
          %v5965 = vpack.c.b16 %v5954, %v5953
          %v5966 = vpack.c.b16 %v5955, %v5955
          %v5978 = vld [vmem:[#allocation11] sm:$0xf]
          %v5979 = vld [vmem:[#allocation11 + $0x4] sm:$0xf]
          %v5980 = vld [vmem:[#allocation11 + $0x8] sm:$0xf]
          %v5981 = vld [vmem:[#allocation11 + $0xc] sm:$0xf]
          %v5982 = vld [vmem:[#allocation11 + $0x10] sm:$0xf]
          %v5983 = vld [vmem:[#allocation11 + $0x14] sm:$0xf]
          %v5984 = vld [vmem:[#allocation11 + $0x18] sm:$0xf]
          %v5985 = vld [vmem:[#allocation11 + $0x1c] sm:$0xf]
          %v5986 = vld [vmem:[#allocation11 + $0x20] sm:$0xf]
          %v5987 = vld [vmem:[#allocation11 + $0x24] sm:$0xf]
          %v5988 = vld [vmem:[#allocation11 + $0x28] sm:$0xf]
          %v5989 = vld [vmem:[#allocation11 + $0x2c] sm:$0xf]
          %v5990 = vld [vmem:[#allocation11 + $0x30] sm:$0xf]
          %v5991 = vld [vmem:[#allocation11 + $0x34] sm:$0xf]
          %v5992 = vld [vmem:[#allocation11 + $0x38] sm:$0xf]
          %v5993 = vld [vmem:[#allocation11 + $0x3c] sm:$0xf]
          %v5994 = vld [vmem:[#allocation11 + $0x40] sm:$0xf]
          %v5995 = vld [vmem:[#allocation11 + $0x44] sm:$0xf]
          %v5996 = vld [vmem:[#allocation11 + $0x48] sm:$0xf]
          %v5997 = vld [vmem:[#allocation11 + $0x4c] sm:$0xf]
          %v5998 = vld [vmem:[#allocation11 + $0x50] sm:$0xf]
          %v5999 = vld [vmem:[#allocation11 + $0x54] sm:$0xf]
          %v6000 = vld [vmem:[#allocation11 + $0x58] sm:$0xf]
          %v6001 = vld [vmem:[#allocation11 + $0x5c] sm:$0xf]
          %v6002 = vld [vmem:[#allocation11 + $0x60] sm:$0xf]
          %v6003 = vld [vmem:[#allocation11 + $0x64] sm:$0xf]
          %v6004 = vld [vmem:[#allocation11 + $0x68] sm:$0xf]
          %v6005 = vld [vmem:[#allocation11 + $0x6c] sm:$0xf]
          %v6006 = vld [vmem:[#allocation11 + $0x70] sm:$0xf]
          %v6007 = vld [vmem:[#allocation11 + $0x74] sm:$0xf]
          %v6008 = vld [vmem:[#allocation11 + $0x78] sm:$0xf]
          %v6009 = vld [vmem:[#allocation11 + $0x7c] sm:$0xf]
          %v6010 = vld [vmem:[#allocation11 + $0x80] sm:$0xf]
          %v6011 = vld [vmem:[#allocation11 + $0x84] sm:$0xf]
          %v6012 = vld [vmem:[#allocation11 + $0x88] sm:$0xf]
          %v6013 = vld [vmem:[#allocation11 + $0x8c] sm:$0xf]
          %v6014 = vld [vmem:[#allocation11 + $0x90] sm:$0xf]
          %v6015 = vld [vmem:[#allocation11 + $0x94] sm:$0xf]
          %v6016 = vld [vmem:[#allocation11 + $0x98] sm:$0xf]
          %v6017 = vld [vmem:[#allocation11 + $0x9c] sm:$0xf]
          %v6018 = vld [vmem:[#allocation11 + $0xa0] sm:$0xf]
          %v6019 = vld [vmem:[#allocation11 + $0xa4] sm:$0xf]
          %v6020 = vld [vmem:[#allocation11 + $0xa8] sm:$0xf]
          %v6021 = vld [vmem:[#allocation11 + $0xac] sm:$0xf]
          %v6022 = vld [vmem:[#allocation11 + $0xb0] sm:$0xf]
          %v6023 = vld [vmem:[#allocation11 + $0xb4] sm:$0xf]
          %v6024 = vld [vmem:[#allocation11 + $0xb8] sm:$0xf]
          %v6025 = vld [vmem:[#allocation11 + $0xbc] sm:$0xf]
          %v6026 = vld [vmem:[#allocation11 + $0xc0] sm:$0xf]
          %v6027 = vld [vmem:[#allocation11 + $0xc4] sm:$0xf]
          %v6028 = vld [vmem:[#allocation11 + $0xc8] sm:$0xf]
          %v6029 = vld [vmem:[#allocation11 + $0xcc] sm:$0xf]
          %v6030 = vld [vmem:[#allocation11 + $0xd0] sm:$0xf]
          %v6031 = vld [vmem:[#allocation11 + $0xd4] sm:$0xf]
          %v6032 = vld [vmem:[#allocation11 + $0xd8] sm:$0xf]
          %v6033 = vld [vmem:[#allocation11 + $0xdc] sm:$0xf]
          %v6034 = vld [vmem:[#allocation11 + $0xe0] sm:$0xf]
          %v6035 = vld [vmem:[#allocation11 + $0xe4] sm:$0xf]
          %v6036 = vld [vmem:[#allocation11 + $0xe8] sm:$0xf]
          %v6037 = vld [vmem:[#allocation11 + $0xec] sm:$0xf]
          %v6038 = vld [vmem:[#allocation11 + $0xf0] sm:$0xf]
          %v6039 = vld [vmem:[#allocation11 + $0xf4] sm:$0xf]
          %v6040 = vld [vmem:[#allocation11 + $0xf8] sm:$0xf]
          %v6041 = vld [vmem:[#allocation11 + $0xfc] sm:$0xf]
          %v6042 = vld [vmem:[#allocation11 + $0x100] sm:$0xf]
          %v6043 = vld [vmem:[#allocation11 + $0x104] sm:$0xf]
          %v6044 = vld [vmem:[#allocation11 + $0x108] sm:$0xf]
          %v6045 = vld [vmem:[#allocation11 + $0x10c] sm:$0xf]
          %v6046 = vld [vmem:[#allocation11 + $0x110] sm:$0xf]
          %v6047 = vld [vmem:[#allocation11 + $0x114] sm:$0xf]
          %v6048 = vld [vmem:[#allocation11 + $0x118] sm:$0xf]
          %v6049 = vld [vmem:[#allocation11 + $0x11c] sm:$0xf]
          %v6050 = vld [vmem:[#allocation11 + $0x120] sm:$0xf]
          %v6051 = vld [vmem:[#allocation11 + $0x124] sm:$0xf]
          %v6052 = vld [vmem:[#allocation11 + $0x128] sm:$0xf]
          %v6053 = vld [vmem:[#allocation11 + $0x12c] sm:$0xf]
          %v6054 = vld [vmem:[#allocation11 + $0x130] sm:$0xf]
          %v6055 = vld [vmem:[#allocation11 + $0x134] sm:$0xf]
          %v6056 = vld [vmem:[#allocation11 + $0x138] sm:$0xf]
          %v6057 = vld [vmem:[#allocation11 + $0x13c] sm:$0xf]
          %v6058 = vld [vmem:[#allocation11 + $0x140] sm:$0xf]
          %v6059 = vld [vmem:[#allocation11 + $0x144] sm:$0xf]
          %v6060 = vld [vmem:[#allocation11 + $0x148] sm:$0xf]
          %v6061 = vld [vmem:[#allocation11 + $0x14c] sm:$0xf]
          %v6062 = vld [vmem:[#allocation11 + $0x150] sm:$0xf]
          %v6063 = vld [vmem:[#allocation11 + $0x154] sm:$0xf]
          %v6064 = vld [vmem:[#allocation11 + $0x158] sm:$0xf]
          %v6065 = vld [vmem:[#allocation11 + $0x15c] sm:$0xf]
          %v6066 = vld [vmem:[#allocation11 + $0x160] sm:$0xf]
          %v6067 = vld [vmem:[#allocation11 + $0x164] sm:$0xf]
          %v6068 = vld [vmem:[#allocation11 + $0x168] sm:$0xf]
          %v6069 = vld [vmem:[#allocation11 + $0x16c] sm:$0xf]
          %v6070 = vld [vmem:[#allocation11 + $0x170] sm:$0xf]
          %v6071 = vld [vmem:[#allocation11 + $0x174] sm:$0xf]
          %v6072 = vld [vmem:[#allocation11 + $0x178] sm:$0xf]
          %v6073 = vld [vmem:[#allocation11 + $0x17c] sm:$0xf]
          %v6074 = vld [vmem:[#allocation11 + $0x180] sm:$0xf]
          %v6075 = vld [vmem:[#allocation11 + $0x184] sm:$0xf]
          %v6076 = vld [vmem:[#allocation11 + $0x188] sm:$0xf]
          %v6077 = vld [vmem:[#allocation11 + $0x18c] sm:$0xf]
          %v6078 = vld [vmem:[#allocation11 + $0x190] sm:$0xf]
          %v6079 = vld [vmem:[#allocation11 + $0x194] sm:$0xf]
          %v6080 = vld [vmem:[#allocation11 + $0x198] sm:$0xf]
          %v6081 = vld [vmem:[#allocation11 + $0x19c] sm:$0xf]
          %v6082 = vld [vmem:[#allocation11 + $0x1a0] sm:$0xf]
          %v6083 = vld [vmem:[#allocation11 + $0x1a4] sm:$0xf]
          %v6084 = vld [vmem:[#allocation11 + $0x1a8] sm:$0xf]
          %v6085 = vld [vmem:[#allocation11 + $0x1ac] sm:$0xf]
          %v6086 = vld [vmem:[#allocation11 + $0x1b0] sm:$0xf]
          %v6087 = vld [vmem:[#allocation11 + $0x1b4] sm:$0xf]
          %v6088 = vld [vmem:[#allocation11 + $0x1b8] sm:$0xf]
          %v6089 = vld [vmem:[#allocation11 + $0x1bc] sm:$0xf]
          %v6090 = vld [vmem:[#allocation11 + $0x1c0] sm:$0xf]
          %v6091 = vld [vmem:[#allocation11 + $0x1c4] sm:$0xf]
          %v6092 = vld [vmem:[#allocation11 + $0x1c8] sm:$0xf]
          %v6093 = vld [vmem:[#allocation11 + $0x1cc] sm:$0xf]
          %v6094 = vld [vmem:[#allocation11 + $0x1d0] sm:$0xf]
          %v6095 = vld [vmem:[#allocation11 + $0x1d4] sm:$0xf]
          %v6096 = vld [vmem:[#allocation11 + $0x1d8] sm:$0xf]
          %v6097 = vld [vmem:[#allocation11 + $0x1dc] sm:$0xf]
          %v6098 = vld [vmem:[#allocation11 + $0x1e0] sm:$0xf]
          %v6099 = vld [vmem:[#allocation11 + $0x1e4] sm:$0xf]
          %v6100 = vld [vmem:[#allocation11 + $0x1e8] sm:$0xf]
          %v6101 = vld [vmem:[#allocation11 + $0x1ec] sm:$0xf]
          %v6102 = vld [vmem:[#allocation11 + $0x1f0] sm:$0xf]
          %v6103 = vld [vmem:[#allocation11 + $0x1f4] sm:$0xf]
          %v6104 = vld [vmem:[#allocation11 + $0x1f8] sm:$0xf]
          %v6105 = vld [vmem:[#allocation11 + $0x1fc] sm:$0xf]
          %v6106 = vld [vmem:[#allocation11 + $0x200] sm:$0xf]
          %v6107 = vld [vmem:[#allocation11 + $0x204] sm:$0xf]
          %v6108 = vld [vmem:[#allocation11 + $0x208] sm:$0xf]
          %v6109 = vld [vmem:[#allocation11 + $0x20c] sm:$0xf]
          %v6110 = vld [vmem:[#allocation11 + $0x210] sm:$0xf]
          %v6111 = vld [vmem:[#allocation11 + $0x214] sm:$0xf]
          %v6112 = vld [vmem:[#allocation11 + $0x218] sm:$0xf]
          %v6113 = vld [vmem:[#allocation11 + $0x21c] sm:$0xf]
          %v6114 = vld [vmem:[#allocation11 + $0x220] sm:$0xf]
          %v6115 = vld [vmem:[#allocation11 + $0x224] sm:$0xf]
          %v6116 = vld [vmem:[#allocation11 + $0x228] sm:$0xf]
          %v6117 = vld [vmem:[#allocation11 + $0x22c] sm:$0xf]
          %v6118 = vld [vmem:[#allocation11 + $0x230] sm:$0xf]
          %v6119 = vld [vmem:[#allocation11 + $0x234] sm:$0xf]
          %v6120 = vld [vmem:[#allocation11 + $0x238] sm:$0xf]
          %v6121 = vld [vmem:[#allocation11 + $0x23c] sm:$0xf]
          %v6122 = vld [vmem:[#allocation12] sm:$0x1]
          %v6124 = vperm.slane %v6122, 0
          %v6270 = vunpack.c.l.b16 %v5978
          %v6271 = vunpack.c.l.b16 %v5979
          %v6272 = vunpack.c.l.b16 %v5980
          %v6273 = vunpack.c.l.b16 %v5981
          %v6274 = vunpack.c.l.b16 %v5982
          %v6275 = vunpack.c.l.b16 %v5983
          %v6276 = vunpack.c.l.b16 %v5984
          %v6277 = vunpack.c.l.b16 %v5985
          %v6278 = vunpack.c.l.b16 %v5986
          %v6279 = vunpack.c.l.b16 %v5987
          %v6280 = vunpack.c.l.b16 %v5988
          %v6281 = vunpack.c.l.b16 %v5989
          %v6282 = vunpack.c.l.b16 %v5990
          %v6283 = vunpack.c.l.b16 %v5991
          %v6284 = vunpack.c.l.b16 %v5992
          %v6285 = vunpack.c.l.b16 %v5993
          %v6286 = vunpack.c.l.b16 %v5994
          %v6287 = vunpack.c.l.b16 %v5995
          %v6288 = vunpack.c.l.b16 %v5996
          %v6289 = vunpack.c.l.b16 %v5997
          %v6290 = vunpack.c.l.b16 %v5998
          %v6291 = vunpack.c.l.b16 %v5999
          %v6292 = vunpack.c.l.b16 %v6000
          %v6293 = vunpack.c.l.b16 %v6001
          %v6294 = vunpack.c.l.b16 %v6002
          %v6295 = vunpack.c.l.b16 %v6003
          %v6296 = vunpack.c.l.b16 %v6004
          %v6297 = vunpack.c.l.b16 %v6005
          %v6298 = vunpack.c.l.b16 %v6006
          %v6299 = vunpack.c.l.b16 %v6007
          %v6300 = vunpack.c.l.b16 %v6008
          %v6301 = vunpack.c.l.b16 %v6009
          %v6302 = vunpack.c.l.b16 %v6010
          %v6303 = vunpack.c.l.b16 %v6011
          %v6304 = vunpack.c.l.b16 %v6012
          %v6305 = vunpack.c.l.b16 %v6013
          %v6306 = vunpack.c.l.b16 %v6014
          %v6307 = vunpack.c.l.b16 %v6015
          %v6308 = vunpack.c.l.b16 %v6016
          %v6309 = vunpack.c.l.b16 %v6017
          %v6310 = vunpack.c.l.b16 %v6018
          %v6311 = vunpack.c.l.b16 %v6019
          %v6312 = vunpack.c.l.b16 %v6020
          %v6313 = vunpack.c.l.b16 %v6021
          %v6314 = vunpack.c.l.b16 %v6022
          %v6315 = vunpack.c.l.b16 %v6023
          %v6316 = vunpack.c.l.b16 %v6024
          %v6317 = vunpack.c.l.b16 %v6025
          %v6318 = vunpack.c.l.b16 %v6026
          %v6319 = vunpack.c.l.b16 %v6027
          %v6320 = vunpack.c.l.b16 %v6028
          %v6321 = vunpack.c.l.b16 %v6029
          %v6322 = vunpack.c.l.b16 %v6030
          %v6323 = vunpack.c.l.b16 %v6031
          %v6324 = vunpack.c.l.b16 %v6032
          %v6325 = vunpack.c.l.b16 %v6033
          %v6326 = vunpack.c.l.b16 %v6034
          %v6327 = vunpack.c.l.b16 %v6035
          %v6328 = vunpack.c.l.b16 %v6036
          %v6329 = vunpack.c.l.b16 %v6037
          %v6330 = vunpack.c.l.b16 %v6038
          %v6331 = vunpack.c.l.b16 %v6039
          %v6332 = vunpack.c.l.b16 %v6040
          %v6333 = vunpack.c.l.b16 %v6041
          %v6334 = vunpack.c.l.b16 %v6042
          %v6335 = vunpack.c.l.b16 %v6043
          %v6336 = vunpack.c.l.b16 %v6044
          %v6337 = vunpack.c.l.b16 %v6045
          %v6338 = vunpack.c.l.b16 %v6046
          %v6339 = vunpack.c.l.b16 %v6047
          %v6340 = vunpack.c.l.b16 %v6048
          %v6341 = vunpack.c.l.b16 %v6049
          %v6342 = vunpack.c.l.b16 %v6050
          %v6343 = vunpack.c.l.b16 %v6051
          %v6344 = vunpack.c.l.b16 %v6052
          %v6345 = vunpack.c.l.b16 %v6053
          %v6346 = vunpack.c.l.b16 %v6054
          %v6347 = vunpack.c.l.b16 %v6055
          %v6348 = vunpack.c.l.b16 %v6056
          %v6349 = vunpack.c.l.b16 %v6057
          %v6350 = vunpack.c.l.b16 %v6058
          %v6351 = vunpack.c.l.b16 %v6059
          %v6352 = vunpack.c.l.b16 %v6060
          %v6353 = vunpack.c.l.b16 %v6061
          %v6354 = vunpack.c.l.b16 %v6062
          %v6355 = vunpack.c.l.b16 %v6063
          %v6356 = vunpack.c.l.b16 %v6064
          %v6357 = vunpack.c.l.b16 %v6065
          %v6358 = vunpack.c.l.b16 %v6066
          %v6359 = vunpack.c.l.b16 %v6067
          %v6360 = vunpack.c.l.b16 %v6068
          %v6361 = vunpack.c.l.b16 %v6069
          %v6362 = vunpack.c.l.b16 %v6070
          %v6363 = vunpack.c.l.b16 %v6071
          %v6364 = vunpack.c.l.b16 %v6072
          %v6365 = vunpack.c.l.b16 %v6073
          %v6366 = vunpack.c.l.b16 %v6074
          %v6367 = vunpack.c.l.b16 %v6075
          %v6368 = vunpack.c.l.b16 %v6076
          %v6369 = vunpack.c.l.b16 %v6077
          %v6370 = vunpack.c.l.b16 %v6078
          %v6371 = vunpack.c.l.b16 %v6079
          %v6372 = vunpack.c.l.b16 %v6080
          %v6373 = vunpack.c.l.b16 %v6081
          %v6374 = vunpack.c.l.b16 %v6082
          %v6375 = vunpack.c.l.b16 %v6083
          %v6376 = vunpack.c.l.b16 %v6084
          %v6377 = vunpack.c.l.b16 %v6085
          %v6378 = vunpack.c.l.b16 %v6086
          %v6379 = vunpack.c.l.b16 %v6087
          %v6380 = vunpack.c.l.b16 %v6088
          %v6381 = vunpack.c.l.b16 %v6089
          %v6382 = vunpack.c.l.b16 %v6090
          %v6383 = vunpack.c.l.b16 %v6091
          %v6384 = vunpack.c.l.b16 %v6092
          %v6385 = vunpack.c.l.b16 %v6093
          %v6386 = vunpack.c.l.b16 %v6094
          %v6387 = vunpack.c.l.b16 %v6095
          %v6388 = vunpack.c.l.b16 %v6096
          %v6389 = vunpack.c.l.b16 %v6097
          %v6390 = vunpack.c.l.b16 %v6098
          %v6391 = vunpack.c.l.b16 %v6099
          %v6392 = vunpack.c.l.b16 %v6100
          %v6393 = vunpack.c.l.b16 %v6101
          %v6394 = vunpack.c.l.b16 %v6102
          %v6395 = vunpack.c.l.b16 %v6103
          %v6396 = vunpack.c.l.b16 %v6104
          %v6397 = vunpack.c.l.b16 %v6105
          %v6398 = vunpack.c.l.b16 %v6106
          %v6399 = vunpack.c.l.b16 %v6107
          %v6400 = vunpack.c.l.b16 %v6108
          %v6401 = vunpack.c.l.b16 %v6109
          %v6402 = vunpack.c.l.b16 %v6110
          %v6403 = vunpack.c.l.b16 %v6111
          %v6404 = vunpack.c.l.b16 %v6112
          %v6405 = vunpack.c.l.b16 %v6113
          %v6406 = vunpack.c.l.b16 %v6114
          %v6407 = vunpack.c.l.b16 %v6115
          %v6408 = vunpack.c.l.b16 %v6116
          %v6409 = vunpack.c.l.b16 %v6117
          %v6410 = vunpack.c.l.b16 %v6118
          %v6411 = vunpack.c.l.b16 %v6119
          %v6412 = vunpack.c.l.b16 %v6120
          %v6413 = vunpack.c.l.b16 %v6121
          %v6414 = vpack.c.b16 %v6271, %v6270
          %v6415 = vpack.c.b16 %v6273, %v6272
          %v6416 = vpack.c.b16 %v6275, %v6274
          %v6417 = vpack.c.b16 %v6277, %v6276
          %v6418 = vpack.c.b16 %v6279, %v6278
          %v6419 = vpack.c.b16 %v6281, %v6280
          %v6420 = vpack.c.b16 %v6283, %v6282
          %v6421 = vpack.c.b16 %v6285, %v6284
          %v6422 = vpack.c.b16 %v6287, %v6286
          %v6423 = vpack.c.b16 %v6289, %v6288
          %v6424 = vpack.c.b16 %v6291, %v6290
          %v6425 = vpack.c.b16 %v6293, %v6292
          %v6426 = vpack.c.b16 %v6295, %v6294
          %v6427 = vpack.c.b16 %v6297, %v6296
          %v6428 = vpack.c.b16 %v6299, %v6298
          %v6429 = vpack.c.b16 %v6301, %v6300
          %v6430 = vpack.c.b16 %v6303, %v6302
          %v6431 = vpack.c.b16 %v6305, %v6304
          %v6432 = vpack.c.b16 %v6307, %v6306
          %v6433 = vpack.c.b16 %v6309, %v6308
          %v6434 = vpack.c.b16 %v6311, %v6310
          %v6435 = vpack.c.b16 %v6313, %v6312
          %v6436 = vpack.c.b16 %v6315, %v6314
          %v6437 = vpack.c.b16 %v6317, %v6316
          %v6438 = vpack.c.b16 %v6319, %v6318
          %v6439 = vpack.c.b16 %v6321, %v6320
          %v6440 = vpack.c.b16 %v6323, %v6322
          %v6441 = vpack.c.b16 %v6325, %v6324
          %v6442 = vpack.c.b16 %v6327, %v6326
          %v6443 = vpack.c.b16 %v6329, %v6328
          %v6444 = vpack.c.b16 %v6331, %v6330
          %v6445 = vpack.c.b16 %v6333, %v6332
          %v6446 = vpack.c.b16 %v6335, %v6334
          %v6447 = vpack.c.b16 %v6337, %v6336
          %v6448 = vpack.c.b16 %v6339, %v6338
          %v6449 = vpack.c.b16 %v6341, %v6340
          %v6450 = vpack.c.b16 %v6343, %v6342
          %v6451 = vpack.c.b16 %v6345, %v6344
          %v6452 = vpack.c.b16 %v6347, %v6346
          %v6453 = vpack.c.b16 %v6349, %v6348
          %v6454 = vpack.c.b16 %v6351, %v6350
          %v6455 = vpack.c.b16 %v6353, %v6352
          %v6456 = vpack.c.b16 %v6355, %v6354
          %v6457 = vpack.c.b16 %v6357, %v6356
          %v6458 = vpack.c.b16 %v6359, %v6358
          %v6459 = vpack.c.b16 %v6361, %v6360
          %v6460 = vpack.c.b16 %v6363, %v6362
          %v6461 = vpack.c.b16 %v6365, %v6364
          %v6462 = vpack.c.b16 %v6367, %v6366
          %v6463 = vpack.c.b16 %v6369, %v6368
          %v6464 = vpack.c.b16 %v6371, %v6370
          %v6465 = vpack.c.b16 %v6373, %v6372
          %v6466 = vpack.c.b16 %v6375, %v6374
          %v6467 = vpack.c.b16 %v6377, %v6376
          %v6468 = vpack.c.b16 %v6379, %v6378
          %v6469 = vpack.c.b16 %v6381, %v6380
          %v6470 = vpack.c.b16 %v6383, %v6382
          %v6471 = vpack.c.b16 %v6385, %v6384
          %v6472 = vpack.c.b16 %v6387, %v6386
          %v6473 = vpack.c.b16 %v6389, %v6388
          %v6474 = vpack.c.b16 %v6391, %v6390
          %v6475 = vpack.c.b16 %v6393, %v6392
          %v6476 = vpack.c.b16 %v6395, %v6394
          %v6477 = vpack.c.b16 %v6397, %v6396
          %v6478 = vpack.c.b16 %v6399, %v6398
          %v6479 = vpack.c.b16 %v6401, %v6400
          %v6480 = vpack.c.b16 %v6403, %v6402
          %v6481 = vpack.c.b16 %v6405, %v6404
          %v6482 = vpack.c.b16 %v6407, %v6406
          %v6483 = vpack.c.b16 %v6409, %v6408
          %v6484 = vpack.c.b16 %v6411, %v6410
          %v6485 = vpack.c.b16 %v6413, %v6412
          %6558 = vmatpush.bf16.msra.mxu0 %v6421
          %6559 = vmatpush.bf16.msra.mxu0 %v6420
          %6560 = vmatpush.bf16.msra.mxu0 %v6419
          %6561 = vmatpush.bf16.msra.mxu0 %v6418
          %6562 = vmatpush.bf16.msra.mxu0 %v6417
          %6563 = vmatpush.bf16.msra.mxu0 %v6416
          %6564 = vmatpush.bf16.msra.mxu0 %v6415
          %6565 = vmatpush.bf16.msra.mxu0 %v6414
          %6566 = vmatmul.bf16.gmra.mxu0 %v5444
          %v6567 = vpop.f32.mrf.mxu0
          %v6568 = vadd.f32 %v6124, %v6567
          %v6569 = vpop.f32.mrf.mxu0
          %v6570 = vadd.f32 %v6124, %v6569
          %6571 = vmatmul.bf16.gmra.mxu0 %v5445
          %v6572 = vpop.f32.mrf.mxu0
          %v6573 = vadd.f32 %v6124, %v6572
          %v6574 = vpop.f32.mrf.mxu0
          %v6575 = vadd.f32 %v6124, %v6574
          %6576 = vmatmul.bf16.gmra.mxu0 %v5446
          %v6577 = vpop.f32.mrf.mxu0
          %v6578 = vadd.f32 %v6124, %v6577
          %v6579 = vpop.f32.mrf.mxu0
          %v6580 = vadd.f32 %v6124, %v6579
          %6581 = vmatmul.bf16.gmra.mxu0 %v5447
          %v6582 = vpop.f32.mrf.mxu0
          %v6583 = vadd.f32 %v6124, %v6582
          %v6584 = vpop.f32.mrf.mxu0
          %v6585 = vadd.f32 %v6124, %v6584
          %6586 = vmatmul.bf16.gmra.mxu0 %v5448
          %v6587 = vpop.f32.mrf.mxu0
          %v6588 = vadd.f32 %v6124, %v6587
          %v6589 = vpop.f32.mrf.mxu0
          %v6590 = vadd.f32 %v6124, %v6589
          %6591 = vmatmul.bf16.gmra.mxu0 %v5449
          %v6592 = vpop.f32.mrf.mxu0
          %v6593 = vadd.f32 %v6124, %v6592
          %v6594 = vpop.f32.mrf.mxu0
          %v6595 = vadd.f32 %v6124, %v6594
          %6596 = vmatmul.bf16.gmra.mxu0 %v5450
          %v6597 = vpop.f32.mrf.mxu0
          %v6598 = vadd.f32 %v6124, %v6597
          %v6599 = vpop.f32.mrf.mxu0
          %v6600 = vadd.f32 %v6124, %v6599
          %6601 = vmatmul.bf16.gmra.mxu0 %v5451
          %v6602 = vpop.f32.mrf.mxu0
          %v6603 = vadd.f32 %v6124, %v6602
          %v6604 = vpop.f32.mrf.mxu0
          %v6605 = vadd.f32 %v6124, %v6604
          %6606 = vmatmul.bf16.gmra.mxu0 %v5452
          %v6607 = vpop.f32.mrf.mxu0
          %v6608 = vadd.f32 %v6124, %v6607
          %v6609 = vpop.f32.mrf.mxu0
          %v6610 = vadd.f32 %v6124, %v6609
          %6611 = vmatmul.bf16.gmra.mxu0 %v5453
          %v6612 = vpop.f32.mrf.mxu0
          %v6613 = vadd.f32 %v6124, %v6612
          %v6614 = vpop.f32.mrf.mxu0
          %v6615 = vadd.f32 %v6124, %v6614
          %6616 = vmatmul.bf16.gmra.mxu0 %v5454
          %v6617 = vpop.f32.mrf.mxu0
          %v6618 = vadd.f32 %v6124, %v6617
          %v6619 = vpop.f32.mrf.mxu0
          %6620 = vdwg.mxu0
          %6621 = vmatpush.bf16.msra.mxu0 %v6429
          %6622 = vmatpush.bf16.msra.mxu0 %v6428
          %6623 = vmatpush.bf16.msra.mxu0 %v6427
          %6624 = vmatpush.bf16.msra.mxu0 %v6426
          %6625 = vmatpush.bf16.msra.mxu0 %v6425
          %6626 = vmatpush.bf16.msra.mxu0 %v6424
          %6627 = vmatpush.bf16.msra.mxu0 %v6423
          %6628 = vmatpush.bf16.msra.mxu0 %v6422
          %6629 = vmatmul.bf16.gmra.mxu0 %v5508
          %v6630 = vpop.f32.mrf.mxu0
          %v6631 = vadd.f32 %v6568, %v6630
          %v6632 = vpop.f32.mrf.mxu0
          %v6633 = vadd.f32 %v6570, %v6632
          %6634 = vmatmul.bf16.gmra.mxu0 %v5509
          %v6635 = vpop.f32.mrf.mxu0
          %v6636 = vadd.f32 %v6573, %v6635
          %v6637 = vpop.f32.mrf.mxu0
          %v6638 = vadd.f32 %v6575, %v6637
          %6639 = vmatmul.bf16.gmra.mxu0 %v5510
          %v6640 = vpop.f32.mrf.mxu0
          %v6641 = vadd.f32 %v6578, %v6640
          %v6642 = vpop.f32.mrf.mxu0
          %v6643 = vadd.f32 %v6580, %v6642
          %6644 = vmatmul.bf16.gmra.mxu0 %v5511
          %v6645 = vpop.f32.mrf.mxu0
          %v6646 = vadd.f32 %v6583, %v6645
          %v6647 = vpop.f32.mrf.mxu0
          %v6648 = vadd.f32 %v6585, %v6647
          %6649 = vmatmul.bf16.gmra.mxu0 %v5512
          %v6650 = vpop.f32.mrf.mxu0
          %v6651 = vadd.f32 %v6588, %v6650
          %v6652 = vpop.f32.mrf.mxu0
          %v6653 = vadd.f32 %v6590, %v6652
          %6654 = vmatmul.bf16.gmra.mxu0 %v5513
          %v6655 = vpop.f32.mrf.mxu0
          %v6656 = vadd.f32 %v6593, %v6655
          %v6657 = vpop.f32.mrf.mxu0
          %v6658 = vadd.f32 %v6595, %v6657
          %6659 = vmatmul.bf16.gmra.mxu0 %v5514
          %v6660 = vpop.f32.mrf.mxu0
          %v6661 = vadd.f32 %v6598, %v6660
          %v6662 = vpop.f32.mrf.mxu0
          %v6663 = vadd.f32 %v6600, %v6662
          %6664 = vmatmul.bf16.gmra.mxu0 %v5515
          %v6665 = vpop.f32.mrf.mxu0
          %v6666 = vadd.f32 %v6603, %v6665
          %v6667 = vpop.f32.mrf.mxu0
          %v6668 = vadd.f32 %v6605, %v6667
          %6669 = vmatmul.bf16.gmra.mxu0 %v5516
          %v6670 = vpop.f32.mrf.mxu0
          %v6671 = vadd.f32 %v6608, %v6670
          %v6672 = vpop.f32.mrf.mxu0
          %v6673 = vadd.f32 %v6610, %v6672
          %6674 = vmatmul.bf16.gmra.mxu0 %v5517
          %v6675 = vpop.f32.mrf.mxu0
          %v6676 = vadd.f32 %v6613, %v6675
          %v6677 = vpop.f32.mrf.mxu0
          %v6678 = vadd.f32 %v6615, %v6677
          %6679 = vmatmul.bf16.gmra.mxu0 %v5518
          %v6680 = vpop.f32.mrf.mxu0
          %v6681 = vadd.f32 %v6618, %v6680
          %v6682 = vpop.f32.mrf.mxu0
          %6683 = vdwg.mxu0
          %6684 = vmatpush.bf16.msra.mxu0 %v6437
          %6685 = vmatpush.bf16.msra.mxu0 %v6436
          %6686 = vmatpush.bf16.msra.mxu0 %v6435
          %6687 = vmatpush.bf16.msra.mxu0 %v6434
          %6688 = vmatpush.bf16.msra.mxu0 %v6433
          %6689 = vmatpush.bf16.msra.mxu0 %v6432
          %6690 = vmatpush.bf16.msra.mxu0 %v6431
          %6691 = vmatpush.bf16.msra.mxu0 %v6430
          %6692 = vmatmul.bf16.gmra.mxu0 %v5572
          %v6693 = vpop.f32.mrf.mxu0
          %v6694 = vadd.f32 %v6631, %v6693
          %v6695 = vpop.f32.mrf.mxu0
          %v6696 = vadd.f32 %v6633, %v6695
          %6697 = vmatmul.bf16.gmra.mxu0 %v5573
          %v6698 = vpop.f32.mrf.mxu0
          %v6699 = vadd.f32 %v6636, %v6698
          %v6700 = vpop.f32.mrf.mxu0
          %v6701 = vadd.f32 %v6638, %v6700
          %6702 = vmatmul.bf16.gmra.mxu0 %v5574
          %v6703 = vpop.f32.mrf.mxu0
          %v6704 = vadd.f32 %v6641, %v6703
          %v6705 = vpop.f32.mrf.mxu0
          %v6706 = vadd.f32 %v6643, %v6705
          %6707 = vmatmul.bf16.gmra.mxu0 %v5575
          %v6708 = vpop.f32.mrf.mxu0
          %v6709 = vadd.f32 %v6646, %v6708
          %v6710 = vpop.f32.mrf.mxu0
          %v6711 = vadd.f32 %v6648, %v6710
          %6712 = vmatmul.bf16.gmra.mxu0 %v5576
          %v6713 = vpop.f32.mrf.mxu0
          %v6714 = vadd.f32 %v6651, %v6713
          %v6715 = vpop.f32.mrf.mxu0
          %v6716 = vadd.f32 %v6653, %v6715
          %6717 = vmatmul.bf16.gmra.mxu0 %v5577
          %v6718 = vpop.f32.mrf.mxu0
          %v6719 = vadd.f32 %v6656, %v6718
          %v6720 = vpop.f32.mrf.mxu0
          %v6721 = vadd.f32 %v6658, %v6720
          %6722 = vmatmul.bf16.gmra.mxu0 %v5578
          %v6723 = vpop.f32.mrf.mxu0
          %v6724 = vadd.f32 %v6661, %v6723
          %v6725 = vpop.f32.mrf.mxu0
          %v6726 = vadd.f32 %v6663, %v6725
          %6727 = vmatmul.bf16.gmra.mxu0 %v5579
          %v6728 = vpop.f32.mrf.mxu0
          %v6729 = vadd.f32 %v6666, %v6728
          %v6730 = vpop.f32.mrf.mxu0
          %v6731 = vadd.f32 %v6668, %v6730
          %6732 = vmatmul.bf16.gmra.mxu0 %v5580
          %v6733 = vpop.f32.mrf.mxu0
          %v6734 = vadd.f32 %v6671, %v6733
          %v6735 = vpop.f32.mrf.mxu0
          %v6736 = vadd.f32 %v6673, %v6735
          %6737 = vmatmul.bf16.gmra.mxu0 %v5581
          %v6738 = vpop.f32.mrf.mxu0
          %v6739 = vadd.f32 %v6676, %v6738
          %v6740 = vpop.f32.mrf.mxu0
          %v6741 = vadd.f32 %v6678, %v6740
          %6742 = vmatmul.bf16.gmra.mxu0 %v5582
          %v6743 = vpop.f32.mrf.mxu0
          %v6744 = vadd.f32 %v6681, %v6743
          %v6745 = vpop.f32.mrf.mxu0
          %6746 = vdwg.mxu0
          %6747 = vmatpush.bf16.msra.mxu0 %v6445
          %6748 = vmatpush.bf16.msra.mxu0 %v6444
          %6749 = vmatpush.bf16.msra.mxu0 %v6443
          %6750 = vmatpush.bf16.msra.mxu0 %v6442
          %6751 = vmatpush.bf16.msra.mxu0 %v6441
          %6752 = vmatpush.bf16.msra.mxu0 %v6440
          %6753 = vmatpush.bf16.msra.mxu0 %v6439
          %6754 = vmatpush.bf16.msra.mxu0 %v6438
          %6755 = vmatmul.bf16.gmra.mxu0 %v5636
          %v6756 = vpop.f32.mrf.mxu0
          %v6757 = vadd.f32 %v6694, %v6756
          %v6758 = vpop.f32.mrf.mxu0
          %v6759 = vadd.f32 %v6696, %v6758
          %6760 = vmatmul.bf16.gmra.mxu0 %v5637
          %v6761 = vpop.f32.mrf.mxu0
          %v6762 = vadd.f32 %v6699, %v6761
          %v6763 = vpop.f32.mrf.mxu0
          %v6764 = vadd.f32 %v6701, %v6763
          %6765 = vmatmul.bf16.gmra.mxu0 %v5638
          %v6766 = vpop.f32.mrf.mxu0
          %v6767 = vadd.f32 %v6704, %v6766
          %v6768 = vpop.f32.mrf.mxu0
          %v6769 = vadd.f32 %v6706, %v6768
          %6770 = vmatmul.bf16.gmra.mxu0 %v5639
          %v6771 = vpop.f32.mrf.mxu0
          %v6772 = vadd.f32 %v6709, %v6771
          %v6773 = vpop.f32.mrf.mxu0
          %v6774 = vadd.f32 %v6711, %v6773
          %6775 = vmatmul.bf16.gmra.mxu0 %v5640
          %v6776 = vpop.f32.mrf.mxu0
          %v6777 = vadd.f32 %v6714, %v6776
          %v6778 = vpop.f32.mrf.mxu0
          %v6779 = vadd.f32 %v6716, %v6778
          %6780 = vmatmul.bf16.gmra.mxu0 %v5641
          %v6781 = vpop.f32.mrf.mxu0
          %v6782 = vadd.f32 %v6719, %v6781
          %v6783 = vpop.f32.mrf.mxu0
          %v6784 = vadd.f32 %v6721, %v6783
          %6785 = vmatmul.bf16.gmra.mxu0 %v5642
          %v6786 = vpop.f32.mrf.mxu0
          %v6787 = vadd.f32 %v6724, %v6786
          %v6788 = vpop.f32.mrf.mxu0
          %v6789 = vadd.f32 %v6726, %v6788
          %6790 = vmatmul.bf16.gmra.mxu0 %v5643
          %v6791 = vpop.f32.mrf.mxu0
          %v6792 = vadd.f32 %v6729, %v6791
          %v6793 = vpop.f32.mrf.mxu0
          %v6794 = vadd.f32 %v6731, %v6793
          %6795 = vmatmul.bf16.gmra.mxu0 %v5644
          %v6796 = vpop.f32.mrf.mxu0
          %v6797 = vadd.f32 %v6734, %v6796
          %v6798 = vpop.f32.mrf.mxu0
          %v6799 = vadd.f32 %v6736, %v6798
          %6800 = vmatmul.bf16.gmra.mxu0 %v5645
          %v6801 = vpop.f32.mrf.mxu0
          %v6802 = vadd.f32 %v6739, %v6801
          %v6803 = vpop.f32.mrf.mxu0
          %v6804 = vadd.f32 %v6741, %v6803
          %6805 = vmatmul.bf16.gmra.mxu0 %v5646
          %v6806 = vpop.f32.mrf.mxu0
          %v6807 = vadd.f32 %v6744, %v6806
          %v6808 = vpop.f32.mrf.mxu0
          %6809 = vdwg.mxu0
          %6810 = vmatpush.bf16.msra.mxu0 %v6453
          %6811 = vmatpush.bf16.msra.mxu0 %v6452
          %6812 = vmatpush.bf16.msra.mxu0 %v6451
          %6813 = vmatpush.bf16.msra.mxu0 %v6450
          %6814 = vmatpush.bf16.msra.mxu0 %v6449
          %6815 = vmatpush.bf16.msra.mxu0 %v6448
          %6816 = vmatpush.bf16.msra.mxu0 %v6447
          %6817 = vmatpush.bf16.msra.mxu0 %v6446
          %6818 = vmatmul.bf16.gmra.mxu0 %v5700
          %v6819 = vpop.f32.mrf.mxu0
          %v6820 = vadd.f32 %v6757, %v6819
          %v6821 = vpop.f32.mrf.mxu0
          %v6822 = vadd.f32 %v6759, %v6821
          %6823 = vmatmul.bf16.gmra.mxu0 %v5701
          %v6824 = vpop.f32.mrf.mxu0
          %v6825 = vadd.f32 %v6762, %v6824
          %v6826 = vpop.f32.mrf.mxu0
          %v6827 = vadd.f32 %v6764, %v6826
          %6828 = vmatmul.bf16.gmra.mxu0 %v5702
          %v6829 = vpop.f32.mrf.mxu0
          %v6830 = vadd.f32 %v6767, %v6829
          %v6831 = vpop.f32.mrf.mxu0
          %v6832 = vadd.f32 %v6769, %v6831
          %6833 = vmatmul.bf16.gmra.mxu0 %v5703
          %v6834 = vpop.f32.mrf.mxu0
          %v6835 = vadd.f32 %v6772, %v6834
          %v6836 = vpop.f32.mrf.mxu0
          %v6837 = vadd.f32 %v6774, %v6836
          %6838 = vmatmul.bf16.gmra.mxu0 %v5704
          %v6839 = vpop.f32.mrf.mxu0
          %v6840 = vadd.f32 %v6777, %v6839
          %v6841 = vpop.f32.mrf.mxu0
          %v6842 = vadd.f32 %v6779, %v6841
          %6843 = vmatmul.bf16.gmra.mxu0 %v5705
          %v6844 = vpop.f32.mrf.mxu0
          %v6845 = vadd.f32 %v6782, %v6844
          %v6846 = vpop.f32.mrf.mxu0
          %v6847 = vadd.f32 %v6784, %v6846
          %6848 = vmatmul.bf16.gmra.mxu0 %v5706
          %v6849 = vpop.f32.mrf.mxu0
          %v6850 = vadd.f32 %v6787, %v6849
          %v6851 = vpop.f32.mrf.mxu0
          %v6852 = vadd.f32 %v6789, %v6851
          %6853 = vmatmul.bf16.gmra.mxu0 %v5707
          %v6854 = vpop.f32.mrf.mxu0
          %v6855 = vadd.f32 %v6792, %v6854
          %v6856 = vpop.f32.mrf.mxu0
          %v6857 = vadd.f32 %v6794, %v6856
          %6858 = vmatmul.bf16.gmra.mxu0 %v5708
          %v6859 = vpop.f32.mrf.mxu0
          %v6860 = vadd.f32 %v6797, %v6859
          %v6861 = vpop.f32.mrf.mxu0
          %v6862 = vadd.f32 %v6799, %v6861
          %6863 = vmatmul.bf16.gmra.mxu0 %v5709
          %v6864 = vpop.f32.mrf.mxu0
          %v6865 = vadd.f32 %v6802, %v6864
          %v6866 = vpop.f32.mrf.mxu0
          %v6867 = vadd.f32 %v6804, %v6866
          %6868 = vmatmul.bf16.gmra.mxu0 %v5710
          %v6869 = vpop.f32.mrf.mxu0
          %v6870 = vadd.f32 %v6807, %v6869
          %v6871 = vpop.f32.mrf.mxu0
          %6872 = vdwg.mxu0
          %6873 = vmatpush.bf16.msra.mxu0 %v6461
          %6874 = vmatpush.bf16.msra.mxu0 %v6460
          %6875 = vmatpush.bf16.msra.mxu0 %v6459
          %6876 = vmatpush.bf16.msra.mxu0 %v6458
          %6877 = vmatpush.bf16.msra.mxu0 %v6457
          %6878 = vmatpush.bf16.msra.mxu0 %v6456
          %6879 = vmatpush.bf16.msra.mxu0 %v6455
          %6880 = vmatpush.bf16.msra.mxu0 %v6454
          %6881 = vmatmul.bf16.gmra.mxu0 %v5764
          %v6882 = vpop.f32.mrf.mxu0
          %v6883 = vadd.f32 %v6820, %v6882
          %v6884 = vpop.f32.mrf.mxu0
          %v6885 = vadd.f32 %v6822, %v6884
          %6886 = vmatmul.bf16.gmra.mxu0 %v5765
          %v6887 = vpop.f32.mrf.mxu0
          %v6888 = vadd.f32 %v6825, %v6887
          %v6889 = vpop.f32.mrf.mxu0
          %v6890 = vadd.f32 %v6827, %v6889
          %6891 = vmatmul.bf16.gmra.mxu0 %v5766
          %v6892 = vpop.f32.mrf.mxu0
          %v6893 = vadd.f32 %v6830, %v6892
          %v6894 = vpop.f32.mrf.mxu0
          %v6895 = vadd.f32 %v6832, %v6894
          %6896 = vmatmul.bf16.gmra.mxu0 %v5767
          %v6897 = vpop.f32.mrf.mxu0
          %v6898 = vadd.f32 %v6835, %v6897
          %v6899 = vpop.f32.mrf.mxu0
          %v6900 = vadd.f32 %v6837, %v6899
          %6901 = vmatmul.bf16.gmra.mxu0 %v5768
          %v6902 = vpop.f32.mrf.mxu0
          %v6903 = vadd.f32 %v6840, %v6902
          %v6904 = vpop.f32.mrf.mxu0
          %v6905 = vadd.f32 %v6842, %v6904
          %6906 = vmatmul.bf16.gmra.mxu0 %v5769
          %v6907 = vpop.f32.mrf.mxu0
          %v6908 = vadd.f32 %v6845, %v6907
          %v6909 = vpop.f32.mrf.mxu0
          %v6910 = vadd.f32 %v6847, %v6909
          %6911 = vmatmul.bf16.gmra.mxu0 %v5770
          %v6912 = vpop.f32.mrf.mxu0
          %v6913 = vadd.f32 %v6850, %v6912
          %v6914 = vpop.f32.mrf.mxu0
          %v6915 = vadd.f32 %v6852, %v6914
          %6916 = vmatmul.bf16.gmra.mxu0 %v5771
          %v6917 = vpop.f32.mrf.mxu0
          %v6918 = vadd.f32 %v6855, %v6917
          %v6919 = vpop.f32.mrf.mxu0
          %v6920 = vadd.f32 %v6857, %v6919
          %6921 = vmatmul.bf16.gmra.mxu0 %v5772
          %v6922 = vpop.f32.mrf.mxu0
          %v6923 = vadd.f32 %v6860, %v6922
          %v6924 = vpop.f32.mrf.mxu0
          %v6925 = vadd.f32 %v6862, %v6924
          %6926 = vmatmul.bf16.gmra.mxu0 %v5773
          %v6927 = vpop.f32.mrf.mxu0
          %v6928 = vadd.f32 %v6865, %v6927
          %v6929 = vpop.f32.mrf.mxu0
          %v6930 = vadd.f32 %v6867, %v6929
          %6931 = vmatmul.bf16.gmra.mxu0 %v5774
          %v6932 = vpop.f32.mrf.mxu0
          %v6933 = vadd.f32 %v6870, %v6932
          %v6934 = vpop.f32.mrf.mxu0
          %6935 = vdwg.mxu0
          %6936 = vmatpush.bf16.msra.mxu0 %v6469
          %6937 = vmatpush.bf16.msra.mxu0 %v6468
          %6938 = vmatpush.bf16.msra.mxu0 %v6467
          %6939 = vmatpush.bf16.msra.mxu0 %v6466
          %6940 = vmatpush.bf16.msra.mxu0 %v6465
          %6941 = vmatpush.bf16.msra.mxu0 %v6464
          %6942 = vmatpush.bf16.msra.mxu0 %v6463
          %6943 = vmatpush.bf16.msra.mxu0 %v6462
          %6944 = vmatmul.bf16.gmra.mxu0 %v5828
          %v6945 = vpop.f32.mrf.mxu0
          %v6946 = vadd.f32 %v6883, %v6945
          %v6947 = vpop.f32.mrf.mxu0
          %v6948 = vadd.f32 %v6885, %v6947
          %6949 = vmatmul.bf16.gmra.mxu0 %v5829
          %v6950 = vpop.f32.mrf.mxu0
          %v6951 = vadd.f32 %v6888, %v6950
          %v6952 = vpop.f32.mrf.mxu0
          %v6953 = vadd.f32 %v6890, %v6952
          %6954 = vmatmul.bf16.gmra.mxu0 %v5830
          %v6955 = vpop.f32.mrf.mxu0
          %v6956 = vadd.f32 %v6893, %v6955
          %v6957 = vpop.f32.mrf.mxu0
          %v6958 = vadd.f32 %v6895, %v6957
          %6959 = vmatmul.bf16.gmra.mxu0 %v5831
          %v6960 = vpop.f32.mrf.mxu0
          %v6961 = vadd.f32 %v6898, %v6960
          %v6962 = vpop.f32.mrf.mxu0
          %v6963 = vadd.f32 %v6900, %v6962
          %6964 = vmatmul.bf16.gmra.mxu0 %v5832
          %v6965 = vpop.f32.mrf.mxu0
          %v6966 = vadd.f32 %v6903, %v6965
          %v6967 = vpop.f32.mrf.mxu0
          %v6968 = vadd.f32 %v6905, %v6967
          %6969 = vmatmul.bf16.gmra.mxu0 %v5833
          %v6970 = vpop.f32.mrf.mxu0
          %v6971 = vadd.f32 %v6908, %v6970
          %v6972 = vpop.f32.mrf.mxu0
          %v6973 = vadd.f32 %v6910, %v6972
          %6974 = vmatmul.bf16.gmra.mxu0 %v5834
          %v6975 = vpop.f32.mrf.mxu0
          %v6976 = vadd.f32 %v6913, %v6975
          %v6977 = vpop.f32.mrf.mxu0
          %v6978 = vadd.f32 %v6915, %v6977
          %6979 = vmatmul.bf16.gmra.mxu0 %v5835
          %v6980 = vpop.f32.mrf.mxu0
          %v6981 = vadd.f32 %v6918, %v6980
          %v6982 = vpop.f32.mrf.mxu0
          %v6983 = vadd.f32 %v6920, %v6982
          %6984 = vmatmul.bf16.gmra.mxu0 %v5836
          %v6985 = vpop.f32.mrf.mxu0
          %v6986 = vadd.f32 %v6923, %v6985
          %v6987 = vpop.f32.mrf.mxu0
          %v6988 = vadd.f32 %v6925, %v6987
          %6989 = vmatmul.bf16.gmra.mxu0 %v5837
          %v6990 = vpop.f32.mrf.mxu0
          %v6991 = vadd.f32 %v6928, %v6990
          %v6992 = vpop.f32.mrf.mxu0
          %v6993 = vadd.f32 %v6930, %v6992
          %6994 = vmatmul.bf16.gmra.mxu0 %v5838
          %v6995 = vpop.f32.mrf.mxu0
          %v6996 = vadd.f32 %v6933, %v6995
          %v6997 = vpop.f32.mrf.mxu0
          %6998 = vdwg.mxu0
          %6999 = vmatpush.bf16.msra.mxu0 %v6477
          %7000 = vmatpush.bf16.msra.mxu0 %v6476
          %7001 = vmatpush.bf16.msra.mxu0 %v6475
          %7002 = vmatpush.bf16.msra.mxu0 %v6474
          %7003 = vmatpush.bf16.msra.mxu0 %v6473
          %7004 = vmatpush.bf16.msra.mxu0 %v6472
          %7005 = vmatpush.bf16.msra.mxu0 %v6471
          %7006 = vmatpush.bf16.msra.mxu0 %v6470
          %7007 = vmatmul.bf16.gmra.mxu0 %v5892
          %v7008 = vpop.f32.mrf.mxu0
          %v7009 = vadd.f32 %v6946, %v7008
          %v7010 = vpop.f32.mrf.mxu0
          %v7011 = vadd.f32 %v6948, %v7010
          %7012 = vmatmul.bf16.gmra.mxu0 %v5893
          %v7013 = vpop.f32.mrf.mxu0
          %v7014 = vadd.f32 %v6951, %v7013
          %v7015 = vpop.f32.mrf.mxu0
          %v7016 = vadd.f32 %v6953, %v7015
          %7017 = vmatmul.bf16.gmra.mxu0 %v5894
          %v7018 = vpop.f32.mrf.mxu0
          %v7019 = vadd.f32 %v6956, %v7018
          %v7020 = vpop.f32.mrf.mxu0
          %v7021 = vadd.f32 %v6958, %v7020
          %7022 = vmatmul.bf16.gmra.mxu0 %v5895
          %v7023 = vpop.f32.mrf.mxu0
          %v7024 = vadd.f32 %v6961, %v7023
          %v7025 = vpop.f32.mrf.mxu0
          %v7026 = vadd.f32 %v6963, %v7025
          %7027 = vmatmul.bf16.gmra.mxu0 %v5896
          %v7028 = vpop.f32.mrf.mxu0
          %v7029 = vadd.f32 %v6966, %v7028
          %v7030 = vpop.f32.mrf.mxu0
          %v7031 = vadd.f32 %v6968, %v7030
          %7032 = vmatmul.bf16.gmra.mxu0 %v5897
          %v7033 = vpop.f32.mrf.mxu0
          %v7034 = vadd.f32 %v6971, %v7033
          %v7035 = vpop.f32.mrf.mxu0
          %v7036 = vadd.f32 %v6973, %v7035
          %7037 = vmatmul.bf16.gmra.mxu0 %v5898
          %v7038 = vpop.f32.mrf.mxu0
          %v7039 = vadd.f32 %v6976, %v7038
          %v7040 = vpop.f32.mrf.mxu0
          %v7041 = vadd.f32 %v6978, %v7040
          %7042 = vmatmul.bf16.gmra.mxu0 %v5899
          %v7043 = vpop.f32.mrf.mxu0
          %v7044 = vadd.f32 %v6981, %v7043
          %v7045 = vpop.f32.mrf.mxu0
          %v7046 = vadd.f32 %v6983, %v7045
          %7047 = vmatmul.bf16.gmra.mxu0 %v5900
          %v7048 = vpop.f32.mrf.mxu0
          %v7049 = vadd.f32 %v6986, %v7048
          %v7050 = vpop.f32.mrf.mxu0
          %v7051 = vadd.f32 %v6988, %v7050
          %7052 = vmatmul.bf16.gmra.mxu0 %v5901
          %v7053 = vpop.f32.mrf.mxu0
          %v7054 = vadd.f32 %v6991, %v7053
          %v7055 = vpop.f32.mrf.mxu0
          %v7056 = vadd.f32 %v6993, %v7055
          %7057 = vmatmul.bf16.gmra.mxu0 %v5902
          %v7058 = vpop.f32.mrf.mxu0
          %v7059 = vadd.f32 %v6996, %v7058
          %v7060 = vpop.f32.mrf.mxu0
          %7061 = vdwg.mxu0
          %7062 = vmatpush.bf16.msra.mxu0 %v6485
          %7063 = vmatpush.bf16.msra.mxu0 %v6484
          %7064 = vmatpush.bf16.msra.mxu0 %v6483
          %7065 = vmatpush.bf16.msra.mxu0 %v6482
          %7066 = vmatpush.bf16.msra.mxu0 %v6481
          %7067 = vmatpush.bf16.msra.mxu0 %v6480
          %7068 = vmatpush.bf16.msra.mxu0 %v6479
          %7069 = vmatpush.bf16.msra.mxu0 %v6478
          %7070 = vmatmul.bf16.gmra.mxu0 %v5956
          %v7071 = vpop.f32.mrf.mxu0
          %v7072 = vadd.f32 %v7009, %v7071
          %v7073 = vpop.f32.mrf.mxu0
          %v7074 = vadd.f32 %v7011, %v7073
          %7075 = vmatmul.bf16.gmra.mxu0 %v5957
          %v7076 = vpop.f32.mrf.mxu0
          %v7077 = vadd.f32 %v7014, %v7076
          %v7078 = vpop.f32.mrf.mxu0
          %v7079 = vadd.f32 %v7016, %v7078
          %7080 = vmatmul.bf16.gmra.mxu0 %v5958
          %v7081 = vpop.f32.mrf.mxu0
          %v7082 = vadd.f32 %v7019, %v7081
          %v7083 = vpop.f32.mrf.mxu0
          %v7084 = vadd.f32 %v7021, %v7083
          %7085 = vmatmul.bf16.gmra.mxu0 %v5959
          %v7086 = vpop.f32.mrf.mxu0
          %v7087 = vadd.f32 %v7024, %v7086
          %v7088 = vpop.f32.mrf.mxu0
          %v7089 = vadd.f32 %v7026, %v7088
          %7090 = vmatmul.bf16.gmra.mxu0 %v5960
          %v7091 = vpop.f32.mrf.mxu0
          %v7092 = vadd.f32 %v7029, %v7091
          %v7093 = vpop.f32.mrf.mxu0
          %v7094 = vadd.f32 %v7031, %v7093
          %7095 = vmatmul.bf16.gmra.mxu0 %v5961
          %v7096 = vpop.f32.mrf.mxu0
          %v7097 = vadd.f32 %v7034, %v7096
          %v7098 = vpop.f32.mrf.mxu0
          %v7099 = vadd.f32 %v7036, %v7098
          %7100 = vmatmul.bf16.gmra.mxu0 %v5962
          %v7101 = vpop.f32.mrf.mxu0
          %v7102 = vadd.f32 %v7039, %v7101
          %v7103 = vpop.f32.mrf.mxu0
          %v7104 = vadd.f32 %v7041, %v7103
          %7105 = vmatmul.bf16.gmra.mxu0 %v5963
          %v7106 = vpop.f32.mrf.mxu0
          %v7107 = vadd.f32 %v7044, %v7106
          %v7108 = vpop.f32.mrf.mxu0
          %v7109 = vadd.f32 %v7046, %v7108
          %7110 = vmatmul.bf16.gmra.mxu0 %v5964
          %v7111 = vpop.f32.mrf.mxu0
          %v7112 = vadd.f32 %v7049, %v7111
          %v7113 = vpop.f32.mrf.mxu0
          %v7114 = vadd.f32 %v7051, %v7113
          %7115 = vmatmul.bf16.gmra.mxu0 %v5965
          %v7116 = vpop.f32.mrf.mxu0
          %v7117 = vadd.f32 %v7054, %v7116
          %v7118 = vpop.f32.mrf.mxu0
          %v7119 = vadd.f32 %v7056, %v7118
          %7120 = vmatmul.bf16.gmra.mxu0 %v5966
          %v7121 = vpop.f32.mrf.mxu0
          %v7122 = vadd.f32 %v7059, %v7121
          %v7123 = vpop.f32.mrf.mxu0
          %7124 = vdwg.mxu0
          %v7125 = vmax.f32 %v7072, 0.0
          %v7126 = vmax.f32 %v7074, 0.0
          %v7127 = vmax.f32 %v7077, 0.0
          %v7128 = vmax.f32 %v7079, 0.0
          %v7129 = vmax.f32 %v7082, 0.0
          %v7130 = vmax.f32 %v7084, 0.0
          %v7131 = vmax.f32 %v7087, 0.0
          %v7132 = vmax.f32 %v7089, 0.0
          %v7133 = vmax.f32 %v7092, 0.0
          %v7134 = vmax.f32 %v7094, 0.0
          %v7135 = vmax.f32 %v7097, 0.0
          %v7136 = vmax.f32 %v7099, 0.0
          %v7137 = vmax.f32 %v7102, 0.0
          %v7138 = vmax.f32 %v7104, 0.0
          %v7139 = vmax.f32 %v7107, 0.0
          %v7140 = vmax.f32 %v7109, 0.0
          %v7141 = vmax.f32 %v7112, 0.0
          %v7142 = vmax.f32 %v7114, 0.0
          %v7143 = vmax.f32 %v7117, 0.0
          %v7144 = vmax.f32 %v7119, 0.0
          %v7145 = vmax.f32 %v7122, 0.0
          %7146 = vst [vmem:[#allocation2] sm:$0xff] %v7125
          %7147 = vst [vmem:[#allocation2 + $0x8] sm:$0xff] %v7126
          %7148 = vst [vmem:[#allocation2 + $0x10] sm:$0xff] %v7127
          %7149 = vst [vmem:[#allocation2 + $0x18] sm:$0xff] %v7128
          %7150 = vst [vmem:[#allocation2 + $0x20] sm:$0xff] %v7129
          %7151 = vst [vmem:[#allocation2 + $0x28] sm:$0xff] %v7130
          %7152 = vst [vmem:[#allocation2 + $0x30] sm:$0xff] %v7131
          %7153 = vst [vmem:[#allocation2 + $0x38] sm:$0xff] %v7132
          %7154 = vst [vmem:[#allocation2 + $0x40] sm:$0xff] %v7133
          %7155 = vst [vmem:[#allocation2 + $0x48] sm:$0xff] %v7134
          %7156 = vst [vmem:[#allocation2 + $0x50] sm:$0xff] %v7135
          %7157 = vst [vmem:[#allocation2 + $0x58] sm:$0xff] %v7136
          %7158 = vst [vmem:[#allocation2 + $0x60] sm:$0xff] %v7137
          %7159 = vst [vmem:[#allocation2 + $0x68] sm:$0xff] %v7138
          %7160 = vst [vmem:[#allocation2 + $0x70] sm:$0xff] %v7139
          %7161 = vst [vmem:[#allocation2 + $0x78] sm:$0xff] %v7140
          %7162 = vst [vmem:[#allocation2 + $0x80] sm:$0xff] %v7141
          %7163 = vst [vmem:[#allocation2 + $0x88] sm:$0xff] %v7142
          %7164 = vst [vmem:[#allocation2 + $0x90] sm:$0xff] %v7143
          %7165 = vst [vmem:[#allocation2 + $0x98] sm:$0xff] %v7144
          %7166 = vst [vmem:[#allocation2 + $0xa0] sm:$0xff] %v7145
          %7167 = vst [vmem:[#allocation3] sm:$0xff] 0.0
          %7168 = vst [vmem:[#allocation3 + $0x8] sm:$0xff] 0.0
          %7169 = vst [vmem:[#allocation3 + $0x10] sm:$0xff] 0.0
          %7170 = vst [vmem:[#allocation3 + $0x18] sm:$0xff] 0.0
          %7171 = vst [vmem:[#allocation3 + $0x20] sm:$0xff] 0.0
          %7172 = vst [vmem:[#allocation3 + $0x28] sm:$0xff] 0.0
          %7173 = vst [vmem:[#allocation3 + $0x30] sm:$0xff] 0.0
          %7174 = vst [vmem:[#allocation3 + $0x38] sm:$0xff] 0.0
          %7175 = vst [vmem:[#allocation3 + $0x40] sm:$0xff] 0.0
          %7176 = vst [vmem:[#allocation3 + $0x48] sm:$0xff] 0.0
          %7177 = vst [vmem:[#allocation3 + $0x50] sm:$0xff] 0.0
          %7178 = vst [vmem:[#allocation3 + $0x58] sm:$0xff] 0.0
          %7179 = vst [vmem:[#allocation3 + $0x60] sm:$0xff] 0.0
          %7180 = vst [vmem:[#allocation3 + $0x68] sm:$0xff] 0.0
          %7181 = vst [vmem:[#allocation3 + $0x70] sm:$0xff] 0.0
          %7182 = vst [vmem:[#allocation3 + $0x78] sm:$0xff] 0.0
          %7183 = vst [vmem:[#allocation3 + $0x80] sm:$0xff] 0.0
          %7184 = vst [vmem:[#allocation3 + $0x88] sm:$0xff] 0.0
          %7185 = vst [vmem:[#allocation3 + $0x90] sm:$0xff] 0.0
          %7186 = vst [vmem:[#allocation3 + $0x98] sm:$0xff] 0.0
          %7187 = vst [vmem:[#allocation3 + $0xa0] sm:$0xff] 0.0
          %7188 = vst [vmem:[#allocation3 + $0xa8] sm:$0xff] 0.0
          %7189 = vst [vmem:[#allocation3 + $0xb0] sm:$0xff] 0.0
          %7190 = vst [vmem:[#allocation3 + $0xb8] sm:$0xff] 0.0
          %7191 = vst [vmem:[#allocation3 + $0xc0] sm:$0xff] 0.0
          %7192 = vst [vmem:[#allocation3 + $0xc8] sm:$0xff] 0.0
          %7193 = vst [vmem:[#allocation3 + $0xd0] sm:$0xff] 0.0
          %7194 = vst [vmem:[#allocation3 + $0xd8] sm:$0xff] 0.0
          %7195 = vst [vmem:[#allocation3 + $0xe0] sm:$0xff] 0.0
          %7196 = vst [vmem:[#allocation3 + $0xe8] sm:$0xff] 0.0
          %7197 = vst [vmem:[#allocation3 + $0xf0] sm:$0xff] 0.0
          %7198 = vst [vmem:[#allocation3 + $0xf8] sm:$0xff] 0.0
          %7199 = vst [vmem:[#allocation3 + $0x100] sm:$0xff] 0.0
          %7200 = vst [vmem:[#allocation3 + $0x108] sm:$0xff] 0.0
          %7201 = vst [vmem:[#allocation3 + $0x110] sm:$0xff] 0.0
          %7202 = vst [vmem:[#allocation3 + $0x118] sm:$0xff] 0.0
          %7203 = vst [vmem:[#allocation3 + $0x120] sm:$0xff] 0.0
          %7204 = vst [vmem:[#allocation3 + $0x128] sm:$0xff] 0.0
          %7205 = vst [vmem:[#allocation3 + $0x130] sm:$0xff] 0.0
          %7206 = vst [vmem:[#allocation3 + $0x138] sm:$0xff] 0.0
          %7207 = vst [vmem:[#allocation3 + $0x140] sm:$0xff] 0.0
          %7208 = vst [vmem:[#allocation3 + $0x148] sm:$0xff] 0.0
          %7209 = vst [vmem:[#allocation3 + $0x150] sm:$0xff] 0.0
          %7210 = vst [vmem:[#allocation3 + $0x158] sm:$0xff] 0.0
          %7211 = vst [vmem:[#allocation3 + $0x160] sm:$0xff] 0.0
          %7212 = vst [vmem:[#allocation3 + $0x168] sm:$0xff] 0.0
          %7213 = vst [vmem:[#allocation3 + $0x170] sm:$0xff] 0.0
          %7214 = vst [vmem:[#allocation3 + $0x178] sm:$0xff] 0.0
          %7215 = vst [vmem:[#allocation3 + $0x180] sm:$0xff] 0.0
          %7216 = vst [vmem:[#allocation3 + $0x188] sm:$0xff] 0.0
          %7217 = vst [vmem:[#allocation3 + $0x190] sm:$0xff] 0.0
          %7218 = vst [vmem:[#allocation3 + $0x198] sm:$0xff] 0.0
          %7219 = vst [vmem:[#allocation3 + $0x1a0] sm:$0xff] 0.0
          %7220 = vst [vmem:[#allocation3 + $0x1a8] sm:$0xff] 0.0
          %7221 = vst [vmem:[#allocation3 + $0x1b0] sm:$0xff] 0.0
          %7222 = vst [vmem:[#allocation3 + $0x1b8] sm:$0xff] 0.0
          %7223 = vst [vmem:[#allocation3 + $0x1c0] sm:$0xff] 0.0
          %7224 = vst [vmem:[#allocation3 + $0x1c8] sm:$0xff] 0.0
          %7225 = vst [vmem:[#allocation3 + $0x1d0] sm:$0xff] 0.0
          %7226 = vst [vmem:[#allocation3 + $0x1d8] sm:$0xff] 0.0
          %7227 = vst [vmem:[#allocation3 + $0x1e0] sm:$0xff] 0.0
          %7228 = vst [vmem:[#allocation3 + $0x1e8] sm:$0xff] 0.0
          %7229 = vst [vmem:[#allocation3 + $0x1f0] sm:$0xff] 0.0
          %7230 = vst [vmem:[#allocation3 + $0x1f8] sm:$0xff] 0.0
          %7231 = vst [vmem:[#allocation3 + $0x200] sm:$0xff] 0.0
          %7232 = vst [vmem:[#allocation3 + $0x208] sm:$0xff] 0.0
          %7233 = vst [vmem:[#allocation3 + $0x210] sm:$0xff] 0.0
          %7234 = vst [vmem:[#allocation3 + $0x218] sm:$0xff] 0.0
          %7235 = vst [vmem:[#allocation3 + $0x220] sm:$0xff] 0.0
          %7236 = vst [vmem:[#allocation3 + $0x228] sm:$0xff] 0.0
          %7237 = vst [vmem:[#allocation3 + $0x230] sm:$0xff] 0.0
          %7238 = vst [vmem:[#allocation3 + $0x238] sm:$0xff] 0.0
          %7239 = vst [vmem:[#allocation3 + $0x240] sm:$0xff] 0.0
          %7240 = vst [vmem:[#allocation3 + $0x248] sm:$0xff] 0.0
          %7241 = vst [vmem:[#allocation3 + $0x250] sm:$0xff] 0.0
          %7242 = vst [vmem:[#allocation3 + $0x258] sm:$0xff] 0.0
          %7243 = vst [vmem:[#allocation3 + $0x260] sm:$0xff] 0.0
          %7244 = vst [vmem:[#allocation3 + $0x268] sm:$0xff] 0.0
          %7245 = vst [vmem:[#allocation3 + $0x270] sm:$0xff] 0.0
          %7246 = vst [vmem:[#allocation3 + $0x278] sm:$0xff] 0.0
          %7247 = vst [vmem:[#allocation3 + $0x280] sm:$0xff] 0.0
          %v7248 = vld [vmem:[#allocation2] sm:$0x3]
          %7249 = vst [vmem:[#allocation3] sm:$0x3] %v7248
          %v7250 = vld [vmem:[#allocation2 + $0x2] sm:$0x3]
          %7251 = vst [vmem:[#allocation3 + $0x8] sm:$0x3] %v7250
          %v7252 = vld [vmem:[#allocation2 + $0x4] sm:$0x3]
          %7253 = vst [vmem:[#allocation3 + $0x10] sm:$0x3] %v7252
          %v7254 = vld [vmem:[#allocation2 + $0x6] sm:$0x3]
          %7255 = vst [vmem:[#allocation3 + $0x18] sm:$0x3] %v7254
          %v7256 = vld [vmem:[#allocation2 + $0x8] sm:$0x3]
          %7257 = vst [vmem:[#allocation3 + $0x20] sm:$0x3] %v7256
          %v7258 = vld [vmem:[#allocation2 + $0xa] sm:$0x3]
          %7259 = vst [vmem:[#allocation3 + $0x28] sm:$0x3] %v7258
          %v7260 = vld [vmem:[#allocation2 + $0xc] sm:$0x3]
          %7261 = vst [vmem:[#allocation3 + $0x30] sm:$0x3] %v7260
          %v7262 = vld [vmem:[#allocation2 + $0xe] sm:$0x3]
          %7263 = vst [vmem:[#allocation3 + $0x38] sm:$0x3] %v7262
          %v7264 = vld [vmem:[#allocation2 + $0x10] sm:$0x3]
          %7265 = vst [vmem:[#allocation3 + $0x40] sm:$0x3] %v7264
          %v7266 = vld [vmem:[#allocation2 + $0x12] sm:$0x3]
          %7267 = vst [vmem:[#allocation3 + $0x48] sm:$0x3] %v7266
          %v7268 = vld [vmem:[#allocation2 + $0x14] sm:$0x3]
          %7269 = vst [vmem:[#allocation3 + $0x50] sm:$0x3] %v7268
          %v7270 = vld [vmem:[#allocation2 + $0x16] sm:$0x3]
          %7271 = vst [vmem:[#allocation3 + $0x58] sm:$0x3] %v7270
          %v7272 = vld [vmem:[#allocation2 + $0x18] sm:$0x3]
          %7273 = vst [vmem:[#allocation3 + $0x60] sm:$0x3] %v7272
          %v7274 = vld [vmem:[#allocation2 + $0x1a] sm:$0x3]
          %7275 = vst [vmem:[#allocation3 + $0x68] sm:$0x3] %v7274
          %v7276 = vld [vmem:[#allocation2 + $0x1c] sm:$0x3]
          %7277 = vst [vmem:[#allocation3 + $0x70] sm:$0x3] %v7276
          %v7278 = vld [vmem:[#allocation2 + $0x1e] sm:$0x3]
          %7279 = vst [vmem:[#allocation3 + $0x78] sm:$0x3] %v7278
          %v7280 = vld [vmem:[#allocation2 + $0x20] sm:$0x3]
          %7281 = vst [vmem:[#allocation3 + $0x80] sm:$0x3] %v7280
          %v7282 = vld [vmem:[#allocation2 + $0x22] sm:$0x3]
          %7283 = vst [vmem:[#allocation3 + $0x88] sm:$0x3] %v7282
          %v7284 = vld [vmem:[#allocation2 + $0x24] sm:$0x3]
          %7285 = vst [vmem:[#allocation3 + $0x90] sm:$0x3] %v7284
          %v7286 = vld [vmem:[#allocation2 + $0x26] sm:$0x3]
          %7287 = vst [vmem:[#allocation3 + $0x98] sm:$0x3] %v7286
          %v7288 = vld [vmem:[#allocation2 + $0x28] sm:$0x3]
          %7289 = vst [vmem:[#allocation3 + $0xa0] sm:$0x3] %v7288
          %v7290 = vld [vmem:[#allocation2 + $0x2a] sm:$0x3]
          %7291 = vst [vmem:[#allocation3 + $0xa8] sm:$0x3] %v7290
          %v7292 = vld [vmem:[#allocation2 + $0x2c] sm:$0x3]
          %7293 = vst [vmem:[#allocation3 + $0xb0] sm:$0x3] %v7292
          %v7294 = vld [vmem:[#allocation2 + $0x2e] sm:$0x3]
          %7295 = vst [vmem:[#allocation3 + $0xb8] sm:$0x3] %v7294
          %v7296 = vld [vmem:[#allocation2 + $0x30] sm:$0x3]
          %7297 = vst [vmem:[#allocation3 + $0xc0] sm:$0x3] %v7296
          %v7298 = vld [vmem:[#allocation2 + $0x32] sm:$0x3]
          %7299 = vst [vmem:[#allocation3 + $0xc8] sm:$0x3] %v7298
          %v7300 = vld [vmem:[#allocation2 + $0x34] sm:$0x3]
          %7301 = vst [vmem:[#allocation3 + $0xd0] sm:$0x3] %v7300
          %v7302 = vld [vmem:[#allocation2 + $0x36] sm:$0x3]
          %7303 = vst [vmem:[#allocation3 + $0xd8] sm:$0x3] %v7302
          %v7304 = vld [vmem:[#allocation2 + $0x38] sm:$0x3]
          %7305 = vst [vmem:[#allocation3 + $0xe0] sm:$0x3] %v7304
          %v7306 = vld [vmem:[#allocation2 + $0x3a] sm:$0x3]
          %7307 = vst [vmem:[#allocation3 + $0xe8] sm:$0x3] %v7306
          %v7308 = vld [vmem:[#allocation2 + $0x3c] sm:$0x3]
          %7309 = vst [vmem:[#allocation3 + $0xf0] sm:$0x3] %v7308
          %v7310 = vld [vmem:[#allocation2 + $0x3e] sm:$0x3]
          %7311 = vst [vmem:[#allocation3 + $0xf8] sm:$0x3] %v7310
          %v7312 = vld [vmem:[#allocation2 + $0x40] sm:$0x3]
          %7313 = vst [vmem:[#allocation3 + $0x100] sm:$0x3] %v7312
          %v7314 = vld [vmem:[#allocation2 + $0x42] sm:$0x3]
          %7315 = vst [vmem:[#allocation3 + $0x108] sm:$0x3] %v7314
          %v7316 = vld [vmem:[#allocation2 + $0x44] sm:$0x3]
          %7317 = vst [vmem:[#allocation3 + $0x110] sm:$0x3] %v7316
          %v7318 = vld [vmem:[#allocation2 + $0x46] sm:$0x3]
          %7319 = vst [vmem:[#allocation3 + $0x118] sm:$0x3] %v7318
          %v7320 = vld [vmem:[#allocation2 + $0x48] sm:$0x3]
          %7321 = vst [vmem:[#allocation3 + $0x120] sm:$0x3] %v7320
          %v7322 = vld [vmem:[#allocation2 + $0x4a] sm:$0x3]
          %7323 = vst [vmem:[#allocation3 + $0x128] sm:$0x3] %v7322
          %v7324 = vld [vmem:[#allocation2 + $0x4c] sm:$0x3]
          %7325 = vst [vmem:[#allocation3 + $0x130] sm:$0x3] %v7324
          %v7326 = vld [vmem:[#allocation2 + $0x4e] sm:$0x3]
          %7327 = vst [vmem:[#allocation3 + $0x138] sm:$0x3] %v7326
          %v7328 = vld [vmem:[#allocation2 + $0x50] sm:$0x3]
          %7329 = vst [vmem:[#allocation3 + $0x140] sm:$0x3] %v7328
          %v7330 = vld [vmem:[#allocation2 + $0x52] sm:$0x3]
          %7331 = vst [vmem:[#allocation3 + $0x148] sm:$0x3] %v7330
          %v7332 = vld [vmem:[#allocation2 + $0x54] sm:$0x3]
          %7333 = vst [vmem:[#allocation3 + $0x150] sm:$0x3] %v7332
          %v7334 = vld [vmem:[#allocation2 + $0x56] sm:$0x3]
          %7335 = vst [vmem:[#allocation3 + $0x158] sm:$0x3] %v7334
          %v7336 = vld [vmem:[#allocation2 + $0x58] sm:$0x3]
          %7337 = vst [vmem:[#allocation3 + $0x160] sm:$0x3] %v7336
          %v7338 = vld [vmem:[#allocation2 + $0x5a] sm:$0x3]
          %7339 = vst [vmem:[#allocation3 + $0x168] sm:$0x3] %v7338
          %v7340 = vld [vmem:[#allocation2 + $0x5c] sm:$0x3]
          %7341 = vst [vmem:[#allocation3 + $0x170] sm:$0x3] %v7340
          %v7342 = vld [vmem:[#allocation2 + $0x5e] sm:$0x3]
          %7343 = vst [vmem:[#allocation3 + $0x178] sm:$0x3] %v7342
          %v7344 = vld [vmem:[#allocation2 + $0x60] sm:$0x3]
          %7345 = vst [vmem:[#allocation3 + $0x180] sm:$0x3] %v7344
          %v7346 = vld [vmem:[#allocation2 + $0x62] sm:$0x3]
          %7347 = vst [vmem:[#allocation3 + $0x188] sm:$0x3] %v7346
          %v7348 = vld [vmem:[#allocation2 + $0x64] sm:$0x3]
          %7349 = vst [vmem:[#allocation3 + $0x190] sm:$0x3] %v7348
          %v7350 = vld [vmem:[#allocation2 + $0x66] sm:$0x3]
          %7351 = vst [vmem:[#allocation3 + $0x198] sm:$0x3] %v7350
          %v7352 = vld [vmem:[#allocation2 + $0x68] sm:$0x3]
          %7353 = vst [vmem:[#allocation3 + $0x1a0] sm:$0x3] %v7352
          %v7354 = vld [vmem:[#allocation2 + $0x6a] sm:$0x3]
          %7355 = vst [vmem:[#allocation3 + $0x1a8] sm:$0x3] %v7354
          %v7356 = vld [vmem:[#allocation2 + $0x6c] sm:$0x3]
          %7357 = vst [vmem:[#allocation3 + $0x1b0] sm:$0x3] %v7356
          %v7358 = vld [vmem:[#allocation2 + $0x6e] sm:$0x3]
          %7359 = vst [vmem:[#allocation3 + $0x1b8] sm:$0x3] %v7358
          %v7360 = vld [vmem:[#allocation2 + $0x70] sm:$0x3]
          %7361 = vst [vmem:[#allocation3 + $0x1c0] sm:$0x3] %v7360
          %v7362 = vld [vmem:[#allocation2 + $0x72] sm:$0x3]
          %7363 = vst [vmem:[#allocation3 + $0x1c8] sm:$0x3] %v7362
          %v7364 = vld [vmem:[#allocation2 + $0x74] sm:$0x3]
          %7365 = vst [vmem:[#allocation3 + $0x1d0] sm:$0x3] %v7364
          %v7366 = vld [vmem:[#allocation2 + $0x76] sm:$0x3]
          %7367 = vst [vmem:[#allocation3 + $0x1d8] sm:$0x3] %v7366
          %v7368 = vld [vmem:[#allocation2 + $0x78] sm:$0x3]
          %7369 = vst [vmem:[#allocation3 + $0x1e0] sm:$0x3] %v7368
          %v7370 = vld [vmem:[#allocation2 + $0x7a] sm:$0x3]
          %7371 = vst [vmem:[#allocation3 + $0x1e8] sm:$0x3] %v7370
          %v7372 = vld [vmem:[#allocation2 + $0x7c] sm:$0x3]
          %7373 = vst [vmem:[#allocation3 + $0x1f0] sm:$0x3] %v7372
          %v7374 = vld [vmem:[#allocation2 + $0x7e] sm:$0x3]
          %7375 = vst [vmem:[#allocation3 + $0x1f8] sm:$0x3] %v7374
          %v7376 = vld [vmem:[#allocation2 + $0x80] sm:$0x3]
          %7377 = vst [vmem:[#allocation3 + $0x200] sm:$0x3] %v7376
          %v7378 = vld [vmem:[#allocation2 + $0x82] sm:$0x3]
          %7379 = vst [vmem:[#allocation3 + $0x208] sm:$0x3] %v7378
          %v7380 = vld [vmem:[#allocation2 + $0x84] sm:$0x3]
          %7381 = vst [vmem:[#allocation3 + $0x210] sm:$0x3] %v7380
          %v7382 = vld [vmem:[#allocation2 + $0x86] sm:$0x3]
          %7383 = vst [vmem:[#allocation3 + $0x218] sm:$0x3] %v7382
          %v7384 = vld [vmem:[#allocation2 + $0x88] sm:$0x3]
          %7385 = vst [vmem:[#allocation3 + $0x220] sm:$0x3] %v7384
          %v7386 = vld [vmem:[#allocation2 + $0x8a] sm:$0x3]
          %7387 = vst [vmem:[#allocation3 + $0x228] sm:$0x3] %v7386
          %v7388 = vld [vmem:[#allocation2 + $0x8c] sm:$0x3]
          %7389 = vst [vmem:[#allocation3 + $0x230] sm:$0x3] %v7388
          %v7390 = vld [vmem:[#allocation2 + $0x8e] sm:$0x3]
          %7391 = vst [vmem:[#allocation3 + $0x238] sm:$0x3] %v7390
          %v7392 = vld [vmem:[#allocation2 + $0x90] sm:$0x3]
          %7393 = vst [vmem:[#allocation3 + $0x240] sm:$0x3] %v7392
          %v7394 = vld [vmem:[#allocation2 + $0x92] sm:$0x3]
          %7395 = vst [vmem:[#allocation3 + $0x248] sm:$0x3] %v7394
          %v7396 = vld [vmem:[#allocation2 + $0x94] sm:$0x3]
          %7397 = vst [vmem:[#allocation3 + $0x250] sm:$0x3] %v7396
          %v7398 = vld [vmem:[#allocation2 + $0x96] sm:$0x3]
          %7399 = vst [vmem:[#allocation3 + $0x258] sm:$0x3] %v7398
          %v7400 = vld [vmem:[#allocation2 + $0x98] sm:$0x3]
          %7401 = vst [vmem:[#allocation3 + $0x260] sm:$0x3] %v7400
          %v7402 = vld [vmem:[#allocation2 + $0x9a] sm:$0x3]
          %7403 = vst [vmem:[#allocation3 + $0x268] sm:$0x3] %v7402
          %v7404 = vld [vmem:[#allocation2 + $0x9c] sm:$0x3]
          %7405 = vst [vmem:[#allocation3 + $0x270] sm:$0x3] %v7404
          %v7406 = vld [vmem:[#allocation2 + $0x9e] sm:$0x3]
          %7407 = vst [vmem:[#allocation3 + $0x278] sm:$0x3] %v7406
          %v7408 = vld [vmem:[#allocation2 + $0xa0] sm:$0x3]
          %7409 = vst [vmem:[#allocation3 + $0x280] sm:$0x3] %v7408
          %v7410 = vld [vmem:[#allocation15] sm:$0x3f]
          %v7412 = vperm.slane %v7410, 0
          %v7413 = vperm.slane %v7410, 1
          %v7414 = vperm.slane %v7410, 2
          %v7415 = vperm.slane %v7410, 3
          %v7416 = vperm.slane %v7410, 4
          %v7417 = vperm.slane %v7410, 5
          %7424 = vst [vmem:[%s10] sm:$0xff] %v7412
          %7425 = vst [vmem:[%s10 + $0x8] sm:$0xff] %v7413
          %7426 = vst [vmem:[%s10 + $0x10] sm:$0xff] %v7414
          %7427 = vst [vmem:[%s10 + $0x18] sm:$0xff] %v7415
          %7428 = vst [vmem:[%s10 + $0x20] sm:$0xff] %v7416
          %7429 = vst [vmem:[%s10 + $0x28] sm:$0xff] %v7417
        $region96: #{sudoku_forward.1} parent=59 // pred_fallthru
          _
        %s7430 = smul.u32 %s25, 72
        %s7431 = scalar_lea.vmem [#allocation3], %s7430
        %v7432 = vld [vmem:[%s7431] sm:$0xff]
        %v7433 = vpack.c.bf16 %v7432, %v7432
        %v7434 = vld [vmem:[%s433] sm:$0xff]
        %v7435 = vld [vmem:[%s433 + $0x8] sm:$0xff]
        %v7436 = vld [vmem:[%s433 + $0x10] sm:$0xff]
        %v7437 = vld [vmem:[%s433 + $0x18] sm:$0xff]
        %v7438 = vld [vmem:[%s433 + $0x20] sm:$0xff]
        %v7439 = vld [vmem:[%s433 + $0x28] sm:$0xff]
        %v7440 = vld [vmem:[%s433 + $0x30] sm:$0xff]
        %v7441 = vld [vmem:[%s433 + $0x38] sm:$0xff]
        %v7442 = vld [vmem:[%s433 + $0x40] sm:$0xff]
        %v7443 = vld [vmem:[%s433 + $0x48] sm:$0xff]
        %v7444 = vld [vmem:[%s433 + $0x50] sm:$0xff]
        %v7445 = vld [vmem:[%s433 + $0x58] sm:$0xff]
        %v7446 = vld [vmem:[%s433 + $0x60] sm:$0xff]
        %v7447 = vld [vmem:[%s433 + $0x68] sm:$0xff]
        %v7448 = vld [vmem:[%s433 + $0x70] sm:$0xff]
        %v7449 = vld [vmem:[%s433 + $0x78] sm:$0xff]
        %v7450 = vld [vmem:[%s433 + $0x80] sm:$0xff]
        %v7451 = vld [vmem:[%s433 + $0x88] sm:$0xff]
        %v7452 = vld [vmem:[%s433 + $0x90] sm:$0xff]
        %v7453 = vld [vmem:[%s433 + $0x98] sm:$0xff]
        %v7454 = vld [vmem:[%s433 + $0xa0] sm:$0xff]
        %v7455 = vld [vmem:[%s433 + $0xa8] sm:$0xff]
        %v7456 = vld [vmem:[%s433 + $0xb0] sm:$0xff]
        %v7457 = vld [vmem:[%s433 + $0xb8] sm:$0xff]
        %v7458 = vld [vmem:[%s433 + $0xc0] sm:$0xff]
        %v7459 = vld [vmem:[%s433 + $0xc8] sm:$0xff]
        %v7460 = vld [vmem:[%s433 + $0xd0] sm:$0xff]
        %v7461 = vld [vmem:[%s433 + $0xd8] sm:$0xff]
        %v7462 = vld [vmem:[%s433 + $0xe0] sm:$0xff]
        %v7463 = vld [vmem:[%s433 + $0xe8] sm:$0xff]
        %v7464 = vld [vmem:[%s433 + $0xf0] sm:$0xff]
        %v7465 = vld [vmem:[%s433 + $0xf8] sm:$0xff]
        %v7466 = vld [vmem:[%s433 + $0x100] sm:$0xff]
        %v7467 = vld [vmem:[%s433 + $0x108] sm:$0xff]
        %v7468 = vld [vmem:[%s433 + $0x110] sm:$0xff]
        %v7469 = vld [vmem:[%s433 + $0x118] sm:$0xff]
        %v7470 = vld [vmem:[%s433 + $0x120] sm:$0xff]
        %v7471 = vld [vmem:[%s433 + $0x128] sm:$0xff]
        %v7472 = vld [vmem:[%s433 + $0x130] sm:$0xff]
        %v7473 = vld [vmem:[%s433 + $0x138] sm:$0xff]
        %v7474 = vld [vmem:[%s433 + $0x140] sm:$0xff]
        %v7475 = vld [vmem:[%s433 + $0x148] sm:$0xff]
        %v7476 = vld [vmem:[%s433 + $0x150] sm:$0xff]
        %v7477 = vld [vmem:[%s433 + $0x158] sm:$0xff]
        %v7478 = vld [vmem:[%s433 + $0x160] sm:$0xff]
        %v7479 = vld [vmem:[%s433 + $0x168] sm:$0xff]
        %v7480 = vld [vmem:[%s433 + $0x170] sm:$0xff]
        %v7481 = vld [vmem:[%s433 + $0x178] sm:$0xff]
        %s7482 = sadd.s32 %s7430, 8
        %s7483 = scalar_lea.vmem [#allocation3], %s7482
        %v7484 = vld [vmem:[%s7483] sm:$0xff]
        %v7485 = vpack.c.bf16 %v7484, %v7484
        %v7486 = vld [vmem:[%s433 + $0x180] sm:$0xff]
        %v7487 = vld [vmem:[%s433 + $0x188] sm:$0xff]
        %v7488 = vld [vmem:[%s433 + $0x190] sm:$0xff]
        %v7489 = vld [vmem:[%s433 + $0x198] sm:$0xff]
        %v7490 = vld [vmem:[%s433 + $0x1a0] sm:$0xff]
        %v7491 = vld [vmem:[%s433 + $0x1a8] sm:$0xff]
        %v7492 = vld [vmem:[%s433 + $0x1b0] sm:$0xff]
        %v7493 = vld [vmem:[%s433 + $0x1b8] sm:$0xff]
        %v7494 = vld [vmem:[%s433 + $0x1c0] sm:$0xff]
        %v7495 = vld [vmem:[%s433 + $0x1c8] sm:$0xff]
        %v7496 = vld [vmem:[%s433 + $0x1d0] sm:$0xff]
        %v7497 = vld [vmem:[%s433 + $0x1d8] sm:$0xff]
        %v7498 = vld [vmem:[%s433 + $0x1e0] sm:$0xff]
        %v7499 = vld [vmem:[%s433 + $0x1e8] sm:$0xff]
        %v7500 = vld [vmem:[%s433 + $0x1f0] sm:$0xff]
        %v7501 = vld [vmem:[%s433 + $0x1f8] sm:$0xff]
        %v7502 = vld [vmem:[%s433 + $0x200] sm:$0xff]
        %v7503 = vld [vmem:[%s433 + $0x208] sm:$0xff]
        %v7504 = vld [vmem:[%s433 + $0x210] sm:$0xff]
        %v7505 = vld [vmem:[%s433 + $0x218] sm:$0xff]
        %v7506 = vld [vmem:[%s433 + $0x220] sm:$0xff]
        %v7507 = vld [vmem:[%s433 + $0x228] sm:$0xff]
        %v7508 = vld [vmem:[%s433 + $0x230] sm:$0xff]
        %v7509 = vld [vmem:[%s433 + $0x238] sm:$0xff]
        %v7510 = vld [vmem:[%s433 + $0x240] sm:$0xff]
        %v7511 = vld [vmem:[%s433 + $0x248] sm:$0xff]
        %v7512 = vld [vmem:[%s433 + $0x250] sm:$0xff]
        %v7513 = vld [vmem:[%s433 + $0x258] sm:$0xff]
        %v7514 = vld [vmem:[%s433 + $0x260] sm:$0xff]
        %v7515 = vld [vmem:[%s433 + $0x268] sm:$0xff]
        %v7516 = vld [vmem:[%s433 + $0x270] sm:$0xff]
        %v7517 = vld [vmem:[%s433 + $0x278] sm:$0xff]
        %v7518 = vld [vmem:[%s433 + $0x280] sm:$0xff]
        %v7519 = vld [vmem:[%s433 + $0x288] sm:$0xff]
        %v7520 = vld [vmem:[%s433 + $0x290] sm:$0xff]
        %v7521 = vld [vmem:[%s433 + $0x298] sm:$0xff]
        %v7522 = vld [vmem:[%s433 + $0x2a0] sm:$0xff]
        %v7523 = vld [vmem:[%s433 + $0x2a8] sm:$0xff]
        %v7524 = vld [vmem:[%s433 + $0x2b0] sm:$0xff]
        %v7525 = vld [vmem:[%s433 + $0x2b8] sm:$0xff]
        %v7526 = vld [vmem:[%s433 + $0x2c0] sm:$0xff]
        %v7527 = vld [vmem:[%s433 + $0x2c8] sm:$0xff]
        %v7528 = vld [vmem:[%s433 + $0x2d0] sm:$0xff]
        %v7529 = vld [vmem:[%s433 + $0x2d8] sm:$0xff]
        %v7530 = vld [vmem:[%s433 + $0x2e0] sm:$0xff]
        %v7531 = vld [vmem:[%s433 + $0x2e8] sm:$0xff]
        %v7532 = vld [vmem:[%s433 + $0x2f0] sm:$0xff]
        %v7533 = vld [vmem:[%s433 + $0x2f8] sm:$0xff]
        %v7582 = vunpack.c.l.b16 %v7486
        %v7583 = vunpack.c.h.b16 %v7486
        %v7584 = vunpack.c.l.b16 %v7487
        %v7585 = vunpack.c.h.b16 %v7487
        %v7586 = vunpack.c.l.b16 %v7488
        %v7587 = vunpack.c.h.b16 %v7488
        %v7588 = vunpack.c.l.b16 %v7489
        %v7589 = vunpack.c.h.b16 %v7489
        %v7590 = vunpack.c.l.b16 %v7490
        %v7591 = vunpack.c.h.b16 %v7490
        %v7592 = vunpack.c.l.b16 %v7491
        %v7593 = vunpack.c.h.b16 %v7491
        %v7594 = vunpack.c.l.b16 %v7492
        %v7595 = vunpack.c.h.b16 %v7492
        %v7596 = vunpack.c.l.b16 %v7493
        %v7597 = vunpack.c.h.b16 %v7493
        %v7598 = vunpack.c.l.b16 %v7494
        %v7599 = vunpack.c.h.b16 %v7494
        %v7600 = vunpack.c.l.b16 %v7495
        %v7601 = vunpack.c.h.b16 %v7495
        %v7602 = vunpack.c.l.b16 %v7496
        %v7603 = vunpack.c.h.b16 %v7496
        %v7604 = vunpack.c.l.b16 %v7497
        %v7605 = vunpack.c.h.b16 %v7497
        %v7606 = vunpack.c.l.b16 %v7498
        %v7607 = vunpack.c.h.b16 %v7498
        %v7608 = vunpack.c.l.b16 %v7499
        %v7609 = vunpack.c.h.b16 %v7499
        %v7610 = vunpack.c.l.b16 %v7500
        %v7611 = vunpack.c.h.b16 %v7500
        %v7612 = vunpack.c.l.b16 %v7501
        %v7613 = vunpack.c.h.b16 %v7501
        %v7614 = vunpack.c.l.b16 %v7502
        %v7615 = vunpack.c.h.b16 %v7502
        %v7616 = vunpack.c.l.b16 %v7503
        %v7617 = vunpack.c.h.b16 %v7503
        %v7618 = vunpack.c.l.b16 %v7504
        %v7619 = vunpack.c.h.b16 %v7504
        %v7620 = vunpack.c.l.b16 %v7505
        %v7621 = vunpack.c.h.b16 %v7505
        %v7622 = vunpack.c.l.b16 %v7506
        %v7623 = vunpack.c.h.b16 %v7506
        %v7624 = vunpack.c.l.b16 %v7507
        %v7625 = vunpack.c.h.b16 %v7507
        %v7626 = vunpack.c.l.b16 %v7508
        %v7627 = vunpack.c.h.b16 %v7508
        %v7628 = vunpack.c.l.b16 %v7509
        %v7629 = vunpack.c.h.b16 %v7509
        %v7630 = vunpack.c.l.b16 %v7510
        %v7631 = vunpack.c.h.b16 %v7510
        %v7632 = vunpack.c.l.b16 %v7511
        %v7633 = vunpack.c.h.b16 %v7511
        %v7634 = vunpack.c.l.b16 %v7512
        %v7635 = vunpack.c.h.b16 %v7512
        %v7636 = vunpack.c.l.b16 %v7513
        %v7637 = vunpack.c.h.b16 %v7513
        %v7638 = vunpack.c.l.b16 %v7514
        %v7639 = vunpack.c.h.b16 %v7514
        %v7640 = vunpack.c.l.b16 %v7515
        %v7641 = vunpack.c.h.b16 %v7515
        %v7642 = vunpack.c.l.b16 %v7516
        %v7643 = vunpack.c.h.b16 %v7516
        %v7644 = vunpack.c.l.b16 %v7517
        %v7645 = vunpack.c.h.b16 %v7517
        %v7646 = vunpack.c.l.b16 %v7518
        %v7647 = vunpack.c.h.b16 %v7518
        %v7648 = vunpack.c.l.b16 %v7519
        %v7649 = vunpack.c.h.b16 %v7519
        %v7650 = vunpack.c.l.b16 %v7520
        %v7651 = vunpack.c.h.b16 %v7520
        %v7652 = vunpack.c.l.b16 %v7521
        %v7653 = vunpack.c.h.b16 %v7521
        %v7654 = vunpack.c.l.b16 %v7522
        %v7655 = vunpack.c.h.b16 %v7522
        %v7656 = vunpack.c.l.b16 %v7523
        %v7657 = vunpack.c.h.b16 %v7523
        %v7658 = vunpack.c.l.b16 %v7524
        %v7659 = vunpack.c.h.b16 %v7524
        %v7660 = vunpack.c.l.b16 %v7525
        %v7661 = vunpack.c.h.b16 %v7525
        %v7662 = vunpack.c.l.b16 %v7526
        %v7663 = vunpack.c.h.b16 %v7526
        %v7664 = vunpack.c.l.b16 %v7527
        %v7665 = vunpack.c.h.b16 %v7527
        %v7666 = vunpack.c.l.b16 %v7528
        %v7667 = vunpack.c.h.b16 %v7528
        %v7668 = vunpack.c.l.b16 %v7529
        %v7669 = vunpack.c.h.b16 %v7529
        %v7670 = vunpack.c.l.b16 %v7530
        %v7671 = vunpack.c.h.b16 %v7530
        %v7672 = vunpack.c.l.b16 %v7531
        %v7673 = vunpack.c.h.b16 %v7531
        %v7674 = vunpack.c.l.b16 %v7532
        %v7675 = vunpack.c.h.b16 %v7532
        %v7676 = vunpack.c.l.b16 %v7533
        %v7677 = vunpack.c.h.b16 %v7533
        %v7678 = vpack.c.b16 %v7588, %v7582
        %v7679 = vpack.c.b16 %v7589, %v7583
        %v7680 = vpack.c.b16 %v7590, %v7584
        %v7681 = vpack.c.b16 %v7591, %v7585
        %v7682 = vpack.c.b16 %v7592, %v7586
        %v7683 = vpack.c.b16 %v7593, %v7587
        %v7684 = vpack.c.b16 %v7600, %v7594
        %v7685 = vpack.c.b16 %v7601, %v7595
        %v7686 = vpack.c.b16 %v7602, %v7596
        %v7687 = vpack.c.b16 %v7603, %v7597
        %v7688 = vpack.c.b16 %v7604, %v7598
        %v7689 = vpack.c.b16 %v7605, %v7599
        %v7690 = vpack.c.b16 %v7612, %v7606
        %v7691 = vpack.c.b16 %v7613, %v7607
        %v7692 = vpack.c.b16 %v7614, %v7608
        %v7693 = vpack.c.b16 %v7615, %v7609
        %v7694 = vpack.c.b16 %v7616, %v7610
        %v7695 = vpack.c.b16 %v7617, %v7611
        %v7696 = vpack.c.b16 %v7624, %v7618
        %v7697 = vpack.c.b16 %v7625, %v7619
        %v7698 = vpack.c.b16 %v7626, %v7620
        %v7699 = vpack.c.b16 %v7627, %v7621
        %v7700 = vpack.c.b16 %v7628, %v7622
        %v7701 = vpack.c.b16 %v7629, %v7623
        %v7702 = vpack.c.b16 %v7636, %v7630
        %v7703 = vpack.c.b16 %v7637, %v7631
        %v7704 = vpack.c.b16 %v7638, %v7632
        %v7705 = vpack.c.b16 %v7639, %v7633
        %v7706 = vpack.c.b16 %v7640, %v7634
        %v7707 = vpack.c.b16 %v7641, %v7635
        %v7708 = vpack.c.b16 %v7648, %v7642
        %v7709 = vpack.c.b16 %v7649, %v7643
        %v7710 = vpack.c.b16 %v7650, %v7644
        %v7711 = vpack.c.b16 %v7651, %v7645
        %v7712 = vpack.c.b16 %v7652, %v7646
        %v7713 = vpack.c.b16 %v7653, %v7647
        %v7714 = vpack.c.b16 %v7660, %v7654
        %v7715 = vpack.c.b16 %v7661, %v7655
        %v7716 = vpack.c.b16 %v7662, %v7656
        %v7717 = vpack.c.b16 %v7663, %v7657
        %v7718 = vpack.c.b16 %v7664, %v7658
        %v7719 = vpack.c.b16 %v7665, %v7659
        %v7720 = vpack.c.b16 %v7672, %v7666
        %v7721 = vpack.c.b16 %v7673, %v7667
        %v7722 = vpack.c.b16 %v7674, %v7668
        %v7723 = vpack.c.b16 %v7675, %v7669
        %v7724 = vpack.c.b16 %v7676, %v7670
        %v7725 = vpack.c.b16 %v7677, %v7671
        %7774 = vmatpush.bf16.msra.mxu0 %v7720
        %7775 = vmatpush.bf16.msra.mxu0 %v7714
        %7776 = vmatpush.bf16.msra.mxu0 %v7708
        %7777 = vmatpush.bf16.msra.mxu0 %v7702
        %7778 = vmatpush.bf16.msra.mxu0 %v7696
        %7779 = vmatpush.bf16.msra.mxu0 %v7690
        %7780 = vmatpush.bf16.msra.mxu0 %v7684
        %7781 = vmatpush.bf16.msra.mxu0 %v7678
        %7782 = vmatmul.bf16.gmra.mxu0 %v7485
        %v7783 = vpop.f32.mrf.mxu0
        %v7784 = vadd.f32 0.0, %v7783
        %v7785 = vpop.f32.mrf.mxu0
        %7786 = vdwg.mxu0
        %7787 = vmatpush.bf16.msra.mxu0 %v7721
        %7788 = vmatpush.bf16.msra.mxu0 %v7715
        %7789 = vmatpush.bf16.msra.mxu0 %v7709
        %7790 = vmatpush.bf16.msra.mxu0 %v7703
        %7791 = vmatpush.bf16.msra.mxu0 %v7697
        %7792 = vmatpush.bf16.msra.mxu0 %v7691
        %7793 = vmatpush.bf16.msra.mxu0 %v7685
        %7794 = vmatpush.bf16.msra.mxu0 %v7679
        %7795 = vmatmul.bf16.gmra.mxu0 %v7485
        %v7796 = vpop.f32.mrf.mxu0
        %v7797 = vadd.f32 0.0, %v7796
        %v7798 = vpop.f32.mrf.mxu0
        %7799 = vdwg.mxu0
        %7800 = vmatpush.bf16.msra.mxu0 %v7722
        %7801 = vmatpush.bf16.msra.mxu0 %v7716
        %7802 = vmatpush.bf16.msra.mxu0 %v7710
        %7803 = vmatpush.bf16.msra.mxu0 %v7704
        %7804 = vmatpush.bf16.msra.mxu0 %v7698
        %7805 = vmatpush.bf16.msra.mxu0 %v7692
        %7806 = vmatpush.bf16.msra.mxu0 %v7686
        %7807 = vmatpush.bf16.msra.mxu0 %v7680
        %7808 = vmatmul.bf16.gmra.mxu0 %v7485
        %v7809 = vpop.f32.mrf.mxu0
        %v7810 = vadd.f32 0.0, %v7809
        %v7811 = vpop.f32.mrf.mxu0
        %7812 = vdwg.mxu0
        %7813 = vmatpush.bf16.msra.mxu0 %v7723
        %7814 = vmatpush.bf16.msra.mxu0 %v7717
        %7815 = vmatpush.bf16.msra.mxu0 %v7711
        %7816 = vmatpush.bf16.msra.mxu0 %v7705
        %7817 = vmatpush.bf16.msra.mxu0 %v7699
        %7818 = vmatpush.bf16.msra.mxu0 %v7693
        %7819 = vmatpush.bf16.msra.mxu0 %v7687
        %7820 = vmatpush.bf16.msra.mxu0 %v7681
        %7821 = vmatmul.bf16.gmra.mxu0 %v7485
        %v7822 = vpop.f32.mrf.mxu0
        %v7823 = vadd.f32 0.0, %v7822
        %v7824 = vpop.f32.mrf.mxu0
        %7825 = vdwg.mxu0
        %7826 = vmatpush.bf16.msra.mxu0 %v7724
        %7827 = vmatpush.bf16.msra.mxu0 %v7718
        %7828 = vmatpush.bf16.msra.mxu0 %v7712
        %7829 = vmatpush.bf16.msra.mxu0 %v7706
        %7830 = vmatpush.bf16.msra.mxu0 %v7700
        %7831 = vmatpush.bf16.msra.mxu0 %v7694
        %7832 = vmatpush.bf16.msra.mxu0 %v7688
        %7833 = vmatpush.bf16.msra.mxu0 %v7682
        %7834 = vmatmul.bf16.gmra.mxu0 %v7485
        %v7835 = vpop.f32.mrf.mxu0
        %v7836 = vadd.f32 0.0, %v7835
        %v7837 = vpop.f32.mrf.mxu0
        %7838 = vdwg.mxu0
        %7839 = vmatpush.bf16.msra.mxu0 %v7725
        %7840 = vmatpush.bf16.msra.mxu0 %v7719
        %7841 = vmatpush.bf16.msra.mxu0 %v7713
        %7842 = vmatpush.bf16.msra.mxu0 %v7707
        %7843 = vmatpush.bf16.msra.mxu0 %v7701
        %7844 = vmatpush.bf16.msra.mxu0 %v7695
        %7845 = vmatpush.bf16.msra.mxu0 %v7689
        %7846 = vmatpush.bf16.msra.mxu0 %v7683
        %7847 = vmatmul.bf16.gmra.mxu0 %v7485
        %v7848 = vpop.f32.mrf.mxu0
        %v7849 = vadd.f32 0.0, %v7848
        %v7850 = vpop.f32.mrf.mxu0
        %7851 = vdwg.mxu0
        %v7900 = vunpack.c.l.b16 %v7434
        %v7901 = vunpack.c.h.b16 %v7434
        %v7902 = vunpack.c.l.b16 %v7435
        %v7903 = vunpack.c.h.b16 %v7435
        %v7904 = vunpack.c.l.b16 %v7436
        %v7905 = vunpack.c.h.b16 %v7436
        %v7906 = vunpack.c.l.b16 %v7437
        %v7907 = vunpack.c.h.b16 %v7437
        %v7908 = vunpack.c.l.b16 %v7438
        %v7909 = vunpack.c.h.b16 %v7438
        %v7910 = vunpack.c.l.b16 %v7439
        %v7911 = vunpack.c.h.b16 %v7439
        %v7912 = vunpack.c.l.b16 %v7440
        %v7913 = vunpack.c.h.b16 %v7440
        %v7914 = vunpack.c.l.b16 %v7441
        %v7915 = vunpack.c.h.b16 %v7441
        %v7916 = vunpack.c.l.b16 %v7442
        %v7917 = vunpack.c.h.b16 %v7442
        %v7918 = vunpack.c.l.b16 %v7443
        %v7919 = vunpack.c.h.b16 %v7443
        %v7920 = vunpack.c.l.b16 %v7444
        %v7921 = vunpack.c.h.b16 %v7444
        %v7922 = vunpack.c.l.b16 %v7445
        %v7923 = vunpack.c.h.b16 %v7445
        %v7924 = vunpack.c.l.b16 %v7446
        %v7925 = vunpack.c.h.b16 %v7446
        %v7926 = vunpack.c.l.b16 %v7447
        %v7927 = vunpack.c.h.b16 %v7447
        %v7928 = vunpack.c.l.b16 %v7448
        %v7929 = vunpack.c.h.b16 %v7448
        %v7930 = vunpack.c.l.b16 %v7449
        %v7931 = vunpack.c.h.b16 %v7449
        %v7932 = vunpack.c.l.b16 %v7450
        %v7933 = vunpack.c.h.b16 %v7450
        %v7934 = vunpack.c.l.b16 %v7451
        %v7935 = vunpack.c.h.b16 %v7451
        %v7936 = vunpack.c.l.b16 %v7452
        %v7937 = vunpack.c.h.b16 %v7452
        %v7938 = vunpack.c.l.b16 %v7453
        %v7939 = vunpack.c.h.b16 %v7453
        %v7940 = vunpack.c.l.b16 %v7454
        %v7941 = vunpack.c.h.b16 %v7454
        %v7942 = vunpack.c.l.b16 %v7455
        %v7943 = vunpack.c.h.b16 %v7455
        %v7944 = vunpack.c.l.b16 %v7456
        %v7945 = vunpack.c.h.b16 %v7456
        %v7946 = vunpack.c.l.b16 %v7457
        %v7947 = vunpack.c.h.b16 %v7457
        %v7948 = vunpack.c.l.b16 %v7458
        %v7949 = vunpack.c.h.b16 %v7458
        %v7950 = vunpack.c.l.b16 %v7459
        %v7951 = vunpack.c.h.b16 %v7459
        %v7952 = vunpack.c.l.b16 %v7460
        %v7953 = vunpack.c.h.b16 %v7460
        %v7954 = vunpack.c.l.b16 %v7461
        %v7955 = vunpack.c.h.b16 %v7461
        %v7956 = vunpack.c.l.b16 %v7462
        %v7957 = vunpack.c.h.b16 %v7462
        %v7958 = vunpack.c.l.b16 %v7463
        %v7959 = vunpack.c.h.b16 %v7463
        %v7960 = vunpack.c.l.b16 %v7464
        %v7961 = vunpack.c.h.b16 %v7464
        %v7962 = vunpack.c.l.b16 %v7465
        %v7963 = vunpack.c.h.b16 %v7465
        %v7964 = vunpack.c.l.b16 %v7466
        %v7965 = vunpack.c.h.b16 %v7466
        %v7966 = vunpack.c.l.b16 %v7467
        %v7967 = vunpack.c.h.b16 %v7467
        %v7968 = vunpack.c.l.b16 %v7468
        %v7969 = vunpack.c.h.b16 %v7468
        %v7970 = vunpack.c.l.b16 %v7469
        %v7971 = vunpack.c.h.b16 %v7469
        %v7972 = vunpack.c.l.b16 %v7470
        %v7973 = vunpack.c.h.b16 %v7470
        %v7974 = vunpack.c.l.b16 %v7471
        %v7975 = vunpack.c.h.b16 %v7471
        %v7976 = vunpack.c.l.b16 %v7472
        %v7977 = vunpack.c.h.b16 %v7472
        %v7978 = vunpack.c.l.b16 %v7473
        %v7979 = vunpack.c.h.b16 %v7473
        %v7980 = vunpack.c.l.b16 %v7474
        %v7981 = vunpack.c.h.b16 %v7474
        %v7982 = vunpack.c.l.b16 %v7475
        %v7983 = vunpack.c.h.b16 %v7475
        %v7984 = vunpack.c.l.b16 %v7476
        %v7985 = vunpack.c.h.b16 %v7476
        %v7986 = vunpack.c.l.b16 %v7477
        %v7987 = vunpack.c.h.b16 %v7477
        %v7988 = vunpack.c.l.b16 %v7478
        %v7989 = vunpack.c.h.b16 %v7478
        %v7990 = vunpack.c.l.b16 %v7479
        %v7991 = vunpack.c.h.b16 %v7479
        %v7992 = vunpack.c.l.b16 %v7480
        %v7993 = vunpack.c.h.b16 %v7480
        %v7994 = vunpack.c.l.b16 %v7481
        %v7995 = vunpack.c.h.b16 %v7481
        %v7996 = vpack.c.b16 %v7906, %v7900
        %v7997 = vpack.c.b16 %v7907, %v7901
        %v7998 = vpack.c.b16 %v7908, %v7902
        %v7999 = vpack.c.b16 %v7909, %v7903
        %v8000 = vpack.c.b16 %v7910, %v7904
        %v8001 = vpack.c.b16 %v7911, %v7905
        %v8002 = vpack.c.b16 %v7918, %v7912
        %v8003 = vpack.c.b16 %v7919, %v7913
        %v8004 = vpack.c.b16 %v7920, %v7914
        %v8005 = vpack.c.b16 %v7921, %v7915
        %v8006 = vpack.c.b16 %v7922, %v7916
        %v8007 = vpack.c.b16 %v7923, %v7917
        %v8008 = vpack.c.b16 %v7930, %v7924
        %v8009 = vpack.c.b16 %v7931, %v7925
        %v8010 = vpack.c.b16 %v7932, %v7926
        %v8011 = vpack.c.b16 %v7933, %v7927
        %v8012 = vpack.c.b16 %v7934, %v7928
        %v8013 = vpack.c.b16 %v7935, %v7929
        %v8014 = vpack.c.b16 %v7942, %v7936
        %v8015 = vpack.c.b16 %v7943, %v7937
        %v8016 = vpack.c.b16 %v7944, %v7938
        %v8017 = vpack.c.b16 %v7945, %v7939
        %v8018 = vpack.c.b16 %v7946, %v7940
        %v8019 = vpack.c.b16 %v7947, %v7941
        %v8020 = vpack.c.b16 %v7954, %v7948
        %v8021 = vpack.c.b16 %v7955, %v7949
        %v8022 = vpack.c.b16 %v7956, %v7950
        %v8023 = vpack.c.b16 %v7957, %v7951
        %v8024 = vpack.c.b16 %v7958, %v7952
        %v8025 = vpack.c.b16 %v7959, %v7953
        %v8026 = vpack.c.b16 %v7966, %v7960
        %v8027 = vpack.c.b16 %v7967, %v7961
        %v8028 = vpack.c.b16 %v7968, %v7962
        %v8029 = vpack.c.b16 %v7969, %v7963
        %v8030 = vpack.c.b16 %v7970, %v7964
        %v8031 = vpack.c.b16 %v7971, %v7965
        %v8032 = vpack.c.b16 %v7978, %v7972
        %v8033 = vpack.c.b16 %v7979, %v7973
        %v8034 = vpack.c.b16 %v7980, %v7974
        %v8035 = vpack.c.b16 %v7981, %v7975
        %v8036 = vpack.c.b16 %v7982, %v7976
        %v8037 = vpack.c.b16 %v7983, %v7977
        %v8038 = vpack.c.b16 %v7990, %v7984
        %v8039 = vpack.c.b16 %v7991, %v7985
        %v8040 = vpack.c.b16 %v7992, %v7986
        %v8041 = vpack.c.b16 %v7993, %v7987
        %v8042 = vpack.c.b16 %v7994, %v7988
        %v8043 = vpack.c.b16 %v7995, %v7989
        %8092 = vmatpush.bf16.msra.mxu0 %v8038
        %8093 = vmatpush.bf16.msra.mxu0 %v8032
        %8094 = vmatpush.bf16.msra.mxu0 %v8026
        %8095 = vmatpush.bf16.msra.mxu0 %v8020
        %8096 = vmatpush.bf16.msra.mxu0 %v8014
        %8097 = vmatpush.bf16.msra.mxu0 %v8008
        %8098 = vmatpush.bf16.msra.mxu0 %v8002
        %8099 = vmatpush.bf16.msra.mxu0 %v7996
        %8100 = vmatmul.bf16.gmra.mxu0 %v7433
        %v8101 = vpop.f32.mrf.mxu0
        %v8102 = vadd.f32 %v7784, %v8101
        %v8103 = vpop.f32.mrf.mxu0
        %8104 = vdwg.mxu0
        %8105 = vmatpush.bf16.msra.mxu0 %v8039
        %8106 = vmatpush.bf16.msra.mxu0 %v8033
        %8107 = vmatpush.bf16.msra.mxu0 %v8027
        %8108 = vmatpush.bf16.msra.mxu0 %v8021
        %8109 = vmatpush.bf16.msra.mxu0 %v8015
        %8110 = vmatpush.bf16.msra.mxu0 %v8009
        %8111 = vmatpush.bf16.msra.mxu0 %v8003
        %8112 = vmatpush.bf16.msra.mxu0 %v7997
        %8113 = vmatmul.bf16.gmra.mxu0 %v7433
        %v8114 = vpop.f32.mrf.mxu0
        %v8115 = vadd.f32 %v7797, %v8114
        %v8116 = vpop.f32.mrf.mxu0
        %8117 = vdwg.mxu0
        %8118 = vmatpush.bf16.msra.mxu0 %v8040
        %8119 = vmatpush.bf16.msra.mxu0 %v8034
        %8120 = vmatpush.bf16.msra.mxu0 %v8028
        %8121 = vmatpush.bf16.msra.mxu0 %v8022
        %8122 = vmatpush.bf16.msra.mxu0 %v8016
        %8123 = vmatpush.bf16.msra.mxu0 %v8010
        %8124 = vmatpush.bf16.msra.mxu0 %v8004
        %8125 = vmatpush.bf16.msra.mxu0 %v7998
        %8126 = vmatmul.bf16.gmra.mxu0 %v7433
        %v8127 = vpop.f32.mrf.mxu0
        %v8128 = vadd.f32 %v7810, %v8127
        %v8129 = vpop.f32.mrf.mxu0
        %8130 = vdwg.mxu0
        %8131 = vmatpush.bf16.msra.mxu0 %v8041
        %8132 = vmatpush.bf16.msra.mxu0 %v8035
        %8133 = vmatpush.bf16.msra.mxu0 %v8029
        %8134 = vmatpush.bf16.msra.mxu0 %v8023
        %8135 = vmatpush.bf16.msra.mxu0 %v8017
        %8136 = vmatpush.bf16.msra.mxu0 %v8011
        %8137 = vmatpush.bf16.msra.mxu0 %v8005
        %8138 = vmatpush.bf16.msra.mxu0 %v7999
        %8139 = vmatmul.bf16.gmra.mxu0 %v7433
        %v8140 = vpop.f32.mrf.mxu0
        %v8141 = vadd.f32 %v7823, %v8140
        %v8142 = vpop.f32.mrf.mxu0
        %8143 = vdwg.mxu0
        %8144 = vmatpush.bf16.msra.mxu0 %v8042
        %8145 = vmatpush.bf16.msra.mxu0 %v8036
        %8146 = vmatpush.bf16.msra.mxu0 %v8030
        %8147 = vmatpush.bf16.msra.mxu0 %v8024
        %8148 = vmatpush.bf16.msra.mxu0 %v8018
        %8149 = vmatpush.bf16.msra.mxu0 %v8012
        %8150 = vmatpush.bf16.msra.mxu0 %v8006
        %8151 = vmatpush.bf16.msra.mxu0 %v8000
        %8152 = vmatmul.bf16.gmra.mxu0 %v7433
        %v8153 = vpop.f32.mrf.mxu0
        %v8154 = vadd.f32 %v7836, %v8153
        %v8155 = vpop.f32.mrf.mxu0
        %8156 = vdwg.mxu0
        %8157 = vmatpush.bf16.msra.mxu0 %v8043
        %8158 = vmatpush.bf16.msra.mxu0 %v8037
        %8159 = vmatpush.bf16.msra.mxu0 %v8031
        %8160 = vmatpush.bf16.msra.mxu0 %v8025
        %8161 = vmatpush.bf16.msra.mxu0 %v8019
        %8162 = vmatpush.bf16.msra.mxu0 %v8013
        %8163 = vmatpush.bf16.msra.mxu0 %v8007
        %8164 = vmatpush.bf16.msra.mxu0 %v8001
        %8165 = vmatmul.bf16.gmra.mxu0 %v7433
        %v8166 = vpop.f32.mrf.mxu0
        %v8167 = vadd.f32 %v7849, %v8166
        %v8168 = vpop.f32.mrf.mxu0
        %8169 = vdwg.mxu0
        %s8170 = sadd.s32 %s7430, 16
        %s8171 = scalar_lea.vmem [#allocation3], %s8170
        %v8172 = vld [vmem:[%s8171] sm:$0xff]
        %v8173 = vpack.c.bf16 %v8172, %v8172
        %v8174 = vld [vmem:[%s433 + $0x300] sm:$0xff]
        %v8175 = vld [vmem:[%s433 + $0x308] sm:$0xff]
        %v8176 = vld [vmem:[%s433 + $0x310] sm:$0xff]
        %v8177 = vld [vmem:[%s433 + $0x318] sm:$0xff]
        %v8178 = vld [vmem:[%s433 + $0x320] sm:$0xff]
        %v8179 = vld [vmem:[%s433 + $0x328] sm:$0xff]
        %v8180 = vld [vmem:[%s433 + $0x330] sm:$0xff]
        %v8181 = vld [vmem:[%s433 + $0x338] sm:$0xff]
        %v8182 = vld [vmem:[%s433 + $0x340] sm:$0xff]
        %v8183 = vld [vmem:[%s433 + $0x348] sm:$0xff]
        %v8184 = vld [vmem:[%s433 + $0x350] sm:$0xff]
        %v8185 = vld [vmem:[%s433 + $0x358] sm:$0xff]
        %v8186 = vld [vmem:[%s433 + $0x360] sm:$0xff]
        %v8187 = vld [vmem:[%s433 + $0x368] sm:$0xff]
        %v8188 = vld [vmem:[%s433 + $0x370] sm:$0xff]
        %v8189 = vld [vmem:[%s433 + $0x378] sm:$0xff]
        %v8190 = vld [vmem:[%s433 + $0x380] sm:$0xff]
        %v8191 = vld [vmem:[%s433 + $0x388] sm:$0xff]
        %v8192 = vld [vmem:[%s433 + $0x390] sm:$0xff]
        %v8193 = vld [vmem:[%s433 + $0x398] sm:$0xff]
        %v8194 = vld [vmem:[%s433 + $0x3a0] sm:$0xff]
        %v8195 = vld [vmem:[%s433 + $0x3a8] sm:$0xff]
        %v8196 = vld [vmem:[%s433 + $0x3b0] sm:$0xff]
        %v8197 = vld [vmem:[%s433 + $0x3b8] sm:$0xff]
        %v8198 = vld [vmem:[%s433 + $0x3c0] sm:$0xff]
        %v8199 = vld [vmem:[%s433 + $0x3c8] sm:$0xff]
        %v8200 = vld [vmem:[%s433 + $0x3d0] sm:$0xff]
        %v8201 = vld [vmem:[%s433 + $0x3d8] sm:$0xff]
        %v8202 = vld [vmem:[%s433 + $0x3e0] sm:$0xff]
        %v8203 = vld [vmem:[%s433 + $0x3e8] sm:$0xff]
        %v8204 = vld [vmem:[%s433 + $0x3f0] sm:$0xff]
        %v8205 = vld [vmem:[%s433 + $0x3f8] sm:$0xff]
        %v8206 = vld [vmem:[%s433 + $0x400] sm:$0xff]
        %v8207 = vld [vmem:[%s433 + $0x408] sm:$0xff]
        %v8208 = vld [vmem:[%s433 + $0x410] sm:$0xff]
        %v8209 = vld [vmem:[%s433 + $0x418] sm:$0xff]
        %v8210 = vld [vmem:[%s433 + $0x420] sm:$0xff]
        %v8211 = vld [vmem:[%s433 + $0x428] sm:$0xff]
        %v8212 = vld [vmem:[%s433 + $0x430] sm:$0xff]
        %v8213 = vld [vmem:[%s433 + $0x438] sm:$0xff]
        %v8214 = vld [vmem:[%s433 + $0x440] sm:$0xff]
        %v8215 = vld [vmem:[%s433 + $0x448] sm:$0xff]
        %v8216 = vld [vmem:[%s433 + $0x450] sm:$0xff]
        %v8217 = vld [vmem:[%s433 + $0x458] sm:$0xff]
        %v8218 = vld [vmem:[%s433 + $0x460] sm:$0xff]
        %v8219 = vld [vmem:[%s433 + $0x468] sm:$0xff]
        %v8220 = vld [vmem:[%s433 + $0x470] sm:$0xff]
        %v8221 = vld [vmem:[%s433 + $0x478] sm:$0xff]
        %v8270 = vunpack.c.l.b16 %v8174
        %v8271 = vunpack.c.h.b16 %v8174
        %v8272 = vunpack.c.l.b16 %v8175
        %v8273 = vunpack.c.h.b16 %v8175
        %v8274 = vunpack.c.l.b16 %v8176
        %v8275 = vunpack.c.h.b16 %v8176
        %v8276 = vunpack.c.l.b16 %v8177
        %v8277 = vunpack.c.h.b16 %v8177
        %v8278 = vunpack.c.l.b16 %v8178
        %v8279 = vunpack.c.h.b16 %v8178
        %v8280 = vunpack.c.l.b16 %v8179
        %v8281 = vunpack.c.h.b16 %v8179
        %v8282 = vunpack.c.l.b16 %v8180
        %v8283 = vunpack.c.h.b16 %v8180
        %v8284 = vunpack.c.l.b16 %v8181
        %v8285 = vunpack.c.h.b16 %v8181
        %v8286 = vunpack.c.l.b16 %v8182
        %v8287 = vunpack.c.h.b16 %v8182
        %v8288 = vunpack.c.l.b16 %v8183
        %v8289 = vunpack.c.h.b16 %v8183
        %v8290 = vunpack.c.l.b16 %v8184
        %v8291 = vunpack.c.h.b16 %v8184
        %v8292 = vunpack.c.l.b16 %v8185
        %v8293 = vunpack.c.h.b16 %v8185
        %v8294 = vunpack.c.l.b16 %v8186
        %v8295 = vunpack.c.h.b16 %v8186
        %v8296 = vunpack.c.l.b16 %v8187
        %v8297 = vunpack.c.h.b16 %v8187
        %v8298 = vunpack.c.l.b16 %v8188
        %v8299 = vunpack.c.h.b16 %v8188
        %v8300 = vunpack.c.l.b16 %v8189
        %v8301 = vunpack.c.h.b16 %v8189
        %v8302 = vunpack.c.l.b16 %v8190
        %v8303 = vunpack.c.h.b16 %v8190
        %v8304 = vunpack.c.l.b16 %v8191
        %v8305 = vunpack.c.h.b16 %v8191
        %v8306 = vunpack.c.l.b16 %v8192
        %v8307 = vunpack.c.h.b16 %v8192
        %v8308 = vunpack.c.l.b16 %v8193
        %v8309 = vunpack.c.h.b16 %v8193
        %v8310 = vunpack.c.l.b16 %v8194
        %v8311 = vunpack.c.h.b16 %v8194
        %v8312 = vunpack.c.l.b16 %v8195
        %v8313 = vunpack.c.h.b16 %v8195
        %v8314 = vunpack.c.l.b16 %v8196
        %v8315 = vunpack.c.h.b16 %v8196
        %v8316 = vunpack.c.l.b16 %v8197
        %v8317 = vunpack.c.h.b16 %v8197
        %v8318 = vunpack.c.l.b16 %v8198
        %v8319 = vunpack.c.h.b16 %v8198
        %v8320 = vunpack.c.l.b16 %v8199
        %v8321 = vunpack.c.h.b16 %v8199
        %v8322 = vunpack.c.l.b16 %v8200
        %v8323 = vunpack.c.h.b16 %v8200
        %v8324 = vunpack.c.l.b16 %v8201
        %v8325 = vunpack.c.h.b16 %v8201
        %v8326 = vunpack.c.l.b16 %v8202
        %v8327 = vunpack.c.h.b16 %v8202
        %v8328 = vunpack.c.l.b16 %v8203
        %v8329 = vunpack.c.h.b16 %v8203
        %v8330 = vunpack.c.l.b16 %v8204
        %v8331 = vunpack.c.h.b16 %v8204
        %v8332 = vunpack.c.l.b16 %v8205
        %v8333 = vunpack.c.h.b16 %v8205
        %v8334 = vunpack.c.l.b16 %v8206
        %v8335 = vunpack.c.h.b16 %v8206
        %v8336 = vunpack.c.l.b16 %v8207
        %v8337 = vunpack.c.h.b16 %v8207
        %v8338 = vunpack.c.l.b16 %v8208
        %v8339 = vunpack.c.h.b16 %v8208
        %v8340 = vunpack.c.l.b16 %v8209
        %v8341 = vunpack.c.h.b16 %v8209
        %v8342 = vunpack.c.l.b16 %v8210
        %v8343 = vunpack.c.h.b16 %v8210
        %v8344 = vunpack.c.l.b16 %v8211
        %v8345 = vunpack.c.h.b16 %v8211
        %v8346 = vunpack.c.l.b16 %v8212
        %v8347 = vunpack.c.h.b16 %v8212
        %v8348 = vunpack.c.l.b16 %v8213
        %v8349 = vunpack.c.h.b16 %v8213
        %v8350 = vunpack.c.l.b16 %v8214
        %v8351 = vunpack.c.h.b16 %v8214
        %v8352 = vunpack.c.l.b16 %v8215
        %v8353 = vunpack.c.h.b16 %v8215
        %v8354 = vunpack.c.l.b16 %v8216
        %v8355 = vunpack.c.h.b16 %v8216
        %v8356 = vunpack.c.l.b16 %v8217
        %v8357 = vunpack.c.h.b16 %v8217
        %v8358 = vunpack.c.l.b16 %v8218
        %v8359 = vunpack.c.h.b16 %v8218
        %v8360 = vunpack.c.l.b16 %v8219
        %v8361 = vunpack.c.h.b16 %v8219
        %v8362 = vunpack.c.l.b16 %v8220
        %v8363 = vunpack.c.h.b16 %v8220
        %v8364 = vunpack.c.l.b16 %v8221
        %v8365 = vunpack.c.h.b16 %v8221
        %v8366 = vpack.c.b16 %v8276, %v8270
        %v8367 = vpack.c.b16 %v8277, %v8271
        %v8368 = vpack.c.b16 %v8278, %v8272
        %v8369 = vpack.c.b16 %v8279, %v8273
        %v8370 = vpack.c.b16 %v8280, %v8274
        %v8371 = vpack.c.b16 %v8281, %v8275
        %v8372 = vpack.c.b16 %v8288, %v8282
        %v8373 = vpack.c.b16 %v8289, %v8283
        %v8374 = vpack.c.b16 %v8290, %v8284
        %v8375 = vpack.c.b16 %v8291, %v8285
        %v8376 = vpack.c.b16 %v8292, %v8286
        %v8377 = vpack.c.b16 %v8293, %v8287
        %v8378 = vpack.c.b16 %v8300, %v8294
        %v8379 = vpack.c.b16 %v8301, %v8295
        %v8380 = vpack.c.b16 %v8302, %v8296
        %v8381 = vpack.c.b16 %v8303, %v8297
        %v8382 = vpack.c.b16 %v8304, %v8298
        %v8383 = vpack.c.b16 %v8305, %v8299
        %v8384 = vpack.c.b16 %v8312, %v8306
        %v8385 = vpack.c.b16 %v8313, %v8307
        %v8386 = vpack.c.b16 %v8314, %v8308
        %v8387 = vpack.c.b16 %v8315, %v8309
        %v8388 = vpack.c.b16 %v8316, %v8310
        %v8389 = vpack.c.b16 %v8317, %v8311
        %v8390 = vpack.c.b16 %v8324, %v8318
        %v8391 = vpack.c.b16 %v8325, %v8319
        %v8392 = vpack.c.b16 %v8326, %v8320
        %v8393 = vpack.c.b16 %v8327, %v8321
        %v8394 = vpack.c.b16 %v8328, %v8322
        %v8395 = vpack.c.b16 %v8329, %v8323
        %v8396 = vpack.c.b16 %v8336, %v8330
        %v8397 = vpack.c.b16 %v8337, %v8331
        %v8398 = vpack.c.b16 %v8338, %v8332
        %v8399 = vpack.c.b16 %v8339, %v8333
        %v8400 = vpack.c.b16 %v8340, %v8334
        %v8401 = vpack.c.b16 %v8341, %v8335
        %v8402 = vpack.c.b16 %v8348, %v8342
        %v8403 = vpack.c.b16 %v8349, %v8343
        %v8404 = vpack.c.b16 %v8350, %v8344
        %v8405 = vpack.c.b16 %v8351, %v8345
        %v8406 = vpack.c.b16 %v8352, %v8346
        %v8407 = vpack.c.b16 %v8353, %v8347
        %v8408 = vpack.c.b16 %v8360, %v8354
        %v8409 = vpack.c.b16 %v8361, %v8355
        %v8410 = vpack.c.b16 %v8362, %v8356
        %v8411 = vpack.c.b16 %v8363, %v8357
        %v8412 = vpack.c.b16 %v8364, %v8358
        %v8413 = vpack.c.b16 %v8365, %v8359
        %8462 = vmatpush.bf16.msra.mxu0 %v8408
        %8463 = vmatpush.bf16.msra.mxu0 %v8402
        %8464 = vmatpush.bf16.msra.mxu0 %v8396
        %8465 = vmatpush.bf16.msra.mxu0 %v8390
        %8466 = vmatpush.bf16.msra.mxu0 %v8384
        %8467 = vmatpush.bf16.msra.mxu0 %v8378
        %8468 = vmatpush.bf16.msra.mxu0 %v8372
        %8469 = vmatpush.bf16.msra.mxu0 %v8366
        %8470 = vmatmul.bf16.gmra.mxu0 %v8173
        %v8471 = vpop.f32.mrf.mxu0
        %v8472 = vadd.f32 0.0, %v8471
        %v8473 = vpop.f32.mrf.mxu0
        %8474 = vdwg.mxu0
        %8475 = vmatpush.bf16.msra.mxu0 %v8409
        %8476 = vmatpush.bf16.msra.mxu0 %v8403
        %8477 = vmatpush.bf16.msra.mxu0 %v8397
        %8478 = vmatpush.bf16.msra.mxu0 %v8391
        %8479 = vmatpush.bf16.msra.mxu0 %v8385
        %8480 = vmatpush.bf16.msra.mxu0 %v8379
        %8481 = vmatpush.bf16.msra.mxu0 %v8373
        %8482 = vmatpush.bf16.msra.mxu0 %v8367
        %8483 = vmatmul.bf16.gmra.mxu0 %v8173
        %v8484 = vpop.f32.mrf.mxu0
        %v8485 = vadd.f32 0.0, %v8484
        %v8486 = vpop.f32.mrf.mxu0
        %8487 = vdwg.mxu0
        %8488 = vmatpush.bf16.msra.mxu0 %v8410
        %8489 = vmatpush.bf16.msra.mxu0 %v8404
        %8490 = vmatpush.bf16.msra.mxu0 %v8398
        %8491 = vmatpush.bf16.msra.mxu0 %v8392
        %8492 = vmatpush.bf16.msra.mxu0 %v8386
        %8493 = vmatpush.bf16.msra.mxu0 %v8380
        %8494 = vmatpush.bf16.msra.mxu0 %v8374
        %8495 = vmatpush.bf16.msra.mxu0 %v8368
        %8496 = vmatmul.bf16.gmra.mxu0 %v8173
        %v8497 = vpop.f32.mrf.mxu0
        %v8498 = vadd.f32 0.0, %v8497
        %v8499 = vpop.f32.mrf.mxu0
        %8500 = vdwg.mxu0
        %8501 = vmatpush.bf16.msra.mxu0 %v8411
        %8502 = vmatpush.bf16.msra.mxu0 %v8405
        %8503 = vmatpush.bf16.msra.mxu0 %v8399
        %8504 = vmatpush.bf16.msra.mxu0 %v8393
        %8505 = vmatpush.bf16.msra.mxu0 %v8387
        %8506 = vmatpush.bf16.msra.mxu0 %v8381
        %8507 = vmatpush.bf16.msra.mxu0 %v8375
        %8508 = vmatpush.bf16.msra.mxu0 %v8369
        %8509 = vmatmul.bf16.gmra.mxu0 %v8173
        %v8510 = vpop.f32.mrf.mxu0
        %v8511 = vadd.f32 0.0, %v8510
        %v8512 = vpop.f32.mrf.mxu0
        %8513 = vdwg.mxu0
        %8514 = vmatpush.bf16.msra.mxu0 %v8412
        %8515 = vmatpush.bf16.msra.mxu0 %v8406
        %8516 = vmatpush.bf16.msra.mxu0 %v8400
        %8517 = vmatpush.bf16.msra.mxu0 %v8394
        %8518 = vmatpush.bf16.msra.mxu0 %v8388
        %8519 = vmatpush.bf16.msra.mxu0 %v8382
        %8520 = vmatpush.bf16.msra.mxu0 %v8376
        %8521 = vmatpush.bf16.msra.mxu0 %v8370
        %8522 = vmatmul.bf16.gmra.mxu0 %v8173
        %v8523 = vpop.f32.mrf.mxu0
        %v8524 = vadd.f32 0.0, %v8523
        %v8525 = vpop.f32.mrf.mxu0
        %8526 = vdwg.mxu0
        %8527 = vmatpush.bf16.msra.mxu0 %v8413
        %8528 = vmatpush.bf16.msra.mxu0 %v8407
        %8529 = vmatpush.bf16.msra.mxu0 %v8401
        %8530 = vmatpush.bf16.msra.mxu0 %v8395
        %8531 = vmatpush.bf16.msra.mxu0 %v8389
        %8532 = vmatpush.bf16.msra.mxu0 %v8383
        %8533 = vmatpush.bf16.msra.mxu0 %v8377
        %8534 = vmatpush.bf16.msra.mxu0 %v8371
        %8535 = vmatmul.bf16.gmra.mxu0 %v8173
        %v8536 = vpop.f32.mrf.mxu0
        %v8537 = vadd.f32 0.0, %v8536
        %v8538 = vpop.f32.mrf.mxu0
        %8539 = vdwg.mxu0
        %v8540 = vadd.f32 %v8102, %v8472
        %v8541 = vadd.f32 %v8115, %v8485
        %v8542 = vadd.f32 %v8128, %v8498
        %v8543 = vadd.f32 %v8141, %v8511
        %v8544 = vadd.f32 %v8154, %v8524
        %v8545 = vadd.f32 %v8167, %v8537
        %s8546 = sadd.s32 %s7430, 24
        %s8547 = scalar_lea.vmem [#allocation3], %s8546
        %v8548 = vld [vmem:[%s8547] sm:$0xff]
        %v8549 = vpack.c.bf16 %v8548, %v8548
        %v8550 = vld [vmem:[%s433 + $0x480] sm:$0xff]
        %v8551 = vld [vmem:[%s433 + $0x488] sm:$0xff]
        %v8552 = vld [vmem:[%s433 + $0x490] sm:$0xff]
        %v8553 = vld [vmem:[%s433 + $0x498] sm:$0xff]
        %v8554 = vld [vmem:[%s433 + $0x4a0] sm:$0xff]
        %v8555 = vld [vmem:[%s433 + $0x4a8] sm:$0xff]
        %v8556 = vld [vmem:[%s433 + $0x4b0] sm:$0xff]
        %v8557 = vld [vmem:[%s433 + $0x4b8] sm:$0xff]
        %v8558 = vld [vmem:[%s433 + $0x4c0] sm:$0xff]
        %v8559 = vld [vmem:[%s433 + $0x4c8] sm:$0xff]
        %v8560 = vld [vmem:[%s433 + $0x4d0] sm:$0xff]
        %v8561 = vld [vmem:[%s433 + $0x4d8] sm:$0xff]
        %v8562 = vld [vmem:[%s433 + $0x4e0] sm:$0xff]
        %v8563 = vld [vmem:[%s433 + $0x4e8] sm:$0xff]
        %v8564 = vld [vmem:[%s433 + $0x4f0] sm:$0xff]
        %v8565 = vld [vmem:[%s433 + $0x4f8] sm:$0xff]
        %v8566 = vld [vmem:[%s433 + $0x500] sm:$0xff]
        %v8567 = vld [vmem:[%s433 + $0x508] sm:$0xff]
        %v8568 = vld [vmem:[%s433 + $0x510] sm:$0xff]
        %v8569 = vld [vmem:[%s433 + $0x518] sm:$0xff]
        %v8570 = vld [vmem:[%s433 + $0x520] sm:$0xff]
        %v8571 = vld [vmem:[%s433 + $0x528] sm:$0xff]
        %v8572 = vld [vmem:[%s433 + $0x530] sm:$0xff]
        %v8573 = vld [vmem:[%s433 + $0x538] sm:$0xff]
        %v8574 = vld [vmem:[%s433 + $0x540] sm:$0xff]
        %v8575 = vld [vmem:[%s433 + $0x548] sm:$0xff]
        %v8576 = vld [vmem:[%s433 + $0x550] sm:$0xff]
        %v8577 = vld [vmem:[%s433 + $0x558] sm:$0xff]
        %v8578 = vld [vmem:[%s433 + $0x560] sm:$0xff]
        %v8579 = vld [vmem:[%s433 + $0x568] sm:$0xff]
        %v8580 = vld [vmem:[%s433 + $0x570] sm:$0xff]
        %v8581 = vld [vmem:[%s433 + $0x578] sm:$0xff]
        %v8582 = vld [vmem:[%s433 + $0x580] sm:$0xff]
        %v8583 = vld [vmem:[%s433 + $0x588] sm:$0xff]
        %v8584 = vld [vmem:[%s433 + $0x590] sm:$0xff]
        %v8585 = vld [vmem:[%s433 + $0x598] sm:$0xff]
        %v8586 = vld [vmem:[%s433 + $0x5a0] sm:$0xff]
        %v8587 = vld [vmem:[%s433 + $0x5a8] sm:$0xff]
        %v8588 = vld [vmem:[%s433 + $0x5b0] sm:$0xff]
        %v8589 = vld [vmem:[%s433 + $0x5b8] sm:$0xff]
        %v8590 = vld [vmem:[%s433 + $0x5c0] sm:$0xff]
        %v8591 = vld [vmem:[%s433 + $0x5c8] sm:$0xff]
        %v8592 = vld [vmem:[%s433 + $0x5d0] sm:$0xff]
        %v8593 = vld [vmem:[%s433 + $0x5d8] sm:$0xff]
        %v8594 = vld [vmem:[%s433 + $0x5e0] sm:$0xff]
        %v8595 = vld [vmem:[%s433 + $0x5e8] sm:$0xff]
        %v8596 = vld [vmem:[%s433 + $0x5f0] sm:$0xff]
        %v8597 = vld [vmem:[%s433 + $0x5f8] sm:$0xff]
        %v8646 = vunpack.c.l.b16 %v8550
        %v8647 = vunpack.c.h.b16 %v8550
        %v8648 = vunpack.c.l.b16 %v8551
        %v8649 = vunpack.c.h.b16 %v8551
        %v8650 = vunpack.c.l.b16 %v8552
        %v8651 = vunpack.c.h.b16 %v8552
        %v8652 = vunpack.c.l.b16 %v8553
        %v8653 = vunpack.c.h.b16 %v8553
        %v8654 = vunpack.c.l.b16 %v8554
        %v8655 = vunpack.c.h.b16 %v8554
        %v8656 = vunpack.c.l.b16 %v8555
        %v8657 = vunpack.c.h.b16 %v8555
        %v8658 = vunpack.c.l.b16 %v8556
        %v8659 = vunpack.c.h.b16 %v8556
        %v8660 = vunpack.c.l.b16 %v8557
        %v8661 = vunpack.c.h.b16 %v8557
        %v8662 = vunpack.c.l.b16 %v8558
        %v8663 = vunpack.c.h.b16 %v8558
        %v8664 = vunpack.c.l.b16 %v8559
        %v8665 = vunpack.c.h.b16 %v8559
        %v8666 = vunpack.c.l.b16 %v8560
        %v8667 = vunpack.c.h.b16 %v8560
        %v8668 = vunpack.c.l.b16 %v8561
        %v8669 = vunpack.c.h.b16 %v8561
        %v8670 = vunpack.c.l.b16 %v8562
        %v8671 = vunpack.c.h.b16 %v8562
        %v8672 = vunpack.c.l.b16 %v8563
        %v8673 = vunpack.c.h.b16 %v8563
        %v8674 = vunpack.c.l.b16 %v8564
        %v8675 = vunpack.c.h.b16 %v8564
        %v8676 = vunpack.c.l.b16 %v8565
        %v8677 = vunpack.c.h.b16 %v8565
        %v8678 = vunpack.c.l.b16 %v8566
        %v8679 = vunpack.c.h.b16 %v8566
        %v8680 = vunpack.c.l.b16 %v8567
        %v8681 = vunpack.c.h.b16 %v8567
        %v8682 = vunpack.c.l.b16 %v8568
        %v8683 = vunpack.c.h.b16 %v8568
        %v8684 = vunpack.c.l.b16 %v8569
        %v8685 = vunpack.c.h.b16 %v8569
        %v8686 = vunpack.c.l.b16 %v8570
        %v8687 = vunpack.c.h.b16 %v8570
        %v8688 = vunpack.c.l.b16 %v8571
        %v8689 = vunpack.c.h.b16 %v8571
        %v8690 = vunpack.c.l.b16 %v8572
        %v8691 = vunpack.c.h.b16 %v8572
        %v8692 = vunpack.c.l.b16 %v8573
        %v8693 = vunpack.c.h.b16 %v8573
        %v8694 = vunpack.c.l.b16 %v8574
        %v8695 = vunpack.c.h.b16 %v8574
        %v8696 = vunpack.c.l.b16 %v8575
        %v8697 = vunpack.c.h.b16 %v8575
        %v8698 = vunpack.c.l.b16 %v8576
        %v8699 = vunpack.c.h.b16 %v8576
        %v8700 = vunpack.c.l.b16 %v8577
        %v8701 = vunpack.c.h.b16 %v8577
        %v8702 = vunpack.c.l.b16 %v8578
        %v8703 = vunpack.c.h.b16 %v8578
        %v8704 = vunpack.c.l.b16 %v8579
        %v8705 = vunpack.c.h.b16 %v8579
        %v8706 = vunpack.c.l.b16 %v8580
        %v8707 = vunpack.c.h.b16 %v8580
        %v8708 = vunpack.c.l.b16 %v8581
        %v8709 = vunpack.c.h.b16 %v8581
        %v8710 = vunpack.c.l.b16 %v8582
        %v8711 = vunpack.c.h.b16 %v8582
        %v8712 = vunpack.c.l.b16 %v8583
        %v8713 = vunpack.c.h.b16 %v8583
        %v8714 = vunpack.c.l.b16 %v8584
        %v8715 = vunpack.c.h.b16 %v8584
        %v8716 = vunpack.c.l.b16 %v8585
        %v8717 = vunpack.c.h.b16 %v8585
        %v8718 = vunpack.c.l.b16 %v8586
        %v8719 = vunpack.c.h.b16 %v8586
        %v8720 = vunpack.c.l.b16 %v8587
        %v8721 = vunpack.c.h.b16 %v8587
        %v8722 = vunpack.c.l.b16 %v8588
        %v8723 = vunpack.c.h.b16 %v8588
        %v8724 = vunpack.c.l.b16 %v8589
        %v8725 = vunpack.c.h.b16 %v8589
        %v8726 = vunpack.c.l.b16 %v8590
        %v8727 = vunpack.c.h.b16 %v8590
        %v8728 = vunpack.c.l.b16 %v8591
        %v8729 = vunpack.c.h.b16 %v8591
        %v8730 = vunpack.c.l.b16 %v8592
        %v8731 = vunpack.c.h.b16 %v8592
        %v8732 = vunpack.c.l.b16 %v8593
        %v8733 = vunpack.c.h.b16 %v8593
        %v8734 = vunpack.c.l.b16 %v8594
        %v8735 = vunpack.c.h.b16 %v8594
        %v8736 = vunpack.c.l.b16 %v8595
        %v8737 = vunpack.c.h.b16 %v8595
        %v8738 = vunpack.c.l.b16 %v8596
        %v8739 = vunpack.c.h.b16 %v8596
        %v8740 = vunpack.c.l.b16 %v8597
        %v8741 = vunpack.c.h.b16 %v8597
        %v8742 = vpack.c.b16 %v8652, %v8646
        %v8743 = vpack.c.b16 %v8653, %v8647
        %v8744 = vpack.c.b16 %v8654, %v8648
        %v8745 = vpack.c.b16 %v8655, %v8649
        %v8746 = vpack.c.b16 %v8656, %v8650
        %v8747 = vpack.c.b16 %v8657, %v8651
        %v8748 = vpack.c.b16 %v8664, %v8658
        %v8749 = vpack.c.b16 %v8665, %v8659
        %v8750 = vpack.c.b16 %v8666, %v8660
        %v8751 = vpack.c.b16 %v8667, %v8661
        %v8752 = vpack.c.b16 %v8668, %v8662
        %v8753 = vpack.c.b16 %v8669, %v8663
        %v8754 = vpack.c.b16 %v8676, %v8670
        %v8755 = vpack.c.b16 %v8677, %v8671
        %v8756 = vpack.c.b16 %v8678, %v8672
        %v8757 = vpack.c.b16 %v8679, %v8673
        %v8758 = vpack.c.b16 %v8680, %v8674
        %v8759 = vpack.c.b16 %v8681, %v8675
        %v8760 = vpack.c.b16 %v8688, %v8682
        %v8761 = vpack.c.b16 %v8689, %v8683
        %v8762 = vpack.c.b16 %v8690, %v8684
        %v8763 = vpack.c.b16 %v8691, %v8685
        %v8764 = vpack.c.b16 %v8692, %v8686
        %v8765 = vpack.c.b16 %v8693, %v8687
        %v8766 = vpack.c.b16 %v8700, %v8694
        %v8767 = vpack.c.b16 %v8701, %v8695
        %v8768 = vpack.c.b16 %v8702, %v8696
        %v8769 = vpack.c.b16 %v8703, %v8697
        %v8770 = vpack.c.b16 %v8704, %v8698
        %v8771 = vpack.c.b16 %v8705, %v8699
        %v8772 = vpack.c.b16 %v8712, %v8706
        %v8773 = vpack.c.b16 %v8713, %v8707
        %v8774 = vpack.c.b16 %v8714, %v8708
        %v8775 = vpack.c.b16 %v8715, %v8709
        %v8776 = vpack.c.b16 %v8716, %v8710
        %v8777 = vpack.c.b16 %v8717, %v8711
        %v8778 = vpack.c.b16 %v8724, %v8718
        %v8779 = vpack.c.b16 %v8725, %v8719
        %v8780 = vpack.c.b16 %v8726, %v8720
        %v8781 = vpack.c.b16 %v8727, %v8721
        %v8782 = vpack.c.b16 %v8728, %v8722
        %v8783 = vpack.c.b16 %v8729, %v8723
        %v8784 = vpack.c.b16 %v8736, %v8730
        %v8785 = vpack.c.b16 %v8737, %v8731
        %v8786 = vpack.c.b16 %v8738, %v8732
        %v8787 = vpack.c.b16 %v8739, %v8733
        %v8788 = vpack.c.b16 %v8740, %v8734
        %v8789 = vpack.c.b16 %v8741, %v8735
        %8838 = vmatpush.bf16.msra.mxu0 %v8784
        %8839 = vmatpush.bf16.msra.mxu0 %v8778
        %8840 = vmatpush.bf16.msra.mxu0 %v8772
        %8841 = vmatpush.bf16.msra.mxu0 %v8766
        %8842 = vmatpush.bf16.msra.mxu0 %v8760
        %8843 = vmatpush.bf16.msra.mxu0 %v8754
        %8844 = vmatpush.bf16.msra.mxu0 %v8748
        %8845 = vmatpush.bf16.msra.mxu0 %v8742
        %8846 = vmatmul.bf16.gmra.mxu0 %v8549
        %v8847 = vpop.f32.mrf.mxu0
        %v8848 = vadd.f32 0.0, %v8847
        %v8849 = vpop.f32.mrf.mxu0
        %8850 = vdwg.mxu0
        %8851 = vmatpush.bf16.msra.mxu0 %v8785
        %8852 = vmatpush.bf16.msra.mxu0 %v8779
        %8853 = vmatpush.bf16.msra.mxu0 %v8773
        %8854 = vmatpush.bf16.msra.mxu0 %v8767
        %8855 = vmatpush.bf16.msra.mxu0 %v8761
        %8856 = vmatpush.bf16.msra.mxu0 %v8755
        %8857 = vmatpush.bf16.msra.mxu0 %v8749
        %8858 = vmatpush.bf16.msra.mxu0 %v8743
        %8859 = vmatmul.bf16.gmra.mxu0 %v8549
        %v8860 = vpop.f32.mrf.mxu0
        %v8861 = vadd.f32 0.0, %v8860
        %v8862 = vpop.f32.mrf.mxu0
        %8863 = vdwg.mxu0
        %8864 = vmatpush.bf16.msra.mxu0 %v8786
        %8865 = vmatpush.bf16.msra.mxu0 %v8780
        %8866 = vmatpush.bf16.msra.mxu0 %v8774
        %8867 = vmatpush.bf16.msra.mxu0 %v8768
        %8868 = vmatpush.bf16.msra.mxu0 %v8762
        %8869 = vmatpush.bf16.msra.mxu0 %v8756
        %8870 = vmatpush.bf16.msra.mxu0 %v8750
        %8871 = vmatpush.bf16.msra.mxu0 %v8744
        %8872 = vmatmul.bf16.gmra.mxu0 %v8549
        %v8873 = vpop.f32.mrf.mxu0
        %v8874 = vadd.f32 0.0, %v8873
        %v8875 = vpop.f32.mrf.mxu0
        %8876 = vdwg.mxu0
        %8877 = vmatpush.bf16.msra.mxu0 %v8787
        %8878 = vmatpush.bf16.msra.mxu0 %v8781
        %8879 = vmatpush.bf16.msra.mxu0 %v8775
        %8880 = vmatpush.bf16.msra.mxu0 %v8769
        %8881 = vmatpush.bf16.msra.mxu0 %v8763
        %8882 = vmatpush.bf16.msra.mxu0 %v8757
        %8883 = vmatpush.bf16.msra.mxu0 %v8751
        %8884 = vmatpush.bf16.msra.mxu0 %v8745
        %8885 = vmatmul.bf16.gmra.mxu0 %v8549
        %v8886 = vpop.f32.mrf.mxu0
        %v8887 = vadd.f32 0.0, %v8886
        %v8888 = vpop.f32.mrf.mxu0
        %8889 = vdwg.mxu0
        %8890 = vmatpush.bf16.msra.mxu0 %v8788
        %8891 = vmatpush.bf16.msra.mxu0 %v8782
        %8892 = vmatpush.bf16.msra.mxu0 %v8776
        %8893 = vmatpush.bf16.msra.mxu0 %v8770
        %8894 = vmatpush.bf16.msra.mxu0 %v8764
        %8895 = vmatpush.bf16.msra.mxu0 %v8758
        %8896 = vmatpush.bf16.msra.mxu0 %v8752
        %8897 = vmatpush.bf16.msra.mxu0 %v8746
        %8898 = vmatmul.bf16.gmra.mxu0 %v8549
        %v8899 = vpop.f32.mrf.mxu0
        %v8900 = vadd.f32 0.0, %v8899
        %v8901 = vpop.f32.mrf.mxu0
        %8902 = vdwg.mxu0
        %8903 = vmatpush.bf16.msra.mxu0 %v8789
        %8904 = vmatpush.bf16.msra.mxu0 %v8783
        %8905 = vmatpush.bf16.msra.mxu0 %v8777
        %8906 = vmatpush.bf16.msra.mxu0 %v8771
        %8907 = vmatpush.bf16.msra.mxu0 %v8765
        %8908 = vmatpush.bf16.msra.mxu0 %v8759
        %8909 = vmatpush.bf16.msra.mxu0 %v8753
        %8910 = vmatpush.bf16.msra.mxu0 %v8747
        %8911 = vmatmul.bf16.gmra.mxu0 %v8549
        %v8912 = vpop.f32.mrf.mxu0
        %v8913 = vadd.f32 0.0, %v8912
        %v8914 = vpop.f32.mrf.mxu0
        %8915 = vdwg.mxu0
        %v8916 = vadd.f32 %v8540, %v8848
        %v8917 = vadd.f32 %v8541, %v8861
        %v8918 = vadd.f32 %v8542, %v8874
        %v8919 = vadd.f32 %v8543, %v8887
        %v8920 = vadd.f32 %v8544, %v8900
        %v8921 = vadd.f32 %v8545, %v8913
        %s8922 = sadd.s32 %s7430, 32
        %s8923 = scalar_lea.vmem [#allocation3], %s8922
        %v8924 = vld [vmem:[%s8923] sm:$0xff]
        %v8925 = vpack.c.bf16 %v8924, %v8924
        %v8926 = vld [vmem:[%s433 + $0x600] sm:$0xff]
        %v8927 = vld [vmem:[%s433 + $0x608] sm:$0xff]
        %v8928 = vld [vmem:[%s433 + $0x610] sm:$0xff]
        %v8929 = vld [vmem:[%s433 + $0x618] sm:$0xff]
        %v8930 = vld [vmem:[%s433 + $0x620] sm:$0xff]
        %v8931 = vld [vmem:[%s433 + $0x628] sm:$0xff]
        %v8932 = vld [vmem:[%s433 + $0x630] sm:$0xff]
        %v8933 = vld [vmem:[%s433 + $0x638] sm:$0xff]
        %v8934 = vld [vmem:[%s433 + $0x640] sm:$0xff]
        %v8935 = vld [vmem:[%s433 + $0x648] sm:$0xff]
        %v8936 = vld [vmem:[%s433 + $0x650] sm:$0xff]
        %v8937 = vld [vmem:[%s433 + $0x658] sm:$0xff]
        %v8938 = vld [vmem:[%s433 + $0x660] sm:$0xff]
        %v8939 = vld [vmem:[%s433 + $0x668] sm:$0xff]
        %v8940 = vld [vmem:[%s433 + $0x670] sm:$0xff]
        %v8941 = vld [vmem:[%s433 + $0x678] sm:$0xff]
        %v8942 = vld [vmem:[%s433 + $0x680] sm:$0xff]
        %v8943 = vld [vmem:[%s433 + $0x688] sm:$0xff]
        %v8944 = vld [vmem:[%s433 + $0x690] sm:$0xff]
        %v8945 = vld [vmem:[%s433 + $0x698] sm:$0xff]
        %v8946 = vld [vmem:[%s433 + $0x6a0] sm:$0xff]
        %v8947 = vld [vmem:[%s433 + $0x6a8] sm:$0xff]
        %v8948 = vld [vmem:[%s433 + $0x6b0] sm:$0xff]
        %v8949 = vld [vmem:[%s433 + $0x6b8] sm:$0xff]
        %v8950 = vld [vmem:[%s433 + $0x6c0] sm:$0xff]
        %v8951 = vld [vmem:[%s433 + $0x6c8] sm:$0xff]
        %v8952 = vld [vmem:[%s433 + $0x6d0] sm:$0xff]
        %v8953 = vld [vmem:[%s433 + $0x6d8] sm:$0xff]
        %v8954 = vld [vmem:[%s433 + $0x6e0] sm:$0xff]
        %v8955 = vld [vmem:[%s433 + $0x6e8] sm:$0xff]
        %v8956 = vld [vmem:[%s433 + $0x6f0] sm:$0xff]
        %v8957 = vld [vmem:[%s433 + $0x6f8] sm:$0xff]
        %v8958 = vld [vmem:[%s433 + $0x700] sm:$0xff]
        %v8959 = vld [vmem:[%s433 + $0x708] sm:$0xff]
        %v8960 = vld [vmem:[%s433 + $0x710] sm:$0xff]
        %v8961 = vld [vmem:[%s433 + $0x718] sm:$0xff]
        %v8962 = vld [vmem:[%s433 + $0x720] sm:$0xff]
        %v8963 = vld [vmem:[%s433 + $0x728] sm:$0xff]
        %v8964 = vld [vmem:[%s433 + $0x730] sm:$0xff]
        %v8965 = vld [vmem:[%s433 + $0x738] sm:$0xff]
        %v8966 = vld [vmem:[%s433 + $0x740] sm:$0xff]
        %v8967 = vld [vmem:[%s433 + $0x748] sm:$0xff]
        %v8968 = vld [vmem:[%s433 + $0x750] sm:$0xff]
        %v8969 = vld [vmem:[%s433 + $0x758] sm:$0xff]
        %v8970 = vld [vmem:[%s433 + $0x760] sm:$0xff]
        %v8971 = vld [vmem:[%s433 + $0x768] sm:$0xff]
        %v8972 = vld [vmem:[%s433 + $0x770] sm:$0xff]
        %v8973 = vld [vmem:[%s433 + $0x778] sm:$0xff]
        %v9022 = vunpack.c.l.b16 %v8926
        %v9023 = vunpack.c.h.b16 %v8926
        %v9024 = vunpack.c.l.b16 %v8927
        %v9025 = vunpack.c.h.b16 %v8927
        %v9026 = vunpack.c.l.b16 %v8928
        %v9027 = vunpack.c.h.b16 %v8928
        %v9028 = vunpack.c.l.b16 %v8929
        %v9029 = vunpack.c.h.b16 %v8929
        %v9030 = vunpack.c.l.b16 %v8930
        %v9031 = vunpack.c.h.b16 %v8930
        %v9032 = vunpack.c.l.b16 %v8931
        %v9033 = vunpack.c.h.b16 %v8931
        %v9034 = vunpack.c.l.b16 %v8932
        %v9035 = vunpack.c.h.b16 %v8932
        %v9036 = vunpack.c.l.b16 %v8933
        %v9037 = vunpack.c.h.b16 %v8933
        %v9038 = vunpack.c.l.b16 %v8934
        %v9039 = vunpack.c.h.b16 %v8934
        %v9040 = vunpack.c.l.b16 %v8935
        %v9041 = vunpack.c.h.b16 %v8935
        %v9042 = vunpack.c.l.b16 %v8936
        %v9043 = vunpack.c.h.b16 %v8936
        %v9044 = vunpack.c.l.b16 %v8937
        %v9045 = vunpack.c.h.b16 %v8937
        %v9046 = vunpack.c.l.b16 %v8938
        %v9047 = vunpack.c.h.b16 %v8938
        %v9048 = vunpack.c.l.b16 %v8939
        %v9049 = vunpack.c.h.b16 %v8939
        %v9050 = vunpack.c.l.b16 %v8940
        %v9051 = vunpack.c.h.b16 %v8940
        %v9052 = vunpack.c.l.b16 %v8941
        %v9053 = vunpack.c.h.b16 %v8941
        %v9054 = vunpack.c.l.b16 %v8942
        %v9055 = vunpack.c.h.b16 %v8942
        %v9056 = vunpack.c.l.b16 %v8943
        %v9057 = vunpack.c.h.b16 %v8943
        %v9058 = vunpack.c.l.b16 %v8944
        %v9059 = vunpack.c.h.b16 %v8944
        %v9060 = vunpack.c.l.b16 %v8945
        %v9061 = vunpack.c.h.b16 %v8945
        %v9062 = vunpack.c.l.b16 %v8946
        %v9063 = vunpack.c.h.b16 %v8946
        %v9064 = vunpack.c.l.b16 %v8947
        %v9065 = vunpack.c.h.b16 %v8947
        %v9066 = vunpack.c.l.b16 %v8948
        %v9067 = vunpack.c.h.b16 %v8948
        %v9068 = vunpack.c.l.b16 %v8949
        %v9069 = vunpack.c.h.b16 %v8949
        %v9070 = vunpack.c.l.b16 %v8950
        %v9071 = vunpack.c.h.b16 %v8950
        %v9072 = vunpack.c.l.b16 %v8951
        %v9073 = vunpack.c.h.b16 %v8951
        %v9074 = vunpack.c.l.b16 %v8952
        %v9075 = vunpack.c.h.b16 %v8952
        %v9076 = vunpack.c.l.b16 %v8953
        %v9077 = vunpack.c.h.b16 %v8953
        %v9078 = vunpack.c.l.b16 %v8954
        %v9079 = vunpack.c.h.b16 %v8954
        %v9080 = vunpack.c.l.b16 %v8955
        %v9081 = vunpack.c.h.b16 %v8955
        %v9082 = vunpack.c.l.b16 %v8956
        %v9083 = vunpack.c.h.b16 %v8956
        %v9084 = vunpack.c.l.b16 %v8957
        %v9085 = vunpack.c.h.b16 %v8957
        %v9086 = vunpack.c.l.b16 %v8958
        %v9087 = vunpack.c.h.b16 %v8958
        %v9088 = vunpack.c.l.b16 %v8959
        %v9089 = vunpack.c.h.b16 %v8959
        %v9090 = vunpack.c.l.b16 %v8960
        %v9091 = vunpack.c.h.b16 %v8960
        %v9092 = vunpack.c.l.b16 %v8961
        %v9093 = vunpack.c.h.b16 %v8961
        %v9094 = vunpack.c.l.b16 %v8962
        %v9095 = vunpack.c.h.b16 %v8962
        %v9096 = vunpack.c.l.b16 %v8963
        %v9097 = vunpack.c.h.b16 %v8963
        %v9098 = vunpack.c.l.b16 %v8964
        %v9099 = vunpack.c.h.b16 %v8964
        %v9100 = vunpack.c.l.b16 %v8965
        %v9101 = vunpack.c.h.b16 %v8965
        %v9102 = vunpack.c.l.b16 %v8966
        %v9103 = vunpack.c.h.b16 %v8966
        %v9104 = vunpack.c.l.b16 %v8967
        %v9105 = vunpack.c.h.b16 %v8967
        %v9106 = vunpack.c.l.b16 %v8968
        %v9107 = vunpack.c.h.b16 %v8968
        %v9108 = vunpack.c.l.b16 %v8969
        %v9109 = vunpack.c.h.b16 %v8969
        %v9110 = vunpack.c.l.b16 %v8970
        %v9111 = vunpack.c.h.b16 %v8970
        %v9112 = vunpack.c.l.b16 %v8971
        %v9113 = vunpack.c.h.b16 %v8971
        %v9114 = vunpack.c.l.b16 %v8972
        %v9115 = vunpack.c.h.b16 %v8972
        %v9116 = vunpack.c.l.b16 %v8973
        %v9117 = vunpack.c.h.b16 %v8973
        %v9118 = vpack.c.b16 %v9028, %v9022
        %v9119 = vpack.c.b16 %v9029, %v9023
        %v9120 = vpack.c.b16 %v9030, %v9024
        %v9121 = vpack.c.b16 %v9031, %v9025
        %v9122 = vpack.c.b16 %v9032, %v9026
        %v9123 = vpack.c.b16 %v9033, %v9027
        %v9124 = vpack.c.b16 %v9040, %v9034
        %v9125 = vpack.c.b16 %v9041, %v9035
        %v9126 = vpack.c.b16 %v9042, %v9036
        %v9127 = vpack.c.b16 %v9043, %v9037
        %v9128 = vpack.c.b16 %v9044, %v9038
        %v9129 = vpack.c.b16 %v9045, %v9039
        %v9130 = vpack.c.b16 %v9052, %v9046
        %v9131 = vpack.c.b16 %v9053, %v9047
        %v9132 = vpack.c.b16 %v9054, %v9048
        %v9133 = vpack.c.b16 %v9055, %v9049
        %v9134 = vpack.c.b16 %v9056, %v9050
        %v9135 = vpack.c.b16 %v9057, %v9051
        %v9136 = vpack.c.b16 %v9064, %v9058
        %v9137 = vpack.c.b16 %v9065, %v9059
        %v9138 = vpack.c.b16 %v9066, %v9060
        %v9139 = vpack.c.b16 %v9067, %v9061
        %v9140 = vpack.c.b16 %v9068, %v9062
        %v9141 = vpack.c.b16 %v9069, %v9063
        %v9142 = vpack.c.b16 %v9076, %v9070
        %v9143 = vpack.c.b16 %v9077, %v9071
        %v9144 = vpack.c.b16 %v9078, %v9072
        %v9145 = vpack.c.b16 %v9079, %v9073
        %v9146 = vpack.c.b16 %v9080, %v9074
        %v9147 = vpack.c.b16 %v9081, %v9075
        %v9148 = vpack.c.b16 %v9088, %v9082
        %v9149 = vpack.c.b16 %v9089, %v9083
        %v9150 = vpack.c.b16 %v9090, %v9084
        %v9151 = vpack.c.b16 %v9091, %v9085
        %v9152 = vpack.c.b16 %v9092, %v9086
        %v9153 = vpack.c.b16 %v9093, %v9087
        %v9154 = vpack.c.b16 %v9100, %v9094
        %v9155 = vpack.c.b16 %v9101, %v9095
        %v9156 = vpack.c.b16 %v9102, %v9096
        %v9157 = vpack.c.b16 %v9103, %v9097
        %v9158 = vpack.c.b16 %v9104, %v9098
        %v9159 = vpack.c.b16 %v9105, %v9099
        %v9160 = vpack.c.b16 %v9112, %v9106
        %v9161 = vpack.c.b16 %v9113, %v9107
        %v9162 = vpack.c.b16 %v9114, %v9108
        %v9163 = vpack.c.b16 %v9115, %v9109
        %v9164 = vpack.c.b16 %v9116, %v9110
        %v9165 = vpack.c.b16 %v9117, %v9111
        %9214 = vmatpush.bf16.msra.mxu0 %v9160
        %9215 = vmatpush.bf16.msra.mxu0 %v9154
        %9216 = vmatpush.bf16.msra.mxu0 %v9148
        %9217 = vmatpush.bf16.msra.mxu0 %v9142
        %9218 = vmatpush.bf16.msra.mxu0 %v9136
        %9219 = vmatpush.bf16.msra.mxu0 %v9130
        %9220 = vmatpush.bf16.msra.mxu0 %v9124
        %9221 = vmatpush.bf16.msra.mxu0 %v9118
        %9222 = vmatmul.bf16.gmra.mxu0 %v8925
        %v9223 = vpop.f32.mrf.mxu0
        %v9224 = vadd.f32 0.0, %v9223
        %v9225 = vpop.f32.mrf.mxu0
        %9226 = vdwg.mxu0
        %9227 = vmatpush.bf16.msra.mxu0 %v9161
        %9228 = vmatpush.bf16.msra.mxu0 %v9155
        %9229 = vmatpush.bf16.msra.mxu0 %v9149
        %9230 = vmatpush.bf16.msra.mxu0 %v9143
        %9231 = vmatpush.bf16.msra.mxu0 %v9137
        %9232 = vmatpush.bf16.msra.mxu0 %v9131
        %9233 = vmatpush.bf16.msra.mxu0 %v9125
        %9234 = vmatpush.bf16.msra.mxu0 %v9119
        %9235 = vmatmul.bf16.gmra.mxu0 %v8925
        %v9236 = vpop.f32.mrf.mxu0
        %v9237 = vadd.f32 0.0, %v9236
        %v9238 = vpop.f32.mrf.mxu0
        %9239 = vdwg.mxu0
        %9240 = vmatpush.bf16.msra.mxu0 %v9162
        %9241 = vmatpush.bf16.msra.mxu0 %v9156
        %9242 = vmatpush.bf16.msra.mxu0 %v9150
        %9243 = vmatpush.bf16.msra.mxu0 %v9144
        %9244 = vmatpush.bf16.msra.mxu0 %v9138
        %9245 = vmatpush.bf16.msra.mxu0 %v9132
        %9246 = vmatpush.bf16.msra.mxu0 %v9126
        %9247 = vmatpush.bf16.msra.mxu0 %v9120
        %9248 = vmatmul.bf16.gmra.mxu0 %v8925
        %v9249 = vpop.f32.mrf.mxu0
        %v9250 = vadd.f32 0.0, %v9249
        %v9251 = vpop.f32.mrf.mxu0
        %9252 = vdwg.mxu0
        %9253 = vmatpush.bf16.msra.mxu0 %v9163
        %9254 = vmatpush.bf16.msra.mxu0 %v9157
        %9255 = vmatpush.bf16.msra.mxu0 %v9151
        %9256 = vmatpush.bf16.msra.mxu0 %v9145
        %9257 = vmatpush.bf16.msra.mxu0 %v9139
        %9258 = vmatpush.bf16.msra.mxu0 %v9133
        %9259 = vmatpush.bf16.msra.mxu0 %v9127
        %9260 = vmatpush.bf16.msra.mxu0 %v9121
        %9261 = vmatmul.bf16.gmra.mxu0 %v8925
        %v9262 = vpop.f32.mrf.mxu0
        %v9263 = vadd.f32 0.0, %v9262
        %v9264 = vpop.f32.mrf.mxu0
        %9265 = vdwg.mxu0
        %9266 = vmatpush.bf16.msra.mxu0 %v9164
        %9267 = vmatpush.bf16.msra.mxu0 %v9158
        %9268 = vmatpush.bf16.msra.mxu0 %v9152
        %9269 = vmatpush.bf16.msra.mxu0 %v9146
        %9270 = vmatpush.bf16.msra.mxu0 %v9140
        %9271 = vmatpush.bf16.msra.mxu0 %v9134
        %9272 = vmatpush.bf16.msra.mxu0 %v9128
        %9273 = vmatpush.bf16.msra.mxu0 %v9122
        %9274 = vmatmul.bf16.gmra.mxu0 %v8925
        %v9275 = vpop.f32.mrf.mxu0
        %v9276 = vadd.f32 0.0, %v9275
        %v9277 = vpop.f32.mrf.mxu0
        %9278 = vdwg.mxu0
        %9279 = vmatpush.bf16.msra.mxu0 %v9165
        %9280 = vmatpush.bf16.msra.mxu0 %v9159
        %9281 = vmatpush.bf16.msra.mxu0 %v9153
        %9282 = vmatpush.bf16.msra.mxu0 %v9147
        %9283 = vmatpush.bf16.msra.mxu0 %v9141
        %9284 = vmatpush.bf16.msra.mxu0 %v9135
        %9285 = vmatpush.bf16.msra.mxu0 %v9129
        %9286 = vmatpush.bf16.msra.mxu0 %v9123
        %9287 = vmatmul.bf16.gmra.mxu0 %v8925
        %v9288 = vpop.f32.mrf.mxu0
        %v9289 = vadd.f32 0.0, %v9288
        %v9290 = vpop.f32.mrf.mxu0
        %9291 = vdwg.mxu0
        %v9292 = vadd.f32 %v8916, %v9224
        %v9293 = vadd.f32 %v8917, %v9237
        %v9294 = vadd.f32 %v8918, %v9250
        %v9295 = vadd.f32 %v8919, %v9263
        %v9296 = vadd.f32 %v8920, %v9276
        %v9297 = vadd.f32 %v8921, %v9289
        %s9298 = sadd.s32 %s7430, 40
        %s9299 = scalar_lea.vmem [#allocation3], %s9298
        %v9300 = vld [vmem:[%s9299] sm:$0xff]
        %v9301 = vpack.c.bf16 %v9300, %v9300
        %v9302 = vld [vmem:[%s433 + $0x780] sm:$0xff]
        %v9303 = vld [vmem:[%s433 + $0x788] sm:$0xff]
        %v9304 = vld [vmem:[%s433 + $0x790] sm:$0xff]
        %v9305 = vld [vmem:[%s433 + $0x798] sm:$0xff]
        %v9306 = vld [vmem:[%s433 + $0x7a0] sm:$0xff]
        %v9307 = vld [vmem:[%s433 + $0x7a8] sm:$0xff]
        %v9308 = vld [vmem:[%s433 + $0x7b0] sm:$0xff]
        %v9309 = vld [vmem:[%s433 + $0x7b8] sm:$0xff]
        %v9310 = vld [vmem:[%s433 + $0x7c0] sm:$0xff]
        %v9311 = vld [vmem:[%s433 + $0x7c8] sm:$0xff]
        %v9312 = vld [vmem:[%s433 + $0x7d0] sm:$0xff]
        %v9313 = vld [vmem:[%s433 + $0x7d8] sm:$0xff]
        %v9314 = vld [vmem:[%s433 + $0x7e0] sm:$0xff]
        %v9315 = vld [vmem:[%s433 + $0x7e8] sm:$0xff]
        %v9316 = vld [vmem:[%s433 + $0x7f0] sm:$0xff]
        %v9317 = vld [vmem:[%s433 + $0x7f8] sm:$0xff]
        %v9318 = vld [vmem:[%s433 + $0x800] sm:$0xff]
        %v9319 = vld [vmem:[%s433 + $0x808] sm:$0xff]
        %v9320 = vld [vmem:[%s433 + $0x810] sm:$0xff]
        %v9321 = vld [vmem:[%s433 + $0x818] sm:$0xff]
        %v9322 = vld [vmem:[%s433 + $0x820] sm:$0xff]
        %v9323 = vld [vmem:[%s433 + $0x828] sm:$0xff]
        %v9324 = vld [vmem:[%s433 + $0x830] sm:$0xff]
        %v9325 = vld [vmem:[%s433 + $0x838] sm:$0xff]
        %v9326 = vld [vmem:[%s433 + $0x840] sm:$0xff]
        %v9327 = vld [vmem:[%s433 + $0x848] sm:$0xff]
        %v9328 = vld [vmem:[%s433 + $0x850] sm:$0xff]
        %v9329 = vld [vmem:[%s433 + $0x858] sm:$0xff]
        %v9330 = vld [vmem:[%s433 + $0x860] sm:$0xff]
        %v9331 = vld [vmem:[%s433 + $0x868] sm:$0xff]
        %v9332 = vld [vmem:[%s433 + $0x870] sm:$0xff]
        %v9333 = vld [vmem:[%s433 + $0x878] sm:$0xff]
        %v9334 = vld [vmem:[%s433 + $0x880] sm:$0xff]
        %v9335 = vld [vmem:[%s433 + $0x888] sm:$0xff]
        %v9336 = vld [vmem:[%s433 + $0x890] sm:$0xff]
        %v9337 = vld [vmem:[%s433 + $0x898] sm:$0xff]
        %v9338 = vld [vmem:[%s433 + $0x8a0] sm:$0xff]
        %v9339 = vld [vmem:[%s433 + $0x8a8] sm:$0xff]
        %v9340 = vld [vmem:[%s433 + $0x8b0] sm:$0xff]
        %v9341 = vld [vmem:[%s433 + $0x8b8] sm:$0xff]
        %v9342 = vld [vmem:[%s433 + $0x8c0] sm:$0xff]
        %v9343 = vld [vmem:[%s433 + $0x8c8] sm:$0xff]
        %v9344 = vld [vmem:[%s433 + $0x8d0] sm:$0xff]
        %v9345 = vld [vmem:[%s433 + $0x8d8] sm:$0xff]
        %v9346 = vld [vmem:[%s433 + $0x8e0] sm:$0xff]
        %v9347 = vld [vmem:[%s433 + $0x8e8] sm:$0xff]
        %v9348 = vld [vmem:[%s433 + $0x8f0] sm:$0xff]
        %v9349 = vld [vmem:[%s433 + $0x8f8] sm:$0xff]
        %v9398 = vunpack.c.l.b16 %v9302
        %v9399 = vunpack.c.h.b16 %v9302
        %v9400 = vunpack.c.l.b16 %v9303
        %v9401 = vunpack.c.h.b16 %v9303
        %v9402 = vunpack.c.l.b16 %v9304
        %v9403 = vunpack.c.h.b16 %v9304
        %v9404 = vunpack.c.l.b16 %v9305
        %v9405 = vunpack.c.h.b16 %v9305
        %v9406 = vunpack.c.l.b16 %v9306
        %v9407 = vunpack.c.h.b16 %v9306
        %v9408 = vunpack.c.l.b16 %v9307
        %v9409 = vunpack.c.h.b16 %v9307
        %v9410 = vunpack.c.l.b16 %v9308
        %v9411 = vunpack.c.h.b16 %v9308
        %v9412 = vunpack.c.l.b16 %v9309
        %v9413 = vunpack.c.h.b16 %v9309
        %v9414 = vunpack.c.l.b16 %v9310
        %v9415 = vunpack.c.h.b16 %v9310
        %v9416 = vunpack.c.l.b16 %v9311
        %v9417 = vunpack.c.h.b16 %v9311
        %v9418 = vunpack.c.l.b16 %v9312
        %v9419 = vunpack.c.h.b16 %v9312
        %v9420 = vunpack.c.l.b16 %v9313
        %v9421 = vunpack.c.h.b16 %v9313
        %v9422 = vunpack.c.l.b16 %v9314
        %v9423 = vunpack.c.h.b16 %v9314
        %v9424 = vunpack.c.l.b16 %v9315
        %v9425 = vunpack.c.h.b16 %v9315
        %v9426 = vunpack.c.l.b16 %v9316
        %v9427 = vunpack.c.h.b16 %v9316
        %v9428 = vunpack.c.l.b16 %v9317
        %v9429 = vunpack.c.h.b16 %v9317
        %v9430 = vunpack.c.l.b16 %v9318
        %v9431 = vunpack.c.h.b16 %v9318
        %v9432 = vunpack.c.l.b16 %v9319
        %v9433 = vunpack.c.h.b16 %v9319
        %v9434 = vunpack.c.l.b16 %v9320
        %v9435 = vunpack.c.h.b16 %v9320
        %v9436 = vunpack.c.l.b16 %v9321
        %v9437 = vunpack.c.h.b16 %v9321
        %v9438 = vunpack.c.l.b16 %v9322
        %v9439 = vunpack.c.h.b16 %v9322
        %v9440 = vunpack.c.l.b16 %v9323
        %v9441 = vunpack.c.h.b16 %v9323
        %v9442 = vunpack.c.l.b16 %v9324
        %v9443 = vunpack.c.h.b16 %v9324
        %v9444 = vunpack.c.l.b16 %v9325
        %v9445 = vunpack.c.h.b16 %v9325
        %v9446 = vunpack.c.l.b16 %v9326
        %v9447 = vunpack.c.h.b16 %v9326
        %v9448 = vunpack.c.l.b16 %v9327
        %v9449 = vunpack.c.h.b16 %v9327
        %v9450 = vunpack.c.l.b16 %v9328
        %v9451 = vunpack.c.h.b16 %v9328
        %v9452 = vunpack.c.l.b16 %v9329
        %v9453 = vunpack.c.h.b16 %v9329
        %v9454 = vunpack.c.l.b16 %v9330
        %v9455 = vunpack.c.h.b16 %v9330
        %v9456 = vunpack.c.l.b16 %v9331
        %v9457 = vunpack.c.h.b16 %v9331
        %v9458 = vunpack.c.l.b16 %v9332
        %v9459 = vunpack.c.h.b16 %v9332
        %v9460 = vunpack.c.l.b16 %v9333
        %v9461 = vunpack.c.h.b16 %v9333
        %v9462 = vunpack.c.l.b16 %v9334
        %v9463 = vunpack.c.h.b16 %v9334
        %v9464 = vunpack.c.l.b16 %v9335
        %v9465 = vunpack.c.h.b16 %v9335
        %v9466 = vunpack.c.l.b16 %v9336
        %v9467 = vunpack.c.h.b16 %v9336
        %v9468 = vunpack.c.l.b16 %v9337
        %v9469 = vunpack.c.h.b16 %v9337
        %v9470 = vunpack.c.l.b16 %v9338
        %v9471 = vunpack.c.h.b16 %v9338
        %v9472 = vunpack.c.l.b16 %v9339
        %v9473 = vunpack.c.h.b16 %v9339
        %v9474 = vunpack.c.l.b16 %v9340
        %v9475 = vunpack.c.h.b16 %v9340
        %v9476 = vunpack.c.l.b16 %v9341
        %v9477 = vunpack.c.h.b16 %v9341
        %v9478 = vunpack.c.l.b16 %v9342
        %v9479 = vunpack.c.h.b16 %v9342
        %v9480 = vunpack.c.l.b16 %v9343
        %v9481 = vunpack.c.h.b16 %v9343
        %v9482 = vunpack.c.l.b16 %v9344
        %v9483 = vunpack.c.h.b16 %v9344
        %v9484 = vunpack.c.l.b16 %v9345
        %v9485 = vunpack.c.h.b16 %v9345
        %v9486 = vunpack.c.l.b16 %v9346
        %v9487 = vunpack.c.h.b16 %v9346
        %v9488 = vunpack.c.l.b16 %v9347
        %v9489 = vunpack.c.h.b16 %v9347
        %v9490 = vunpack.c.l.b16 %v9348
        %v9491 = vunpack.c.h.b16 %v9348
        %v9492 = vunpack.c.l.b16 %v9349
        %v9493 = vunpack.c.h.b16 %v9349
        %v9494 = vpack.c.b16 %v9404, %v9398
        %v9495 = vpack.c.b16 %v9405, %v9399
        %v9496 = vpack.c.b16 %v9406, %v9400
        %v9497 = vpack.c.b16 %v9407, %v9401
        %v9498 = vpack.c.b16 %v9408, %v9402
        %v9499 = vpack.c.b16 %v9409, %v9403
        %v9500 = vpack.c.b16 %v9416, %v9410
        %v9501 = vpack.c.b16 %v9417, %v9411
        %v9502 = vpack.c.b16 %v9418, %v9412
        %v9503 = vpack.c.b16 %v9419, %v9413
        %v9504 = vpack.c.b16 %v9420, %v9414
        %v9505 = vpack.c.b16 %v9421, %v9415
        %v9506 = vpack.c.b16 %v9428, %v9422
        %v9507 = vpack.c.b16 %v9429, %v9423
        %v9508 = vpack.c.b16 %v9430, %v9424
        %v9509 = vpack.c.b16 %v9431, %v9425
        %v9510 = vpack.c.b16 %v9432, %v9426
        %v9511 = vpack.c.b16 %v9433, %v9427
        %v9512 = vpack.c.b16 %v9440, %v9434
        %v9513 = vpack.c.b16 %v9441, %v9435
        %v9514 = vpack.c.b16 %v9442, %v9436
        %v9515 = vpack.c.b16 %v9443, %v9437
        %v9516 = vpack.c.b16 %v9444, %v9438
        %v9517 = vpack.c.b16 %v9445, %v9439
        %v9518 = vpack.c.b16 %v9452, %v9446
        %v9519 = vpack.c.b16 %v9453, %v9447
        %v9520 = vpack.c.b16 %v9454, %v9448
        %v9521 = vpack.c.b16 %v9455, %v9449
        %v9522 = vpack.c.b16 %v9456, %v9450
        %v9523 = vpack.c.b16 %v9457, %v9451
        %v9524 = vpack.c.b16 %v9464, %v9458
        %v9525 = vpack.c.b16 %v9465, %v9459
        %v9526 = vpack.c.b16 %v9466, %v9460
        %v9527 = vpack.c.b16 %v9467, %v9461
        %v9528 = vpack.c.b16 %v9468, %v9462
        %v9529 = vpack.c.b16 %v9469, %v9463
        %v9530 = vpack.c.b16 %v9476, %v9470
        %v9531 = vpack.c.b16 %v9477, %v9471
        %v9532 = vpack.c.b16 %v9478, %v9472
        %v9533 = vpack.c.b16 %v9479, %v9473
        %v9534 = vpack.c.b16 %v9480, %v9474
        %v9535 = vpack.c.b16 %v9481, %v9475
        %v9536 = vpack.c.b16 %v9488, %v9482
        %v9537 = vpack.c.b16 %v9489, %v9483
        %v9538 = vpack.c.b16 %v9490, %v9484
        %v9539 = vpack.c.b16 %v9491, %v9485
        %v9540 = vpack.c.b16 %v9492, %v9486
        %v9541 = vpack.c.b16 %v9493, %v9487
        %9590 = vmatpush.bf16.msra.mxu0 %v9536
        %9591 = vmatpush.bf16.msra.mxu0 %v9530
        %9592 = vmatpush.bf16.msra.mxu0 %v9524
        %9593 = vmatpush.bf16.msra.mxu0 %v9518
        %9594 = vmatpush.bf16.msra.mxu0 %v9512
        %9595 = vmatpush.bf16.msra.mxu0 %v9506
        %9596 = vmatpush.bf16.msra.mxu0 %v9500
        %9597 = vmatpush.bf16.msra.mxu0 %v9494
        %9598 = vmatmul.bf16.gmra.mxu0 %v9301
        %v9599 = vpop.f32.mrf.mxu0
        %v9600 = vadd.f32 0.0, %v9599
        %v9601 = vpop.f32.mrf.mxu0
        %9602 = vdwg.mxu0
        %9603 = vmatpush.bf16.msra.mxu0 %v9537
        %9604 = vmatpush.bf16.msra.mxu0 %v9531
        %9605 = vmatpush.bf16.msra.mxu0 %v9525
        %9606 = vmatpush.bf16.msra.mxu0 %v9519
        %9607 = vmatpush.bf16.msra.mxu0 %v9513
        %9608 = vmatpush.bf16.msra.mxu0 %v9507
        %9609 = vmatpush.bf16.msra.mxu0 %v9501
        %9610 = vmatpush.bf16.msra.mxu0 %v9495
        %9611 = vmatmul.bf16.gmra.mxu0 %v9301
        %v9612 = vpop.f32.mrf.mxu0
        %v9613 = vadd.f32 0.0, %v9612
        %v9614 = vpop.f32.mrf.mxu0
        %9615 = vdwg.mxu0
        %9616 = vmatpush.bf16.msra.mxu0 %v9538
        %9617 = vmatpush.bf16.msra.mxu0 %v9532
        %9618 = vmatpush.bf16.msra.mxu0 %v9526
        %9619 = vmatpush.bf16.msra.mxu0 %v9520
        %9620 = vmatpush.bf16.msra.mxu0 %v9514
        %9621 = vmatpush.bf16.msra.mxu0 %v9508
        %9622 = vmatpush.bf16.msra.mxu0 %v9502
        %9623 = vmatpush.bf16.msra.mxu0 %v9496
        %9624 = vmatmul.bf16.gmra.mxu0 %v9301
        %v9625 = vpop.f32.mrf.mxu0
        %v9626 = vadd.f32 0.0, %v9625
        %v9627 = vpop.f32.mrf.mxu0
        %9628 = vdwg.mxu0
        %9629 = vmatpush.bf16.msra.mxu0 %v9539
        %9630 = vmatpush.bf16.msra.mxu0 %v9533
        %9631 = vmatpush.bf16.msra.mxu0 %v9527
        %9632 = vmatpush.bf16.msra.mxu0 %v9521
        %9633 = vmatpush.bf16.msra.mxu0 %v9515
        %9634 = vmatpush.bf16.msra.mxu0 %v9509
        %9635 = vmatpush.bf16.msra.mxu0 %v9503
        %9636 = vmatpush.bf16.msra.mxu0 %v9497
        %9637 = vmatmul.bf16.gmra.mxu0 %v9301
        %v9638 = vpop.f32.mrf.mxu0
        %v9639 = vadd.f32 0.0, %v9638
        %v9640 = vpop.f32.mrf.mxu0
        %9641 = vdwg.mxu0
        %9642 = vmatpush.bf16.msra.mxu0 %v9540
        %9643 = vmatpush.bf16.msra.mxu0 %v9534
        %9644 = vmatpush.bf16.msra.mxu0 %v9528
        %9645 = vmatpush.bf16.msra.mxu0 %v9522
        %9646 = vmatpush.bf16.msra.mxu0 %v9516
        %9647 = vmatpush.bf16.msra.mxu0 %v9510
        %9648 = vmatpush.bf16.msra.mxu0 %v9504
        %9649 = vmatpush.bf16.msra.mxu0 %v9498
        %9650 = vmatmul.bf16.gmra.mxu0 %v9301
        %v9651 = vpop.f32.mrf.mxu0
        %v9652 = vadd.f32 0.0, %v9651
        %v9653 = vpop.f32.mrf.mxu0
        %9654 = vdwg.mxu0
        %9655 = vmatpush.bf16.msra.mxu0 %v9541
        %9656 = vmatpush.bf16.msra.mxu0 %v9535
        %9657 = vmatpush.bf16.msra.mxu0 %v9529
        %9658 = vmatpush.bf16.msra.mxu0 %v9523
        %9659 = vmatpush.bf16.msra.mxu0 %v9517
        %9660 = vmatpush.bf16.msra.mxu0 %v9511
        %9661 = vmatpush.bf16.msra.mxu0 %v9505
        %9662 = vmatpush.bf16.msra.mxu0 %v9499
        %9663 = vmatmul.bf16.gmra.mxu0 %v9301
        %v9664 = vpop.f32.mrf.mxu0
        %v9665 = vadd.f32 0.0, %v9664
        %v9666 = vpop.f32.mrf.mxu0
        %9667 = vdwg.mxu0
        %v9668 = vadd.f32 %v9292, %v9600
        %v9669 = vadd.f32 %v9293, %v9613
        %v9670 = vadd.f32 %v9294, %v9626
        %v9671 = vadd.f32 %v9295, %v9639
        %v9672 = vadd.f32 %v9296, %v9652
        %v9673 = vadd.f32 %v9297, %v9665
        %s9674 = sadd.s32 %s7430, 48
        %s9675 = scalar_lea.vmem [#allocation3], %s9674
        %v9676 = vld [vmem:[%s9675] sm:$0xff]
        %v9677 = vpack.c.bf16 %v9676, %v9676
        %v9678 = vld [vmem:[%s433 + $0x900] sm:$0xff]
        %v9679 = vld [vmem:[%s433 + $0x908] sm:$0xff]
        %v9680 = vld [vmem:[%s433 + $0x910] sm:$0xff]
        %v9681 = vld [vmem:[%s433 + $0x918] sm:$0xff]
        %v9682 = vld [vmem:[%s433 + $0x920] sm:$0xff]
        %v9683 = vld [vmem:[%s433 + $0x928] sm:$0xff]
        %v9684 = vld [vmem:[%s433 + $0x930] sm:$0xff]
        %v9685 = vld [vmem:[%s433 + $0x938] sm:$0xff]
        %v9686 = vld [vmem:[%s433 + $0x940] sm:$0xff]
        %v9687 = vld [vmem:[%s433 + $0x948] sm:$0xff]
        %v9688 = vld [vmem:[%s433 + $0x950] sm:$0xff]
        %v9689 = vld [vmem:[%s433 + $0x958] sm:$0xff]
        %v9690 = vld [vmem:[%s433 + $0x960] sm:$0xff]
        %v9691 = vld [vmem:[%s433 + $0x968] sm:$0xff]
        %v9692 = vld [vmem:[%s433 + $0x970] sm:$0xff]
        %v9693 = vld [vmem:[%s433 + $0x978] sm:$0xff]
        %v9694 = vld [vmem:[%s433 + $0x980] sm:$0xff]
        %v9695 = vld [vmem:[%s433 + $0x988] sm:$0xff]
        %v9696 = vld [vmem:[%s433 + $0x990] sm:$0xff]
        %v9697 = vld [vmem:[%s433 + $0x998] sm:$0xff]
        %v9698 = vld [vmem:[%s433 + $0x9a0] sm:$0xff]
        %v9699 = vld [vmem:[%s433 + $0x9a8] sm:$0xff]
        %v9700 = vld [vmem:[%s433 + $0x9b0] sm:$0xff]
        %v9701 = vld [vmem:[%s433 + $0x9b8] sm:$0xff]
        %v9702 = vld [vmem:[%s433 + $0x9c0] sm:$0xff]
        %v9703 = vld [vmem:[%s433 + $0x9c8] sm:$0xff]
        %v9704 = vld [vmem:[%s433 + $0x9d0] sm:$0xff]
        %v9705 = vld [vmem:[%s433 + $0x9d8] sm:$0xff]
        %v9706 = vld [vmem:[%s433 + $0x9e0] sm:$0xff]
        %v9707 = vld [vmem:[%s433 + $0x9e8] sm:$0xff]
        %v9708 = vld [vmem:[%s433 + $0x9f0] sm:$0xff]
        %v9709 = vld [vmem:[%s433 + $0x9f8] sm:$0xff]
        %v9710 = vld [vmem:[%s433 + $0xa00] sm:$0xff]
        %v9711 = vld [vmem:[%s433 + $0xa08] sm:$0xff]
        %v9712 = vld [vmem:[%s433 + $0xa10] sm:$0xff]
        %v9713 = vld [vmem:[%s433 + $0xa18] sm:$0xff]
        %v9714 = vld [vmem:[%s433 + $0xa20] sm:$0xff]
        %v9715 = vld [vmem:[%s433 + $0xa28] sm:$0xff]
        %v9716 = vld [vmem:[%s433 + $0xa30] sm:$0xff]
        %v9717 = vld [vmem:[%s433 + $0xa38] sm:$0xff]
        %v9718 = vld [vmem:[%s433 + $0xa40] sm:$0xff]
        %v9719 = vld [vmem:[%s433 + $0xa48] sm:$0xff]
        %v9720 = vld [vmem:[%s433 + $0xa50] sm:$0xff]
        %v9721 = vld [vmem:[%s433 + $0xa58] sm:$0xff]
        %v9722 = vld [vmem:[%s433 + $0xa60] sm:$0xff]
        %v9723 = vld [vmem:[%s433 + $0xa68] sm:$0xff]
        %v9724 = vld [vmem:[%s433 + $0xa70] sm:$0xff]
        %v9725 = vld [vmem:[%s433 + $0xa78] sm:$0xff]
        %v9774 = vunpack.c.l.b16 %v9678
        %v9775 = vunpack.c.h.b16 %v9678
        %v9776 = vunpack.c.l.b16 %v9679
        %v9777 = vunpack.c.h.b16 %v9679
        %v9778 = vunpack.c.l.b16 %v9680
        %v9779 = vunpack.c.h.b16 %v9680
        %v9780 = vunpack.c.l.b16 %v9681
        %v9781 = vunpack.c.h.b16 %v9681
        %v9782 = vunpack.c.l.b16 %v9682
        %v9783 = vunpack.c.h.b16 %v9682
        %v9784 = vunpack.c.l.b16 %v9683
        %v9785 = vunpack.c.h.b16 %v9683
        %v9786 = vunpack.c.l.b16 %v9684
        %v9787 = vunpack.c.h.b16 %v9684
        %v9788 = vunpack.c.l.b16 %v9685
        %v9789 = vunpack.c.h.b16 %v9685
        %v9790 = vunpack.c.l.b16 %v9686
        %v9791 = vunpack.c.h.b16 %v9686
        %v9792 = vunpack.c.l.b16 %v9687
        %v9793 = vunpack.c.h.b16 %v9687
        %v9794 = vunpack.c.l.b16 %v9688
        %v9795 = vunpack.c.h.b16 %v9688
        %v9796 = vunpack.c.l.b16 %v9689
        %v9797 = vunpack.c.h.b16 %v9689
        %v9798 = vunpack.c.l.b16 %v9690
        %v9799 = vunpack.c.h.b16 %v9690
        %v9800 = vunpack.c.l.b16 %v9691
        %v9801 = vunpack.c.h.b16 %v9691
        %v9802 = vunpack.c.l.b16 %v9692
        %v9803 = vunpack.c.h.b16 %v9692
        %v9804 = vunpack.c.l.b16 %v9693
        %v9805 = vunpack.c.h.b16 %v9693
        %v9806 = vunpack.c.l.b16 %v9694
        %v9807 = vunpack.c.h.b16 %v9694
        %v9808 = vunpack.c.l.b16 %v9695
        %v9809 = vunpack.c.h.b16 %v9695
        %v9810 = vunpack.c.l.b16 %v9696
        %v9811 = vunpack.c.h.b16 %v9696
        %v9812 = vunpack.c.l.b16 %v9697
        %v9813 = vunpack.c.h.b16 %v9697
        %v9814 = vunpack.c.l.b16 %v9698
        %v9815 = vunpack.c.h.b16 %v9698
        %v9816 = vunpack.c.l.b16 %v9699
        %v9817 = vunpack.c.h.b16 %v9699
        %v9818 = vunpack.c.l.b16 %v9700
        %v9819 = vunpack.c.h.b16 %v9700
        %v9820 = vunpack.c.l.b16 %v9701
        %v9821 = vunpack.c.h.b16 %v9701
        %v9822 = vunpack.c.l.b16 %v9702
        %v9823 = vunpack.c.h.b16 %v9702
        %v9824 = vunpack.c.l.b16 %v9703
        %v9825 = vunpack.c.h.b16 %v9703
        %v9826 = vunpack.c.l.b16 %v9704
        %v9827 = vunpack.c.h.b16 %v9704
        %v9828 = vunpack.c.l.b16 %v9705
        %v9829 = vunpack.c.h.b16 %v9705
        %v9830 = vunpack.c.l.b16 %v9706
        %v9831 = vunpack.c.h.b16 %v9706
        %v9832 = vunpack.c.l.b16 %v9707
        %v9833 = vunpack.c.h.b16 %v9707
        %v9834 = vunpack.c.l.b16 %v9708
        %v9835 = vunpack.c.h.b16 %v9708
        %v9836 = vunpack.c.l.b16 %v9709
        %v9837 = vunpack.c.h.b16 %v9709
        %v9838 = vunpack.c.l.b16 %v9710
        %v9839 = vunpack.c.h.b16 %v9710
        %v9840 = vunpack.c.l.b16 %v9711
        %v9841 = vunpack.c.h.b16 %v9711
        %v9842 = vunpack.c.l.b16 %v9712
        %v9843 = vunpack.c.h.b16 %v9712
        %v9844 = vunpack.c.l.b16 %v9713
        %v9845 = vunpack.c.h.b16 %v9713
        %v9846 = vunpack.c.l.b16 %v9714
        %v9847 = vunpack.c.h.b16 %v9714
        %v9848 = vunpack.c.l.b16 %v9715
        %v9849 = vunpack.c.h.b16 %v9715
        %v9850 = vunpack.c.l.b16 %v9716
        %v9851 = vunpack.c.h.b16 %v9716
        %v9852 = vunpack.c.l.b16 %v9717
        %v9853 = vunpack.c.h.b16 %v9717
        %v9854 = vunpack.c.l.b16 %v9718
        %v9855 = vunpack.c.h.b16 %v9718
        %v9856 = vunpack.c.l.b16 %v9719
        %v9857 = vunpack.c.h.b16 %v9719
        %v9858 = vunpack.c.l.b16 %v9720
        %v9859 = vunpack.c.h.b16 %v9720
        %v9860 = vunpack.c.l.b16 %v9721
        %v9861 = vunpack.c.h.b16 %v9721
        %v9862 = vunpack.c.l.b16 %v9722
        %v9863 = vunpack.c.h.b16 %v9722
        %v9864 = vunpack.c.l.b16 %v9723
        %v9865 = vunpack.c.h.b16 %v9723
        %v9866 = vunpack.c.l.b16 %v9724
        %v9867 = vunpack.c.h.b16 %v9724
        %v9868 = vunpack.c.l.b16 %v9725
        %v9869 = vunpack.c.h.b16 %v9725
        %v9870 = vpack.c.b16 %v9780, %v9774
        %v9871 = vpack.c.b16 %v9781, %v9775
        %v9872 = vpack.c.b16 %v9782, %v9776
        %v9873 = vpack.c.b16 %v9783, %v9777
        %v9874 = vpack.c.b16 %v9784, %v9778
        %v9875 = vpack.c.b16 %v9785, %v9779
        %v9876 = vpack.c.b16 %v9792, %v9786
        %v9877 = vpack.c.b16 %v9793, %v9787
        %v9878 = vpack.c.b16 %v9794, %v9788
        %v9879 = vpack.c.b16 %v9795, %v9789
        %v9880 = vpack.c.b16 %v9796, %v9790
        %v9881 = vpack.c.b16 %v9797, %v9791
        %v9882 = vpack.c.b16 %v9804, %v9798
        %v9883 = vpack.c.b16 %v9805, %v9799
        %v9884 = vpack.c.b16 %v9806, %v9800
        %v9885 = vpack.c.b16 %v9807, %v9801
        %v9886 = vpack.c.b16 %v9808, %v9802
        %v9887 = vpack.c.b16 %v9809, %v9803
        %v9888 = vpack.c.b16 %v9816, %v9810
        %v9889 = vpack.c.b16 %v9817, %v9811
        %v9890 = vpack.c.b16 %v9818, %v9812
        %v9891 = vpack.c.b16 %v9819, %v9813
        %v9892 = vpack.c.b16 %v9820, %v9814
        %v9893 = vpack.c.b16 %v9821, %v9815
        %v9894 = vpack.c.b16 %v9828, %v9822
        %v9895 = vpack.c.b16 %v9829, %v9823
        %v9896 = vpack.c.b16 %v9830, %v9824
        %v9897 = vpack.c.b16 %v9831, %v9825
        %v9898 = vpack.c.b16 %v9832, %v9826
        %v9899 = vpack.c.b16 %v9833, %v9827
        %v9900 = vpack.c.b16 %v9840, %v9834
        %v9901 = vpack.c.b16 %v9841, %v9835
        %v9902 = vpack.c.b16 %v9842, %v9836
        %v9903 = vpack.c.b16 %v9843, %v9837
        %v9904 = vpack.c.b16 %v9844, %v9838
        %v9905 = vpack.c.b16 %v9845, %v9839
        %v9906 = vpack.c.b16 %v9852, %v9846
        %v9907 = vpack.c.b16 %v9853, %v9847
        %v9908 = vpack.c.b16 %v9854, %v9848
        %v9909 = vpack.c.b16 %v9855, %v9849
        %v9910 = vpack.c.b16 %v9856, %v9850
        %v9911 = vpack.c.b16 %v9857, %v9851
        %v9912 = vpack.c.b16 %v9864, %v9858
        %v9913 = vpack.c.b16 %v9865, %v9859
        %v9914 = vpack.c.b16 %v9866, %v9860
        %v9915 = vpack.c.b16 %v9867, %v9861
        %v9916 = vpack.c.b16 %v9868, %v9862
        %v9917 = vpack.c.b16 %v9869, %v9863
        %9966 = vmatpush.bf16.msra.mxu0 %v9912
        %9967 = vmatpush.bf16.msra.mxu0 %v9906
        %9968 = vmatpush.bf16.msra.mxu0 %v9900
        %9969 = vmatpush.bf16.msra.mxu0 %v9894
        %9970 = vmatpush.bf16.msra.mxu0 %v9888
        %9971 = vmatpush.bf16.msra.mxu0 %v9882
        %9972 = vmatpush.bf16.msra.mxu0 %v9876
        %9973 = vmatpush.bf16.msra.mxu0 %v9870
        %9974 = vmatmul.bf16.gmra.mxu0 %v9677
        %v9975 = vpop.f32.mrf.mxu0
        %v9976 = vadd.f32 0.0, %v9975
        %v9977 = vpop.f32.mrf.mxu0
        %9978 = vdwg.mxu0
        %9979 = vmatpush.bf16.msra.mxu0 %v9913
        %9980 = vmatpush.bf16.msra.mxu0 %v9907
        %9981 = vmatpush.bf16.msra.mxu0 %v9901
        %9982 = vmatpush.bf16.msra.mxu0 %v9895
        %9983 = vmatpush.bf16.msra.mxu0 %v9889
        %9984 = vmatpush.bf16.msra.mxu0 %v9883
        %9985 = vmatpush.bf16.msra.mxu0 %v9877
        %9986 = vmatpush.bf16.msra.mxu0 %v9871
        %9987 = vmatmul.bf16.gmra.mxu0 %v9677
        %v9988 = vpop.f32.mrf.mxu0
        %v9989 = vadd.f32 0.0, %v9988
        %v9990 = vpop.f32.mrf.mxu0
        %9991 = vdwg.mxu0
        %9992 = vmatpush.bf16.msra.mxu0 %v9914
        %9993 = vmatpush.bf16.msra.mxu0 %v9908
        %9994 = vmatpush.bf16.msra.mxu0 %v9902
        %9995 = vmatpush.bf16.msra.mxu0 %v9896
        %9996 = vmatpush.bf16.msra.mxu0 %v9890
        %9997 = vmatpush.bf16.msra.mxu0 %v9884
        %9998 = vmatpush.bf16.msra.mxu0 %v9878
        %9999 = vmatpush.bf16.msra.mxu0 %v9872
        %10000 = vmatmul.bf16.gmra.mxu0 %v9677
        %v10001 = vpop.f32.mrf.mxu0
        %v10002 = vadd.f32 0.0, %v10001
        %v10003 = vpop.f32.mrf.mxu0
        %10004 = vdwg.mxu0
        %10005 = vmatpush.bf16.msra.mxu0 %v9915
        %10006 = vmatpush.bf16.msra.mxu0 %v9909
        %10007 = vmatpush.bf16.msra.mxu0 %v9903
        %10008 = vmatpush.bf16.msra.mxu0 %v9897
        %10009 = vmatpush.bf16.msra.mxu0 %v9891
        %10010 = vmatpush.bf16.msra.mxu0 %v9885
        %10011 = vmatpush.bf16.msra.mxu0 %v9879
        %10012 = vmatpush.bf16.msra.mxu0 %v9873
        %10013 = vmatmul.bf16.gmra.mxu0 %v9677
        %v10014 = vpop.f32.mrf.mxu0
        %v10015 = vadd.f32 0.0, %v10014
        %v10016 = vpop.f32.mrf.mxu0
        %10017 = vdwg.mxu0
        %10018 = vmatpush.bf16.msra.mxu0 %v9916
        %10019 = vmatpush.bf16.msra.mxu0 %v9910
        %10020 = vmatpush.bf16.msra.mxu0 %v9904
        %10021 = vmatpush.bf16.msra.mxu0 %v9898
        %10022 = vmatpush.bf16.msra.mxu0 %v9892
        %10023 = vmatpush.bf16.msra.mxu0 %v9886
        %10024 = vmatpush.bf16.msra.mxu0 %v9880
        %10025 = vmatpush.bf16.msra.mxu0 %v9874
        %10026 = vmatmul.bf16.gmra.mxu0 %v9677
        %v10027 = vpop.f32.mrf.mxu0
        %v10028 = vadd.f32 0.0, %v10027
        %v10029 = vpop.f32.mrf.mxu0
        %10030 = vdwg.mxu0
        %10031 = vmatpush.bf16.msra.mxu0 %v9917
        %10032 = vmatpush.bf16.msra.mxu0 %v9911
        %10033 = vmatpush.bf16.msra.mxu0 %v9905
        %10034 = vmatpush.bf16.msra.mxu0 %v9899
        %10035 = vmatpush.bf16.msra.mxu0 %v9893
        %10036 = vmatpush.bf16.msra.mxu0 %v9887
        %10037 = vmatpush.bf16.msra.mxu0 %v9881
        %10038 = vmatpush.bf16.msra.mxu0 %v9875
        %10039 = vmatmul.bf16.gmra.mxu0 %v9677
        %v10040 = vpop.f32.mrf.mxu0
        %v10041 = vadd.f32 0.0, %v10040
        %v10042 = vpop.f32.mrf.mxu0
        %10043 = vdwg.mxu0
        %v10044 = vadd.f32 %v9668, %v9976
        %v10045 = vadd.f32 %v9669, %v9989
        %v10046 = vadd.f32 %v9670, %v10002
        %v10047 = vadd.f32 %v9671, %v10015
        %v10048 = vadd.f32 %v9672, %v10028
        %v10049 = vadd.f32 %v9673, %v10041
        %s10050 = sadd.s32 %s7430, 56
        %s10051 = scalar_lea.vmem [#allocation3], %s10050
        %v10052 = vld [vmem:[%s10051] sm:$0xff]
        %v10053 = vpack.c.bf16 %v10052, %v10052
        %v10054 = vld [vmem:[%s433 + $0xa80] sm:$0xff]
        %v10055 = vld [vmem:[%s433 + $0xa88] sm:$0xff]
        %v10056 = vld [vmem:[%s433 + $0xa90] sm:$0xff]
        %v10057 = vld [vmem:[%s433 + $0xa98] sm:$0xff]
        %v10058 = vld [vmem:[%s433 + $0xaa0] sm:$0xff]
        %v10059 = vld [vmem:[%s433 + $0xaa8] sm:$0xff]
        %v10060 = vld [vmem:[%s433 + $0xab0] sm:$0xff]
        %v10061 = vld [vmem:[%s433 + $0xab8] sm:$0xff]
        %v10062 = vld [vmem:[%s433 + $0xac0] sm:$0xff]
        %v10063 = vld [vmem:[%s433 + $0xac8] sm:$0xff]
        %v10064 = vld [vmem:[%s433 + $0xad0] sm:$0xff]
        %v10065 = vld [vmem:[%s433 + $0xad8] sm:$0xff]
        %v10066 = vld [vmem:[%s433 + $0xae0] sm:$0xff]
        %v10067 = vld [vmem:[%s433 + $0xae8] sm:$0xff]
        %v10068 = vld [vmem:[%s433 + $0xaf0] sm:$0xff]
        %v10069 = vld [vmem:[%s433 + $0xaf8] sm:$0xff]
        %v10070 = vld [vmem:[%s433 + $0xb00] sm:$0xff]
        %v10071 = vld [vmem:[%s433 + $0xb08] sm:$0xff]
        %v10072 = vld [vmem:[%s433 + $0xb10] sm:$0xff]
        %v10073 = vld [vmem:[%s433 + $0xb18] sm:$0xff]
        %v10074 = vld [vmem:[%s433 + $0xb20] sm:$0xff]
        %v10075 = vld [vmem:[%s433 + $0xb28] sm:$0xff]
        %v10076 = vld [vmem:[%s433 + $0xb30] sm:$0xff]
        %v10077 = vld [vmem:[%s433 + $0xb38] sm:$0xff]
        %v10078 = vld [vmem:[%s433 + $0xb40] sm:$0xff]
        %v10079 = vld [vmem:[%s433 + $0xb48] sm:$0xff]
        %v10080 = vld [vmem:[%s433 + $0xb50] sm:$0xff]
        %v10081 = vld [vmem:[%s433 + $0xb58] sm:$0xff]
        %v10082 = vld [vmem:[%s433 + $0xb60] sm:$0xff]
        %v10083 = vld [vmem:[%s433 + $0xb68] sm:$0xff]
        %v10084 = vld [vmem:[%s433 + $0xb70] sm:$0xff]
        %v10085 = vld [vmem:[%s433 + $0xb78] sm:$0xff]
        %v10086 = vld [vmem:[%s433 + $0xb80] sm:$0xff]
        %v10087 = vld [vmem:[%s433 + $0xb88] sm:$0xff]
        %v10088 = vld [vmem:[%s433 + $0xb90] sm:$0xff]
        %v10089 = vld [vmem:[%s433 + $0xb98] sm:$0xff]
        %v10090 = vld [vmem:[%s433 + $0xba0] sm:$0xff]
        %v10091 = vld [vmem:[%s433 + $0xba8] sm:$0xff]
        %v10092 = vld [vmem:[%s433 + $0xbb0] sm:$0xff]
        %v10093 = vld [vmem:[%s433 + $0xbb8] sm:$0xff]
        %v10094 = vld [vmem:[%s433 + $0xbc0] sm:$0xff]
        %v10095 = vld [vmem:[%s433 + $0xbc8] sm:$0xff]
        %v10096 = vld [vmem:[%s433 + $0xbd0] sm:$0xff]
        %v10097 = vld [vmem:[%s433 + $0xbd8] sm:$0xff]
        %v10098 = vld [vmem:[%s433 + $0xbe0] sm:$0xff]
        %v10099 = vld [vmem:[%s433 + $0xbe8] sm:$0xff]
        %v10100 = vld [vmem:[%s433 + $0xbf0] sm:$0xff]
        %v10101 = vld [vmem:[%s433 + $0xbf8] sm:$0xff]
        %v10150 = vunpack.c.l.b16 %v10054
        %v10151 = vunpack.c.h.b16 %v10054
        %v10152 = vunpack.c.l.b16 %v10055
        %v10153 = vunpack.c.h.b16 %v10055
        %v10154 = vunpack.c.l.b16 %v10056
        %v10155 = vunpack.c.h.b16 %v10056
        %v10156 = vunpack.c.l.b16 %v10057
        %v10157 = vunpack.c.h.b16 %v10057
        %v10158 = vunpack.c.l.b16 %v10058
        %v10159 = vunpack.c.h.b16 %v10058
        %v10160 = vunpack.c.l.b16 %v10059
        %v10161 = vunpack.c.h.b16 %v10059
        %v10162 = vunpack.c.l.b16 %v10060
        %v10163 = vunpack.c.h.b16 %v10060
        %v10164 = vunpack.c.l.b16 %v10061
        %v10165 = vunpack.c.h.b16 %v10061
        %v10166 = vunpack.c.l.b16 %v10062
        %v10167 = vunpack.c.h.b16 %v10062
        %v10168 = vunpack.c.l.b16 %v10063
        %v10169 = vunpack.c.h.b16 %v10063
        %v10170 = vunpack.c.l.b16 %v10064
        %v10171 = vunpack.c.h.b16 %v10064
        %v10172 = vunpack.c.l.b16 %v10065
        %v10173 = vunpack.c.h.b16 %v10065
        %v10174 = vunpack.c.l.b16 %v10066
        %v10175 = vunpack.c.h.b16 %v10066
        %v10176 = vunpack.c.l.b16 %v10067
        %v10177 = vunpack.c.h.b16 %v10067
        %v10178 = vunpack.c.l.b16 %v10068
        %v10179 = vunpack.c.h.b16 %v10068
        %v10180 = vunpack.c.l.b16 %v10069
        %v10181 = vunpack.c.h.b16 %v10069
        %v10182 = vunpack.c.l.b16 %v10070
        %v10183 = vunpack.c.h.b16 %v10070
        %v10184 = vunpack.c.l.b16 %v10071
        %v10185 = vunpack.c.h.b16 %v10071
        %v10186 = vunpack.c.l.b16 %v10072
        %v10187 = vunpack.c.h.b16 %v10072
        %v10188 = vunpack.c.l.b16 %v10073
        %v10189 = vunpack.c.h.b16 %v10073
        %v10190 = vunpack.c.l.b16 %v10074
        %v10191 = vunpack.c.h.b16 %v10074
        %v10192 = vunpack.c.l.b16 %v10075
        %v10193 = vunpack.c.h.b16 %v10075
        %v10194 = vunpack.c.l.b16 %v10076
        %v10195 = vunpack.c.h.b16 %v10076
        %v10196 = vunpack.c.l.b16 %v10077
        %v10197 = vunpack.c.h.b16 %v10077
        %v10198 = vunpack.c.l.b16 %v10078
        %v10199 = vunpack.c.h.b16 %v10078
        %v10200 = vunpack.c.l.b16 %v10079
        %v10201 = vunpack.c.h.b16 %v10079
        %v10202 = vunpack.c.l.b16 %v10080
        %v10203 = vunpack.c.h.b16 %v10080
        %v10204 = vunpack.c.l.b16 %v10081
        %v10205 = vunpack.c.h.b16 %v10081
        %v10206 = vunpack.c.l.b16 %v10082
        %v10207 = vunpack.c.h.b16 %v10082
        %v10208 = vunpack.c.l.b16 %v10083
        %v10209 = vunpack.c.h.b16 %v10083
        %v10210 = vunpack.c.l.b16 %v10084
        %v10211 = vunpack.c.h.b16 %v10084
        %v10212 = vunpack.c.l.b16 %v10085
        %v10213 = vunpack.c.h.b16 %v10085
        %v10214 = vunpack.c.l.b16 %v10086
        %v10215 = vunpack.c.h.b16 %v10086
        %v10216 = vunpack.c.l.b16 %v10087
        %v10217 = vunpack.c.h.b16 %v10087
        %v10218 = vunpack.c.l.b16 %v10088
        %v10219 = vunpack.c.h.b16 %v10088
        %v10220 = vunpack.c.l.b16 %v10089
        %v10221 = vunpack.c.h.b16 %v10089
        %v10222 = vunpack.c.l.b16 %v10090
        %v10223 = vunpack.c.h.b16 %v10090
        %v10224 = vunpack.c.l.b16 %v10091
        %v10225 = vunpack.c.h.b16 %v10091
        %v10226 = vunpack.c.l.b16 %v10092
        %v10227 = vunpack.c.h.b16 %v10092
        %v10228 = vunpack.c.l.b16 %v10093
        %v10229 = vunpack.c.h.b16 %v10093
        %v10230 = vunpack.c.l.b16 %v10094
        %v10231 = vunpack.c.h.b16 %v10094
        %v10232 = vunpack.c.l.b16 %v10095
        %v10233 = vunpack.c.h.b16 %v10095
        %v10234 = vunpack.c.l.b16 %v10096
        %v10235 = vunpack.c.h.b16 %v10096
        %v10236 = vunpack.c.l.b16 %v10097
        %v10237 = vunpack.c.h.b16 %v10097
        %v10238 = vunpack.c.l.b16 %v10098
        %v10239 = vunpack.c.h.b16 %v10098
        %v10240 = vunpack.c.l.b16 %v10099
        %v10241 = vunpack.c.h.b16 %v10099
        %v10242 = vunpack.c.l.b16 %v10100
        %v10243 = vunpack.c.h.b16 %v10100
        %v10244 = vunpack.c.l.b16 %v10101
        %v10245 = vunpack.c.h.b16 %v10101
        %v10246 = vpack.c.b16 %v10156, %v10150
        %v10247 = vpack.c.b16 %v10157, %v10151
        %v10248 = vpack.c.b16 %v10158, %v10152
        %v10249 = vpack.c.b16 %v10159, %v10153
        %v10250 = vpack.c.b16 %v10160, %v10154
        %v10251 = vpack.c.b16 %v10161, %v10155
        %v10252 = vpack.c.b16 %v10168, %v10162
        %v10253 = vpack.c.b16 %v10169, %v10163
        %v10254 = vpack.c.b16 %v10170, %v10164
        %v10255 = vpack.c.b16 %v10171, %v10165
        %v10256 = vpack.c.b16 %v10172, %v10166
        %v10257 = vpack.c.b16 %v10173, %v10167
        %v10258 = vpack.c.b16 %v10180, %v10174
        %v10259 = vpack.c.b16 %v10181, %v10175
        %v10260 = vpack.c.b16 %v10182, %v10176
        %v10261 = vpack.c.b16 %v10183, %v10177
        %v10262 = vpack.c.b16 %v10184, %v10178
        %v10263 = vpack.c.b16 %v10185, %v10179
        %v10264 = vpack.c.b16 %v10192, %v10186
        %v10265 = vpack.c.b16 %v10193, %v10187
        %v10266 = vpack.c.b16 %v10194, %v10188
        %v10267 = vpack.c.b16 %v10195, %v10189
        %v10268 = vpack.c.b16 %v10196, %v10190
        %v10269 = vpack.c.b16 %v10197, %v10191
        %v10270 = vpack.c.b16 %v10204, %v10198
        %v10271 = vpack.c.b16 %v10205, %v10199
        %v10272 = vpack.c.b16 %v10206, %v10200
        %v10273 = vpack.c.b16 %v10207, %v10201
        %v10274 = vpack.c.b16 %v10208, %v10202
        %v10275 = vpack.c.b16 %v10209, %v10203
        %v10276 = vpack.c.b16 %v10216, %v10210
        %v10277 = vpack.c.b16 %v10217, %v10211
        %v10278 = vpack.c.b16 %v10218, %v10212
        %v10279 = vpack.c.b16 %v10219, %v10213
        %v10280 = vpack.c.b16 %v10220, %v10214
        %v10281 = vpack.c.b16 %v10221, %v10215
        %v10282 = vpack.c.b16 %v10228, %v10222
        %v10283 = vpack.c.b16 %v10229, %v10223
        %v10284 = vpack.c.b16 %v10230, %v10224
        %v10285 = vpack.c.b16 %v10231, %v10225
        %v10286 = vpack.c.b16 %v10232, %v10226
        %v10287 = vpack.c.b16 %v10233, %v10227
        %v10288 = vpack.c.b16 %v10240, %v10234
        %v10289 = vpack.c.b16 %v10241, %v10235
        %v10290 = vpack.c.b16 %v10242, %v10236
        %v10291 = vpack.c.b16 %v10243, %v10237
        %v10292 = vpack.c.b16 %v10244, %v10238
        %v10293 = vpack.c.b16 %v10245, %v10239
        %10342 = vmatpush.bf16.msra.mxu0 %v10288
        %10343 = vmatpush.bf16.msra.mxu0 %v10282
        %10344 = vmatpush.bf16.msra.mxu0 %v10276
        %10345 = vmatpush.bf16.msra.mxu0 %v10270
        %10346 = vmatpush.bf16.msra.mxu0 %v10264
        %10347 = vmatpush.bf16.msra.mxu0 %v10258
        %10348 = vmatpush.bf16.msra.mxu0 %v10252
        %10349 = vmatpush.bf16.msra.mxu0 %v10246
        %10350 = vmatmul.bf16.gmra.mxu0 %v10053
        %v10351 = vpop.f32.mrf.mxu0
        %v10352 = vadd.f32 0.0, %v10351
        %v10353 = vpop.f32.mrf.mxu0
        %10354 = vdwg.mxu0
        %10355 = vmatpush.bf16.msra.mxu0 %v10289
        %10356 = vmatpush.bf16.msra.mxu0 %v10283
        %10357 = vmatpush.bf16.msra.mxu0 %v10277
        %10358 = vmatpush.bf16.msra.mxu0 %v10271
        %10359 = vmatpush.bf16.msra.mxu0 %v10265
        %10360 = vmatpush.bf16.msra.mxu0 %v10259
        %10361 = vmatpush.bf16.msra.mxu0 %v10253
        %10362 = vmatpush.bf16.msra.mxu0 %v10247
        %10363 = vmatmul.bf16.gmra.mxu0 %v10053
        %v10364 = vpop.f32.mrf.mxu0
        %v10365 = vadd.f32 0.0, %v10364
        %v10366 = vpop.f32.mrf.mxu0
        %10367 = vdwg.mxu0
        %10368 = vmatpush.bf16.msra.mxu0 %v10290
        %10369 = vmatpush.bf16.msra.mxu0 %v10284
        %10370 = vmatpush.bf16.msra.mxu0 %v10278
        %10371 = vmatpush.bf16.msra.mxu0 %v10272
        %10372 = vmatpush.bf16.msra.mxu0 %v10266
        %10373 = vmatpush.bf16.msra.mxu0 %v10260
        %10374 = vmatpush.bf16.msra.mxu0 %v10254
        %10375 = vmatpush.bf16.msra.mxu0 %v10248
        %10376 = vmatmul.bf16.gmra.mxu0 %v10053
        %v10377 = vpop.f32.mrf.mxu0
        %v10378 = vadd.f32 0.0, %v10377
        %v10379 = vpop.f32.mrf.mxu0
        %10380 = vdwg.mxu0
        %10381 = vmatpush.bf16.msra.mxu0 %v10291
        %10382 = vmatpush.bf16.msra.mxu0 %v10285
        %10383 = vmatpush.bf16.msra.mxu0 %v10279
        %10384 = vmatpush.bf16.msra.mxu0 %v10273
        %10385 = vmatpush.bf16.msra.mxu0 %v10267
        %10386 = vmatpush.bf16.msra.mxu0 %v10261
        %10387 = vmatpush.bf16.msra.mxu0 %v10255
        %10388 = vmatpush.bf16.msra.mxu0 %v10249
        %10389 = vmatmul.bf16.gmra.mxu0 %v10053
        %v10390 = vpop.f32.mrf.mxu0
        %v10391 = vadd.f32 0.0, %v10390
        %v10392 = vpop.f32.mrf.mxu0
        %10393 = vdwg.mxu0
        %10394 = vmatpush.bf16.msra.mxu0 %v10292
        %10395 = vmatpush.bf16.msra.mxu0 %v10286
        %10396 = vmatpush.bf16.msra.mxu0 %v10280
        %10397 = vmatpush.bf16.msra.mxu0 %v10274
        %10398 = vmatpush.bf16.msra.mxu0 %v10268
        %10399 = vmatpush.bf16.msra.mxu0 %v10262
        %10400 = vmatpush.bf16.msra.mxu0 %v10256
        %10401 = vmatpush.bf16.msra.mxu0 %v10250
        %10402 = vmatmul.bf16.gmra.mxu0 %v10053
        %v10403 = vpop.f32.mrf.mxu0
        %v10404 = vadd.f32 0.0, %v10403
        %v10405 = vpop.f32.mrf.mxu0
        %10406 = vdwg.mxu0
        %10407 = vmatpush.bf16.msra.mxu0 %v10293
        %10408 = vmatpush.bf16.msra.mxu0 %v10287
        %10409 = vmatpush.bf16.msra.mxu0 %v10281
        %10410 = vmatpush.bf16.msra.mxu0 %v10275
        %10411 = vmatpush.bf16.msra.mxu0 %v10269
        %10412 = vmatpush.bf16.msra.mxu0 %v10263
        %10413 = vmatpush.bf16.msra.mxu0 %v10257
        %10414 = vmatpush.bf16.msra.mxu0 %v10251
        %10415 = vmatmul.bf16.gmra.mxu0 %v10053
        %v10416 = vpop.f32.mrf.mxu0
        %v10417 = vadd.f32 0.0, %v10416
        %v10418 = vpop.f32.mrf.mxu0
        %10419 = vdwg.mxu0
        %v10420 = vadd.f32 %v10044, %v10352
        %v10421 = vadd.f32 %v10045, %v10365
        %v10422 = vadd.f32 %v10046, %v10378
        %v10423 = vadd.f32 %v10047, %v10391
        %v10424 = vadd.f32 %v10048, %v10404
        %v10425 = vadd.f32 %v10049, %v10417
        %s10426 = sadd.s32 %s7430, 64
        %s10427 = scalar_lea.vmem [#allocation3], %s10426
        %v10428 = vld [vmem:[%s10427] sm:$0xff]
        %v10429 = vpack.c.bf16 %v10428, %v10428
        %v10430 = vld [vmem:[%s433 + $0xc00] sm:$0xff]
        %v10431 = vld [vmem:[%s433 + $0xc08] sm:$0xff]
        %v10432 = vld [vmem:[%s433 + $0xc10] sm:$0xff]
        %v10433 = vld [vmem:[%s433 + $0xc18] sm:$0xff]
        %v10434 = vld [vmem:[%s433 + $0xc20] sm:$0xff]
        %v10435 = vld [vmem:[%s433 + $0xc28] sm:$0xff]
        %v10436 = vld [vmem:[%s433 + $0xc30] sm:$0xff]
        %v10437 = vld [vmem:[%s433 + $0xc38] sm:$0xff]
        %v10438 = vld [vmem:[%s433 + $0xc40] sm:$0xff]
        %v10439 = vld [vmem:[%s433 + $0xc48] sm:$0xff]
        %v10440 = vld [vmem:[%s433 + $0xc50] sm:$0xff]
        %v10441 = vld [vmem:[%s433 + $0xc58] sm:$0xff]
        %v10442 = vld [vmem:[%s433 + $0xc60] sm:$0xff]
        %v10443 = vld [vmem:[%s433 + $0xc68] sm:$0xff]
        %v10444 = vld [vmem:[%s433 + $0xc70] sm:$0xff]
        %v10445 = vld [vmem:[%s433 + $0xc78] sm:$0xff]
        %v10446 = vld [vmem:[%s433 + $0xc80] sm:$0xff]
        %v10447 = vld [vmem:[%s433 + $0xc88] sm:$0xff]
        %v10448 = vld [vmem:[%s433 + $0xc90] sm:$0xff]
        %v10449 = vld [vmem:[%s433 + $0xc98] sm:$0xff]
        %v10450 = vld [vmem:[%s433 + $0xca0] sm:$0xff]
        %v10451 = vld [vmem:[%s433 + $0xca8] sm:$0xff]
        %v10452 = vld [vmem:[%s433 + $0xcb0] sm:$0xff]
        %v10453 = vld [vmem:[%s433 + $0xcb8] sm:$0xff]
        %v10454 = vld [vmem:[%s433 + $0xcc0] sm:$0xff]
        %v10455 = vld [vmem:[%s433 + $0xcc8] sm:$0xff]
        %v10456 = vld [vmem:[%s433 + $0xcd0] sm:$0xff]
        %v10457 = vld [vmem:[%s433 + $0xcd8] sm:$0xff]
        %v10458 = vld [vmem:[%s433 + $0xce0] sm:$0xff]
        %v10459 = vld [vmem:[%s433 + $0xce8] sm:$0xff]
        %v10460 = vld [vmem:[%s433 + $0xcf0] sm:$0xff]
        %v10461 = vld [vmem:[%s433 + $0xcf8] sm:$0xff]
        %v10462 = vld [vmem:[%s433 + $0xd00] sm:$0xff]
        %v10463 = vld [vmem:[%s433 + $0xd08] sm:$0xff]
        %v10464 = vld [vmem:[%s433 + $0xd10] sm:$0xff]
        %v10465 = vld [vmem:[%s433 + $0xd18] sm:$0xff]
        %v10466 = vld [vmem:[%s433 + $0xd20] sm:$0xff]
        %v10467 = vld [vmem:[%s433 + $0xd28] sm:$0xff]
        %v10468 = vld [vmem:[%s433 + $0xd30] sm:$0xff]
        %v10469 = vld [vmem:[%s433 + $0xd38] sm:$0xff]
        %v10470 = vld [vmem:[%s433 + $0xd40] sm:$0xff]
        %v10471 = vld [vmem:[%s433 + $0xd48] sm:$0xff]
        %v10472 = vld [vmem:[%s433 + $0xd50] sm:$0xff]
        %v10473 = vld [vmem:[%s433 + $0xd58] sm:$0xff]
        %v10474 = vld [vmem:[%s433 + $0xd60] sm:$0xff]
        %v10475 = vld [vmem:[%s433 + $0xd68] sm:$0xff]
        %v10476 = vld [vmem:[%s433 + $0xd70] sm:$0xff]
        %v10477 = vld [vmem:[%s433 + $0xd78] sm:$0xff]
        %v10526 = vunpack.c.l.b16 %v10430
        %v10527 = vunpack.c.h.b16 %v10430
        %v10528 = vunpack.c.l.b16 %v10431
        %v10529 = vunpack.c.h.b16 %v10431
        %v10530 = vunpack.c.l.b16 %v10432
        %v10531 = vunpack.c.h.b16 %v10432
        %v10532 = vunpack.c.l.b16 %v10433
        %v10533 = vunpack.c.h.b16 %v10433
        %v10534 = vunpack.c.l.b16 %v10434
        %v10535 = vunpack.c.h.b16 %v10434
        %v10536 = vunpack.c.l.b16 %v10435
        %v10537 = vunpack.c.h.b16 %v10435
        %v10538 = vunpack.c.l.b16 %v10436
        %v10539 = vunpack.c.h.b16 %v10436
        %v10540 = vunpack.c.l.b16 %v10437
        %v10541 = vunpack.c.h.b16 %v10437
        %v10542 = vunpack.c.l.b16 %v10438
        %v10543 = vunpack.c.h.b16 %v10438
        %v10544 = vunpack.c.l.b16 %v10439
        %v10545 = vunpack.c.h.b16 %v10439
        %v10546 = vunpack.c.l.b16 %v10440
        %v10547 = vunpack.c.h.b16 %v10440
        %v10548 = vunpack.c.l.b16 %v10441
        %v10549 = vunpack.c.h.b16 %v10441
        %v10550 = vunpack.c.l.b16 %v10442
        %v10551 = vunpack.c.h.b16 %v10442
        %v10552 = vunpack.c.l.b16 %v10443
        %v10553 = vunpack.c.h.b16 %v10443
        %v10554 = vunpack.c.l.b16 %v10444
        %v10555 = vunpack.c.h.b16 %v10444
        %v10556 = vunpack.c.l.b16 %v10445
        %v10557 = vunpack.c.h.b16 %v10445
        %v10558 = vunpack.c.l.b16 %v10446
        %v10559 = vunpack.c.h.b16 %v10446
        %v10560 = vunpack.c.l.b16 %v10447
        %v10561 = vunpack.c.h.b16 %v10447
        %v10562 = vunpack.c.l.b16 %v10448
        %v10563 = vunpack.c.h.b16 %v10448
        %v10564 = vunpack.c.l.b16 %v10449
        %v10565 = vunpack.c.h.b16 %v10449
        %v10566 = vunpack.c.l.b16 %v10450
        %v10567 = vunpack.c.h.b16 %v10450
        %v10568 = vunpack.c.l.b16 %v10451
        %v10569 = vunpack.c.h.b16 %v10451
        %v10570 = vunpack.c.l.b16 %v10452
        %v10571 = vunpack.c.h.b16 %v10452
        %v10572 = vunpack.c.l.b16 %v10453
        %v10573 = vunpack.c.h.b16 %v10453
        %v10574 = vunpack.c.l.b16 %v10454
        %v10575 = vunpack.c.h.b16 %v10454
        %v10576 = vunpack.c.l.b16 %v10455
        %v10577 = vunpack.c.h.b16 %v10455
        %v10578 = vunpack.c.l.b16 %v10456
        %v10579 = vunpack.c.h.b16 %v10456
        %v10580 = vunpack.c.l.b16 %v10457
        %v10581 = vunpack.c.h.b16 %v10457
        %v10582 = vunpack.c.l.b16 %v10458
        %v10583 = vunpack.c.h.b16 %v10458
        %v10584 = vunpack.c.l.b16 %v10459
        %v10585 = vunpack.c.h.b16 %v10459
        %v10586 = vunpack.c.l.b16 %v10460
        %v10587 = vunpack.c.h.b16 %v10460
        %v10588 = vunpack.c.l.b16 %v10461
        %v10589 = vunpack.c.h.b16 %v10461
        %v10590 = vunpack.c.l.b16 %v10462
        %v10591 = vunpack.c.h.b16 %v10462
        %v10592 = vunpack.c.l.b16 %v10463
        %v10593 = vunpack.c.h.b16 %v10463
        %v10594 = vunpack.c.l.b16 %v10464
        %v10595 = vunpack.c.h.b16 %v10464
        %v10596 = vunpack.c.l.b16 %v10465
        %v10597 = vunpack.c.h.b16 %v10465
        %v10598 = vunpack.c.l.b16 %v10466
        %v10599 = vunpack.c.h.b16 %v10466
        %v10600 = vunpack.c.l.b16 %v10467
        %v10601 = vunpack.c.h.b16 %v10467
        %v10602 = vunpack.c.l.b16 %v10468
        %v10603 = vunpack.c.h.b16 %v10468
        %v10604 = vunpack.c.l.b16 %v10469
        %v10605 = vunpack.c.h.b16 %v10469
        %v10606 = vunpack.c.l.b16 %v10470
        %v10607 = vunpack.c.h.b16 %v10470
        %v10608 = vunpack.c.l.b16 %v10471
        %v10609 = vunpack.c.h.b16 %v10471
        %v10610 = vunpack.c.l.b16 %v10472
        %v10611 = vunpack.c.h.b16 %v10472
        %v10612 = vunpack.c.l.b16 %v10473
        %v10613 = vunpack.c.h.b16 %v10473
        %v10614 = vunpack.c.l.b16 %v10474
        %v10615 = vunpack.c.h.b16 %v10474
        %v10616 = vunpack.c.l.b16 %v10475
        %v10617 = vunpack.c.h.b16 %v10475
        %v10618 = vunpack.c.l.b16 %v10476
        %v10619 = vunpack.c.h.b16 %v10476
        %v10620 = vunpack.c.l.b16 %v10477
        %v10621 = vunpack.c.h.b16 %v10477
        %v10622 = vpack.c.b16 %v10532, %v10526
        %v10623 = vpack.c.b16 %v10533, %v10527
        %v10624 = vpack.c.b16 %v10534, %v10528
        %v10625 = vpack.c.b16 %v10535, %v10529
        %v10626 = vpack.c.b16 %v10536, %v10530
        %v10627 = vpack.c.b16 %v10537, %v10531
        %v10628 = vpack.c.b16 %v10544, %v10538
        %v10629 = vpack.c.b16 %v10545, %v10539
        %v10630 = vpack.c.b16 %v10546, %v10540
        %v10631 = vpack.c.b16 %v10547, %v10541
        %v10632 = vpack.c.b16 %v10548, %v10542
        %v10633 = vpack.c.b16 %v10549, %v10543
        %v10634 = vpack.c.b16 %v10556, %v10550
        %v10635 = vpack.c.b16 %v10557, %v10551
        %v10636 = vpack.c.b16 %v10558, %v10552
        %v10637 = vpack.c.b16 %v10559, %v10553
        %v10638 = vpack.c.b16 %v10560, %v10554
        %v10639 = vpack.c.b16 %v10561, %v10555
        %v10640 = vpack.c.b16 %v10568, %v10562
        %v10641 = vpack.c.b16 %v10569, %v10563
        %v10642 = vpack.c.b16 %v10570, %v10564
        %v10643 = vpack.c.b16 %v10571, %v10565
        %v10644 = vpack.c.b16 %v10572, %v10566
        %v10645 = vpack.c.b16 %v10573, %v10567
        %v10646 = vpack.c.b16 %v10580, %v10574
        %v10647 = vpack.c.b16 %v10581, %v10575
        %v10648 = vpack.c.b16 %v10582, %v10576
        %v10649 = vpack.c.b16 %v10583, %v10577
        %v10650 = vpack.c.b16 %v10584, %v10578
        %v10651 = vpack.c.b16 %v10585, %v10579
        %v10652 = vpack.c.b16 %v10592, %v10586
        %v10653 = vpack.c.b16 %v10593, %v10587
        %v10654 = vpack.c.b16 %v10594, %v10588
        %v10655 = vpack.c.b16 %v10595, %v10589
        %v10656 = vpack.c.b16 %v10596, %v10590
        %v10657 = vpack.c.b16 %v10597, %v10591
        %v10658 = vpack.c.b16 %v10604, %v10598
        %v10659 = vpack.c.b16 %v10605, %v10599
        %v10660 = vpack.c.b16 %v10606, %v10600
        %v10661 = vpack.c.b16 %v10607, %v10601
        %v10662 = vpack.c.b16 %v10608, %v10602
        %v10663 = vpack.c.b16 %v10609, %v10603
        %v10664 = vpack.c.b16 %v10616, %v10610
        %v10665 = vpack.c.b16 %v10617, %v10611
        %v10666 = vpack.c.b16 %v10618, %v10612
        %v10667 = vpack.c.b16 %v10619, %v10613
        %v10668 = vpack.c.b16 %v10620, %v10614
        %v10669 = vpack.c.b16 %v10621, %v10615
        %10718 = vmatpush.bf16.msra.mxu0 %v10664
        %10719 = vmatpush.bf16.msra.mxu0 %v10658
        %10720 = vmatpush.bf16.msra.mxu0 %v10652
        %10721 = vmatpush.bf16.msra.mxu0 %v10646
        %10722 = vmatpush.bf16.msra.mxu0 %v10640
        %10723 = vmatpush.bf16.msra.mxu0 %v10634
        %10724 = vmatpush.bf16.msra.mxu0 %v10628
        %10725 = vmatpush.bf16.msra.mxu0 %v10622
        %10726 = vmatmul.bf16.gmra.mxu0 %v10429
        %v10727 = vpop.f32.mrf.mxu0
        %v10728 = vadd.f32 0.0, %v10727
        %v10729 = vpop.f32.mrf.mxu0
        %10730 = vdwg.mxu0
        %10731 = vmatpush.bf16.msra.mxu0 %v10665
        %10732 = vmatpush.bf16.msra.mxu0 %v10659
        %10733 = vmatpush.bf16.msra.mxu0 %v10653
        %10734 = vmatpush.bf16.msra.mxu0 %v10647
        %10735 = vmatpush.bf16.msra.mxu0 %v10641
        %10736 = vmatpush.bf16.msra.mxu0 %v10635
        %10737 = vmatpush.bf16.msra.mxu0 %v10629
        %10738 = vmatpush.bf16.msra.mxu0 %v10623
        %10739 = vmatmul.bf16.gmra.mxu0 %v10429
        %v10740 = vpop.f32.mrf.mxu0
        %v10741 = vadd.f32 0.0, %v10740
        %v10742 = vpop.f32.mrf.mxu0
        %10743 = vdwg.mxu0
        %10744 = vmatpush.bf16.msra.mxu0 %v10666
        %10745 = vmatpush.bf16.msra.mxu0 %v10660
        %10746 = vmatpush.bf16.msra.mxu0 %v10654
        %10747 = vmatpush.bf16.msra.mxu0 %v10648
        %10748 = vmatpush.bf16.msra.mxu0 %v10642
        %10749 = vmatpush.bf16.msra.mxu0 %v10636
        %10750 = vmatpush.bf16.msra.mxu0 %v10630
        %10751 = vmatpush.bf16.msra.mxu0 %v10624
        %10752 = vmatmul.bf16.gmra.mxu0 %v10429
        %v10753 = vpop.f32.mrf.mxu0
        %v10754 = vadd.f32 0.0, %v10753
        %v10755 = vpop.f32.mrf.mxu0
        %10756 = vdwg.mxu0
        %10757 = vmatpush.bf16.msra.mxu0 %v10667
        %10758 = vmatpush.bf16.msra.mxu0 %v10661
        %10759 = vmatpush.bf16.msra.mxu0 %v10655
        %10760 = vmatpush.bf16.msra.mxu0 %v10649
        %10761 = vmatpush.bf16.msra.mxu0 %v10643
        %10762 = vmatpush.bf16.msra.mxu0 %v10637
        %10763 = vmatpush.bf16.msra.mxu0 %v10631
        %10764 = vmatpush.bf16.msra.mxu0 %v10625
        %10765 = vmatmul.bf16.gmra.mxu0 %v10429
        %v10766 = vpop.f32.mrf.mxu0
        %v10767 = vadd.f32 0.0, %v10766
        %v10768 = vpop.f32.mrf.mxu0
        %10769 = vdwg.mxu0
        %10770 = vmatpush.bf16.msra.mxu0 %v10668
        %10771 = vmatpush.bf16.msra.mxu0 %v10662
        %10772 = vmatpush.bf16.msra.mxu0 %v10656
        %10773 = vmatpush.bf16.msra.mxu0 %v10650
        %10774 = vmatpush.bf16.msra.mxu0 %v10644
        %10775 = vmatpush.bf16.msra.mxu0 %v10638
        %10776 = vmatpush.bf16.msra.mxu0 %v10632
        %10777 = vmatpush.bf16.msra.mxu0 %v10626
        %10778 = vmatmul.bf16.gmra.mxu0 %v10429
        %v10779 = vpop.f32.mrf.mxu0
        %v10780 = vadd.f32 0.0, %v10779
        %v10781 = vpop.f32.mrf.mxu0
        %10782 = vdwg.mxu0
        %10783 = vmatpush.bf16.msra.mxu0 %v10669
        %10784 = vmatpush.bf16.msra.mxu0 %v10663
        %10785 = vmatpush.bf16.msra.mxu0 %v10657
        %10786 = vmatpush.bf16.msra.mxu0 %v10651
        %10787 = vmatpush.bf16.msra.mxu0 %v10645
        %10788 = vmatpush.bf16.msra.mxu0 %v10639
        %10789 = vmatpush.bf16.msra.mxu0 %v10633
        %10790 = vmatpush.bf16.msra.mxu0 %v10627
        %10791 = vmatmul.bf16.gmra.mxu0 %v10429
        %v10792 = vpop.f32.mrf.mxu0
        %v10793 = vadd.f32 0.0, %v10792
        %v10794 = vpop.f32.mrf.mxu0
        %10795 = vdwg.mxu0
        %v10796 = vadd.f32 %v10420, %v10728
        %v10797 = vadd.f32 %v10421, %v10741
        %v10798 = vadd.f32 %v10422, %v10754
        %v10799 = vadd.f32 %v10423, %v10767
        %v10800 = vadd.f32 %v10424, %v10780
        %v10801 = vadd.f32 %v10425, %v10793
        %v10802 = vld [vmem:[%s10] sm:$0xff]
        %v10803 = vld [vmem:[%s10 + $0x8] sm:$0xff]
        %v10804 = vld [vmem:[%s10 + $0x10] sm:$0xff]
        %v10805 = vld [vmem:[%s10 + $0x18] sm:$0xff]
        %v10806 = vld [vmem:[%s10 + $0x20] sm:$0xff]
        %v10807 = vld [vmem:[%s10 + $0x28] sm:$0xff]
        %v10808 = vadd.f32 %v10802, %v10796
        %v10809 = vadd.f32 %v10803, %v10797
        %v10810 = vadd.f32 %v10804, %v10798
        %v10811 = vadd.f32 %v10805, %v10799
        %v10812 = vadd.f32 %v10806, %v10800
        %v10813 = vadd.f32 %v10807, %v10801
        %10814 = vst [vmem:[%s10] sm:$0xff] %v10808
        %10815 = vst [vmem:[%s10 + $0x8] sm:$0xff] %v10809
        %10816 = vst [vmem:[%s10 + $0x10] sm:$0xff] %v10810
        %10817 = vst [vmem:[%s10 + $0x18] sm:$0xff] %v10811
        %10818 = vst [vmem:[%s10 + $0x20] sm:$0xff] %v10812
        %10819 = vst [vmem:[%s10 + $0x28] sm:$0xff] %v10813
        // Predicated region
        $region97: #{sudoku_forward.1} parent=59 // pred_check
          %p10820 = pneg %p253
        $region98: #{sudoku_forward.1} parent=59 // pred_check_branch
          %10822 = sbr.rel (%p10820) target = $region100
        $region99: #{sudoku_forward.1} parent=59 // pred_region
          _
        $region100: #{sudoku_forward.1} parent=59 // pred_fallthru
          _
        // Predicated region
        $region101: #{sudoku_forward.1} parent=59 // pred_check
          %p10823 = pneg %p253
        $region102: #{sudoku_forward.1} parent=59 // pred_check_branch
          %10825 = sbr.rel (%p10823) target = $region104
        $region103: #{sudoku_forward.1} parent=59 // pred_region
          _
        $region104: #{sudoku_forward.1} parent=59 // pred_fallthru
          _
      $region60: #{sudoku_forward.1} parent=5 // pred_fallthru
        _
      %p10826 = scmp.le.s32.totalorder 2, %s20
      // Predicated region
      $region105: #{sudoku_forward.1} parent=5 // pred_check
        %p10827 = pneg %p10826
      $region106: #{sudoku_forward.1} parent=5 // pred_check_branch
        %10829 = sbr.rel (%p10827) target = $region108
      $region107: #{sudoku_forward.1} parent=5 // pred_region
        %s10830 = ssub.s32 %s20, 2
      $region108: #{sudoku_forward.1} parent=5 // pred_fallthru
        _
    $region6: #{sudoku_forward.1} parent=1 // loop_footer
      %s24 = sadd.s32 1, %s20
    $region7: #{sudoku_forward.1} parent=1 // loop_footer_branch
      %19 = sbr.rel target = $region3
    $region8: #{sudoku_forward.1} parent=1 // loop_exit
      _
    %10831 = vsyncpa [#allocation5], 1
    %s10832 = scalar_lea.sflag [#allocation5], 1
    %10833 = vsyncpa %s10832, 1
    %10834 = vsyncpa [#allocation7], 1
    %10835 = vsyncpa [#allocation10], 1
    %10836 = vsyncpa [#allocation13], 1

</llo_original>
